<compile_context>
chip_gen: v5e
topology: v5e:2x2
jax: 0.10.0
libtpu: 0.0.40
codegen_flags: <defaults>
</compile_context>

<pallas_src>
import numpy as np
import jax
import jax.numpy as jnp
from jax import lax
from jax.experimental import pallas as pl
from jax.experimental.pallas import tpu as pltpu


def _silu(v):
    return v * jax.nn.sigmoid(v)


def _make_c3_kernel(H, W, c_):
    HW = H * W
    PAD = W + 1          # rows of zero padding before/after the activations

    def kernel(x_ref, w12_ref, b12_ref, wm1_ref, bm1_ref,
               wm2_ref, bm2_ref, w3_ref, b3_ref,
               out_ref, tp_ref, patch_ref):
        # Zero only the halo rows (cheap), every step: megacore-safe and the
        # interior HW rows are fully overwritten below anyway.
        zpad = jnp.zeros((PAD, c_), jnp.float32)
        tp_ref[0:PAD, :] = zpad
        tp_ref[PAD + HW:, :] = zpad

        x = x_ref[0]                                     # (HW, C1) bf16

        # cv1 & cv2 fused: 1x1 conv (+folded BN) + SiLU in one matmul
        ab = _silu(jnp.dot(x, w12_ref[...],
                           preferred_element_type=jnp.float32) + b12_ref[...])
        a = ab[:, :c_]                                   # cv1 output (f32)
        b = ab[:, c_:]                                   # cv2 output (f32)

        # Bottleneck.cv1: 1x1 conv + SiLU
        t = _silu(jnp.dot(a.astype(jnp.bfloat16), wm1_ref[...],
                          preferred_element_type=jnp.float32) + bm1_ref[...])
        tp_ref[PAD:PAD + HW, :] = t                      # place in padded buf

        # column validity masks for the left/right taps (lane-dense, built once)
        col = lax.broadcasted_iota(jnp.int32, (HW, c_), 0) % W
        mask_l = col >= 1
        mask_r = col <= W - 2

        # im2col: 9 shifted (+masked) windows packed side-by-side
        for j in range(9):
            ky, kx = j // 3, j % 3
            start = ky * W + kx                          # static offset
            win = tp_ref[start:start + HW, :]            # (HW, c_) f32
            if kx == 0:
                win = jnp.where(mask_l, win, 0.0)
            elif kx == 2:
                win = jnp.where(mask_r, win, 0.0)
            patch_ref[:, j * c_:(j + 1) * c_] = win.astype(jnp.bfloat16)

        # Bottleneck.cv2: single (HW, 9c_) @ (9c_, c_) matmul + SiLU
        u = _silu(jnp.dot(patch_ref[...], wm2_ref[...],
                          preferred_element_type=jnp.float32) + bm2_ref[...])

        y1 = a + u                                       # residual (shortcut)

        # cv3 on concat([y1, b]) along channels (output channels lane-padded)
        cat = jnp.concatenate(
            [y1.astype(jnp.bfloat16), b.astype(jnp.bfloat16)], axis=-1)
        out = _silu(jnp.dot(cat, w3_ref[...],
                            preferred_element_type=jnp.float32) + b3_ref[...])
        out_ref[0] = out.astype(out_ref.dtype)

    return kernel


def c3_forward(x_nchw, params):
    """Fused C3 forward. x_nchw: (N, C1, H, W) float32 -> (N, C2, H, W)."""
    N, C1, H, W = x_nchw.shape
    HW = H * W
    w12, b12 = params['w12'], params['b12']
    wm1, bm1 = params['wm1'], params['bm1']
    wm2, bm2 = params['wm2'], params['bm2']
    w3, b3 = params['w3'], params['b3']
    c_ = wm1.shape[0]
    c2p = w3.shape[1]                 # lane-padded output channels
    c2 = params['c2']                 # true output channels

    # NCHW -> (N, H*W, C), bf16 activations (f32 accumulation in-kernel)
    x = jnp.transpose(x_nchw, (0, 2, 3, 1)).reshape(N, HW, C1)
    x = x.astype(jnp.bfloat16)

    def full_spec(arr):
        nd = arr.ndim
        return pl.BlockSpec(arr.shape, lambda n, _nd=nd: (0,) * _nd)

    inputs = (x, w12, b12, wm1, bm1, wm2, bm2, w3, b3)
    in_specs = [pl.BlockSpec((1, HW, C1), lambda n: (n, 0, 0))] + \
               [full_spec(a) for a in inputs[1:]]

    flops = int(2 * N * HW * (C1 * 2 * c_ + c_ * c_ + 9 * c_ * c_
                              + 2 * c_ * c2p))
    transcendentals = int(N * HW * (4 * c_ + c2p))
    bytes_accessed = int(sum(a.size * a.dtype.itemsize for a in inputs)
                         + N * HW * c2p * 4)

    out = pl.pallas_call(
        _make_c3_kernel(H, W, c_),
        out_shape=jax.ShapeDtypeStruct((N, HW, c2p), jnp.float32),
        grid=(N,),
        in_specs=in_specs,
        out_specs=pl.BlockSpec((1, HW, c2p), lambda n: (n, 0, 0)),
        scratch_shapes=[pltpu.VMEM((HW + 2 * W + 2, c_), jnp.float32),
                        pltpu.VMEM((HW, 9 * c_), jnp.bfloat16)],
        compiler_params=pltpu.CompilerParams(
            dimension_semantics=("parallel",),
            vmem_limit_bytes=48 * 1024 * 1024),
        cost_estimate=pl.CostEstimate(flops=flops,
                                      transcendentals=transcendentals,
                                      bytes_accessed=bytes_accessed),
    )(*inputs)

    out = out[..., :c2]
    return jnp.transpose(out.reshape(N, H, W, c2), (0, 3, 1, 2))


# -------------------- parameter construction (deterministic) --------------------

def _conv_bn_fold(key, cin, cout, k):
    """Conv2d(cin, cout, k, bias=False) + BatchNorm2d(cout) in eval mode,
    folded into a single (weight, bias)."""
    kw, kg, kb, km, kv = jax.random.split(key, 5)
    w = jax.random.normal(kw, (cout, cin, k, k), jnp.float32) * 0.3
    gamma = jax.random.uniform(kg, (cout,), jnp.float32, 0.5, 1.5)
    beta = jax.random.normal(kb, (cout,), jnp.float32) * 0.1
    mean = jax.random.normal(km, (cout,), jnp.float32) * 0.1
    var = jax.random.uniform(kv, (cout,), jnp.float32, 0.5, 1.5)
    scale = gamma / jnp.sqrt(var + 1e-5)
    w_f = w * scale[:, None, None, None]           # (out, in, k, k)
    b_f = beta - mean * scale                      # (out,)
    return w_f, b_f


def make_c3_params(key, c1, c2, e=0.5):
    c_ = int(c2 * e)
    c2p = ((c2 + 127) // 128) * 128               # lane-dense output channels
    k1, k2, k3, k4, k5 = jax.random.split(key, 5)
    wf1, bf1 = _conv_bn_fold(k1, c1, c_, 1)        # cv1
    wf2, bf2 = _conv_bn_fold(k2, c1, c_, 1)        # cv2
    wf3, bf3 = _conv_bn_fold(k3, 2 * c_, c2, 1)    # cv3
    wfm1, bfm1 = _conv_bn_fold(k4, c_, c_, 1)      # m[0].cv1 (e=1.0)
    wfm2, bfm2 = _conv_bn_fold(k5, c_, c_, 3)      # m[0].cv2 (3x3)

    w1 = wf1[:, :, 0, 0].T                         # (c1, c_)
    w2 = wf2[:, :, 0, 0].T
    w12 = jnp.concatenate([w1, w2], axis=1)        # (c1, 2c_) fused cv1|cv2
    b12 = jnp.concatenate([bf1, bf2]).reshape(1, -1)

    wm1 = wfm1[:, :, 0, 0].T                       # (c_, c_)
    bm1 = bfm1.reshape(1, -1)
    # (out, in, ky, kx) -> (ky, kx, in, out) -> (9*c_, c_) for the im2col dot
    wm2 = jnp.transpose(wfm2, (2, 3, 1, 0)).reshape(9 * c_, c_)
    bm2 = bfm2.reshape(1, -1)

    w3 = wf3[:, :, 0, 0].T                         # (2c_, c2)
    w3p = jnp.zeros((2 * c_, c2p), jnp.float32).at[:, :c2].set(w3)
    b3p = jnp.zeros((1, c2p), jnp.float32).at[:, :c2].set(bf3.reshape(1, -1))

    bf16 = jnp.bfloat16
    return dict(
        w12=w12.astype(bf16), b12=b12,
        wm1=wm1.astype(bf16), bm1=bm1,
        wm2=wm2.astype(bf16), bm2=bm2,
        w3=w3p.astype(bf16), b3=b3p,
        c2=c2,
    )


# -------------------- pure-JAX reference (for verification) --------------------

def ref_c3(x_nchw, p):
    f32 = jnp.float32
    c_ = p['wm1'].shape[0]
    c2 = p['c2']
    x = jnp.transpose(x_nchw, (0, 2, 3, 1))
    x = x.astype(jnp.bfloat16).astype(f32)         # mirror the kernel's input cast

    w12 = p['w12'].astype(f32)
    wm1 = p['wm1'].astype(f32)
    wm2 = p['wm2'].astype(f32).reshape(3, 3, c_, c_)   # HWIO
    w3 = p['w3'].astype(f32)[:, :c2]
    b3 = p['b3'][:, :c2]

    def c1x1(v, w, b):
        return _silu(jnp.einsum('nhwc,cd->nhwd', v, w) + b.reshape(1, 1, 1, -1))

    ab = c1x1(x, w12, p['b12'])
    a, b = ab[..., :c_], ab[..., c_:]
    t = c1x1(a, wm1, p['bm1'])
    u = lax.conv_general_dilated(t, wm2, (1, 1), 'SAME',
                                 dimension_numbers=('NHWC', 'HWIO', 'NHWC'))
    u = _silu(u + p['bm2'].reshape(1, 1, 1, -1))
    y1 = a + u
    cat = jnp.concatenate([y1, b], axis=-1)
    out = c1x1(cat, w3, b3)
    return jnp.transpose(out, (0, 3, 1, 2))


if __name__ == "__main__":
    key = jax.random.PRNGKey(0)
    kx, kp = jax.random.split(key)

    N, C1, H, W = 2, 4, 16, 16
    C2 = 4
    x = jax.random.normal(kx, (N, C1, H, W), jnp.float32)
    params = make_c3_params(kp, C1, C2)

    out = jax.block_until_ready(c3_forward(x, params))
    expected = jax.block_until_ready(ref_c3(x, params))
    # bf16 inputs/weights with f32 accumulation -> loosened tolerance
    np.testing.assert_allclose(np.asarray(out), np.asarray(expected),
                               rtol=2e-2, atol=2e-2)
    assert out.shape == (N, C2, H, W)
    print("KERNEL_OK")
</pallas_src>

<mosaic_0001>
module attributes {stable_mosaic.version = 11 : i64} {
  func.func @kernel(%arg0: i32, %arg1: memref<1x256x4xbf16, #tpu.memory_space<vmem>>, %arg2: memref<4x4xbf16, #tpu.memory_space<vmem>>, %arg3: memref<1x4xf32, #tpu.memory_space<vmem>>, %arg4: memref<2x2xbf16, #tpu.memory_space<vmem>>, %arg5: memref<1x2xf32, #tpu.memory_space<vmem>>, %arg6: memref<18x2xbf16, #tpu.memory_space<vmem>>, %arg7: memref<1x2xf32, #tpu.memory_space<vmem>>, %arg8: memref<4x128xbf16, #tpu.memory_space<vmem>>, %arg9: memref<1x128xf32, #tpu.memory_space<vmem>>, %arg10: memref<1x256x128xf32, #tpu.memory_space<vmem>>, %arg11: memref<290x2xf32, #tpu.memory_space<vmem>>, %arg12: memref<256x18xbf16, #tpu.memory_space<vmem>>) attributes {dimension_semantics = [#tpu.dimension_semantics<parallel>], iteration_bounds = array<i64: 2>, scalar_prefetch = 0 : i64, scratch_operands = 2 : i64, tpu.core_type = #tpu.core_type<tc>, window_params = [{transform_indices = @transform_0, window_bounds = array<i64: 1, 256, 4>}, {pipeline_mode = #tpu.pipeline_mode<synchronous>, transform_indices = @transform_1, window_bounds = array<i64: 4, 4>}, {pipeline_mode = #tpu.pipeline_mode<synchronous>, transform_indices = @transform_2, window_bounds = array<i64: 1, 4>}, {pipeline_mode = #tpu.pipeline_mode<synchronous>, transform_indices = @transform_3, window_bounds = array<i64: 2, 2>}, {pipeline_mode = #tpu.pipeline_mode<synchronous>, transform_indices = @transform_4, window_bounds = array<i64: 1, 2>}, {pipeline_mode = #tpu.pipeline_mode<synchronous>, transform_indices = @transform_5, window_bounds = array<i64: 18, 2>}, {pipeline_mode = #tpu.pipeline_mode<synchronous>, transform_indices = @transform_6, window_bounds = array<i64: 1, 2>}, {pipeline_mode = #tpu.pipeline_mode<synchronous>, transform_indices = @transform_7, window_bounds = array<i64: 4, 128>}, {pipeline_mode = #tpu.pipeline_mode<synchronous>, transform_indices = @transform_8, window_bounds = array<i64: 1, 128>}, {transform_indices = @transform_9, window_bounds = array<i64: 1, 256, 128>}]} {
    %cst = arith.constant 0.000000e+00 : f32
    %0 = vector.broadcast %cst : f32 to vector<17x2xf32>
    %c0 = arith.constant 0 : index
    %c0_0 = arith.constant 0 : index
    %1 = vector.load %arg11[%c0, %c0_0] : memref<290x2xf32, #tpu.memory_space<vmem>>, vector<17x2xf32>
    tpu.vector_store %arg11[%c0, %c0_0], %0 {strides = array<i32>} : memref<290x2xf32, #tpu.memory_space<vmem>>, vector<17x2xf32>,
    %c273 = arith.constant 273 : index
    %c0_1 = arith.constant 0 : index
    %2 = vector.load %arg11[%c273, %c0_1] : memref<290x2xf32, #tpu.memory_space<vmem>>, vector<17x2xf32>
    tpu.vector_store %arg11[%c273, %c0_1], %0 {strides = array<i32>} : memref<290x2xf32, #tpu.memory_space<vmem>>, vector<17x2xf32>,
    %c0_2 = arith.constant 0 : index
    %c0_3 = arith.constant 0 : index
    %c0_4 = arith.constant 0 : index
    %3 = vector.load %arg1[%c0_2, %c0_3, %c0_4] : memref<1x256x4xbf16, #tpu.memory_space<vmem>>, vector<1x256x4xbf16>
    %4 = vector.shape_cast %3 : vector<1x256x4xbf16> to vector<256x4xbf16>
    %c0_5 = arith.constant 0 : index
    %c0_6 = arith.constant 0 : index
    %5 = vector.load %arg2[%c0_5, %c0_6] : memref<4x4xbf16, #tpu.memory_space<vmem>>, vector<4x4xbf16>
    %cst_7 = arith.constant dense<0.000000e+00> : vector<256x4xf32>
    %6 = tpu.matmul %4, %5, %cst_7 {dimension_numbers = #tpu.dot_dimension_numbers<[1], [0], [0], [1], [0, 0, 1, 1], [], []>} : vector<256x4xbf16>, vector<4x4xbf16>, vector<256x4xf32> -> vector<256x4xf32>
    %c0_8 = arith.constant 0 : index
    %c0_9 = arith.constant 0 : index
    %7 = vector.load %arg3[%c0_8, %c0_9] : memref<1x4xf32, #tpu.memory_space<vmem>>, vector<1x4xf32>
    %8 = vector.broadcast %7 : vector<1x4xf32> to vector<256x4xf32>
    %9 = arith.addf %6, %8 : vector<256x4xf32>
    %10 = arith.negf %9 : vector<256x4xf32>
    %11 = math.exp %10 : vector<256x4xf32>
    %cst_10 = arith.constant 1.000000e+00 : f32
    %12 = vector.broadcast %cst_10 : f32 to vector<256x4xf32>
    %13 = arith.addf %12, %11 : vector<256x4xf32>
    %14 = arith.divf %12, %13 : vector<256x4xf32>
    %15 = arith.mulf %9, %14 : vector<256x4xf32>
    %16 = vector.extract_strided_slice %15 {offsets = [0, 0], sizes = [256, 2], strides = [1, 1]} : vector<256x4xf32> to vector<256x2xf32>
    %17 = vector.extract_strided_slice %15 {offsets = [0, 2], sizes = [256, 2], strides = [1, 1]} : vector<256x4xf32> to vector<256x2xf32>
    %18 = arith.truncf %16 : vector<256x2xf32> to vector<256x2xbf16>
    %c0_11 = arith.constant 0 : index
    %c0_12 = arith.constant 0 : index
    %19 = vector.load %arg4[%c0_11, %c0_12] : memref<2x2xbf16, #tpu.memory_space<vmem>>, vector<2x2xbf16>
    %cst_13 = arith.constant dense<0.000000e+00> : vector<256x2xf32>
    %20 = tpu.matmul %18, %19, %cst_13 {dimension_numbers = #tpu.dot_dimension_numbers<[1], [0], [0], [1], [0, 0, 1, 1], [], []>} : vector<256x2xbf16>, vector<2x2xbf16>, vector<256x2xf32> -> vector<256x2xf32>
    %c0_14 = arith.constant 0 : index
    %c0_15 = arith.constant 0 : index
    %21 = vector.load %arg5[%c0_14, %c0_15] : memref<1x2xf32, #tpu.memory_space<vmem>>, vector<1x2xf32>
    %22 = vector.broadcast %21 : vector<1x2xf32> to vector<256x2xf32>
    %23 = arith.addf %20, %22 : vector<256x2xf32>
    %24 = arith.negf %23 : vector<256x2xf32>
    %25 = math.exp %24 : vector<256x2xf32>
    %cst_16 = arith.constant 1.000000e+00 : f32
    %26 = vector.broadcast %cst_16 : f32 to vector<256x2xf32>
    %27 = arith.addf %26, %25 : vector<256x2xf32>
    %28 = arith.divf %26, %27 : vector<256x2xf32>
    %29 = arith.mulf %23, %28 : vector<256x2xf32>
    %c17 = arith.constant 17 : index
    %c0_17 = arith.constant 0 : index
    %30 = vector.load %arg11[%c17, %c0_17] : memref<290x2xf32, #tpu.memory_space<vmem>>, vector<256x2xf32>
    tpu.vector_store %arg11[%c17, %c0_17], %29 {strides = array<i32>} : memref<290x2xf32, #tpu.memory_space<vmem>>, vector<256x2xf32>,
    %31 = tpu.iota {dimensions = array<i32: 0>} : vector<256x2xi32>
    %c16_i32 = arith.constant 16 : i32
    %c0_i32 = arith.constant 0 : i32
    %32 = arith.cmpi eq, %c16_i32, %c0_i32 : i32
    %c1_i32 = arith.constant 1 : i32
    %33 = arith.select %32, %c1_i32, %c16_i32 : i32
    %34 = vector.broadcast %33 : i32 to vector<256x2xi32>
    %35 = arith.remsi %31, %34 : vector<256x2xi32>
    %c0_i32_18 = arith.constant 0 : i32
    %36 = vector.broadcast %c0_i32_18 : i32 to vector<256x2xi32>
    %37 = arith.cmpi ne, %35, %36 : vector<256x2xi32>
    %c0_i32_19 = arith.constant 0 : i32
    %38 = vector.broadcast %c0_i32_19 : i32 to vector<256x2xi32>
    %39 = arith.cmpi slt, %35, %38 : vector<256x2xi32>
    %c0_i32_20 = arith.constant 0 : i32
    %40 = arith.cmpi slt, %33, %c0_i32_20 : i32
    %41 = vector.broadcast %40 : i1 to vector<256x2xi1>
    %42 = vector.broadcast %41 : vector<256x2xi1> to vector<256x2xi1>
    %43 = arith.xori %39, %42 : vector<256x2xi1>
    %44 = arith.andi %43, %37 : vector<256x2xi1>
    %45 = vector.broadcast %33 : i32 to vector<256x2xi32>
    %46 = arith.addi %35, %45 : vector<256x2xi32>
    %47 = arith.select %44, %46, %35 : vector<256x2xi1>, vector<256x2xi32>
    %c1_i32_21 = arith.constant 1 : i32
    %48 = vector.broadcast %c1_i32_21 : i32 to vector<256x2xi32>
    %49 = arith.cmpi sge, %47, %48 : vector<256x2xi32>
    %c14_i32 = arith.constant 14 : i32
    %50 = vector.broadcast %c14_i32 : i32 to vector<256x2xi32>
    %51 = arith.cmpi sle, %47, %50 : vector<256x2xi32>
    %c0_22 = arith.constant 0 : index
    %c0_23 = arith.constant 0 : index
    %52 = vector.load %arg11[%c0_22, %c0_23] : memref<290x2xf32, #tpu.memory_space<vmem>>, vector<256x2xf32>
    %cst_24 = arith.constant 0.000000e+00 : f32
    %53 = vector.broadcast %cst_24 : f32 to vector<256x2xf32>
    %54 = arith.select %49, %52, %53 : vector<256x2xi1>, vector<256x2xf32>
    %55 = arith.truncf %54 : vector<256x2xf32> to vector<256x2xbf16>
    %c0_25 = arith.constant 0 : index
    %c0_26 = arith.constant 0 : index
    %56 = vector.load %arg12[%c0_25, %c0_26] : memref<256x18xbf16, #tpu.memory_space<vmem>>, vector<256x2xbf16>
    tpu.vector_store %arg12[%c0_25, %c0_26], %55 {strides = array<i32>} : memref<256x18xbf16, #tpu.memory_space<vmem>>, vector<256x2xbf16>,
    %c1 = arith.constant 1 : index
    %c0_27 = arith.constant 0 : index
    %57 = vector.load %arg11[%c1, %c0_27] : memref<290x2xf32, #tpu.memory_space<vmem>>, vector<256x2xf32>
    %58 = arith.truncf %57 : vector<256x2xf32> to vector<256x2xbf16>
    %c0_28 = arith.constant 0 : index
    %c2 = arith.constant 2 : index
    %59 = vector.load %arg12[%c0_28, %c2] : memref<256x18xbf16, #tpu.memory_space<vmem>>, vector<256x2xbf16>
    tpu.vector_store %arg12[%c0_28, %c2], %58 {strides = array<i32>} : memref<256x18xbf16, #tpu.memory_space<vmem>>, vector<256x2xbf16>,
    %c2_29 = arith.constant 2 : index
    %c0_30 = arith.constant 0 : index
    %60 = vector.load %arg11[%c2_29, %c0_30] : memref<290x2xf32, #tpu.memory_space<vmem>>, vector<256x2xf32>
    %cst_31 = arith.constant 0.000000e+00 : f32
    %61 = vector.broadcast %cst_31 : f32 to vector<256x2xf32>
    %62 = arith.select %51, %60, %61 : vector<256x2xi1>, vector<256x2xf32>
    %63 = arith.truncf %62 : vector<256x2xf32> to vector<256x2xbf16>
    %c0_32 = arith.constant 0 : index
    %c4 = arith.constant 4 : index
    %64 = vector.load %arg12[%c0_32, %c4] : memref<256x18xbf16, #tpu.memory_space<vmem>>, vector<256x2xbf16>
    tpu.vector_store %arg12[%c0_32, %c4], %63 {strides = array<i32>} : memref<256x18xbf16, #tpu.memory_space<vmem>>, vector<256x2xbf16>,
    %c16 = arith.constant 16 : index
    %c0_33 = arith.constant 0 : index
    %65 = vector.load %arg11[%c16, %c0_33] : memref<290x2xf32, #tpu.memory_space<vmem>>, vector<256x2xf32>
    %cst_34 = arith.constant 0.000000e+00 : f32
    %66 = vector.broadcast %cst_34 : f32 to vector<256x2xf32>
    %67 = arith.select %49, %65, %66 : vector<256x2xi1>, vector<256x2xf32>
    %68 = arith.truncf %67 : vector<256x2xf32> to vector<256x2xbf16>
    %c0_35 = arith.constant 0 : index
    %c6 = arith.constant 6 : index
    %69 = vector.load %arg12[%c0_35, %c6] : memref<256x18xbf16, #tpu.memory_space<vmem>>, vector<256x2xbf16>
    tpu.vector_store %arg12[%c0_35, %c6], %68 {strides = array<i32>} : memref<256x18xbf16, #tpu.memory_space<vmem>>, vector<256x2xbf16>,
    %c17_36 = arith.constant 17 : index
    %c0_37 = arith.constant 0 : index
    %70 = vector.load %arg11[%c17_36, %c0_37] : memref<290x2xf32, #tpu.memory_space<vmem>>, vector<256x2xf32>
    %71 = arith.truncf %70 : vector<256x2xf32> to vector<256x2xbf16>
    %c0_38 = arith.constant 0 : index
    %c8 = arith.constant 8 : index
    %72 = vector.load %arg12[%c0_38, %c8] : memref<256x18xbf16, #tpu.memory_space<vmem>>, vector<256x2xbf16>
    tpu.vector_store %arg12[%c0_38, %c8], %71 {strides = array<i32>} : memref<256x18xbf16, #tpu.memory_space<vmem>>, vector<256x2xbf16>,
    %c18 = arith.constant 18 : index
    %c0_39 = arith.constant 0 : index
    %73 = vector.load %arg11[%c18, %c0_39] : memref<290x2xf32, #tpu.memory_space<vmem>>, vector<256x2xf32>
    %cst_40 = arith.constant 0.000000e+00 : f32
    %74 = vector.broadcast %cst_40 : f32 to vector<256x2xf32>
    %75 = arith.select %51, %73, %74 : vector<256x2xi1>, vector<256x2xf32>
    %76 = arith.truncf %75 : vector<256x2xf32> to vector<256x2xbf16>
    %c0_41 = arith.constant 0 : index
    %c10 = arith.constant 10 : index
    %77 = vector.load %arg12[%c0_41, %c10] : memref<256x18xbf16, #tpu.memory_space<vmem>>, vector<256x2xbf16>
    tpu.vector_store %arg12[%c0_41, %c10], %76 {strides = array<i32>} : memref<256x18xbf16, #tpu.memory_space<vmem>>, vector<256x2xbf16>,
    %c32 = arith.constant 32 : index
    %c0_42 = arith.constant 0 : index
    %78 = vector.load %arg11[%c32, %c0_42] : memref<290x2xf32, #tpu.memory_space<vmem>>, vector<256x2xf32>
    %cst_43 = arith.constant 0.000000e+00 : f32
    %79 = vector.broadcast %cst_43 : f32 to vector<256x2xf32>
    %80 = arith.select %49, %78, %79 : vector<256x2xi1>, vector<256x2xf32>
    %81 = arith.truncf %80 : vector<256x2xf32> to vector<256x2xbf16>
    %c0_44 = arith.constant 0 : index
    %c12 = arith.constant 12 : index
    %82 = vector.load %arg12[%c0_44, %c12] : memref<256x18xbf16, #tpu.memory_space<vmem>>, vector<256x2xbf16>
    tpu.vector_store %arg12[%c0_44, %c12], %81 {strides = array<i32>} : memref<256x18xbf16, #tpu.memory_space<vmem>>, vector<256x2xbf16>,
    %c33 = arith.constant 33 : index
    %c0_45 = arith.constant 0 : index
    %83 = vector.load %arg11[%c33, %c0_45] : memref<290x2xf32, #tpu.memory_space<vmem>>, vector<256x2xf32>
    %84 = arith.truncf %83 : vector<256x2xf32> to vector<256x2xbf16>
    %c0_46 = arith.constant 0 : index
    %c14 = arith.constant 14 : index
    %85 = vector.load %arg12[%c0_46, %c14] : memref<256x18xbf16, #tpu.memory_space<vmem>>, vector<256x2xbf16>
    tpu.vector_store %arg12[%c0_46, %c14], %84 {strides = array<i32>} : memref<256x18xbf16, #tpu.memory_space<vmem>>, vector<256x2xbf16>,
    %c34 = arith.constant 34 : index
    %c0_47 = arith.constant 0 : index
    %86 = vector.load %arg11[%c34, %c0_47] : memref<290x2xf32, #tpu.memory_space<vmem>>, vector<256x2xf32>
    %cst_48 = arith.constant 0.000000e+00 : f32
    %87 = vector.broadcast %cst_48 : f32 to vector<256x2xf32>
    %88 = arith.select %51, %86, %87 : vector<256x2xi1>, vector<256x2xf32>
    %89 = arith.truncf %88 : vector<256x2xf32> to vector<256x2xbf16>
    %c0_49 = arith.constant 0 : index
    %c16_50 = arith.constant 16 : index
    %90 = vector.load %arg12[%c0_49, %c16_50] : memref<256x18xbf16, #tpu.memory_space<vmem>>, vector<256x2xbf16>
    tpu.vector_store %arg12[%c0_49, %c16_50], %89 {strides = array<i32>} : memref<256x18xbf16, #tpu.memory_space<vmem>>, vector<256x2xbf16>,
    %c0_51 = arith.constant 0 : index
    %c0_52 = arith.constant 0 : index
    %91 = vector.load %arg12[%c0_51, %c0_52] : memref<256x18xbf16, #tpu.memory_space<vmem>>, vector<256x18xbf16>
    %c0_53 = arith.constant 0 : index
    %c0_54 = arith.constant 0 : index
    %92 = vector.load %arg6[%c0_53, %c0_54] : memref<18x2xbf16, #tpu.memory_space<vmem>>, vector<18x2xbf16>
    %cst_55 = arith.constant dense<0.000000e+00> : vector<256x2xf32>
    %93 = tpu.matmul %91, %92, %cst_55 {dimension_numbers = #tpu.dot_dimension_numbers<[1], [0], [0], [1], [0, 0, 1, 1], [], []>} : vector<256x18xbf16>, vector<18x2xbf16>, vector<256x2xf32> -> vector<256x2xf32>
    %c0_56 = arith.constant 0 : index
    %c0_57 = arith.constant 0 : index
    %94 = vector.load %arg7[%c0_56, %c0_57] : memref<1x2xf32, #tpu.memory_space<vmem>>, vector<1x2xf32>
    %95 = vector.broadcast %94 : vector<1x2xf32> to vector<256x2xf32>
    %96 = arith.addf %93, %95 : vector<256x2xf32>
    %97 = arith.negf %96 : vector<256x2xf32>
    %98 = math.exp %97 : vector<256x2xf32>
    %cst_58 = arith.constant 1.000000e+00 : f32
    %99 = vector.broadcast %cst_58 : f32 to vector<256x2xf32>
    %100 = arith.addf %99, %98 : vector<256x2xf32>
    %101 = arith.divf %99, %100 : vector<256x2xf32>
    %102 = arith.mulf %96, %101 : vector<256x2xf32>
    %103 = arith.addf %16, %102 : vector<256x2xf32>
    %104 = arith.truncf %103 : vector<256x2xf32> to vector<256x2xbf16>
    %105 = arith.truncf %17 : vector<256x2xf32> to vector<256x2xbf16>
    %106 = tpu.concatenate %104, %105 in 1 : vector<256x2xbf16>, vector<256x2xbf16> -> vector<256x4xbf16>
    %c0_59 = arith.constant 0 : index
    %c0_60 = arith.constant 0 : index
    %107 = vector.load %arg8[%c0_59, %c0_60] : memref<4x128xbf16, #tpu.memory_space<vmem>>, vector<4x128xbf16>
    %cst_61 = arith.constant dense<0.000000e+00> : vector<256x128xf32>
    %108 = tpu.matmul %106, %107, %cst_61 {dimension_numbers = #tpu.dot_dimension_numbers<[1], [0], [0], [1], [0, 0, 1, 1], [], []>} : vector<256x4xbf16>, vector<4x128xbf16>, vector<256x128xf32> -> vector<256x128xf32>
    %c0_62 = arith.constant 0 : index
    %c0_63 = arith.constant 0 : index
    %109 = vector.load %arg9[%c0_62, %c0_63] : memref<1x128xf32, #tpu.memory_space<vmem>>, vector<1x128xf32>
    %110 = vector.broadcast %109 : vector<1x128xf32> to vector<256x128xf32>
    %111 = arith.addf %108, %110 : vector<256x128xf32>
    %112 = arith.negf %111 : vector<256x128xf32>
    %113 = math.exp %112 : vector<256x128xf32>
    %cst_64 = arith.constant 1.000000e+00 : f32
    %114 = vector.broadcast %cst_64 : f32 to vector<256x128xf32>
    %115 = arith.addf %114, %113 : vector<256x128xf32>
    %116 = arith.divf %114, %115 : vector<256x128xf32>
    %117 = arith.mulf %111, %116 : vector<256x128xf32>
    %c0_65 = arith.constant 0 : index
    %c0_66 = arith.constant 0 : index
    %c0_67 = arith.constant 0 : index
    %118 = vector.load %arg10[%c0_65, %c0_66, %c0_67] : memref<1x256x128xf32, #tpu.memory_space<vmem>>, vector<1x256x128xf32>
    %119 = vector.shape_cast %118 : vector<1x256x128xf32> to vector<256x128xf32>
    %120 = vector.shape_cast %117 : vector<256x128xf32> to vector<1x256x128xf32>
    tpu.vector_store %arg10[%c0_65, %c0_66, %c0_67], %120 {strides = array<i32>} : memref<1x256x128xf32, #tpu.memory_space<vmem>>, vector<1x256x128xf32>,
    return
  }
  func.func @transform_0(%arg0: i32) -> (i32, i32, i32) {
    %c0_i32 = arith.constant 0 : i32
    %c0_i32_0 = arith.constant 0 : i32
    %c0_i32_1 = arith.constant 0 : i32
    return %arg0, %c0_i32, %c0_i32_0 : i32, i32, i32
  }
  func.func @transform_1(%arg0: i32) -> (i32, i32) {
    %c0_i32 = arith.constant 0 : i32
    %c0_i32_0 = arith.constant 0 : i32
    %c0_i32_1 = arith.constant 0 : i32
    return %c0_i32, %c0_i32_0 : i32, i32
  }
  func.func @transform_2(%arg0: i32) -> (i32, i32) {
    %c0_i32 = arith.constant 0 : i32
    %c0_i32_0 = arith.constant 0 : i32
    %c0_i32_1 = arith.constant 0 : i32
    return %c0_i32, %c0_i32_0 : i32, i32
  }
  func.func @transform_3(%arg0: i32) -> (i32, i32) {
    %c0_i32 = arith.constant 0 : i32
    %c0_i32_0 = arith.constant 0 : i32
    %c0_i32_1 = arith.constant 0 : i32
    return %c0_i32, %c0_i32_0 : i32, i32
  }
  func.func @transform_4(%arg0: i32) -> (i32, i32) {
    %c0_i32 = arith.constant 0 : i32
    %c0_i32_0 = arith.constant 0 : i32
    %c0_i32_1 = arith.constant 0 : i32
    return %c0_i32, %c0_i32_0 : i32, i32
  }
  func.func @transform_5(%arg0: i32) -> (i32, i32) {
    %c0_i32 = arith.constant 0 : i32
    %c0_i32_0 = arith.constant 0 : i32
    %c0_i32_1 = arith.constant 0 : i32
    return %c0_i32, %c0_i32_0 : i32, i32
  }
  func.func @transform_6(%arg0: i32) -> (i32, i32) {
    %c0_i32 = arith.constant 0 : i32
    %c0_i32_0 = arith.constant 0 : i32
    %c0_i32_1 = arith.constant 0 : i32
    return %c0_i32, %c0_i32_0 : i32, i32
  }
  func.func @transform_7(%arg0: i32) -> (i32, i32) {
    %c0_i32 = arith.constant 0 : i32
    %c0_i32_0 = arith.constant 0 : i32
    %c0_i32_1 = arith.constant 0 : i32
    return %c0_i32, %c0_i32_0 : i32, i32
  }
  func.func @transform_8(%arg0: i32) -> (i32, i32) {
    %c0_i32 = arith.constant 0 : i32
    %c0_i32_0 = arith.constant 0 : i32
    %c0_i32_1 = arith.constant 0 : i32
    return %c0_i32, %c0_i32_0 : i32, i32
  }
  func.func @transform_9(%arg0: i32) -> (i32, i32, i32) {
    %c0_i32 = arith.constant 0 : i32
    %c0_i32_0 = arith.constant 0 : i32
    %c0_i32_1 = arith.constant 0 : i32
    return %arg0, %c0_i32, %c0_i32_0 : i32, i32, i32
  }
}

</mosaic_0001>

<llo_original>
// kernel: tpu_custom_call.1
$region0: #{tpu_custom_call.1}
  #allocation0 [shape = 'u32[]', space=smem, size = 0x4, offset = 0x4, fixed_abs, tag = 'smem constant byte address 0x4 - core index']
  #allocation1 [shape = 'u32[72,128]{1,0:T(1,128)}', space=vmem, size = 0x9000, scoped, tag = 'internal scratch']
  #allocation2 [shape = 'f32[290,2]{1,0:T(8,128)}', space=vmem, size = 0x25000, scoped, tag = 'scratch operand']
  #allocation3 [shape = 'bf16[256,18]{1,0:T(8,128)(2,1)}', space=vmem, size = 0x10000, scoped, tag = 'scratch operand']
  %s0 = inlined_call_operand.vmem [shape: bf16[2,256,4], index: 0, kind: input, shape index: {}]
  %s1 = inlined_call_operand.vmem [shape: bf16[4,4], index: 1, kind: input, shape index: {}]
  %s2 = inlined_call_operand.vmem [shape: f32[1,4], index: 2, kind: input, shape index: {}]
  %s3 = inlined_call_operand.vmem [shape: bf16[2,2], index: 3, kind: input, shape index: {}]
  %s4 = inlined_call_operand.vmem [shape: f32[1,2], index: 4, kind: input, shape index: {}]
  %s5 = inlined_call_operand.vmem [shape: bf16[18,2], index: 5, kind: input, shape index: {}]
  %s6 = inlined_call_operand.vmem [shape: f32[1,2], index: 6, kind: input, shape index: {}]
  %s7 = inlined_call_operand.vmem [shape: bf16[4,128], index: 7, kind: input, shape index: {}]
  %s8 = inlined_call_operand.vmem [shape: f32[1,128], index: 8, kind: input, shape index: {}]
  %s9 = inlined_call_operand.hbm [shape: f32[2,256,128], index: 9, kind: output, shape index: {}]
  %s10 = sld [smem:[#allocation0]]
  $region69: #{tpu_custom_call.1} parent=0
    _
  %s12 = ssub.s32 1, %s10
  %s13 = scalar_select 0, %s12, %s10
  $region1: #{tpu_custom_call.1} parent=0
    #allocation4 [shape = 'u8[262144]{0}', space=vmem, size = 0x40000, scoped, tag = 'output window, operand 0']
    #allocation5 [shape = 's32[2]{0}', space=sflag, size = 0x8, scoped, tag = 'scoped memory for tpu_custom_call.1']
    %14 = vsyncpa [#allocation5], 0
    %s15 = scalar_lea.sflag [#allocation5], 1
    %16 = vsyncpa %s15, 0
    loop: start=0, step=1, limit=4
    $region2: #{tpu_custom_call.1} parent=1 // loop_pre_header
      _
    $region3: #{tpu_custom_call.1} parent=1 // loop_header
      %s18 = sphi 0, %s22
      %p19 = scmp.ge.s32.totalorder %s18, 4
      %s28 = sphi 0, %s30
      %s31 = sphi 0, %s28
      %s32 = sphi 0, %s31
      %s48 = sphi 0, %s32
      %s52 = sphi 0, %s52
      %s54 = sphi 0, %s52
      %s55 = sphi 0, %s54
      %s69 = sphi 0, %s55
      %s73 = sphi 0, %s73
      %s75 = sphi 0, %s73
      %s76 = sphi 0, %s75
      %s90 = sphi 0, %s76
      %s94 = sphi 0, %s94
      %s96 = sphi 0, %s94
      %s97 = sphi 0, %s96
      %s111 = sphi 0, %s97
      %s115 = sphi 0, %s115
      %s117 = sphi 0, %s115
      %s118 = sphi 0, %s117
      %s132 = sphi 0, %s118
      %s136 = sphi 0, %s136
      %s138 = sphi 0, %s136
      %s139 = sphi 0, %s138
      %s153 = sphi 0, %s139
      %s157 = sphi 0, %s157
      %s159 = sphi 0, %s157
      %s160 = sphi 0, %s159
      %s174 = sphi 0, %s160
      %s178 = sphi 0, %s178
      %s180 = sphi 0, %s178
      %s181 = sphi 0, %s180
      %s195 = sphi 0, %s181
      %s199 = sphi 0, %s199
      %s201 = sphi 0, %s199
      %s202 = sphi 0, %s201
      %s216 = sphi 0, %s202
      %s222 = sphi 0, %s224
      %s225 = sphi 0, %s222
      %s226 = sphi 0, %s225
      %s242 = sphi 0, %s226
    $region4: #{tpu_custom_call.1} parent=1 // loop_header_branch
      %21 = sbr.rel (%p19) target = $region8
    $region5: #{tpu_custom_call.1} parent=1 // loop_body
      %s23 = ssub.s32 %s18, 1
      %s24 = ssub.s32 %s18, 2
      %s25 = sadd.s32 %s18, 1
      %s26 = ssub.s32 %s18, %s25
      %p27 = scmp.eq.s32.totalorder %s26, 0
      %s29 = sadd.s32 %s28, 1
      %s30 = scalar_select %p27, %s28, %s29
      %p33 = pneg %p27
      %p34 = scmp.eq.s32.totalorder %s18, 1
      %p35 = por %p33, %p34
      %p36 = scmp.ne.s32.totalorder %s28, %s31
      %p37 = scmp.eq.s32.totalorder %s18, 0
      %p38 = por %p36, %p37
      %p39 = scmp.ne.s32.totalorder %s28, %s31
      %p40 = scmp.eq.s32.totalorder %s23, 1
      %p41 = por %p39, %p40
      %p42 = scmp.ne.s32.totalorder %s31, %s32
      %p43 = scmp.eq.s32.totalorder %s23, 0
      %p44 = por %p42, %p43
      %p45 = scmp.ne.s32.totalorder %s31, %s32
      %p46 = scmp.eq.s32.totalorder %s24, 1
      %p47 = por %p45, %p46
      %p49 = scmp.ne.s32.totalorder %s32, %s48
      %p50 = scmp.eq.s32.totalorder %s24, 0
      %p51 = por %p49, %p50
      %s53 = sadd.s32 %s52, 1
      %p56 = scmp.eq.s32.totalorder %s18, 1
      %p57 = scmp.ne.s32.totalorder %s52, %s54
      %p58 = scmp.eq.s32.totalorder %s18, 0
      %p59 = por %p57, %p58
      %p60 = scmp.ne.s32.totalorder %s52, %s54
      %p61 = scmp.eq.s32.totalorder %s23, 1
      %p62 = por %p60, %p61
      %p63 = scmp.ne.s32.totalorder %s54, %s55
      %p64 = scmp.eq.s32.totalorder %s23, 0
      %p65 = por %p63, %p64
      %p66 = scmp.ne.s32.totalorder %s54, %s55
      %p67 = scmp.eq.s32.totalorder %s24, 1
      %p68 = por %p66, %p67
      %p70 = scmp.ne.s32.totalorder %s55, %s69
      %p71 = scmp.eq.s32.totalorder %s24, 0
      %p72 = por %p70, %p71
      %s74 = sadd.s32 %s73, 1
      %p77 = scmp.eq.s32.totalorder %s18, 1
      %p78 = scmp.ne.s32.totalorder %s73, %s75
      %p79 = scmp.eq.s32.totalorder %s18, 0
      %p80 = por %p78, %p79
      %p81 = scmp.ne.s32.totalorder %s73, %s75
      %p82 = scmp.eq.s32.totalorder %s23, 1
      %p83 = por %p81, %p82
      %p84 = scmp.ne.s32.totalorder %s75, %s76
      %p85 = scmp.eq.s32.totalorder %s23, 0
      %p86 = por %p84, %p85
      %p87 = scmp.ne.s32.totalorder %s75, %s76
      %p88 = scmp.eq.s32.totalorder %s24, 1
      %p89 = por %p87, %p88
      %p91 = scmp.ne.s32.totalorder %s76, %s90
      %p92 = scmp.eq.s32.totalorder %s24, 0
      %p93 = por %p91, %p92
      %s95 = sadd.s32 %s94, 1
      %p98 = scmp.eq.s32.totalorder %s18, 1
      %p99 = scmp.ne.s32.totalorder %s94, %s96
      %p100 = scmp.eq.s32.totalorder %s18, 0
      %p101 = por %p99, %p100
      %p102 = scmp.ne.s32.totalorder %s94, %s96
      %p103 = scmp.eq.s32.totalorder %s23, 1
      %p104 = por %p102, %p103
      %p105 = scmp.ne.s32.totalorder %s96, %s97
      %p106 = scmp.eq.s32.totalorder %s23, 0
      %p107 = por %p105, %p106
      %p108 = scmp.ne.s32.totalorder %s96, %s97
      %p109 = scmp.eq.s32.totalorder %s24, 1
      %p110 = por %p108, %p109
      %p112 = scmp.ne.s32.totalorder %s97, %s111
      %p113 = scmp.eq.s32.totalorder %s24, 0
      %p114 = por %p112, %p113
      %s116 = sadd.s32 %s115, 1
      %p119 = scmp.eq.s32.totalorder %s18, 1
      %p120 = scmp.ne.s32.totalorder %s115, %s117
      %p121 = scmp.eq.s32.totalorder %s18, 0
      %p122 = por %p120, %p121
      %p123 = scmp.ne.s32.totalorder %s115, %s117
      %p124 = scmp.eq.s32.totalorder %s23, 1
      %p125 = por %p123, %p124
      %p126 = scmp.ne.s32.totalorder %s117, %s118
      %p127 = scmp.eq.s32.totalorder %s23, 0
      %p128 = por %p126, %p127
      %p129 = scmp.ne.s32.totalorder %s117, %s118
      %p130 = scmp.eq.s32.totalorder %s24, 1
      %p131 = por %p129, %p130
      %p133 = scmp.ne.s32.totalorder %s118, %s132
      %p134 = scmp.eq.s32.totalorder %s24, 0
      %p135 = por %p133, %p134
      %s137 = sadd.s32 %s136, 1
      %p140 = scmp.eq.s32.totalorder %s18, 1
      %p141 = scmp.ne.s32.totalorder %s136, %s138
      %p142 = scmp.eq.s32.totalorder %s18, 0
      %p143 = por %p141, %p142
      %p144 = scmp.ne.s32.totalorder %s136, %s138
      %p145 = scmp.eq.s32.totalorder %s23, 1
      %p146 = por %p144, %p145
      %p147 = scmp.ne.s32.totalorder %s138, %s139
      %p148 = scmp.eq.s32.totalorder %s23, 0
      %p149 = por %p147, %p148
      %p150 = scmp.ne.s32.totalorder %s138, %s139
      %p151 = scmp.eq.s32.totalorder %s24, 1
      %p152 = por %p150, %p151
      %p154 = scmp.ne.s32.totalorder %s139, %s153
      %p155 = scmp.eq.s32.totalorder %s24, 0
      %p156 = por %p154, %p155
      %s158 = sadd.s32 %s157, 1
      %p161 = scmp.eq.s32.totalorder %s18, 1
      %p162 = scmp.ne.s32.totalorder %s157, %s159
      %p163 = scmp.eq.s32.totalorder %s18, 0
      %p164 = por %p162, %p163
      %p165 = scmp.ne.s32.totalorder %s157, %s159
      %p166 = scmp.eq.s32.totalorder %s23, 1
      %p167 = por %p165, %p166
      %p168 = scmp.ne.s32.totalorder %s159, %s160
      %p169 = scmp.eq.s32.totalorder %s23, 0
      %p170 = por %p168, %p169
      %p171 = scmp.ne.s32.totalorder %s159, %s160
      %p172 = scmp.eq.s32.totalorder %s24, 1
      %p173 = por %p171, %p172
      %p175 = scmp.ne.s32.totalorder %s160, %s174
      %p176 = scmp.eq.s32.totalorder %s24, 0
      %p177 = por %p175, %p176
      %s179 = sadd.s32 %s178, 1
      %p182 = scmp.eq.s32.totalorder %s18, 1
      %p183 = scmp.ne.s32.totalorder %s178, %s180
      %p184 = scmp.eq.s32.totalorder %s18, 0
      %p185 = por %p183, %p184
      %p186 = scmp.ne.s32.totalorder %s178, %s180
      %p187 = scmp.eq.s32.totalorder %s23, 1
      %p188 = por %p186, %p187
      %p189 = scmp.ne.s32.totalorder %s180, %s181
      %p190 = scmp.eq.s32.totalorder %s23, 0
      %p191 = por %p189, %p190
      %p192 = scmp.ne.s32.totalorder %s180, %s181
      %p193 = scmp.eq.s32.totalorder %s24, 1
      %p194 = por %p192, %p193
      %p196 = scmp.ne.s32.totalorder %s181, %s195
      %p197 = scmp.eq.s32.totalorder %s24, 0
      %p198 = por %p196, %p197
      %s200 = sadd.s32 %s199, 1
      %p203 = scmp.eq.s32.totalorder %s18, 1
      %p204 = scmp.ne.s32.totalorder %s199, %s201
      %p205 = scmp.eq.s32.totalorder %s18, 0
      %p206 = por %p204, %p205
      %p207 = scmp.ne.s32.totalorder %s199, %s201
      %p208 = scmp.eq.s32.totalorder %s23, 1
      %p209 = por %p207, %p208
      %p210 = scmp.ne.s32.totalorder %s201, %s202
      %p211 = scmp.eq.s32.totalorder %s23, 0
      %p212 = por %p210, %p211
      %p213 = scmp.ne.s32.totalorder %s201, %s202
      %p214 = scmp.eq.s32.totalorder %s24, 1
      %p215 = por %p213, %p214
      %p217 = scmp.ne.s32.totalorder %s202, %s216
      %p218 = scmp.eq.s32.totalorder %s24, 0
      %p219 = por %p217, %p218
      %s220 = ssub.s32 %s18, %s25
      %p221 = scmp.eq.s32.totalorder %s220, 0
      %s223 = sadd.s32 %s222, 1
      %s224 = scalar_select %p221, %s222, %s223
      %p227 = pneg %p221
      %p228 = scmp.eq.s32.totalorder %s18, 1
      %p229 = por %p227, %p228
      %p230 = scmp.ne.s32.totalorder %s222, %s225
      %p231 = scmp.eq.s32.totalorder %s18, 0
      %p232 = por %p230, %p231
      %p233 = scmp.ne.s32.totalorder %s222, %s225
      %p234 = scmp.eq.s32.totalorder %s23, 1
      %p235 = por %p233, %p234
      %p236 = scmp.ne.s32.totalorder %s225, %s226
      %p237 = scmp.eq.s32.totalorder %s23, 0
      %p238 = por %p236, %p237
      %p239 = scmp.ne.s32.totalorder %s225, %s226
      %p240 = scmp.eq.s32.totalorder %s24, 1
      %p241 = por %p239, %p240
      %p243 = scmp.ne.s32.totalorder %s226, %s242
      %p244 = scmp.eq.s32.totalorder %s24, 0
      %p245 = por %p243, %p244
      %p246 = scmp.le.s32.totalorder 1, %s18
      %p247 = scmp.lt.s32.totalorder %s18, 3
      %p248 = pnand %p246, %p247
      %p249 = pneg %p248
      // Predicated region
      $region9: #{tpu_custom_call.1} parent=5 // pred_check
        _
      $region10: #{tpu_custom_call.1} parent=5 // pred_check_branch
        %251 = sbr.rel (%p248) target = $region12
      $region11: #{tpu_custom_call.1} parent=5 // pred_region
        %s252 = ssub.s32 %s18, 1
        // Predicated region
        $region13: #{tpu_custom_call.1} parent=11 // pred_check
          %p253 = pneg %p65
        $region14: #{tpu_custom_call.1} parent=11 // pred_check_branch
          %255 = sbr.rel (%p253) target = $region16
        $region15: #{tpu_custom_call.1} parent=11 // pred_region
          _
        $region16: #{tpu_custom_call.1} parent=11 // pred_fallthru
          _
        // Predicated region
        $region17: #{tpu_custom_call.1} parent=11 // pred_check
          %p256 = pneg %p86
        $region18: #{tpu_custom_call.1} parent=11 // pred_check_branch
          %258 = sbr.rel (%p256) target = $region20
        $region19: #{tpu_custom_call.1} parent=11 // pred_region
          _
        $region20: #{tpu_custom_call.1} parent=11 // pred_fallthru
          _
        // Predicated region
        $region21: #{tpu_custom_call.1} parent=11 // pred_check
          %p259 = pneg %p107
        $region22: #{tpu_custom_call.1} parent=11 // pred_check_branch
          %261 = sbr.rel (%p259) target = $region24
        $region23: #{tpu_custom_call.1} parent=11 // pred_region
          _
        $region24: #{tpu_custom_call.1} parent=11 // pred_fallthru
          _
        // Predicated region
        $region25: #{tpu_custom_call.1} parent=11 // pred_check
          %p262 = pneg %p128
        $region26: #{tpu_custom_call.1} parent=11 // pred_check_branch
          %264 = sbr.rel (%p262) target = $region28
        $region27: #{tpu_custom_call.1} parent=11 // pred_region
          _
        $region28: #{tpu_custom_call.1} parent=11 // pred_fallthru
          _
        // Predicated region
        $region29: #{tpu_custom_call.1} parent=11 // pred_check
          %p265 = pneg %p149
        $region30: #{tpu_custom_call.1} parent=11 // pred_check_branch
          %267 = sbr.rel (%p265) target = $region32
        $region31: #{tpu_custom_call.1} parent=11 // pred_region
          _
        $region32: #{tpu_custom_call.1} parent=11 // pred_fallthru
          _
        // Predicated region
        $region33: #{tpu_custom_call.1} parent=11 // pred_check
          %p268 = pneg %p170
        $region34: #{tpu_custom_call.1} parent=11 // pred_check_branch
          %270 = sbr.rel (%p268) target = $region36
        $region35: #{tpu_custom_call.1} parent=11 // pred_region
          _
        $region36: #{tpu_custom_call.1} parent=11 // pred_fallthru
          _
        // Predicated region
        $region37: #{tpu_custom_call.1} parent=11 // pred_check
          %p271 = pneg %p191
        $region38: #{tpu_custom_call.1} parent=11 // pred_check_branch
          %273 = sbr.rel (%p271) target = $region40
        $region39: #{tpu_custom_call.1} parent=11 // pred_region
          _
        $region40: #{tpu_custom_call.1} parent=11 // pred_fallthru
          _
        // Predicated region
        $region41: #{tpu_custom_call.1} parent=11 // pred_check
          %p274 = pneg %p212
        $region42: #{tpu_custom_call.1} parent=11 // pred_check_branch
          %276 = sbr.rel (%p274) target = $region44
        $region43: #{tpu_custom_call.1} parent=11 // pred_region
          _
        $region44: #{tpu_custom_call.1} parent=11 // pred_fallthru
          _
      $region12: #{tpu_custom_call.1} parent=5 // pred_fallthru
        _
      %p277 = scmp.lt.s32.totalorder %s18, 2
      // Predicated region
      $region45: #{tpu_custom_call.1} parent=5 // pred_check
        %p278 = pneg %p277
      $region46: #{tpu_custom_call.1} parent=5 // pred_check_branch
        %280 = sbr.rel (%p278) target = $region48
      $region47: #{tpu_custom_call.1} parent=5 // pred_region
        // Predicated region
        $region49: #{tpu_custom_call.1} parent=47 // pred_check
          %p281 = pneg %p38
        $region50: #{tpu_custom_call.1} parent=47 // pred_check_branch
          %283 = sbr.rel (%p281) target = $region52
        $region51: #{tpu_custom_call.1} parent=47 // pred_region
          %p284 = scmp.lt.s32.totalorder %s18, 1
          %s285 = scalar_select %p284, %s18, 1
          %s286 = smul.addr %s285, 32
          %s287 = smul.addr %s286, 4
          %s288 = scalar_lea.vmem %s0, %s287
        $region52: #{tpu_custom_call.1} parent=47 // pred_fallthru
          _
      $region48: #{tpu_custom_call.1} parent=5 // pred_fallthru
        _
      %p289 = scmp.le.s32.totalorder 1, %s18
      %p290 = scmp.lt.s32.totalorder %s18, 3
      %p291 = pnand %p289, %p290
      %p292 = pneg %p291
      // Predicated region
      $region53: #{tpu_custom_call.1} parent=5 // pred_check
        _
      $region54: #{tpu_custom_call.1} parent=5 // pred_check_branch
        %294 = sbr.rel (%p291) target = $region56
      $region55: #{tpu_custom_call.1} parent=5 // pred_region
        %s295 = ssub.s32 %s18, 1
        %p296 = scmp.lt.s32.totalorder %s23, 1
        %s297 = scalar_select %p296, %s23, 1
        %s298 = smul.addr %s297, 32
        %s299 = smul.addr %s298, 4
        %s300 = scalar_lea.vmem %s0, %s299
        %p301 = pneg %p44
        %p302 = pneg %p41
        %p303 = pneg %p65
        %p304 = pneg %p62
        %p305 = pneg %p86
        %p306 = pneg %p83
        %p307 = pneg %p107
        %p308 = pneg %p104
        %p309 = pneg %p128
        %p310 = pneg %p125
        %p311 = pneg %p149
        %p312 = pneg %p146
        %p313 = pneg %p170
        %p314 = pneg %p167
        %p315 = pneg %p191
        %p316 = pneg %p188
        %p317 = pneg %p212
        %p318 = pneg %p209
        %p319 = pneg %p238
        %p320 = pneg %p235
        %s321 = sand.u32 %s225, 1
        %s322 = scalar_lea.sflag [#allocation5], %s321
        %s323 = sand.u32 %s225, 1
        %s324 = smul.addr %s323, 256
        %s325 = scalar_lea.vmem [#allocation4], %s324
        %p326 = scmp.lt.s32.totalorder %s23, 1
        %s327 = scalar_select %p326, %s23, 1
        %s328 = smul.addr %s327, 32
        %s329 = smul.addr %s328, 4
        %s330 = scalar_lea.vmem %s0, %s329
        %vm332 = vcmask 15360
        %333 = vst.msk [vmem:[#allocation2] sm:$0xff] %vm332, 0.0
        %334 = vst.msk [vmem:[#allocation2 + $0x8] sm:$0xff] %vm332, 0.0
        %vm335 = vcmask 8192
        %336 = vst.msk [vmem:[#allocation2 + $0x10] sm:$0x1] %vm335, 0.0
        %337 = vst.msk [vmem:[#allocation2 + $0x111] sm:$0xff] %vm332, 0.0
        %338 = vst.msk [vmem:[#allocation2 + $0x119] sm:$0xff] %vm332, 0.0
        %339 = vst.msk [vmem:[#allocation2 + $0x121] sm:$0x1] %vm335, 0.0
        %v340 = vld [vmem:[%s330] sm:$0xf]
        %v341 = vld [vmem:[%s330 + $0x4] sm:$0xf]
        %v342 = vld [vmem:[%s330 + $0x8] sm:$0xf]
        %v343 = vld [vmem:[%s330 + $0xc] sm:$0xf]
        %v344 = vld [vmem:[%s330 + $0x10] sm:$0xf]
        %v345 = vld [vmem:[%s330 + $0x14] sm:$0xf]
        %v346 = vld [vmem:[%s330 + $0x18] sm:$0xf]
        %v347 = vld [vmem:[%s330 + $0x1c] sm:$0xf]
        %v348 = vld [vmem:[%s330 + $0x20] sm:$0xf]
        %v349 = vld [vmem:[%s330 + $0x24] sm:$0xf]
        %v350 = vld [vmem:[%s330 + $0x28] sm:$0xf]
        %v351 = vld [vmem:[%s330 + $0x2c] sm:$0xf]
        %v352 = vld [vmem:[%s330 + $0x30] sm:$0xf]
        %v353 = vld [vmem:[%s330 + $0x34] sm:$0xf]
        %v354 = vld [vmem:[%s330 + $0x38] sm:$0xf]
        %v355 = vld [vmem:[%s330 + $0x3c] sm:$0xf]
        %v356 = vld [vmem:[%s330 + $0x40] sm:$0xf]
        %v357 = vld [vmem:[%s330 + $0x44] sm:$0xf]
        %v358 = vld [vmem:[%s330 + $0x48] sm:$0xf]
        %v359 = vld [vmem:[%s330 + $0x4c] sm:$0xf]
        %v360 = vld [vmem:[%s330 + $0x50] sm:$0xf]
        %v361 = vld [vmem:[%s330 + $0x54] sm:$0xf]
        %v362 = vld [vmem:[%s330 + $0x58] sm:$0xf]
        %v363 = vld [vmem:[%s330 + $0x5c] sm:$0xf]
        %v364 = vld [vmem:[%s330 + $0x60] sm:$0xf]
        %v365 = vld [vmem:[%s330 + $0x64] sm:$0xf]
        %v366 = vld [vmem:[%s330 + $0x68] sm:$0xf]
        %v367 = vld [vmem:[%s330 + $0x6c] sm:$0xf]
        %v368 = vld [vmem:[%s330 + $0x70] sm:$0xf]
        %v369 = vld [vmem:[%s330 + $0x74] sm:$0xf]
        %v370 = vld [vmem:[%s330 + $0x78] sm:$0xf]
        %v371 = vld [vmem:[%s330 + $0x7c] sm:$0xf]
        %v372 = vld [vmem:[%s1] sm:$0x3]
        %v373 = vld [vmem:[%s2] sm:$0x1]
        %v375 = vperm.slane %v373, 0
        %v409 = vunpack.c.l.b16 %v340
        %v410 = vunpack.c.l.b16 %v341
        %v411 = vunpack.c.l.b16 %v342
        %v412 = vunpack.c.l.b16 %v343
        %v413 = vunpack.c.l.b16 %v344
        %v414 = vunpack.c.l.b16 %v345
        %v415 = vunpack.c.l.b16 %v346
        %v416 = vunpack.c.l.b16 %v347
        %v417 = vunpack.c.l.b16 %v348
        %v418 = vunpack.c.l.b16 %v349
        %v419 = vunpack.c.l.b16 %v350
        %v420 = vunpack.c.l.b16 %v351
        %v421 = vunpack.c.l.b16 %v352
        %v422 = vunpack.c.l.b16 %v353
        %v423 = vunpack.c.l.b16 %v354
        %v424 = vunpack.c.l.b16 %v355
        %v425 = vunpack.c.l.b16 %v356
        %v426 = vunpack.c.l.b16 %v357
        %v427 = vunpack.c.l.b16 %v358
        %v428 = vunpack.c.l.b16 %v359
        %v429 = vunpack.c.l.b16 %v360
        %v430 = vunpack.c.l.b16 %v361
        %v431 = vunpack.c.l.b16 %v362
        %v432 = vunpack.c.l.b16 %v363
        %v433 = vunpack.c.l.b16 %v364
        %v434 = vunpack.c.l.b16 %v365
        %v435 = vunpack.c.l.b16 %v366
        %v436 = vunpack.c.l.b16 %v367
        %v437 = vunpack.c.l.b16 %v368
        %v438 = vunpack.c.l.b16 %v369
        %v439 = vunpack.c.l.b16 %v370
        %v440 = vunpack.c.l.b16 %v371
        %v441 = vpack.c.b16 %v410, %v409
        %v442 = vpack.c.b16 %v412, %v411
        %v443 = vpack.c.b16 %v414, %v413
        %v444 = vpack.c.b16 %v416, %v415
        %v445 = vpack.c.b16 %v418, %v417
        %v446 = vpack.c.b16 %v420, %v419
        %v447 = vpack.c.b16 %v422, %v421
        %v448 = vpack.c.b16 %v424, %v423
        %v449 = vpack.c.b16 %v426, %v425
        %v450 = vpack.c.b16 %v428, %v427
        %v451 = vpack.c.b16 %v430, %v429
        %v452 = vpack.c.b16 %v432, %v431
        %v453 = vpack.c.b16 %v434, %v433
        %v454 = vpack.c.b16 %v436, %v435
        %v455 = vpack.c.b16 %v438, %v437
        %v456 = vpack.c.b16 %v440, %v439
        %vm457 = vcmask 31744
        %v459 = vsel %vm457, %v441, 0
        %v462 = vsel %vm457, %v442, 0
        %v465 = vsel %vm457, %v443, 0
        %v468 = vsel %vm457, %v444, 0
        %v471 = vsel %vm457, %v445, 0
        %v474 = vsel %vm457, %v446, 0
        %v477 = vsel %vm457, %v447, 0
        %v480 = vsel %vm457, %v448, 0
        %v483 = vsel %vm457, %v449, 0
        %v486 = vsel %vm457, %v450, 0
        %v489 = vsel %vm457, %v451, 0
        %v492 = vsel %vm457, %v452, 0
        %v495 = vsel %vm457, %v453, 0
        %v498 = vsel %vm457, %v454, 0
        %v501 = vsel %vm457, %v455, 0
        %v504 = vsel %vm457, %v456, 0
        %vm506 = vcmask 1041408
        %v508 = vsel %vm506, %v372, 0
        %510 = vmatpush.bf16.msra.mxu0 0
        %511 = vmatpush.bf16.msra.mxu0 0
        %512 = vmatpush.bf16.msra.mxu0 0
        %513 = vmatpush.bf16.msra.mxu0 0
        %514 = vmatpush.bf16.msra.mxu0 0
        %515 = vmatpush.bf16.msra.mxu0 0
        %516 = vmatpush.bf16.msra.mxu0 0
        %517 = vmatpush.bf16.msra.mxu0 %v508
        %518 = vmatmul.bf16.gmra.mxu0 %v459
        %v519 = vpop.f32.mrf.mxu0
        %v520 = vadd.f32 %v375, %v519
        %v521 = vpop.f32.mrf.mxu0
        %v522 = vadd.f32 %v375, %v521
        %523 = vmatmul.bf16.gmra.mxu0 %v462
        %v524 = vpop.f32.mrf.mxu0
        %v525 = vadd.f32 %v375, %v524
        %v526 = vpop.f32.mrf.mxu0
        %v527 = vadd.f32 %v375, %v526
        %528 = vmatmul.bf16.gmra.mxu0 %v465
        %v529 = vpop.f32.mrf.mxu0
        %v530 = vadd.f32 %v375, %v529
        %v531 = vpop.f32.mrf.mxu0
        %v532 = vadd.f32 %v375, %v531
        %533 = vmatmul.bf16.gmra.mxu0 %v468
        %v534 = vpop.f32.mrf.mxu0
        %v535 = vadd.f32 %v375, %v534
        %v536 = vpop.f32.mrf.mxu0
        %v537 = vadd.f32 %v375, %v536
        %538 = vmatmul.bf16.gmra.mxu0 %v471
        %v539 = vpop.f32.mrf.mxu0
        %v540 = vadd.f32 %v375, %v539
        %v541 = vpop.f32.mrf.mxu0
        %v542 = vadd.f32 %v375, %v541
        %543 = vmatmul.bf16.gmra.mxu0 %v474
        %v544 = vpop.f32.mrf.mxu0
        %v545 = vadd.f32 %v375, %v544
        %v546 = vpop.f32.mrf.mxu0
        %v547 = vadd.f32 %v375, %v546
        %548 = vmatmul.bf16.gmra.mxu0 %v477
        %v549 = vpop.f32.mrf.mxu0
        %v550 = vadd.f32 %v375, %v549
        %v551 = vpop.f32.mrf.mxu0
        %v552 = vadd.f32 %v375, %v551
        %553 = vmatmul.bf16.gmra.mxu0 %v480
        %v554 = vpop.f32.mrf.mxu0
        %v555 = vadd.f32 %v375, %v554
        %v556 = vpop.f32.mrf.mxu0
        %v557 = vadd.f32 %v375, %v556
        %558 = vmatmul.bf16.gmra.mxu0 %v483
        %v559 = vpop.f32.mrf.mxu0
        %v560 = vadd.f32 %v375, %v559
        %v561 = vpop.f32.mrf.mxu0
        %v562 = vadd.f32 %v375, %v561
        %563 = vmatmul.bf16.gmra.mxu0 %v486
        %v564 = vpop.f32.mrf.mxu0
        %v565 = vadd.f32 %v375, %v564
        %v566 = vpop.f32.mrf.mxu0
        %v567 = vadd.f32 %v375, %v566
        %568 = vmatmul.bf16.gmra.mxu0 %v489
        %v569 = vpop.f32.mrf.mxu0
        %v570 = vadd.f32 %v375, %v569
        %v571 = vpop.f32.mrf.mxu0
        %v572 = vadd.f32 %v375, %v571
        %573 = vmatmul.bf16.gmra.mxu0 %v492
        %v574 = vpop.f32.mrf.mxu0
        %v575 = vadd.f32 %v375, %v574
        %v576 = vpop.f32.mrf.mxu0
        %v577 = vadd.f32 %v375, %v576
        %578 = vmatmul.bf16.gmra.mxu0 %v495
        %v579 = vpop.f32.mrf.mxu0
        %v580 = vadd.f32 %v375, %v579
        %v581 = vpop.f32.mrf.mxu0
        %v582 = vadd.f32 %v375, %v581
        %583 = vmatmul.bf16.gmra.mxu0 %v498
        %v584 = vpop.f32.mrf.mxu0
        %v585 = vadd.f32 %v375, %v584
        %v586 = vpop.f32.mrf.mxu0
        %v587 = vadd.f32 %v375, %v586
        %588 = vmatmul.bf16.gmra.mxu0 %v501
        %v589 = vpop.f32.mrf.mxu0
        %v590 = vadd.f32 %v375, %v589
        %v591 = vpop.f32.mrf.mxu0
        %v592 = vadd.f32 %v375, %v591
        %593 = vmatmul.bf16.gmra.mxu0 %v504
        %v594 = vpop.f32.mrf.mxu0
        %v595 = vadd.f32 %v375, %v594
        %v596 = vpop.f32.mrf.mxu0
        %v597 = vadd.f32 %v375, %v596
        %598 = vdwg.mxu0
        %v599 = vxor.u32 %v520, 2147483648
        %v600 = vxor.u32 %v522, 2147483648
        %v601 = vxor.u32 %v525, 2147483648
        %v602 = vxor.u32 %v527, 2147483648
        %v603 = vxor.u32 %v530, 2147483648
        %v604 = vxor.u32 %v532, 2147483648
        %v605 = vxor.u32 %v535, 2147483648
        %v606 = vxor.u32 %v537, 2147483648
        %v607 = vxor.u32 %v540, 2147483648
        %v608 = vxor.u32 %v542, 2147483648
        %v609 = vxor.u32 %v545, 2147483648
        %v610 = vxor.u32 %v547, 2147483648
        %v611 = vxor.u32 %v550, 2147483648
        %v612 = vxor.u32 %v552, 2147483648
        %v613 = vxor.u32 %v555, 2147483648
        %v614 = vxor.u32 %v557, 2147483648
        %v615 = vxor.u32 %v560, 2147483648
        %v616 = vxor.u32 %v562, 2147483648
        %v617 = vxor.u32 %v565, 2147483648
        %v618 = vxor.u32 %v567, 2147483648
        %v619 = vxor.u32 %v570, 2147483648
        %v620 = vxor.u32 %v572, 2147483648
        %v621 = vxor.u32 %v575, 2147483648
        %v622 = vxor.u32 %v577, 2147483648
        %v623 = vxor.u32 %v580, 2147483648
        %v624 = vxor.u32 %v582, 2147483648
        %v625 = vxor.u32 %v585, 2147483648
        %v626 = vxor.u32 %v587, 2147483648
        %v627 = vxor.u32 %v590, 2147483648
        %v628 = vxor.u32 %v592, 2147483648
        %v629 = vxor.u32 %v595, 2147483648
        %v630 = vxor.u32 %v597, 2147483648
        %v631 = vmul.f32 %v599, 1.442695
        %v632 = vpow.pop %v631
        %v633 = vmul.f32 %v600, 1.442695
        %v634 = vpow.pop %v633
        %v635 = vmul.f32 %v601, 1.442695
        %v636 = vpow.pop %v635
        %v637 = vmul.f32 %v602, 1.442695
        %v638 = vpow.pop %v637
        %v639 = vmul.f32 %v603, 1.442695
        %v640 = vpow.pop %v639
        %v641 = vmul.f32 %v604, 1.442695
        %v642 = vpow.pop %v641
        %v643 = vmul.f32 %v605, 1.442695
        %v644 = vpow.pop %v643
        %v645 = vmul.f32 %v606, 1.442695
        %v646 = vpow.pop %v645
        %v647 = vmul.f32 %v607, 1.442695
        %v648 = vpow.pop %v647
        %v649 = vmul.f32 %v608, 1.442695
        %v650 = vpow.pop %v649
        %v651 = vmul.f32 %v609, 1.442695
        %v652 = vpow.pop %v651
        %v653 = vmul.f32 %v610, 1.442695
        %v654 = vpow.pop %v653
        %v655 = vmul.f32 %v611, 1.442695
        %v656 = vpow.pop %v655
        %v657 = vmul.f32 %v612, 1.442695
        %v658 = vpow.pop %v657
        %v659 = vmul.f32 %v613, 1.442695
        %v660 = vpow.pop %v659
        %v661 = vmul.f32 %v614, 1.442695
        %v662 = vpow.pop %v661
        %v663 = vmul.f32 %v615, 1.442695
        %v664 = vpow.pop %v663
        %v665 = vmul.f32 %v616, 1.442695
        %v666 = vpow.pop %v665
        %v667 = vmul.f32 %v617, 1.442695
        %v668 = vpow.pop %v667
        %v669 = vmul.f32 %v618, 1.442695
        %v670 = vpow.pop %v669
        %v671 = vmul.f32 %v619, 1.442695
        %v672 = vpow.pop %v671
        %v673 = vmul.f32 %v620, 1.442695
        %v674 = vpow.pop %v673
        %v675 = vmul.f32 %v621, 1.442695
        %v676 = vpow.pop %v675
        %v677 = vmul.f32 %v622, 1.442695
        %v678 = vpow.pop %v677
        %v679 = vmul.f32 %v623, 1.442695
        %v680 = vpow.pop %v679
        %v681 = vmul.f32 %v624, 1.442695
        %v682 = vpow.pop %v681
        %v683 = vmul.f32 %v625, 1.442695
        %v684 = vpow.pop %v683
        %v685 = vmul.f32 %v626, 1.442695
        %v686 = vpow.pop %v685
        %v687 = vmul.f32 %v627, 1.442695
        %v688 = vpow.pop %v687
        %v689 = vmul.f32 %v628, 1.442695
        %v690 = vpow.pop %v689
        %v691 = vmul.f32 %v629, 1.442695
        %v692 = vpow.pop %v691
        %v693 = vmul.f32 %v630, 1.442695
        %v694 = vpow.pop %v693
        %v695 = vadd.f32 %v632, 1.0
        %v696 = vadd.f32 %v634, 1.0
        %v697 = vadd.f32 %v636, 1.0
        %v698 = vadd.f32 %v638, 1.0
        %v699 = vadd.f32 %v640, 1.0
        %v700 = vadd.f32 %v642, 1.0
        %v701 = vadd.f32 %v644, 1.0
        %v702 = vadd.f32 %v646, 1.0
        %v703 = vadd.f32 %v648, 1.0
        %v704 = vadd.f32 %v650, 1.0
        %v705 = vadd.f32 %v652, 1.0
        %v706 = vadd.f32 %v654, 1.0
        %v707 = vadd.f32 %v656, 1.0
        %v708 = vadd.f32 %v658, 1.0
        %v709 = vadd.f32 %v660, 1.0
        %v710 = vadd.f32 %v662, 1.0
        %v711 = vadd.f32 %v664, 1.0
        %v712 = vadd.f32 %v666, 1.0
        %v713 = vadd.f32 %v668, 1.0
        %v714 = vadd.f32 %v670, 1.0
        %v715 = vadd.f32 %v672, 1.0
        %v716 = vadd.f32 %v674, 1.0
        %v717 = vadd.f32 %v676, 1.0
        %v718 = vadd.f32 %v678, 1.0
        %v719 = vadd.f32 %v680, 1.0
        %v720 = vadd.f32 %v682, 1.0
        %v721 = vadd.f32 %v684, 1.0
        %v722 = vadd.f32 %v686, 1.0
        %v723 = vadd.f32 %v688, 1.0
        %v724 = vadd.f32 %v690, 1.0
        %v725 = vadd.f32 %v692, 1.0
        %v726 = vadd.f32 %v694, 1.0
        %v727 = vrcp.pop %v695
        %v728 = vmul.f32 %v695, %v727
        %v729 = vsub.f32 1.0, %v728
        %v730 = vmul.f32 %v727, %v729
        %v731 = vadd.f32 %v727, %v730
        %vm732 = vweird.f32 %v695
        %vm733 = vweird.f32 %v727
        %vm734 = vmor %vm732, %vm733
        %v735 = vsel %vm734, %v727, %v731
        %v736 = vand.u32 2147483647, %v695
        %vm737 = vcmp.eq.f32.partialorder %v736, 8.507059e+37
        %v738 = vand.u32 %v695, 2147483648
        %v739 = vor.u32 1.1754944e-38, %v738
        %v740 = vsel %vm737, %v739, %v735
        %v741 = vmul.f32 1.0, %v740
        %v742 = vrcp.pop %v696
        %v743 = vmul.f32 %v696, %v742
        %v744 = vsub.f32 1.0, %v743
        %v745 = vmul.f32 %v742, %v744
        %v746 = vadd.f32 %v742, %v745
        %vm747 = vweird.f32 %v696
        %vm748 = vweird.f32 %v742
        %vm749 = vmor %vm747, %vm748
        %v750 = vsel %vm749, %v742, %v746
        %v751 = vand.u32 2147483647, %v696
        %vm752 = vcmp.eq.f32.partialorder %v751, 8.507059e+37
        %v753 = vand.u32 %v696, 2147483648
        %v754 = vor.u32 1.1754944e-38, %v753
        %v755 = vsel %vm752, %v754, %v750
        %v756 = vmul.f32 1.0, %v755
        %v757 = vrcp.pop %v697
        %v758 = vmul.f32 %v697, %v757
        %v759 = vsub.f32 1.0, %v758
        %v760 = vmul.f32 %v757, %v759
        %v761 = vadd.f32 %v757, %v760
        %vm762 = vweird.f32 %v697
        %vm763 = vweird.f32 %v757
        %vm764 = vmor %vm762, %vm763
        %v765 = vsel %vm764, %v757, %v761
        %v766 = vand.u32 2147483647, %v697
        %vm767 = vcmp.eq.f32.partialorder %v766, 8.507059e+37
        %v768 = vand.u32 %v697, 2147483648
        %v769 = vor.u32 1.1754944e-38, %v768
        %v770 = vsel %vm767, %v769, %v765
        %v771 = vmul.f32 1.0, %v770
        %v772 = vrcp.pop %v698
        %v773 = vmul.f32 %v698, %v772
        %v774 = vsub.f32 1.0, %v773
        %v775 = vmul.f32 %v772, %v774
        %v776 = vadd.f32 %v772, %v775
        %vm777 = vweird.f32 %v698
        %vm778 = vweird.f32 %v772
        %vm779 = vmor %vm777, %vm778
        %v780 = vsel %vm779, %v772, %v776
        %v781 = vand.u32 2147483647, %v698
        %vm782 = vcmp.eq.f32.partialorder %v781, 8.507059e+37
        %v783 = vand.u32 %v698, 2147483648
        %v784 = vor.u32 1.1754944e-38, %v783
        %v785 = vsel %vm782, %v784, %v780
        %v786 = vmul.f32 1.0, %v785
        %v787 = vrcp.pop %v699
        %v788 = vmul.f32 %v699, %v787
        %v789 = vsub.f32 1.0, %v788
        %v790 = vmul.f32 %v787, %v789
        %v791 = vadd.f32 %v787, %v790
        %vm792 = vweird.f32 %v699
        %vm793 = vweird.f32 %v787
        %vm794 = vmor %vm792, %vm793
        %v795 = vsel %vm794, %v787, %v791
        %v796 = vand.u32 2147483647, %v699
        %vm797 = vcmp.eq.f32.partialorder %v796, 8.507059e+37
        %v798 = vand.u32 %v699, 2147483648
        %v799 = vor.u32 1.1754944e-38, %v798
        %v800 = vsel %vm797, %v799, %v795
        %v801 = vmul.f32 1.0, %v800
        %v802 = vrcp.pop %v700
        %v803 = vmul.f32 %v700, %v802
        %v804 = vsub.f32 1.0, %v803
        %v805 = vmul.f32 %v802, %v804
        %v806 = vadd.f32 %v802, %v805
        %vm807 = vweird.f32 %v700
        %vm808 = vweird.f32 %v802
        %vm809 = vmor %vm807, %vm808
        %v810 = vsel %vm809, %v802, %v806
        %v811 = vand.u32 2147483647, %v700
        %vm812 = vcmp.eq.f32.partialorder %v811, 8.507059e+37
        %v813 = vand.u32 %v700, 2147483648
        %v814 = vor.u32 1.1754944e-38, %v813
        %v815 = vsel %vm812, %v814, %v810
        %v816 = vmul.f32 1.0, %v815
        %v817 = vrcp.pop %v701
        %v818 = vmul.f32 %v701, %v817
        %v819 = vsub.f32 1.0, %v818
        %v820 = vmul.f32 %v817, %v819
        %v821 = vadd.f32 %v817, %v820
        %vm822 = vweird.f32 %v701
        %vm823 = vweird.f32 %v817
        %vm824 = vmor %vm822, %vm823
        %v825 = vsel %vm824, %v817, %v821
        %v826 = vand.u32 2147483647, %v701
        %vm827 = vcmp.eq.f32.partialorder %v826, 8.507059e+37
        %v828 = vand.u32 %v701, 2147483648
        %v829 = vor.u32 1.1754944e-38, %v828
        %v830 = vsel %vm827, %v829, %v825
        %v831 = vmul.f32 1.0, %v830
        %v832 = vrcp.pop %v702
        %v833 = vmul.f32 %v702, %v832
        %v834 = vsub.f32 1.0, %v833
        %v835 = vmul.f32 %v832, %v834
        %v836 = vadd.f32 %v832, %v835
        %vm837 = vweird.f32 %v702
        %vm838 = vweird.f32 %v832
        %vm839 = vmor %vm837, %vm838
        %v840 = vsel %vm839, %v832, %v836
        %v841 = vand.u32 2147483647, %v702
        %vm842 = vcmp.eq.f32.partialorder %v841, 8.507059e+37
        %v843 = vand.u32 %v702, 2147483648
        %v844 = vor.u32 1.1754944e-38, %v843
        %v845 = vsel %vm842, %v844, %v840
        %v846 = vmul.f32 1.0, %v845
        %v847 = vrcp.pop %v703
        %v848 = vmul.f32 %v703, %v847
        %v849 = vsub.f32 1.0, %v848
        %v850 = vmul.f32 %v847, %v849
        %v851 = vadd.f32 %v847, %v850
        %vm852 = vweird.f32 %v703
        %vm853 = vweird.f32 %v847
        %vm854 = vmor %vm852, %vm853
        %v855 = vsel %vm854, %v847, %v851
        %v856 = vand.u32 2147483647, %v703
        %vm857 = vcmp.eq.f32.partialorder %v856, 8.507059e+37
        %v858 = vand.u32 %v703, 2147483648
        %v859 = vor.u32 1.1754944e-38, %v858
        %v860 = vsel %vm857, %v859, %v855
        %v861 = vmul.f32 1.0, %v860
        %v862 = vrcp.pop %v704
        %v863 = vmul.f32 %v704, %v862
        %v864 = vsub.f32 1.0, %v863
        %v865 = vmul.f32 %v862, %v864
        %v866 = vadd.f32 %v862, %v865
        %vm867 = vweird.f32 %v704
        %vm868 = vweird.f32 %v862
        %vm869 = vmor %vm867, %vm868
        %v870 = vsel %vm869, %v862, %v866
        %v871 = vand.u32 2147483647, %v704
        %vm872 = vcmp.eq.f32.partialorder %v871, 8.507059e+37
        %v873 = vand.u32 %v704, 2147483648
        %v874 = vor.u32 1.1754944e-38, %v873
        %v875 = vsel %vm872, %v874, %v870
        %v876 = vmul.f32 1.0, %v875
        %v877 = vrcp.pop %v705
        %v878 = vmul.f32 %v705, %v877
        %v879 = vsub.f32 1.0, %v878
        %v880 = vmul.f32 %v877, %v879
        %v881 = vadd.f32 %v877, %v880
        %vm882 = vweird.f32 %v705
        %vm883 = vweird.f32 %v877
        %vm884 = vmor %vm882, %vm883
        %v885 = vsel %vm884, %v877, %v881
        %v886 = vand.u32 2147483647, %v705
        %vm887 = vcmp.eq.f32.partialorder %v886, 8.507059e+37
        %v888 = vand.u32 %v705, 2147483648
        %v889 = vor.u32 1.1754944e-38, %v888
        %v890 = vsel %vm887, %v889, %v885
        %v891 = vmul.f32 1.0, %v890
        %v892 = vrcp.pop %v706
        %v893 = vmul.f32 %v706, %v892
        %v894 = vsub.f32 1.0, %v893
        %v895 = vmul.f32 %v892, %v894
        %v896 = vadd.f32 %v892, %v895
        %vm897 = vweird.f32 %v706
        %vm898 = vweird.f32 %v892
        %vm899 = vmor %vm897, %vm898
        %v900 = vsel %vm899, %v892, %v896
        %v901 = vand.u32 2147483647, %v706
        %vm902 = vcmp.eq.f32.partialorder %v901, 8.507059e+37
        %v903 = vand.u32 %v706, 2147483648
        %v904 = vor.u32 1.1754944e-38, %v903
        %v905 = vsel %vm902, %v904, %v900
        %v906 = vmul.f32 1.0, %v905
        %v907 = vrcp.pop %v707
        %v908 = vmul.f32 %v707, %v907
        %v909 = vsub.f32 1.0, %v908
        %v910 = vmul.f32 %v907, %v909
        %v911 = vadd.f32 %v907, %v910
        %vm912 = vweird.f32 %v707
        %vm913 = vweird.f32 %v907
        %vm914 = vmor %vm912, %vm913
        %v915 = vsel %vm914, %v907, %v911
        %v916 = vand.u32 2147483647, %v707
        %vm917 = vcmp.eq.f32.partialorder %v916, 8.507059e+37
        %v918 = vand.u32 %v707, 2147483648
        %v919 = vor.u32 1.1754944e-38, %v918
        %v920 = vsel %vm917, %v919, %v915
        %v921 = vmul.f32 1.0, %v920
        %v922 = vrcp.pop %v708
        %v923 = vmul.f32 %v708, %v922
        %v924 = vsub.f32 1.0, %v923
        %v925 = vmul.f32 %v922, %v924
        %v926 = vadd.f32 %v922, %v925
        %vm927 = vweird.f32 %v708
        %vm928 = vweird.f32 %v922
        %vm929 = vmor %vm927, %vm928
        %v930 = vsel %vm929, %v922, %v926
        %v931 = vand.u32 2147483647, %v708
        %vm932 = vcmp.eq.f32.partialorder %v931, 8.507059e+37
        %v933 = vand.u32 %v708, 2147483648
        %v934 = vor.u32 1.1754944e-38, %v933
        %v935 = vsel %vm932, %v934, %v930
        %v936 = vmul.f32 1.0, %v935
        %v937 = vrcp.pop %v709
        %v938 = vmul.f32 %v709, %v937
        %v939 = vsub.f32 1.0, %v938
        %v940 = vmul.f32 %v937, %v939
        %v941 = vadd.f32 %v937, %v940
        %vm942 = vweird.f32 %v709
        %vm943 = vweird.f32 %v937
        %vm944 = vmor %vm942, %vm943
        %v945 = vsel %vm944, %v937, %v941
        %v946 = vand.u32 2147483647, %v709
        %vm947 = vcmp.eq.f32.partialorder %v946, 8.507059e+37
        %v948 = vand.u32 %v709, 2147483648
        %v949 = vor.u32 1.1754944e-38, %v948
        %v950 = vsel %vm947, %v949, %v945
        %v951 = vmul.f32 1.0, %v950
        %v952 = vrcp.pop %v710
        %v953 = vmul.f32 %v710, %v952
        %v954 = vsub.f32 1.0, %v953
        %v955 = vmul.f32 %v952, %v954
        %v956 = vadd.f32 %v952, %v955
        %vm957 = vweird.f32 %v710
        %vm958 = vweird.f32 %v952
        %vm959 = vmor %vm957, %vm958
        %v960 = vsel %vm959, %v952, %v956
        %v961 = vand.u32 2147483647, %v710
        %vm962 = vcmp.eq.f32.partialorder %v961, 8.507059e+37
        %v963 = vand.u32 %v710, 2147483648
        %v964 = vor.u32 1.1754944e-38, %v963
        %v965 = vsel %vm962, %v964, %v960
        %v966 = vmul.f32 1.0, %v965
        %v967 = vrcp.pop %v711
        %v968 = vmul.f32 %v711, %v967
        %v969 = vsub.f32 1.0, %v968
        %v970 = vmul.f32 %v967, %v969
        %v971 = vadd.f32 %v967, %v970
        %vm972 = vweird.f32 %v711
        %vm973 = vweird.f32 %v967
        %vm974 = vmor %vm972, %vm973
        %v975 = vsel %vm974, %v967, %v971
        %v976 = vand.u32 2147483647, %v711
        %vm977 = vcmp.eq.f32.partialorder %v976, 8.507059e+37
        %v978 = vand.u32 %v711, 2147483648
        %v979 = vor.u32 1.1754944e-38, %v978
        %v980 = vsel %vm977, %v979, %v975
        %v981 = vmul.f32 1.0, %v980
        %v982 = vrcp.pop %v712
        %v983 = vmul.f32 %v712, %v982
        %v984 = vsub.f32 1.0, %v983
        %v985 = vmul.f32 %v982, %v984
        %v986 = vadd.f32 %v982, %v985
        %vm987 = vweird.f32 %v712
        %vm988 = vweird.f32 %v982
        %vm989 = vmor %vm987, %vm988
        %v990 = vsel %vm989, %v982, %v986
        %v991 = vand.u32 2147483647, %v712
        %vm992 = vcmp.eq.f32.partialorder %v991, 8.507059e+37
        %v993 = vand.u32 %v712, 2147483648
        %v994 = vor.u32 1.1754944e-38, %v993
        %v995 = vsel %vm992, %v994, %v990
        %v996 = vmul.f32 1.0, %v995
        %v997 = vrcp.pop %v713
        %v998 = vmul.f32 %v713, %v997
        %v999 = vsub.f32 1.0, %v998
        %v1000 = vmul.f32 %v997, %v999
        %v1001 = vadd.f32 %v997, %v1000
        %vm1002 = vweird.f32 %v713
        %vm1003 = vweird.f32 %v997
        %vm1004 = vmor %vm1002, %vm1003
        %v1005 = vsel %vm1004, %v997, %v1001
        %v1006 = vand.u32 2147483647, %v713
        %vm1007 = vcmp.eq.f32.partialorder %v1006, 8.507059e+37
        %v1008 = vand.u32 %v713, 2147483648
        %v1009 = vor.u32 1.1754944e-38, %v1008
        %v1010 = vsel %vm1007, %v1009, %v1005
        %v1011 = vmul.f32 1.0, %v1010
        %v1012 = vrcp.pop %v714
        %v1013 = vmul.f32 %v714, %v1012
        %v1014 = vsub.f32 1.0, %v1013
        %v1015 = vmul.f32 %v1012, %v1014
        %v1016 = vadd.f32 %v1012, %v1015
        %vm1017 = vweird.f32 %v714
        %vm1018 = vweird.f32 %v1012
        %vm1019 = vmor %vm1017, %vm1018
        %v1020 = vsel %vm1019, %v1012, %v1016
        %v1021 = vand.u32 2147483647, %v714
        %vm1022 = vcmp.eq.f32.partialorder %v1021, 8.507059e+37
        %v1023 = vand.u32 %v714, 2147483648
        %v1024 = vor.u32 1.1754944e-38, %v1023
        %v1025 = vsel %vm1022, %v1024, %v1020
        %v1026 = vmul.f32 1.0, %v1025
        %v1027 = vrcp.pop %v715
        %v1028 = vmul.f32 %v715, %v1027
        %v1029 = vsub.f32 1.0, %v1028
        %v1030 = vmul.f32 %v1027, %v1029
        %v1031 = vadd.f32 %v1027, %v1030
        %vm1032 = vweird.f32 %v715
        %vm1033 = vweird.f32 %v1027
        %vm1034 = vmor %vm1032, %vm1033
        %v1035 = vsel %vm1034, %v1027, %v1031
        %v1036 = vand.u32 2147483647, %v715
        %vm1037 = vcmp.eq.f32.partialorder %v1036, 8.507059e+37
        %v1038 = vand.u32 %v715, 2147483648
        %v1039 = vor.u32 1.1754944e-38, %v1038
        %v1040 = vsel %vm1037, %v1039, %v1035
        %v1041 = vmul.f32 1.0, %v1040
        %v1042 = vrcp.pop %v716
        %v1043 = vmul.f32 %v716, %v1042
        %v1044 = vsub.f32 1.0, %v1043
        %v1045 = vmul.f32 %v1042, %v1044
        %v1046 = vadd.f32 %v1042, %v1045
        %vm1047 = vweird.f32 %v716
        %vm1048 = vweird.f32 %v1042
        %vm1049 = vmor %vm1047, %vm1048
        %v1050 = vsel %vm1049, %v1042, %v1046
        %v1051 = vand.u32 2147483647, %v716
        %vm1052 = vcmp.eq.f32.partialorder %v1051, 8.507059e+37
        %v1053 = vand.u32 %v716, 2147483648
        %v1054 = vor.u32 1.1754944e-38, %v1053
        %v1055 = vsel %vm1052, %v1054, %v1050
        %v1056 = vmul.f32 1.0, %v1055
        %v1057 = vrcp.pop %v717
        %v1058 = vmul.f32 %v717, %v1057
        %v1059 = vsub.f32 1.0, %v1058
        %v1060 = vmul.f32 %v1057, %v1059
        %v1061 = vadd.f32 %v1057, %v1060
        %vm1062 = vweird.f32 %v717
        %vm1063 = vweird.f32 %v1057
        %vm1064 = vmor %vm1062, %vm1063
        %v1065 = vsel %vm1064, %v1057, %v1061
        %v1066 = vand.u32 2147483647, %v717
        %vm1067 = vcmp.eq.f32.partialorder %v1066, 8.507059e+37
        %v1068 = vand.u32 %v717, 2147483648
        %v1069 = vor.u32 1.1754944e-38, %v1068
        %v1070 = vsel %vm1067, %v1069, %v1065
        %v1071 = vmul.f32 1.0, %v1070
        %v1072 = vrcp.pop %v718
        %v1073 = vmul.f32 %v718, %v1072
        %v1074 = vsub.f32 1.0, %v1073
        %v1075 = vmul.f32 %v1072, %v1074
        %v1076 = vadd.f32 %v1072, %v1075
        %vm1077 = vweird.f32 %v718
        %vm1078 = vweird.f32 %v1072
        %vm1079 = vmor %vm1077, %vm1078
        %v1080 = vsel %vm1079, %v1072, %v1076
        %v1081 = vand.u32 2147483647, %v718
        %vm1082 = vcmp.eq.f32.partialorder %v1081, 8.507059e+37
        %v1083 = vand.u32 %v718, 2147483648
        %v1084 = vor.u32 1.1754944e-38, %v1083
        %v1085 = vsel %vm1082, %v1084, %v1080
        %v1086 = vmul.f32 1.0, %v1085
        %v1087 = vrcp.pop %v719
        %v1088 = vmul.f32 %v719, %v1087
        %v1089 = vsub.f32 1.0, %v1088
        %v1090 = vmul.f32 %v1087, %v1089
        %v1091 = vadd.f32 %v1087, %v1090
        %vm1092 = vweird.f32 %v719
        %vm1093 = vweird.f32 %v1087
        %vm1094 = vmor %vm1092, %vm1093
        %v1095 = vsel %vm1094, %v1087, %v1091
        %v1096 = vand.u32 2147483647, %v719
        %vm1097 = vcmp.eq.f32.partialorder %v1096, 8.507059e+37
        %v1098 = vand.u32 %v719, 2147483648
        %v1099 = vor.u32 1.1754944e-38, %v1098
        %v1100 = vsel %vm1097, %v1099, %v1095
        %v1101 = vmul.f32 1.0, %v1100
        %v1102 = vrcp.pop %v720
        %v1103 = vmul.f32 %v720, %v1102
        %v1104 = vsub.f32 1.0, %v1103
        %v1105 = vmul.f32 %v1102, %v1104
        %v1106 = vadd.f32 %v1102, %v1105
        %vm1107 = vweird.f32 %v720
        %vm1108 = vweird.f32 %v1102
        %vm1109 = vmor %vm1107, %vm1108
        %v1110 = vsel %vm1109, %v1102, %v1106
        %v1111 = vand.u32 2147483647, %v720
        %vm1112 = vcmp.eq.f32.partialorder %v1111, 8.507059e+37
        %v1113 = vand.u32 %v720, 2147483648
        %v1114 = vor.u32 1.1754944e-38, %v1113
        %v1115 = vsel %vm1112, %v1114, %v1110
        %v1116 = vmul.f32 1.0, %v1115
        %v1117 = vrcp.pop %v721
        %v1118 = vmul.f32 %v721, %v1117
        %v1119 = vsub.f32 1.0, %v1118
        %v1120 = vmul.f32 %v1117, %v1119
        %v1121 = vadd.f32 %v1117, %v1120
        %vm1122 = vweird.f32 %v721
        %vm1123 = vweird.f32 %v1117
        %vm1124 = vmor %vm1122, %vm1123
        %v1125 = vsel %vm1124, %v1117, %v1121
        %v1126 = vand.u32 2147483647, %v721
        %vm1127 = vcmp.eq.f32.partialorder %v1126, 8.507059e+37
        %v1128 = vand.u32 %v721, 2147483648
        %v1129 = vor.u32 1.1754944e-38, %v1128
        %v1130 = vsel %vm1127, %v1129, %v1125
        %v1131 = vmul.f32 1.0, %v1130
        %v1132 = vrcp.pop %v722
        %v1133 = vmul.f32 %v722, %v1132
        %v1134 = vsub.f32 1.0, %v1133
        %v1135 = vmul.f32 %v1132, %v1134
        %v1136 = vadd.f32 %v1132, %v1135
        %vm1137 = vweird.f32 %v722
        %vm1138 = vweird.f32 %v1132
        %vm1139 = vmor %vm1137, %vm1138
        %v1140 = vsel %vm1139, %v1132, %v1136
        %v1141 = vand.u32 2147483647, %v722
        %vm1142 = vcmp.eq.f32.partialorder %v1141, 8.507059e+37
        %v1143 = vand.u32 %v722, 2147483648
        %v1144 = vor.u32 1.1754944e-38, %v1143
        %v1145 = vsel %vm1142, %v1144, %v1140
        %v1146 = vmul.f32 1.0, %v1145
        %v1147 = vrcp.pop %v723
        %v1148 = vmul.f32 %v723, %v1147
        %v1149 = vsub.f32 1.0, %v1148
        %v1150 = vmul.f32 %v1147, %v1149
        %v1151 = vadd.f32 %v1147, %v1150
        %vm1152 = vweird.f32 %v723
        %vm1153 = vweird.f32 %v1147
        %vm1154 = vmor %vm1152, %vm1153
        %v1155 = vsel %vm1154, %v1147, %v1151
        %v1156 = vand.u32 2147483647, %v723
        %vm1157 = vcmp.eq.f32.partialorder %v1156, 8.507059e+37
        %v1158 = vand.u32 %v723, 2147483648
        %v1159 = vor.u32 1.1754944e-38, %v1158
        %v1160 = vsel %vm1157, %v1159, %v1155
        %v1161 = vmul.f32 1.0, %v1160
        %v1162 = vrcp.pop %v724
        %v1163 = vmul.f32 %v724, %v1162
        %v1164 = vsub.f32 1.0, %v1163
        %v1165 = vmul.f32 %v1162, %v1164
        %v1166 = vadd.f32 %v1162, %v1165
        %vm1167 = vweird.f32 %v724
        %vm1168 = vweird.f32 %v1162
        %vm1169 = vmor %vm1167, %vm1168
        %v1170 = vsel %vm1169, %v1162, %v1166
        %v1171 = vand.u32 2147483647, %v724
        %vm1172 = vcmp.eq.f32.partialorder %v1171, 8.507059e+37
        %v1173 = vand.u32 %v724, 2147483648
        %v1174 = vor.u32 1.1754944e-38, %v1173
        %v1175 = vsel %vm1172, %v1174, %v1170
        %v1176 = vmul.f32 1.0, %v1175
        %v1177 = vrcp.pop %v725
        %v1178 = vmul.f32 %v725, %v1177
        %v1179 = vsub.f32 1.0, %v1178
        %v1180 = vmul.f32 %v1177, %v1179
        %v1181 = vadd.f32 %v1177, %v1180
        %vm1182 = vweird.f32 %v725
        %vm1183 = vweird.f32 %v1177
        %vm1184 = vmor %vm1182, %vm1183
        %v1185 = vsel %vm1184, %v1177, %v1181
        %v1186 = vand.u32 2147483647, %v725
        %vm1187 = vcmp.eq.f32.partialorder %v1186, 8.507059e+37
        %v1188 = vand.u32 %v725, 2147483648
        %v1189 = vor.u32 1.1754944e-38, %v1188
        %v1190 = vsel %vm1187, %v1189, %v1185
        %v1191 = vmul.f32 1.0, %v1190
        %v1192 = vrcp.pop %v726
        %v1193 = vmul.f32 %v726, %v1192
        %v1194 = vsub.f32 1.0, %v1193
        %v1195 = vmul.f32 %v1192, %v1194
        %v1196 = vadd.f32 %v1192, %v1195
        %vm1197 = vweird.f32 %v726
        %vm1198 = vweird.f32 %v1192
        %vm1199 = vmor %vm1197, %vm1198
        %v1200 = vsel %vm1199, %v1192, %v1196
        %v1201 = vand.u32 2147483647, %v726
        %vm1202 = vcmp.eq.f32.partialorder %v1201, 8.507059e+37
        %v1203 = vand.u32 %v726, 2147483648
        %v1204 = vor.u32 1.1754944e-38, %v1203
        %v1205 = vsel %vm1202, %v1204, %v1200
        %v1206 = vmul.f32 1.0, %v1205
        %v1207 = vmul.f32 %v520, %v741
        %v1208 = vmul.f32 %v522, %v756
        %v1209 = vmul.f32 %v525, %v771
        %v1210 = vmul.f32 %v527, %v786
        %v1211 = vmul.f32 %v530, %v801
        %v1212 = vmul.f32 %v532, %v816
        %v1213 = vmul.f32 %v535, %v831
        %v1214 = vmul.f32 %v537, %v846
        %v1215 = vmul.f32 %v540, %v861
        %v1216 = vmul.f32 %v542, %v876
        %v1217 = vmul.f32 %v545, %v891
        %v1218 = vmul.f32 %v547, %v906
        %v1219 = vmul.f32 %v550, %v921
        %v1220 = vmul.f32 %v552, %v936
        %v1221 = vmul.f32 %v555, %v951
        %v1222 = vmul.f32 %v557, %v966
        %v1223 = vmul.f32 %v560, %v981
        %v1224 = vmul.f32 %v562, %v996
        %v1225 = vmul.f32 %v565, %v1011
        %v1226 = vmul.f32 %v567, %v1026
        %v1227 = vmul.f32 %v570, %v1041
        %v1228 = vmul.f32 %v572, %v1056
        %v1229 = vmul.f32 %v575, %v1071
        %v1230 = vmul.f32 %v577, %v1086
        %v1231 = vmul.f32 %v580, %v1101
        %v1232 = vmul.f32 %v582, %v1116
        %v1233 = vmul.f32 %v585, %v1131
        %v1234 = vmul.f32 %v587, %v1146
        %v1235 = vmul.f32 %v590, %v1161
        %v1236 = vmul.f32 %v592, %v1176
        %v1237 = vmul.f32 %v595, %v1191
        %v1238 = vmul.f32 %v597, %v1206
        %v1239 = vpack.c.bf16 %v1208, %v1207
        %v1240 = vpack.c.bf16 %v1210, %v1209
        %v1241 = vpack.c.bf16 %v1212, %v1211
        %v1242 = vpack.c.bf16 %v1214, %v1213
        %v1243 = vpack.c.bf16 %v1216, %v1215
        %v1244 = vpack.c.bf16 %v1218, %v1217
        %v1245 = vpack.c.bf16 %v1220, %v1219
        %v1246 = vpack.c.bf16 %v1222, %v1221
        %v1247 = vpack.c.bf16 %v1224, %v1223
        %v1248 = vpack.c.bf16 %v1226, %v1225
        %v1249 = vpack.c.bf16 %v1228, %v1227
        %v1250 = vpack.c.bf16 %v1230, %v1229
        %v1251 = vpack.c.bf16 %v1232, %v1231
        %v1252 = vpack.c.bf16 %v1234, %v1233
        %v1253 = vpack.c.bf16 %v1236, %v1235
        %v1254 = vpack.c.bf16 %v1238, %v1237
        %v1255 = vld [vmem:[%s3] sm:$0x1]
        %v1256 = vld [vmem:[%s4] sm:$0x1]
        %v1258 = vperm.slane %v1256, 0
        %v1261 = vsel %vm332, %v1239, 0
        %v1264 = vsel %vm332, %v1240, 0
        %v1267 = vsel %vm332, %v1241, 0
        %v1270 = vsel %vm332, %v1242, 0
        %v1273 = vsel %vm332, %v1243, 0
        %v1276 = vsel %vm332, %v1244, 0
        %v1279 = vsel %vm332, %v1245, 0
        %v1282 = vsel %vm332, %v1246, 0
        %v1285 = vsel %vm332, %v1247, 0
        %v1288 = vsel %vm332, %v1248, 0
        %v1291 = vsel %vm332, %v1249, 0
        %v1294 = vsel %vm332, %v1250, 0
        %v1297 = vsel %vm332, %v1251, 0
        %v1300 = vsel %vm332, %v1252, 0
        %v1303 = vsel %vm332, %v1253, 0
        %v1306 = vsel %vm332, %v1254, 0
        %vm1308 = vcmask 1040384
        %v1310 = vsel %vm1308, %v1255, 0
        %1312 = vmatpush.bf16.msra.mxu0 0
        %1313 = vmatpush.bf16.msra.mxu0 0
        %1314 = vmatpush.bf16.msra.mxu0 0
        %1315 = vmatpush.bf16.msra.mxu0 0
        %1316 = vmatpush.bf16.msra.mxu0 0
        %1317 = vmatpush.bf16.msra.mxu0 0
        %1318 = vmatpush.bf16.msra.mxu0 0
        %1319 = vmatpush.bf16.msra.mxu0 %v1310
        %1320 = vmatmul.bf16.gmra.mxu0 %v1261
        %v1321 = vpop.f32.mrf.mxu0
        %v1322 = vadd.f32 %v1258, %v1321
        %v1323 = vpop.f32.mrf.mxu0
        %v1324 = vadd.f32 %v1258, %v1323
        %1325 = vmatmul.bf16.gmra.mxu0 %v1264
        %v1326 = vpop.f32.mrf.mxu0
        %v1327 = vadd.f32 %v1258, %v1326
        %v1328 = vpop.f32.mrf.mxu0
        %v1329 = vadd.f32 %v1258, %v1328
        %1330 = vmatmul.bf16.gmra.mxu0 %v1267
        %v1331 = vpop.f32.mrf.mxu0
        %v1332 = vadd.f32 %v1258, %v1331
        %v1333 = vpop.f32.mrf.mxu0
        %v1334 = vadd.f32 %v1258, %v1333
        %1335 = vmatmul.bf16.gmra.mxu0 %v1270
        %v1336 = vpop.f32.mrf.mxu0
        %v1337 = vadd.f32 %v1258, %v1336
        %v1338 = vpop.f32.mrf.mxu0
        %v1339 = vadd.f32 %v1258, %v1338
        %1340 = vmatmul.bf16.gmra.mxu0 %v1273
        %v1341 = vpop.f32.mrf.mxu0
        %v1342 = vadd.f32 %v1258, %v1341
        %v1343 = vpop.f32.mrf.mxu0
        %v1344 = vadd.f32 %v1258, %v1343
        %1345 = vmatmul.bf16.gmra.mxu0 %v1276
        %v1346 = vpop.f32.mrf.mxu0
        %v1347 = vadd.f32 %v1258, %v1346
        %v1348 = vpop.f32.mrf.mxu0
        %v1349 = vadd.f32 %v1258, %v1348
        %1350 = vmatmul.bf16.gmra.mxu0 %v1279
        %v1351 = vpop.f32.mrf.mxu0
        %v1352 = vadd.f32 %v1258, %v1351
        %v1353 = vpop.f32.mrf.mxu0
        %v1354 = vadd.f32 %v1258, %v1353
        %1355 = vmatmul.bf16.gmra.mxu0 %v1282
        %v1356 = vpop.f32.mrf.mxu0
        %v1357 = vadd.f32 %v1258, %v1356
        %v1358 = vpop.f32.mrf.mxu0
        %v1359 = vadd.f32 %v1258, %v1358
        %1360 = vmatmul.bf16.gmra.mxu0 %v1285
        %v1361 = vpop.f32.mrf.mxu0
        %v1362 = vadd.f32 %v1258, %v1361
        %v1363 = vpop.f32.mrf.mxu0
        %v1364 = vadd.f32 %v1258, %v1363
        %1365 = vmatmul.bf16.gmra.mxu0 %v1288
        %v1366 = vpop.f32.mrf.mxu0
        %v1367 = vadd.f32 %v1258, %v1366
        %v1368 = vpop.f32.mrf.mxu0
        %v1369 = vadd.f32 %v1258, %v1368
        %1370 = vmatmul.bf16.gmra.mxu0 %v1291
        %v1371 = vpop.f32.mrf.mxu0
        %v1372 = vadd.f32 %v1258, %v1371
        %v1373 = vpop.f32.mrf.mxu0
        %v1374 = vadd.f32 %v1258, %v1373
        %1375 = vmatmul.bf16.gmra.mxu0 %v1294
        %v1376 = vpop.f32.mrf.mxu0
        %v1377 = vadd.f32 %v1258, %v1376
        %v1378 = vpop.f32.mrf.mxu0
        %v1379 = vadd.f32 %v1258, %v1378
        %1380 = vmatmul.bf16.gmra.mxu0 %v1297
        %v1381 = vpop.f32.mrf.mxu0
        %v1382 = vadd.f32 %v1258, %v1381
        %v1383 = vpop.f32.mrf.mxu0
        %v1384 = vadd.f32 %v1258, %v1383
        %1385 = vmatmul.bf16.gmra.mxu0 %v1300
        %v1386 = vpop.f32.mrf.mxu0
        %v1387 = vadd.f32 %v1258, %v1386
        %v1388 = vpop.f32.mrf.mxu0
        %v1389 = vadd.f32 %v1258, %v1388
        %1390 = vmatmul.bf16.gmra.mxu0 %v1303
        %v1391 = vpop.f32.mrf.mxu0
        %v1392 = vadd.f32 %v1258, %v1391
        %v1393 = vpop.f32.mrf.mxu0
        %v1394 = vadd.f32 %v1258, %v1393
        %1395 = vmatmul.bf16.gmra.mxu0 %v1306
        %v1396 = vpop.f32.mrf.mxu0
        %v1397 = vadd.f32 %v1258, %v1396
        %v1398 = vpop.f32.mrf.mxu0
        %v1399 = vadd.f32 %v1258, %v1398
        %1400 = vdwg.mxu0
        %v1401 = vxor.u32 %v1322, 2147483648
        %v1402 = vxor.u32 %v1324, 2147483648
        %v1403 = vxor.u32 %v1327, 2147483648
        %v1404 = vxor.u32 %v1329, 2147483648
        %v1405 = vxor.u32 %v1332, 2147483648
        %v1406 = vxor.u32 %v1334, 2147483648
        %v1407 = vxor.u32 %v1337, 2147483648
        %v1408 = vxor.u32 %v1339, 2147483648
        %v1409 = vxor.u32 %v1342, 2147483648
        %v1410 = vxor.u32 %v1344, 2147483648
        %v1411 = vxor.u32 %v1347, 2147483648
        %v1412 = vxor.u32 %v1349, 2147483648
        %v1413 = vxor.u32 %v1352, 2147483648
        %v1414 = vxor.u32 %v1354, 2147483648
        %v1415 = vxor.u32 %v1357, 2147483648
        %v1416 = vxor.u32 %v1359, 2147483648
        %v1417 = vxor.u32 %v1362, 2147483648
        %v1418 = vxor.u32 %v1364, 2147483648
        %v1419 = vxor.u32 %v1367, 2147483648
        %v1420 = vxor.u32 %v1369, 2147483648
        %v1421 = vxor.u32 %v1372, 2147483648
        %v1422 = vxor.u32 %v1374, 2147483648
        %v1423 = vxor.u32 %v1377, 2147483648
        %v1424 = vxor.u32 %v1379, 2147483648
        %v1425 = vxor.u32 %v1382, 2147483648
        %v1426 = vxor.u32 %v1384, 2147483648
        %v1427 = vxor.u32 %v1387, 2147483648
        %v1428 = vxor.u32 %v1389, 2147483648
        %v1429 = vxor.u32 %v1392, 2147483648
        %v1430 = vxor.u32 %v1394, 2147483648
        %v1431 = vxor.u32 %v1397, 2147483648
        %v1432 = vxor.u32 %v1399, 2147483648
        %v1433 = vmul.f32 %v1401, 1.442695
        %v1434 = vpow.pop %v1433
        %v1435 = vmul.f32 %v1402, 1.442695
        %v1436 = vpow.pop %v1435
        %v1437 = vmul.f32 %v1403, 1.442695
        %v1438 = vpow.pop %v1437
        %v1439 = vmul.f32 %v1404, 1.442695
        %v1440 = vpow.pop %v1439
        %v1441 = vmul.f32 %v1405, 1.442695
        %v1442 = vpow.pop %v1441
        %v1443 = vmul.f32 %v1406, 1.442695
        %v1444 = vpow.pop %v1443
        %v1445 = vmul.f32 %v1407, 1.442695
        %v1446 = vpow.pop %v1445
        %v1447 = vmul.f32 %v1408, 1.442695
        %v1448 = vpow.pop %v1447
        %v1449 = vmul.f32 %v1409, 1.442695
        %v1450 = vpow.pop %v1449
        %v1451 = vmul.f32 %v1410, 1.442695
        %v1452 = vpow.pop %v1451
        %v1453 = vmul.f32 %v1411, 1.442695
        %v1454 = vpow.pop %v1453
        %v1455 = vmul.f32 %v1412, 1.442695
        %v1456 = vpow.pop %v1455
        %v1457 = vmul.f32 %v1413, 1.442695
        %v1458 = vpow.pop %v1457
        %v1459 = vmul.f32 %v1414, 1.442695
        %v1460 = vpow.pop %v1459
        %v1461 = vmul.f32 %v1415, 1.442695
        %v1462 = vpow.pop %v1461
        %v1463 = vmul.f32 %v1416, 1.442695
        %v1464 = vpow.pop %v1463
        %v1465 = vmul.f32 %v1417, 1.442695
        %v1466 = vpow.pop %v1465
        %v1467 = vmul.f32 %v1418, 1.442695
        %v1468 = vpow.pop %v1467
        %v1469 = vmul.f32 %v1419, 1.442695
        %v1470 = vpow.pop %v1469
        %v1471 = vmul.f32 %v1420, 1.442695
        %v1472 = vpow.pop %v1471
        %v1473 = vmul.f32 %v1421, 1.442695
        %v1474 = vpow.pop %v1473
        %v1475 = vmul.f32 %v1422, 1.442695
        %v1476 = vpow.pop %v1475
        %v1477 = vmul.f32 %v1423, 1.442695
        %v1478 = vpow.pop %v1477
        %v1479 = vmul.f32 %v1424, 1.442695
        %v1480 = vpow.pop %v1479
        %v1481 = vmul.f32 %v1425, 1.442695
        %v1482 = vpow.pop %v1481
        %v1483 = vmul.f32 %v1426, 1.442695
        %v1484 = vpow.pop %v1483
        %v1485 = vmul.f32 %v1427, 1.442695
        %v1486 = vpow.pop %v1485
        %v1487 = vmul.f32 %v1428, 1.442695
        %v1488 = vpow.pop %v1487
        %v1489 = vmul.f32 %v1429, 1.442695
        %v1490 = vpow.pop %v1489
        %v1491 = vmul.f32 %v1430, 1.442695
        %v1492 = vpow.pop %v1491
        %v1493 = vmul.f32 %v1431, 1.442695
        %v1494 = vpow.pop %v1493
        %v1495 = vmul.f32 %v1432, 1.442695
        %v1496 = vpow.pop %v1495
        %v1497 = vadd.f32 %v1434, 1.0
        %v1498 = vadd.f32 %v1436, 1.0
        %v1499 = vadd.f32 %v1438, 1.0
        %v1500 = vadd.f32 %v1440, 1.0
        %v1501 = vadd.f32 %v1442, 1.0
        %v1502 = vadd.f32 %v1444, 1.0
        %v1503 = vadd.f32 %v1446, 1.0
        %v1504 = vadd.f32 %v1448, 1.0
        %v1505 = vadd.f32 %v1450, 1.0
        %v1506 = vadd.f32 %v1452, 1.0
        %v1507 = vadd.f32 %v1454, 1.0
        %v1508 = vadd.f32 %v1456, 1.0
        %v1509 = vadd.f32 %v1458, 1.0
        %v1510 = vadd.f32 %v1460, 1.0
        %v1511 = vadd.f32 %v1462, 1.0
        %v1512 = vadd.f32 %v1464, 1.0
        %v1513 = vadd.f32 %v1466, 1.0
        %v1514 = vadd.f32 %v1468, 1.0
        %v1515 = vadd.f32 %v1470, 1.0
        %v1516 = vadd.f32 %v1472, 1.0
        %v1517 = vadd.f32 %v1474, 1.0
        %v1518 = vadd.f32 %v1476, 1.0
        %v1519 = vadd.f32 %v1478, 1.0
        %v1520 = vadd.f32 %v1480, 1.0
        %v1521 = vadd.f32 %v1482, 1.0
        %v1522 = vadd.f32 %v1484, 1.0
        %v1523 = vadd.f32 %v1486, 1.0
        %v1524 = vadd.f32 %v1488, 1.0
        %v1525 = vadd.f32 %v1490, 1.0
        %v1526 = vadd.f32 %v1492, 1.0
        %v1527 = vadd.f32 %v1494, 1.0
        %v1528 = vadd.f32 %v1496, 1.0
        %v1529 = vrcp.pop %v1497
        %v1530 = vmul.f32 %v1497, %v1529
        %v1531 = vsub.f32 1.0, %v1530
        %v1532 = vmul.f32 %v1529, %v1531
        %v1533 = vadd.f32 %v1529, %v1532
        %vm1534 = vweird.f32 %v1497
        %vm1535 = vweird.f32 %v1529
        %vm1536 = vmor %vm1534, %vm1535
        %v1537 = vsel %vm1536, %v1529, %v1533
        %v1538 = vand.u32 2147483647, %v1497
        %vm1539 = vcmp.eq.f32.partialorder %v1538, 8.507059e+37
        %v1540 = vand.u32 %v1497, 2147483648
        %v1541 = vor.u32 1.1754944e-38, %v1540
        %v1542 = vsel %vm1539, %v1541, %v1537
        %v1543 = vmul.f32 1.0, %v1542
        %v1544 = vrcp.pop %v1498
        %v1545 = vmul.f32 %v1498, %v1544
        %v1546 = vsub.f32 1.0, %v1545
        %v1547 = vmul.f32 %v1544, %v1546
        %v1548 = vadd.f32 %v1544, %v1547
        %vm1549 = vweird.f32 %v1498
        %vm1550 = vweird.f32 %v1544
        %vm1551 = vmor %vm1549, %vm1550
        %v1552 = vsel %vm1551, %v1544, %v1548
        %v1553 = vand.u32 2147483647, %v1498
        %vm1554 = vcmp.eq.f32.partialorder %v1553, 8.507059e+37
        %v1555 = vand.u32 %v1498, 2147483648
        %v1556 = vor.u32 1.1754944e-38, %v1555
        %v1557 = vsel %vm1554, %v1556, %v1552
        %v1558 = vmul.f32 1.0, %v1557
        %v1559 = vrcp.pop %v1499
        %v1560 = vmul.f32 %v1499, %v1559
        %v1561 = vsub.f32 1.0, %v1560
        %v1562 = vmul.f32 %v1559, %v1561
        %v1563 = vadd.f32 %v1559, %v1562
        %vm1564 = vweird.f32 %v1499
        %vm1565 = vweird.f32 %v1559
        %vm1566 = vmor %vm1564, %vm1565
        %v1567 = vsel %vm1566, %v1559, %v1563
        %v1568 = vand.u32 2147483647, %v1499
        %vm1569 = vcmp.eq.f32.partialorder %v1568, 8.507059e+37
        %v1570 = vand.u32 %v1499, 2147483648
        %v1571 = vor.u32 1.1754944e-38, %v1570
        %v1572 = vsel %vm1569, %v1571, %v1567
        %v1573 = vmul.f32 1.0, %v1572
        %v1574 = vrcp.pop %v1500
        %v1575 = vmul.f32 %v1500, %v1574
        %v1576 = vsub.f32 1.0, %v1575
        %v1577 = vmul.f32 %v1574, %v1576
        %v1578 = vadd.f32 %v1574, %v1577
        %vm1579 = vweird.f32 %v1500
        %vm1580 = vweird.f32 %v1574
        %vm1581 = vmor %vm1579, %vm1580
        %v1582 = vsel %vm1581, %v1574, %v1578
        %v1583 = vand.u32 2147483647, %v1500
        %vm1584 = vcmp.eq.f32.partialorder %v1583, 8.507059e+37
        %v1585 = vand.u32 %v1500, 2147483648
        %v1586 = vor.u32 1.1754944e-38, %v1585
        %v1587 = vsel %vm1584, %v1586, %v1582
        %v1588 = vmul.f32 1.0, %v1587
        %v1589 = vrcp.pop %v1501
        %v1590 = vmul.f32 %v1501, %v1589
        %v1591 = vsub.f32 1.0, %v1590
        %v1592 = vmul.f32 %v1589, %v1591
        %v1593 = vadd.f32 %v1589, %v1592
        %vm1594 = vweird.f32 %v1501
        %vm1595 = vweird.f32 %v1589
        %vm1596 = vmor %vm1594, %vm1595
        %v1597 = vsel %vm1596, %v1589, %v1593
        %v1598 = vand.u32 2147483647, %v1501
        %vm1599 = vcmp.eq.f32.partialorder %v1598, 8.507059e+37
        %v1600 = vand.u32 %v1501, 2147483648
        %v1601 = vor.u32 1.1754944e-38, %v1600
        %v1602 = vsel %vm1599, %v1601, %v1597
        %v1603 = vmul.f32 1.0, %v1602
        %v1604 = vrcp.pop %v1502
        %v1605 = vmul.f32 %v1502, %v1604
        %v1606 = vsub.f32 1.0, %v1605
        %v1607 = vmul.f32 %v1604, %v1606
        %v1608 = vadd.f32 %v1604, %v1607
        %vm1609 = vweird.f32 %v1502
        %vm1610 = vweird.f32 %v1604
        %vm1611 = vmor %vm1609, %vm1610
        %v1612 = vsel %vm1611, %v1604, %v1608
        %v1613 = vand.u32 2147483647, %v1502
        %vm1614 = vcmp.eq.f32.partialorder %v1613, 8.507059e+37
        %v1615 = vand.u32 %v1502, 2147483648
        %v1616 = vor.u32 1.1754944e-38, %v1615
        %v1617 = vsel %vm1614, %v1616, %v1612
        %v1618 = vmul.f32 1.0, %v1617
        %v1619 = vrcp.pop %v1503
        %v1620 = vmul.f32 %v1503, %v1619
        %v1621 = vsub.f32 1.0, %v1620
        %v1622 = vmul.f32 %v1619, %v1621
        %v1623 = vadd.f32 %v1619, %v1622
        %vm1624 = vweird.f32 %v1503
        %vm1625 = vweird.f32 %v1619
        %vm1626 = vmor %vm1624, %vm1625
        %v1627 = vsel %vm1626, %v1619, %v1623
        %v1628 = vand.u32 2147483647, %v1503
        %vm1629 = vcmp.eq.f32.partialorder %v1628, 8.507059e+37
        %v1630 = vand.u32 %v1503, 2147483648
        %v1631 = vor.u32 1.1754944e-38, %v1630
        %v1632 = vsel %vm1629, %v1631, %v1627
        %v1633 = vmul.f32 1.0, %v1632
        %v1634 = vrcp.pop %v1504
        %v1635 = vmul.f32 %v1504, %v1634
        %v1636 = vsub.f32 1.0, %v1635
        %v1637 = vmul.f32 %v1634, %v1636
        %v1638 = vadd.f32 %v1634, %v1637
        %vm1639 = vweird.f32 %v1504
        %vm1640 = vweird.f32 %v1634
        %vm1641 = vmor %vm1639, %vm1640
        %v1642 = vsel %vm1641, %v1634, %v1638
        %v1643 = vand.u32 2147483647, %v1504
        %vm1644 = vcmp.eq.f32.partialorder %v1643, 8.507059e+37
        %v1645 = vand.u32 %v1504, 2147483648
        %v1646 = vor.u32 1.1754944e-38, %v1645
        %v1647 = vsel %vm1644, %v1646, %v1642
        %v1648 = vmul.f32 1.0, %v1647
        %v1649 = vrcp.pop %v1505
        %v1650 = vmul.f32 %v1505, %v1649
        %v1651 = vsub.f32 1.0, %v1650
        %v1652 = vmul.f32 %v1649, %v1651
        %v1653 = vadd.f32 %v1649, %v1652
        %vm1654 = vweird.f32 %v1505
        %vm1655 = vweird.f32 %v1649
        %vm1656 = vmor %vm1654, %vm1655
        %v1657 = vsel %vm1656, %v1649, %v1653
        %v1658 = vand.u32 2147483647, %v1505
        %vm1659 = vcmp.eq.f32.partialorder %v1658, 8.507059e+37
        %v1660 = vand.u32 %v1505, 2147483648
        %v1661 = vor.u32 1.1754944e-38, %v1660
        %v1662 = vsel %vm1659, %v1661, %v1657
        %v1663 = vmul.f32 1.0, %v1662
        %v1664 = vrcp.pop %v1506
        %v1665 = vmul.f32 %v1506, %v1664
        %v1666 = vsub.f32 1.0, %v1665
        %v1667 = vmul.f32 %v1664, %v1666
        %v1668 = vadd.f32 %v1664, %v1667
        %vm1669 = vweird.f32 %v1506
        %vm1670 = vweird.f32 %v1664
        %vm1671 = vmor %vm1669, %vm1670
        %v1672 = vsel %vm1671, %v1664, %v1668
        %v1673 = vand.u32 2147483647, %v1506
        %vm1674 = vcmp.eq.f32.partialorder %v1673, 8.507059e+37
        %v1675 = vand.u32 %v1506, 2147483648
        %v1676 = vor.u32 1.1754944e-38, %v1675
        %v1677 = vsel %vm1674, %v1676, %v1672
        %v1678 = vmul.f32 1.0, %v1677
        %v1679 = vrcp.pop %v1507
        %v1680 = vmul.f32 %v1507, %v1679
        %v1681 = vsub.f32 1.0, %v1680
        %v1682 = vmul.f32 %v1679, %v1681
        %v1683 = vadd.f32 %v1679, %v1682
        %vm1684 = vweird.f32 %v1507
        %vm1685 = vweird.f32 %v1679
        %vm1686 = vmor %vm1684, %vm1685
        %v1687 = vsel %vm1686, %v1679, %v1683
        %v1688 = vand.u32 2147483647, %v1507
        %vm1689 = vcmp.eq.f32.partialorder %v1688, 8.507059e+37
        %v1690 = vand.u32 %v1507, 2147483648
        %v1691 = vor.u32 1.1754944e-38, %v1690
        %v1692 = vsel %vm1689, %v1691, %v1687
        %v1693 = vmul.f32 1.0, %v1692
        %v1694 = vrcp.pop %v1508
        %v1695 = vmul.f32 %v1508, %v1694
        %v1696 = vsub.f32 1.0, %v1695
        %v1697 = vmul.f32 %v1694, %v1696
        %v1698 = vadd.f32 %v1694, %v1697
        %vm1699 = vweird.f32 %v1508
        %vm1700 = vweird.f32 %v1694
        %vm1701 = vmor %vm1699, %vm1700
        %v1702 = vsel %vm1701, %v1694, %v1698
        %v1703 = vand.u32 2147483647, %v1508
        %vm1704 = vcmp.eq.f32.partialorder %v1703, 8.507059e+37
        %v1705 = vand.u32 %v1508, 2147483648
        %v1706 = vor.u32 1.1754944e-38, %v1705
        %v1707 = vsel %vm1704, %v1706, %v1702
        %v1708 = vmul.f32 1.0, %v1707
        %v1709 = vrcp.pop %v1509
        %v1710 = vmul.f32 %v1509, %v1709
        %v1711 = vsub.f32 1.0, %v1710
        %v1712 = vmul.f32 %v1709, %v1711
        %v1713 = vadd.f32 %v1709, %v1712
        %vm1714 = vweird.f32 %v1509
        %vm1715 = vweird.f32 %v1709
        %vm1716 = vmor %vm1714, %vm1715
        %v1717 = vsel %vm1716, %v1709, %v1713
        %v1718 = vand.u32 2147483647, %v1509
        %vm1719 = vcmp.eq.f32.partialorder %v1718, 8.507059e+37
        %v1720 = vand.u32 %v1509, 2147483648
        %v1721 = vor.u32 1.1754944e-38, %v1720
        %v1722 = vsel %vm1719, %v1721, %v1717
        %v1723 = vmul.f32 1.0, %v1722
        %v1724 = vrcp.pop %v1510
        %v1725 = vmul.f32 %v1510, %v1724
        %v1726 = vsub.f32 1.0, %v1725
        %v1727 = vmul.f32 %v1724, %v1726
        %v1728 = vadd.f32 %v1724, %v1727
        %vm1729 = vweird.f32 %v1510
        %vm1730 = vweird.f32 %v1724
        %vm1731 = vmor %vm1729, %vm1730
        %v1732 = vsel %vm1731, %v1724, %v1728
        %v1733 = vand.u32 2147483647, %v1510
        %vm1734 = vcmp.eq.f32.partialorder %v1733, 8.507059e+37
        %v1735 = vand.u32 %v1510, 2147483648
        %v1736 = vor.u32 1.1754944e-38, %v1735
        %v1737 = vsel %vm1734, %v1736, %v1732
        %v1738 = vmul.f32 1.0, %v1737
        %v1739 = vrcp.pop %v1511
        %v1740 = vmul.f32 %v1511, %v1739
        %v1741 = vsub.f32 1.0, %v1740
        %v1742 = vmul.f32 %v1739, %v1741
        %v1743 = vadd.f32 %v1739, %v1742
        %vm1744 = vweird.f32 %v1511
        %vm1745 = vweird.f32 %v1739
        %vm1746 = vmor %vm1744, %vm1745
        %v1747 = vsel %vm1746, %v1739, %v1743
        %v1748 = vand.u32 2147483647, %v1511
        %vm1749 = vcmp.eq.f32.partialorder %v1748, 8.507059e+37
        %v1750 = vand.u32 %v1511, 2147483648
        %v1751 = vor.u32 1.1754944e-38, %v1750
        %v1752 = vsel %vm1749, %v1751, %v1747
        %v1753 = vmul.f32 1.0, %v1752
        %v1754 = vrcp.pop %v1512
        %v1755 = vmul.f32 %v1512, %v1754
        %v1756 = vsub.f32 1.0, %v1755
        %v1757 = vmul.f32 %v1754, %v1756
        %v1758 = vadd.f32 %v1754, %v1757
        %vm1759 = vweird.f32 %v1512
        %vm1760 = vweird.f32 %v1754
        %vm1761 = vmor %vm1759, %vm1760
        %v1762 = vsel %vm1761, %v1754, %v1758
        %v1763 = vand.u32 2147483647, %v1512
        %vm1764 = vcmp.eq.f32.partialorder %v1763, 8.507059e+37
        %v1765 = vand.u32 %v1512, 2147483648
        %v1766 = vor.u32 1.1754944e-38, %v1765
        %v1767 = vsel %vm1764, %v1766, %v1762
        %v1768 = vmul.f32 1.0, %v1767
        %v1769 = vrcp.pop %v1513
        %v1770 = vmul.f32 %v1513, %v1769
        %v1771 = vsub.f32 1.0, %v1770
        %v1772 = vmul.f32 %v1769, %v1771
        %v1773 = vadd.f32 %v1769, %v1772
        %vm1774 = vweird.f32 %v1513
        %vm1775 = vweird.f32 %v1769
        %vm1776 = vmor %vm1774, %vm1775
        %v1777 = vsel %vm1776, %v1769, %v1773
        %v1778 = vand.u32 2147483647, %v1513
        %vm1779 = vcmp.eq.f32.partialorder %v1778, 8.507059e+37
        %v1780 = vand.u32 %v1513, 2147483648
        %v1781 = vor.u32 1.1754944e-38, %v1780
        %v1782 = vsel %vm1779, %v1781, %v1777
        %v1783 = vmul.f32 1.0, %v1782
        %v1784 = vrcp.pop %v1514
        %v1785 = vmul.f32 %v1514, %v1784
        %v1786 = vsub.f32 1.0, %v1785
        %v1787 = vmul.f32 %v1784, %v1786
        %v1788 = vadd.f32 %v1784, %v1787
        %vm1789 = vweird.f32 %v1514
        %vm1790 = vweird.f32 %v1784
        %vm1791 = vmor %vm1789, %vm1790
        %v1792 = vsel %vm1791, %v1784, %v1788
        %v1793 = vand.u32 2147483647, %v1514
        %vm1794 = vcmp.eq.f32.partialorder %v1793, 8.507059e+37
        %v1795 = vand.u32 %v1514, 2147483648
        %v1796 = vor.u32 1.1754944e-38, %v1795
        %v1797 = vsel %vm1794, %v1796, %v1792
        %v1798 = vmul.f32 1.0, %v1797
        %v1799 = vrcp.pop %v1515
        %v1800 = vmul.f32 %v1515, %v1799
        %v1801 = vsub.f32 1.0, %v1800
        %v1802 = vmul.f32 %v1799, %v1801
        %v1803 = vadd.f32 %v1799, %v1802
        %vm1804 = vweird.f32 %v1515
        %vm1805 = vweird.f32 %v1799
        %vm1806 = vmor %vm1804, %vm1805
        %v1807 = vsel %vm1806, %v1799, %v1803
        %v1808 = vand.u32 2147483647, %v1515
        %vm1809 = vcmp.eq.f32.partialorder %v1808, 8.507059e+37
        %v1810 = vand.u32 %v1515, 2147483648
        %v1811 = vor.u32 1.1754944e-38, %v1810
        %v1812 = vsel %vm1809, %v1811, %v1807
        %v1813 = vmul.f32 1.0, %v1812
        %v1814 = vrcp.pop %v1516
        %v1815 = vmul.f32 %v1516, %v1814
        %v1816 = vsub.f32 1.0, %v1815
        %v1817 = vmul.f32 %v1814, %v1816
        %v1818 = vadd.f32 %v1814, %v1817
        %vm1819 = vweird.f32 %v1516
        %vm1820 = vweird.f32 %v1814
        %vm1821 = vmor %vm1819, %vm1820
        %v1822 = vsel %vm1821, %v1814, %v1818
        %v1823 = vand.u32 2147483647, %v1516
        %vm1824 = vcmp.eq.f32.partialorder %v1823, 8.507059e+37
        %v1825 = vand.u32 %v1516, 2147483648
        %v1826 = vor.u32 1.1754944e-38, %v1825
        %v1827 = vsel %vm1824, %v1826, %v1822
        %v1828 = vmul.f32 1.0, %v1827
        %v1829 = vrcp.pop %v1517
        %v1830 = vmul.f32 %v1517, %v1829
        %v1831 = vsub.f32 1.0, %v1830
        %v1832 = vmul.f32 %v1829, %v1831
        %v1833 = vadd.f32 %v1829, %v1832
        %vm1834 = vweird.f32 %v1517
        %vm1835 = vweird.f32 %v1829
        %vm1836 = vmor %vm1834, %vm1835
        %v1837 = vsel %vm1836, %v1829, %v1833
        %v1838 = vand.u32 2147483647, %v1517
        %vm1839 = vcmp.eq.f32.partialorder %v1838, 8.507059e+37
        %v1840 = vand.u32 %v1517, 2147483648
        %v1841 = vor.u32 1.1754944e-38, %v1840
        %v1842 = vsel %vm1839, %v1841, %v1837
        %v1843 = vmul.f32 1.0, %v1842
        %v1844 = vrcp.pop %v1518
        %v1845 = vmul.f32 %v1518, %v1844
        %v1846 = vsub.f32 1.0, %v1845
        %v1847 = vmul.f32 %v1844, %v1846
        %v1848 = vadd.f32 %v1844, %v1847
        %vm1849 = vweird.f32 %v1518
        %vm1850 = vweird.f32 %v1844
        %vm1851 = vmor %vm1849, %vm1850
        %v1852 = vsel %vm1851, %v1844, %v1848
        %v1853 = vand.u32 2147483647, %v1518
        %vm1854 = vcmp.eq.f32.partialorder %v1853, 8.507059e+37
        %v1855 = vand.u32 %v1518, 2147483648
        %v1856 = vor.u32 1.1754944e-38, %v1855
        %v1857 = vsel %vm1854, %v1856, %v1852
        %v1858 = vmul.f32 1.0, %v1857
        %v1859 = vrcp.pop %v1519
        %v1860 = vmul.f32 %v1519, %v1859
        %v1861 = vsub.f32 1.0, %v1860
        %v1862 = vmul.f32 %v1859, %v1861
        %v1863 = vadd.f32 %v1859, %v1862
        %vm1864 = vweird.f32 %v1519
        %vm1865 = vweird.f32 %v1859
        %vm1866 = vmor %vm1864, %vm1865
        %v1867 = vsel %vm1866, %v1859, %v1863
        %v1868 = vand.u32 2147483647, %v1519
        %vm1869 = vcmp.eq.f32.partialorder %v1868, 8.507059e+37
        %v1870 = vand.u32 %v1519, 2147483648
        %v1871 = vor.u32 1.1754944e-38, %v1870
        %v1872 = vsel %vm1869, %v1871, %v1867
        %v1873 = vmul.f32 1.0, %v1872
        %v1874 = vrcp.pop %v1520
        %v1875 = vmul.f32 %v1520, %v1874
        %v1876 = vsub.f32 1.0, %v1875
        %v1877 = vmul.f32 %v1874, %v1876
        %v1878 = vadd.f32 %v1874, %v1877
        %vm1879 = vweird.f32 %v1520
        %vm1880 = vweird.f32 %v1874
        %vm1881 = vmor %vm1879, %vm1880
        %v1882 = vsel %vm1881, %v1874, %v1878
        %v1883 = vand.u32 2147483647, %v1520
        %vm1884 = vcmp.eq.f32.partialorder %v1883, 8.507059e+37
        %v1885 = vand.u32 %v1520, 2147483648
        %v1886 = vor.u32 1.1754944e-38, %v1885
        %v1887 = vsel %vm1884, %v1886, %v1882
        %v1888 = vmul.f32 1.0, %v1887
        %v1889 = vrcp.pop %v1521
        %v1890 = vmul.f32 %v1521, %v1889
        %v1891 = vsub.f32 1.0, %v1890
        %v1892 = vmul.f32 %v1889, %v1891
        %v1893 = vadd.f32 %v1889, %v1892
        %vm1894 = vweird.f32 %v1521
        %vm1895 = vweird.f32 %v1889
        %vm1896 = vmor %vm1894, %vm1895
        %v1897 = vsel %vm1896, %v1889, %v1893
        %v1898 = vand.u32 2147483647, %v1521
        %vm1899 = vcmp.eq.f32.partialorder %v1898, 8.507059e+37
        %v1900 = vand.u32 %v1521, 2147483648
        %v1901 = vor.u32 1.1754944e-38, %v1900
        %v1902 = vsel %vm1899, %v1901, %v1897
        %v1903 = vmul.f32 1.0, %v1902
        %v1904 = vrcp.pop %v1522
        %v1905 = vmul.f32 %v1522, %v1904
        %v1906 = vsub.f32 1.0, %v1905
        %v1907 = vmul.f32 %v1904, %v1906
        %v1908 = vadd.f32 %v1904, %v1907
        %vm1909 = vweird.f32 %v1522
        %vm1910 = vweird.f32 %v1904
        %vm1911 = vmor %vm1909, %vm1910
        %v1912 = vsel %vm1911, %v1904, %v1908
        %v1913 = vand.u32 2147483647, %v1522
        %vm1914 = vcmp.eq.f32.partialorder %v1913, 8.507059e+37
        %v1915 = vand.u32 %v1522, 2147483648
        %v1916 = vor.u32 1.1754944e-38, %v1915
        %v1917 = vsel %vm1914, %v1916, %v1912
        %v1918 = vmul.f32 1.0, %v1917
        %v1919 = vrcp.pop %v1523
        %v1920 = vmul.f32 %v1523, %v1919
        %v1921 = vsub.f32 1.0, %v1920
        %v1922 = vmul.f32 %v1919, %v1921
        %v1923 = vadd.f32 %v1919, %v1922
        %vm1924 = vweird.f32 %v1523
        %vm1925 = vweird.f32 %v1919
        %vm1926 = vmor %vm1924, %vm1925
        %v1927 = vsel %vm1926, %v1919, %v1923
        %v1928 = vand.u32 2147483647, %v1523
        %vm1929 = vcmp.eq.f32.partialorder %v1928, 8.507059e+37
        %v1930 = vand.u32 %v1523, 2147483648
        %v1931 = vor.u32 1.1754944e-38, %v1930
        %v1932 = vsel %vm1929, %v1931, %v1927
        %v1933 = vmul.f32 1.0, %v1932
        %v1934 = vrcp.pop %v1524
        %v1935 = vmul.f32 %v1524, %v1934
        %v1936 = vsub.f32 1.0, %v1935
        %v1937 = vmul.f32 %v1934, %v1936
        %v1938 = vadd.f32 %v1934, %v1937
        %vm1939 = vweird.f32 %v1524
        %vm1940 = vweird.f32 %v1934
        %vm1941 = vmor %vm1939, %vm1940
        %v1942 = vsel %vm1941, %v1934, %v1938
        %v1943 = vand.u32 2147483647, %v1524
        %vm1944 = vcmp.eq.f32.partialorder %v1943, 8.507059e+37
        %v1945 = vand.u32 %v1524, 2147483648
        %v1946 = vor.u32 1.1754944e-38, %v1945
        %v1947 = vsel %vm1944, %v1946, %v1942
        %v1948 = vmul.f32 1.0, %v1947
        %v1949 = vrcp.pop %v1525
        %v1950 = vmul.f32 %v1525, %v1949
        %v1951 = vsub.f32 1.0, %v1950
        %v1952 = vmul.f32 %v1949, %v1951
        %v1953 = vadd.f32 %v1949, %v1952
        %vm1954 = vweird.f32 %v1525
        %vm1955 = vweird.f32 %v1949
        %vm1956 = vmor %vm1954, %vm1955
        %v1957 = vsel %vm1956, %v1949, %v1953
        %v1958 = vand.u32 2147483647, %v1525
        %vm1959 = vcmp.eq.f32.partialorder %v1958, 8.507059e+37
        %v1960 = vand.u32 %v1525, 2147483648
        %v1961 = vor.u32 1.1754944e-38, %v1960
        %v1962 = vsel %vm1959, %v1961, %v1957
        %v1963 = vmul.f32 1.0, %v1962
        %v1964 = vrcp.pop %v1526
        %v1965 = vmul.f32 %v1526, %v1964
        %v1966 = vsub.f32 1.0, %v1965
        %v1967 = vmul.f32 %v1964, %v1966
        %v1968 = vadd.f32 %v1964, %v1967
        %vm1969 = vweird.f32 %v1526
        %vm1970 = vweird.f32 %v1964
        %vm1971 = vmor %vm1969, %vm1970
        %v1972 = vsel %vm1971, %v1964, %v1968
        %v1973 = vand.u32 2147483647, %v1526
        %vm1974 = vcmp.eq.f32.partialorder %v1973, 8.507059e+37
        %v1975 = vand.u32 %v1526, 2147483648
        %v1976 = vor.u32 1.1754944e-38, %v1975
        %v1977 = vsel %vm1974, %v1976, %v1972
        %v1978 = vmul.f32 1.0, %v1977
        %v1979 = vrcp.pop %v1527
        %v1980 = vmul.f32 %v1527, %v1979
        %v1981 = vsub.f32 1.0, %v1980
        %v1982 = vmul.f32 %v1979, %v1981
        %v1983 = vadd.f32 %v1979, %v1982
        %vm1984 = vweird.f32 %v1527
        %vm1985 = vweird.f32 %v1979
        %vm1986 = vmor %vm1984, %vm1985
        %v1987 = vsel %vm1986, %v1979, %v1983
        %v1988 = vand.u32 2147483647, %v1527
        %vm1989 = vcmp.eq.f32.partialorder %v1988, 8.507059e+37
        %v1990 = vand.u32 %v1527, 2147483648
        %v1991 = vor.u32 1.1754944e-38, %v1990
        %v1992 = vsel %vm1989, %v1991, %v1987
        %v1993 = vmul.f32 1.0, %v1992
        %v1994 = vrcp.pop %v1528
        %v1995 = vmul.f32 %v1528, %v1994
        %v1996 = vsub.f32 1.0, %v1995
        %v1997 = vmul.f32 %v1994, %v1996
        %v1998 = vadd.f32 %v1994, %v1997
        %vm1999 = vweird.f32 %v1528
        %vm2000 = vweird.f32 %v1994
        %vm2001 = vmor %vm1999, %vm2000
        %v2002 = vsel %vm2001, %v1994, %v1998
        %v2003 = vand.u32 2147483647, %v1528
        %vm2004 = vcmp.eq.f32.partialorder %v2003, 8.507059e+37
        %v2005 = vand.u32 %v1528, 2147483648
        %v2006 = vor.u32 1.1754944e-38, %v2005
        %v2007 = vsel %vm2004, %v2006, %v2002
        %v2008 = vmul.f32 1.0, %v2007
        %v2009 = vmul.f32 %v1322, %v1543
        %v2010 = vmul.f32 %v1324, %v1558
        %v2011 = vmul.f32 %v1327, %v1573
        %v2012 = vmul.f32 %v1329, %v1588
        %v2013 = vmul.f32 %v1332, %v1603
        %v2014 = vmul.f32 %v1334, %v1618
        %v2015 = vmul.f32 %v1337, %v1633
        %v2016 = vmul.f32 %v1339, %v1648
        %v2017 = vmul.f32 %v1342, %v1663
        %v2018 = vmul.f32 %v1344, %v1678
        %v2019 = vmul.f32 %v1347, %v1693
        %v2020 = vmul.f32 %v1349, %v1708
        %v2021 = vmul.f32 %v1352, %v1723
        %v2022 = vmul.f32 %v1354, %v1738
        %v2023 = vmul.f32 %v1357, %v1753
        %v2024 = vmul.f32 %v1359, %v1768
        %v2025 = vmul.f32 %v1362, %v1783
        %v2026 = vmul.f32 %v1364, %v1798
        %v2027 = vmul.f32 %v1367, %v1813
        %v2028 = vmul.f32 %v1369, %v1828
        %v2029 = vmul.f32 %v1372, %v1843
        %v2030 = vmul.f32 %v1374, %v1858
        %v2031 = vmul.f32 %v1377, %v1873
        %v2032 = vmul.f32 %v1379, %v1888
        %v2033 = vmul.f32 %v1382, %v1903
        %v2034 = vmul.f32 %v1384, %v1918
        %v2035 = vmul.f32 %v1387, %v1933
        %v2036 = vmul.f32 %v1389, %v1948
        %v2037 = vmul.f32 %v1392, %v1963
        %v2038 = vmul.f32 %v1394, %v1978
        %v2039 = vmul.f32 %v1397, %v1993
        %v2040 = vmul.f32 %v1399, %v2008
        %2041 = vst.msk [vmem:[#allocation2 + $0x11] sm:$0xff] %vm332, %v2009
        %2042 = vst.msk [vmem:[#allocation2 + $0x19] sm:$0xff] %vm332, %v2010
        %2043 = vst.msk [vmem:[#allocation2 + $0x21] sm:$0xff] %vm332, %v2011
        %2044 = vst.msk [vmem:[#allocation2 + $0x29] sm:$0xff] %vm332, %v2012
        %2045 = vst.msk [vmem:[#allocation2 + $0x31] sm:$0xff] %vm332, %v2013
        %2046 = vst.msk [vmem:[#allocation2 + $0x39] sm:$0xff] %vm332, %v2014
        %2047 = vst.msk [vmem:[#allocation2 + $0x41] sm:$0xff] %vm332, %v2015
        %2048 = vst.msk [vmem:[#allocation2 + $0x49] sm:$0xff] %vm332, %v2016
        %2049 = vst.msk [vmem:[#allocation2 + $0x51] sm:$0xff] %vm332, %v2017
        %2050 = vst.msk [vmem:[#allocation2 + $0x59] sm:$0xff] %vm332, %v2018
        %2051 = vst.msk [vmem:[#allocation2 + $0x61] sm:$0xff] %vm332, %v2019
        %2052 = vst.msk [vmem:[#allocation2 + $0x69] sm:$0xff] %vm332, %v2020
        %2053 = vst.msk [vmem:[#allocation2 + $0x71] sm:$0xff] %vm332, %v2021
        %2054 = vst.msk [vmem:[#allocation2 + $0x79] sm:$0xff] %vm332, %v2022
        %2055 = vst.msk [vmem:[#allocation2 + $0x81] sm:$0xff] %vm332, %v2023
        %2056 = vst.msk [vmem:[#allocation2 + $0x89] sm:$0xff] %vm332, %v2024
        %2057 = vst.msk [vmem:[#allocation2 + $0x91] sm:$0xff] %vm332, %v2025
        %2058 = vst.msk [vmem:[#allocation2 + $0x99] sm:$0xff] %vm332, %v2026
        %2059 = vst.msk [vmem:[#allocation2 + $0xa1] sm:$0xff] %vm332, %v2027
        %2060 = vst.msk [vmem:[#allocation2 + $0xa9] sm:$0xff] %vm332, %v2028
        %2061 = vst.msk [vmem:[#allocation2 + $0xb1] sm:$0xff] %vm332, %v2029
        %2062 = vst.msk [vmem:[#allocation2 + $0xb9] sm:$0xff] %vm332, %v2030
        %2063 = vst.msk [vmem:[#allocation2 + $0xc1] sm:$0xff] %vm332, %v2031
        %2064 = vst.msk [vmem:[#allocation2 + $0xc9] sm:$0xff] %vm332, %v2032
        %2065 = vst.msk [vmem:[#allocation2 + $0xd1] sm:$0xff] %vm332, %v2033
        %2066 = vst.msk [vmem:[#allocation2 + $0xd9] sm:$0xff] %vm332, %v2034
        %2067 = vst.msk [vmem:[#allocation2 + $0xe1] sm:$0xff] %vm332, %v2035
        %2068 = vst.msk [vmem:[#allocation2 + $0xe9] sm:$0xff] %vm332, %v2036
        %2069 = vst.msk [vmem:[#allocation2 + $0xf1] sm:$0xff] %vm332, %v2037
        %2070 = vst.msk [vmem:[#allocation2 + $0xf9] sm:$0xff] %vm332, %v2038
        %2071 = vst.msk [vmem:[#allocation2 + $0x101] sm:$0xff] %vm332, %v2039
        %2072 = vst.msk [vmem:[#allocation2 + $0x109] sm:$0xff] %vm332, %v2040
        %v2073 = vlaneseq
        %v2074 = vshrl.u32 %v2073, 7
        %v2075 = vadd.s32 %v2074, 8
        %v2076 = vadd.s32 %v2074, 16
        %v2077 = vadd.s32 %v2074, 24
        %v2078 = vadd.s32 %v2074, 32
        %v2079 = vadd.s32 %v2074, 40
        %v2080 = vadd.s32 %v2074, 48
        %v2081 = vadd.s32 %v2074, 56
        %v2082 = vadd.s32 %v2074, 64
        %v2083 = vadd.s32 %v2074, 72
        %v2084 = vadd.s32 %v2074, 80
        %v2085 = vadd.s32 %v2074, 88
        %v2086 = vadd.s32 %v2074, 96
        %v2087 = vadd.s32 %v2074, 104
        %v2088 = vadd.s32 %v2074, 112
        %v2089 = vadd.s32 %v2074, 120
        %v2090 = vadd.s32 %v2074, 128
        %v2091 = vadd.s32 %v2074, 136
        %v2092 = vadd.s32 %v2074, 144
        %v2093 = vadd.s32 %v2074, 152
        %v2094 = vadd.s32 %v2074, 160
        %v2095 = vadd.s32 %v2074, 168
        %v2096 = vadd.s32 %v2074, 176
        %v2097 = vadd.s32 %v2074, 184
        %v2098 = vadd.s32 %v2074, 192
        %v2099 = vadd.s32 %v2074, 200
        %v2100 = vadd.s32 %v2074, 208
        %v2101 = vadd.s32 %v2074, 216
        %v2102 = vadd.s32 %v2074, 224
        %v2103 = vadd.s32 %v2074, 232
        %v2104 = vadd.s32 %v2074, 240
        %v2105 = vadd.s32 %v2074, 248
        %vm2106 = vcmp.lt.s32.totalorder %v2074, 0
        %v2107 = vsub.s32 0, %v2074
        %v2108 = vsel %vm2106, %v2107, %v2074
        %v2109 = vshrl.u32 %v2108, 4
        %v2110 = vand.u32 %v2108, 15
        %v2111 = vsub.s32 0, %v2110
        %v2112 = vsel %vm2106, %v2111, %v2110
        %vm2113 = vcmp.lt.s32.totalorder %v2075, 0
        %v2114 = vsub.s32 0, %v2075
        %v2115 = vsel %vm2113, %v2114, %v2075
        %v2116 = vshrl.u32 %v2115, 4
        %v2117 = vand.u32 %v2115, 15
        %v2118 = vsub.s32 0, %v2117
        %v2119 = vsel %vm2113, %v2118, %v2117
        %vm2120 = vcmp.lt.s32.totalorder %v2076, 0
        %v2121 = vsub.s32 0, %v2076
        %v2122 = vsel %vm2120, %v2121, %v2076
        %v2123 = vshrl.u32 %v2122, 4
        %v2124 = vand.u32 %v2122, 15
        %v2125 = vsub.s32 0, %v2124
        %v2126 = vsel %vm2120, %v2125, %v2124
        %vm2127 = vcmp.lt.s32.totalorder %v2077, 0
        %v2128 = vsub.s32 0, %v2077
        %v2129 = vsel %vm2127, %v2128, %v2077
        %v2130 = vshrl.u32 %v2129, 4
        %v2131 = vand.u32 %v2129, 15
        %v2132 = vsub.s32 0, %v2131
        %v2133 = vsel %vm2127, %v2132, %v2131
        %vm2134 = vcmp.lt.s32.totalorder %v2078, 0
        %v2135 = vsub.s32 0, %v2078
        %v2136 = vsel %vm2134, %v2135, %v2078
        %v2137 = vshrl.u32 %v2136, 4
        %v2138 = vand.u32 %v2136, 15
        %v2139 = vsub.s32 0, %v2138
        %v2140 = vsel %vm2134, %v2139, %v2138
        %vm2141 = vcmp.lt.s32.totalorder %v2079, 0
        %v2142 = vsub.s32 0, %v2079
        %v2143 = vsel %vm2141, %v2142, %v2079
        %v2144 = vshrl.u32 %v2143, 4
        %v2145 = vand.u32 %v2143, 15
        %v2146 = vsub.s32 0, %v2145
        %v2147 = vsel %vm2141, %v2146, %v2145
        %vm2148 = vcmp.lt.s32.totalorder %v2080, 0
        %v2149 = vsub.s32 0, %v2080
        %v2150 = vsel %vm2148, %v2149, %v2080
        %v2151 = vshrl.u32 %v2150, 4
        %v2152 = vand.u32 %v2150, 15
        %v2153 = vsub.s32 0, %v2152
        %v2154 = vsel %vm2148, %v2153, %v2152
        %vm2155 = vcmp.lt.s32.totalorder %v2081, 0
        %v2156 = vsub.s32 0, %v2081
        %v2157 = vsel %vm2155, %v2156, %v2081
        %v2158 = vshrl.u32 %v2157, 4
        %v2159 = vand.u32 %v2157, 15
        %v2160 = vsub.s32 0, %v2159
        %v2161 = vsel %vm2155, %v2160, %v2159
        %vm2162 = vcmp.lt.s32.totalorder %v2082, 0
        %v2163 = vsub.s32 0, %v2082
        %v2164 = vsel %vm2162, %v2163, %v2082
        %v2165 = vshrl.u32 %v2164, 4
        %v2166 = vand.u32 %v2164, 15
        %v2167 = vsub.s32 0, %v2166
        %v2168 = vsel %vm2162, %v2167, %v2166
        %vm2169 = vcmp.lt.s32.totalorder %v2083, 0
        %v2170 = vsub.s32 0, %v2083
        %v2171 = vsel %vm2169, %v2170, %v2083
        %v2172 = vshrl.u32 %v2171, 4
        %v2173 = vand.u32 %v2171, 15
        %v2174 = vsub.s32 0, %v2173
        %v2175 = vsel %vm2169, %v2174, %v2173
        %vm2176 = vcmp.lt.s32.totalorder %v2084, 0
        %v2177 = vsub.s32 0, %v2084
        %v2178 = vsel %vm2176, %v2177, %v2084
        %v2179 = vshrl.u32 %v2178, 4
        %v2180 = vand.u32 %v2178, 15
        %v2181 = vsub.s32 0, %v2180
        %v2182 = vsel %vm2176, %v2181, %v2180
        %vm2183 = vcmp.lt.s32.totalorder %v2085, 0
        %v2184 = vsub.s32 0, %v2085
        %v2185 = vsel %vm2183, %v2184, %v2085
        %v2186 = vshrl.u32 %v2185, 4
        %v2187 = vand.u32 %v2185, 15
        %v2188 = vsub.s32 0, %v2187
        %v2189 = vsel %vm2183, %v2188, %v2187
        %vm2190 = vcmp.lt.s32.totalorder %v2086, 0
        %v2191 = vsub.s32 0, %v2086
        %v2192 = vsel %vm2190, %v2191, %v2086
        %v2193 = vshrl.u32 %v2192, 4
        %v2194 = vand.u32 %v2192, 15
        %v2195 = vsub.s32 0, %v2194
        %v2196 = vsel %vm2190, %v2195, %v2194
        %vm2197 = vcmp.lt.s32.totalorder %v2087, 0
        %v2198 = vsub.s32 0, %v2087
        %v2199 = vsel %vm2197, %v2198, %v2087
        %v2200 = vshrl.u32 %v2199, 4
        %v2201 = vand.u32 %v2199, 15
        %v2202 = vsub.s32 0, %v2201
        %v2203 = vsel %vm2197, %v2202, %v2201
        %vm2204 = vcmp.lt.s32.totalorder %v2088, 0
        %v2205 = vsub.s32 0, %v2088
        %v2206 = vsel %vm2204, %v2205, %v2088
        %v2207 = vshrl.u32 %v2206, 4
        %v2208 = vand.u32 %v2206, 15
        %v2209 = vsub.s32 0, %v2208
        %v2210 = vsel %vm2204, %v2209, %v2208
        %vm2211 = vcmp.lt.s32.totalorder %v2089, 0
        %v2212 = vsub.s32 0, %v2089
        %v2213 = vsel %vm2211, %v2212, %v2089
        %v2214 = vshrl.u32 %v2213, 4
        %v2215 = vand.u32 %v2213, 15
        %v2216 = vsub.s32 0, %v2215
        %v2217 = vsel %vm2211, %v2216, %v2215
        %vm2218 = vcmp.lt.s32.totalorder %v2090, 0
        %v2219 = vsub.s32 0, %v2090
        %v2220 = vsel %vm2218, %v2219, %v2090
        %v2221 = vshrl.u32 %v2220, 4
        %v2222 = vand.u32 %v2220, 15
        %v2223 = vsub.s32 0, %v2222
        %v2224 = vsel %vm2218, %v2223, %v2222
        %vm2225 = vcmp.lt.s32.totalorder %v2091, 0
        %v2226 = vsub.s32 0, %v2091
        %v2227 = vsel %vm2225, %v2226, %v2091
        %v2228 = vshrl.u32 %v2227, 4
        %v2229 = vand.u32 %v2227, 15
        %v2230 = vsub.s32 0, %v2229
        %v2231 = vsel %vm2225, %v2230, %v2229
        %vm2232 = vcmp.lt.s32.totalorder %v2092, 0
        %v2233 = vsub.s32 0, %v2092
        %v2234 = vsel %vm2232, %v2233, %v2092
        %v2235 = vshrl.u32 %v2234, 4
        %v2236 = vand.u32 %v2234, 15
        %v2237 = vsub.s32 0, %v2236
        %v2238 = vsel %vm2232, %v2237, %v2236
        %vm2239 = vcmp.lt.s32.totalorder %v2093, 0
        %v2240 = vsub.s32 0, %v2093
        %v2241 = vsel %vm2239, %v2240, %v2093
        %v2242 = vshrl.u32 %v2241, 4
        %v2243 = vand.u32 %v2241, 15
        %v2244 = vsub.s32 0, %v2243
        %v2245 = vsel %vm2239, %v2244, %v2243
        %vm2246 = vcmp.lt.s32.totalorder %v2094, 0
        %v2247 = vsub.s32 0, %v2094
        %v2248 = vsel %vm2246, %v2247, %v2094
        %v2249 = vshrl.u32 %v2248, 4
        %v2250 = vand.u32 %v2248, 15
        %v2251 = vsub.s32 0, %v2250
        %v2252 = vsel %vm2246, %v2251, %v2250
        %vm2253 = vcmp.lt.s32.totalorder %v2095, 0
        %v2254 = vsub.s32 0, %v2095
        %v2255 = vsel %vm2253, %v2254, %v2095
        %v2256 = vshrl.u32 %v2255, 4
        %v2257 = vand.u32 %v2255, 15
        %v2258 = vsub.s32 0, %v2257
        %v2259 = vsel %vm2253, %v2258, %v2257
        %vm2260 = vcmp.lt.s32.totalorder %v2096, 0
        %v2261 = vsub.s32 0, %v2096
        %v2262 = vsel %vm2260, %v2261, %v2096
        %v2263 = vshrl.u32 %v2262, 4
        %v2264 = vand.u32 %v2262, 15
        %v2265 = vsub.s32 0, %v2264
        %v2266 = vsel %vm2260, %v2265, %v2264
        %vm2267 = vcmp.lt.s32.totalorder %v2097, 0
        %v2268 = vsub.s32 0, %v2097
        %v2269 = vsel %vm2267, %v2268, %v2097
        %v2270 = vshrl.u32 %v2269, 4
        %v2271 = vand.u32 %v2269, 15
        %v2272 = vsub.s32 0, %v2271
        %v2273 = vsel %vm2267, %v2272, %v2271
        %vm2274 = vcmp.lt.s32.totalorder %v2098, 0
        %v2275 = vsub.s32 0, %v2098
        %v2276 = vsel %vm2274, %v2275, %v2098
        %v2277 = vshrl.u32 %v2276, 4
        %v2278 = vand.u32 %v2276, 15
        %v2279 = vsub.s32 0, %v2278
        %v2280 = vsel %vm2274, %v2279, %v2278
        %vm2281 = vcmp.lt.s32.totalorder %v2099, 0
        %v2282 = vsub.s32 0, %v2099
        %v2283 = vsel %vm2281, %v2282, %v2099
        %v2284 = vshrl.u32 %v2283, 4
        %v2285 = vand.u32 %v2283, 15
        %v2286 = vsub.s32 0, %v2285
        %v2287 = vsel %vm2281, %v2286, %v2285
        %vm2288 = vcmp.lt.s32.totalorder %v2100, 0
        %v2289 = vsub.s32 0, %v2100
        %v2290 = vsel %vm2288, %v2289, %v2100
        %v2291 = vshrl.u32 %v2290, 4
        %v2292 = vand.u32 %v2290, 15
        %v2293 = vsub.s32 0, %v2292
        %v2294 = vsel %vm2288, %v2293, %v2292
        %vm2295 = vcmp.lt.s32.totalorder %v2101, 0
        %v2296 = vsub.s32 0, %v2101
        %v2297 = vsel %vm2295, %v2296, %v2101
        %v2298 = vshrl.u32 %v2297, 4
        %v2299 = vand.u32 %v2297, 15
        %v2300 = vsub.s32 0, %v2299
        %v2301 = vsel %vm2295, %v2300, %v2299
        %vm2302 = vcmp.lt.s32.totalorder %v2102, 0
        %v2303 = vsub.s32 0, %v2102
        %v2304 = vsel %vm2302, %v2303, %v2102
        %v2305 = vshrl.u32 %v2304, 4
        %v2306 = vand.u32 %v2304, 15
        %v2307 = vsub.s32 0, %v2306
        %v2308 = vsel %vm2302, %v2307, %v2306
        %vm2309 = vcmp.lt.s32.totalorder %v2103, 0
        %v2310 = vsub.s32 0, %v2103
        %v2311 = vsel %vm2309, %v2310, %v2103
        %v2312 = vshrl.u32 %v2311, 4
        %v2313 = vand.u32 %v2311, 15
        %v2314 = vsub.s32 0, %v2313
        %v2315 = vsel %vm2309, %v2314, %v2313
        %vm2316 = vcmp.lt.s32.totalorder %v2104, 0
        %v2317 = vsub.s32 0, %v2104
        %v2318 = vsel %vm2316, %v2317, %v2104
        %v2319 = vshrl.u32 %v2318, 4
        %v2320 = vand.u32 %v2318, 15
        %v2321 = vsub.s32 0, %v2320
        %v2322 = vsel %vm2316, %v2321, %v2320
        %vm2323 = vcmp.lt.s32.totalorder %v2105, 0
        %v2324 = vsub.s32 0, %v2105
        %v2325 = vsel %vm2323, %v2324, %v2105
        %v2326 = vshrl.u32 %v2325, 4
        %v2327 = vand.u32 %v2325, 15
        %v2328 = vsub.s32 0, %v2327
        %v2329 = vsel %vm2323, %v2328, %v2327
        %vm2330 = vcmp.ne.s32.totalorder %v2112, 0
        %vm2331 = vcmp.ne.s32.totalorder %v2119, 0
        %vm2332 = vcmp.ne.s32.totalorder %v2126, 0
        %vm2333 = vcmp.ne.s32.totalorder %v2133, 0
        %vm2334 = vcmp.ne.s32.totalorder %v2140, 0
        %vm2335 = vcmp.ne.s32.totalorder %v2147, 0
        %vm2336 = vcmp.ne.s32.totalorder %v2154, 0
        %vm2337 = vcmp.ne.s32.totalorder %v2161, 0
        %vm2338 = vcmp.ne.s32.totalorder %v2168, 0
        %vm2339 = vcmp.ne.s32.totalorder %v2175, 0
        %vm2340 = vcmp.ne.s32.totalorder %v2182, 0
        %vm2341 = vcmp.ne.s32.totalorder %v2189, 0
        %vm2342 = vcmp.ne.s32.totalorder %v2196, 0
        %vm2343 = vcmp.ne.s32.totalorder %v2203, 0
        %vm2344 = vcmp.ne.s32.totalorder %v2210, 0
        %vm2345 = vcmp.ne.s32.totalorder %v2217, 0
        %vm2346 = vcmp.ne.s32.totalorder %v2224, 0
        %vm2347 = vcmp.ne.s32.totalorder %v2231, 0
        %vm2348 = vcmp.ne.s32.totalorder %v2238, 0
        %vm2349 = vcmp.ne.s32.totalorder %v2245, 0
        %vm2350 = vcmp.ne.s32.totalorder %v2252, 0
        %vm2351 = vcmp.ne.s32.totalorder %v2259, 0
        %vm2352 = vcmp.ne.s32.totalorder %v2266, 0
        %vm2353 = vcmp.ne.s32.totalorder %v2273, 0
        %vm2354 = vcmp.ne.s32.totalorder %v2280, 0
        %vm2355 = vcmp.ne.s32.totalorder %v2287, 0
        %vm2356 = vcmp.ne.s32.totalorder %v2294, 0
        %vm2357 = vcmp.ne.s32.totalorder %v2301, 0
        %vm2358 = vcmp.ne.s32.totalorder %v2308, 0
        %vm2359 = vcmp.ne.s32.totalorder %v2315, 0
        %vm2360 = vcmp.ne.s32.totalorder %v2322, 0
        %vm2361 = vcmp.ne.s32.totalorder %v2329, 0
        %vm2362 = vcmp.lt.s32.totalorder %v2112, 0
        %vm2363 = vcmp.lt.s32.totalorder %v2119, 0
        %vm2364 = vcmp.lt.s32.totalorder %v2126, 0
        %vm2365 = vcmp.lt.s32.totalorder %v2133, 0
        %vm2366 = vcmp.lt.s32.totalorder %v2140, 0
        %vm2367 = vcmp.lt.s32.totalorder %v2147, 0
        %vm2368 = vcmp.lt.s32.totalorder %v2154, 0
        %vm2369 = vcmp.lt.s32.totalorder %v2161, 0
        %vm2370 = vcmp.lt.s32.totalorder %v2168, 0
        %vm2371 = vcmp.lt.s32.totalorder %v2175, 0
        %vm2372 = vcmp.lt.s32.totalorder %v2182, 0
        %vm2373 = vcmp.lt.s32.totalorder %v2189, 0
        %vm2374 = vcmp.lt.s32.totalorder %v2196, 0
        %vm2375 = vcmp.lt.s32.totalorder %v2203, 0
        %vm2376 = vcmp.lt.s32.totalorder %v2210, 0
        %vm2377 = vcmp.lt.s32.totalorder %v2217, 0
        %vm2378 = vcmp.lt.s32.totalorder %v2224, 0
        %vm2379 = vcmp.lt.s32.totalorder %v2231, 0
        %vm2380 = vcmp.lt.s32.totalorder %v2238, 0
        %vm2381 = vcmp.lt.s32.totalorder %v2245, 0
        %vm2382 = vcmp.lt.s32.totalorder %v2252, 0
        %vm2383 = vcmp.lt.s32.totalorder %v2259, 0
        %vm2384 = vcmp.lt.s32.totalorder %v2266, 0
        %vm2385 = vcmp.lt.s32.totalorder %v2273, 0
        %vm2386 = vcmp.lt.s32.totalorder %v2280, 0
        %vm2387 = vcmp.lt.s32.totalorder %v2287, 0
        %vm2388 = vcmp.lt.s32.totalorder %v2294, 0
        %vm2389 = vcmp.lt.s32.totalorder %v2301, 0
        %vm2390 = vcmp.lt.s32.totalorder %v2308, 0
        %vm2391 = vcmp.lt.s32.totalorder %v2315, 0
        %vm2392 = vcmp.lt.s32.totalorder %v2322, 0
        %vm2393 = vcmp.lt.s32.totalorder %v2329, 0
        %vm2394 = vmand %vm2362, %vm2330
        %vm2395 = vmand %vm2363, %vm2331
        %vm2396 = vmand %vm2364, %vm2332
        %vm2397 = vmand %vm2365, %vm2333
        %vm2398 = vmand %vm2366, %vm2334
        %vm2399 = vmand %vm2367, %vm2335
        %vm2400 = vmand %vm2368, %vm2336
        %vm2401 = vmand %vm2369, %vm2337
        %vm2402 = vmand %vm2370, %vm2338
        %vm2403 = vmand %vm2371, %vm2339
        %vm2404 = vmand %vm2372, %vm2340
        %vm2405 = vmand %vm2373, %vm2341
        %vm2406 = vmand %vm2374, %vm2342
        %vm2407 = vmand %vm2375, %vm2343
        %vm2408 = vmand %vm2376, %vm2344
        %vm2409 = vmand %vm2377, %vm2345
        %vm2410 = vmand %vm2378, %vm2346
        %vm2411 = vmand %vm2379, %vm2347
        %vm2412 = vmand %vm2380, %vm2348
        %vm2413 = vmand %vm2381, %vm2349
        %vm2414 = vmand %vm2382, %vm2350
        %vm2415 = vmand %vm2383, %vm2351
        %vm2416 = vmand %vm2384, %vm2352
        %vm2417 = vmand %vm2385, %vm2353
        %vm2418 = vmand %vm2386, %vm2354
        %vm2419 = vmand %vm2387, %vm2355
        %vm2420 = vmand %vm2388, %vm2356
        %vm2421 = vmand %vm2389, %vm2357
        %vm2422 = vmand %vm2390, %vm2358
        %vm2423 = vmand %vm2391, %vm2359
        %vm2424 = vmand %vm2392, %vm2360
        %vm2425 = vmand %vm2393, %vm2361
        %v2426 = vadd.s32 %v2112, 16
        %v2427 = vadd.s32 %v2119, 16
        %v2428 = vadd.s32 %v2126, 16
        %v2429 = vadd.s32 %v2133, 16
        %v2430 = vadd.s32 %v2140, 16
        %v2431 = vadd.s32 %v2147, 16
        %v2432 = vadd.s32 %v2154, 16
        %v2433 = vadd.s32 %v2161, 16
        %v2434 = vadd.s32 %v2168, 16
        %v2435 = vadd.s32 %v2175, 16
        %v2436 = vadd.s32 %v2182, 16
        %v2437 = vadd.s32 %v2189, 16
        %v2438 = vadd.s32 %v2196, 16
        %v2439 = vadd.s32 %v2203, 16
        %v2440 = vadd.s32 %v2210, 16
        %v2441 = vadd.s32 %v2217, 16
        %v2442 = vadd.s32 %v2224, 16
        %v2443 = vadd.s32 %v2231, 16
        %v2444 = vadd.s32 %v2238, 16
        %v2445 = vadd.s32 %v2245, 16
        %v2446 = vadd.s32 %v2252, 16
        %v2447 = vadd.s32 %v2259, 16
        %v2448 = vadd.s32 %v2266, 16
        %v2449 = vadd.s32 %v2273, 16
        %v2450 = vadd.s32 %v2280, 16
        %v2451 = vadd.s32 %v2287, 16
        %v2452 = vadd.s32 %v2294, 16
        %v2453 = vadd.s32 %v2301, 16
        %v2454 = vadd.s32 %v2308, 16
        %v2455 = vadd.s32 %v2315, 16
        %v2456 = vadd.s32 %v2322, 16
        %v2457 = vadd.s32 %v2329, 16
        %v2458 = vsel %vm2394, %v2426, %v2112
        %v2459 = vsel %vm2395, %v2427, %v2119
        %v2460 = vsel %vm2396, %v2428, %v2126
        %v2461 = vsel %vm2397, %v2429, %v2133
        %v2462 = vsel %vm2398, %v2430, %v2140
        %v2463 = vsel %vm2399, %v2431, %v2147
        %v2464 = vsel %vm2400, %v2432, %v2154
        %v2465 = vsel %vm2401, %v2433, %v2161
        %v2466 = vsel %vm2402, %v2434, %v2168
        %v2467 = vsel %vm2403, %v2435, %v2175
        %v2468 = vsel %vm2404, %v2436, %v2182
        %v2469 = vsel %vm2405, %v2437, %v2189
        %v2470 = vsel %vm2406, %v2438, %v2196
        %v2471 = vsel %vm2407, %v2439, %v2203
        %v2472 = vsel %vm2408, %v2440, %v2210
        %v2473 = vsel %vm2409, %v2441, %v2217
        %v2474 = vsel %vm2410, %v2442, %v2224
        %v2475 = vsel %vm2411, %v2443, %v2231
        %v2476 = vsel %vm2412, %v2444, %v2238
        %v2477 = vsel %vm2413, %v2445, %v2245
        %v2478 = vsel %vm2414, %v2446, %v2252
        %v2479 = vsel %vm2415, %v2447, %v2259
        %v2480 = vsel %vm2416, %v2448, %v2266
        %v2481 = vsel %vm2417, %v2449, %v2273
        %v2482 = vsel %vm2418, %v2450, %v2280
        %v2483 = vsel %vm2419, %v2451, %v2287
        %v2484 = vsel %vm2420, %v2452, %v2294
        %v2485 = vsel %vm2421, %v2453, %v2301
        %v2486 = vsel %vm2422, %v2454, %v2308
        %v2487 = vsel %vm2423, %v2455, %v2315
        %v2488 = vsel %vm2424, %v2456, %v2322
        %v2489 = vsel %vm2425, %v2457, %v2329
        %vm2490 = vcmp.ge.s32.totalorder %v2458, 1
        %vm2491 = vcmp.ge.s32.totalorder %v2459, 1
        %vm2492 = vcmp.ge.s32.totalorder %v2460, 1
        %vm2493 = vcmp.ge.s32.totalorder %v2461, 1
        %vm2494 = vcmp.ge.s32.totalorder %v2462, 1
        %vm2495 = vcmp.ge.s32.totalorder %v2463, 1
        %vm2496 = vcmp.ge.s32.totalorder %v2464, 1
        %vm2497 = vcmp.ge.s32.totalorder %v2465, 1
        %vm2498 = vcmp.ge.s32.totalorder %v2466, 1
        %vm2499 = vcmp.ge.s32.totalorder %v2467, 1
        %vm2500 = vcmp.ge.s32.totalorder %v2468, 1
        %vm2501 = vcmp.ge.s32.totalorder %v2469, 1
        %vm2502 = vcmp.ge.s32.totalorder %v2470, 1
        %vm2503 = vcmp.ge.s32.totalorder %v2471, 1
        %vm2504 = vcmp.ge.s32.totalorder %v2472, 1
        %vm2505 = vcmp.ge.s32.totalorder %v2473, 1
        %vm2506 = vcmp.ge.s32.totalorder %v2474, 1
        %vm2507 = vcmp.ge.s32.totalorder %v2475, 1
        %vm2508 = vcmp.ge.s32.totalorder %v2476, 1
        %vm2509 = vcmp.ge.s32.totalorder %v2477, 1
        %vm2510 = vcmp.ge.s32.totalorder %v2478, 1
        %vm2511 = vcmp.ge.s32.totalorder %v2479, 1
        %vm2512 = vcmp.ge.s32.totalorder %v2480, 1
        %vm2513 = vcmp.ge.s32.totalorder %v2481, 1
        %vm2514 = vcmp.ge.s32.totalorder %v2482, 1
        %vm2515 = vcmp.ge.s32.totalorder %v2483, 1
        %vm2516 = vcmp.ge.s32.totalorder %v2484, 1
        %vm2517 = vcmp.ge.s32.totalorder %v2485, 1
        %vm2518 = vcmp.ge.s32.totalorder %v2486, 1
        %vm2519 = vcmp.ge.s32.totalorder %v2487, 1
        %vm2520 = vcmp.ge.s32.totalorder %v2488, 1
        %vm2521 = vcmp.ge.s32.totalorder %v2489, 1
        %vm2522 = vcmp.le.s32.totalorder %v2458, 14
        %vm2523 = vcmp.le.s32.totalorder %v2459, 14
        %vm2524 = vcmp.le.s32.totalorder %v2460, 14
        %vm2525 = vcmp.le.s32.totalorder %v2461, 14
        %vm2526 = vcmp.le.s32.totalorder %v2462, 14
        %vm2527 = vcmp.le.s32.totalorder %v2463, 14
        %vm2528 = vcmp.le.s32.totalorder %v2464, 14
        %vm2529 = vcmp.le.s32.totalorder %v2465, 14
        %vm2530 = vcmp.le.s32.totalorder %v2466, 14
        %vm2531 = vcmp.le.s32.totalorder %v2467, 14
        %vm2532 = vcmp.le.s32.totalorder %v2468, 14
        %vm2533 = vcmp.le.s32.totalorder %v2469, 14
        %vm2534 = vcmp.le.s32.totalorder %v2470, 14
        %vm2535 = vcmp.le.s32.totalorder %v2471, 14
        %vm2536 = vcmp.le.s32.totalorder %v2472, 14
        %vm2537 = vcmp.le.s32.totalorder %v2473, 14
        %vm2538 = vcmp.le.s32.totalorder %v2474, 14
        %vm2539 = vcmp.le.s32.totalorder %v2475, 14
        %vm2540 = vcmp.le.s32.totalorder %v2476, 14
        %vm2541 = vcmp.le.s32.totalorder %v2477, 14
        %vm2542 = vcmp.le.s32.totalorder %v2478, 14
        %vm2543 = vcmp.le.s32.totalorder %v2479, 14
        %vm2544 = vcmp.le.s32.totalorder %v2480, 14
        %vm2545 = vcmp.le.s32.totalorder %v2481, 14
        %vm2546 = vcmp.le.s32.totalorder %v2482, 14
        %vm2547 = vcmp.le.s32.totalorder %v2483, 14
        %vm2548 = vcmp.le.s32.totalorder %v2484, 14
        %vm2549 = vcmp.le.s32.totalorder %v2485, 14
        %vm2550 = vcmp.le.s32.totalorder %v2486, 14
        %vm2551 = vcmp.le.s32.totalorder %v2487, 14
        %vm2552 = vcmp.le.s32.totalorder %v2488, 14
        %vm2553 = vcmp.le.s32.totalorder %v2489, 14
        %v2554 = vld [vmem:[#allocation2] sm:$0xff]
        %v2555 = vld [vmem:[#allocation2 + $0x8] sm:$0xff]
        %v2556 = vld [vmem:[#allocation2 + $0x10] sm:$0xff]
        %v2557 = vld [vmem:[#allocation2 + $0x18] sm:$0xff]
        %v2558 = vld [vmem:[#allocation2 + $0x20] sm:$0xff]
        %v2559 = vld [vmem:[#allocation2 + $0x28] sm:$0xff]
        %v2560 = vld [vmem:[#allocation2 + $0x30] sm:$0xff]
        %v2561 = vld [vmem:[#allocation2 + $0x38] sm:$0xff]
        %v2562 = vld [vmem:[#allocation2 + $0x40] sm:$0xff]
        %v2563 = vld [vmem:[#allocation2 + $0x48] sm:$0xff]
        %v2564 = vld [vmem:[#allocation2 + $0x50] sm:$0xff]
        %v2565 = vld [vmem:[#allocation2 + $0x58] sm:$0xff]
        %v2566 = vld [vmem:[#allocation2 + $0x60] sm:$0xff]
        %v2567 = vld [vmem:[#allocation2 + $0x68] sm:$0xff]
        %v2568 = vld [vmem:[#allocation2 + $0x70] sm:$0xff]
        %v2569 = vld [vmem:[#allocation2 + $0x78] sm:$0xff]
        %v2570 = vld [vmem:[#allocation2 + $0x80] sm:$0xff]
        %v2571 = vld [vmem:[#allocation2 + $0x88] sm:$0xff]
        %v2572 = vld [vmem:[#allocation2 + $0x90] sm:$0xff]
        %v2573 = vld [vmem:[#allocation2 + $0x98] sm:$0xff]
        %v2574 = vld [vmem:[#allocation2 + $0xa0] sm:$0xff]
        %v2575 = vld [vmem:[#allocation2 + $0xa8] sm:$0xff]
        %v2576 = vld [vmem:[#allocation2 + $0xb0] sm:$0xff]
        %v2577 = vld [vmem:[#allocation2 + $0xb8] sm:$0xff]
        %v2578 = vld [vmem:[#allocation2 + $0xc0] sm:$0xff]
        %v2579 = vld [vmem:[#allocation2 + $0xc8] sm:$0xff]
        %v2580 = vld [vmem:[#allocation2 + $0xd0] sm:$0xff]
        %v2581 = vld [vmem:[#allocation2 + $0xd8] sm:$0xff]
        %v2582 = vld [vmem:[#allocation2 + $0xe0] sm:$0xff]
        %v2583 = vld [vmem:[#allocation2 + $0xe8] sm:$0xff]
        %v2584 = vld [vmem:[#allocation2 + $0xf0] sm:$0xff]
        %v2585 = vld [vmem:[#allocation2 + $0xf8] sm:$0xff]
        %v2586 = vsel %vm2490, %v2554, 0.0
        %v2587 = vsel %vm2491, %v2555, 0.0
        %v2588 = vsel %vm2492, %v2556, 0.0
        %v2589 = vsel %vm2493, %v2557, 0.0
        %v2590 = vsel %vm2494, %v2558, 0.0
        %v2591 = vsel %vm2495, %v2559, 0.0
        %v2592 = vsel %vm2496, %v2560, 0.0
        %v2593 = vsel %vm2497, %v2561, 0.0
        %v2594 = vsel %vm2498, %v2562, 0.0
        %v2595 = vsel %vm2499, %v2563, 0.0
        %v2596 = vsel %vm2500, %v2564, 0.0
        %v2597 = vsel %vm2501, %v2565, 0.0
        %v2598 = vsel %vm2502, %v2566, 0.0
        %v2599 = vsel %vm2503, %v2567, 0.0
        %v2600 = vsel %vm2504, %v2568, 0.0
        %v2601 = vsel %vm2505, %v2569, 0.0
        %v2602 = vsel %vm2506, %v2570, 0.0
        %v2603 = vsel %vm2507, %v2571, 0.0
        %v2604 = vsel %vm2508, %v2572, 0.0
        %v2605 = vsel %vm2509, %v2573, 0.0
        %v2606 = vsel %vm2510, %v2574, 0.0
        %v2607 = vsel %vm2511, %v2575, 0.0
        %v2608 = vsel %vm2512, %v2576, 0.0
        %v2609 = vsel %vm2513, %v2577, 0.0
        %v2610 = vsel %vm2514, %v2578, 0.0
        %v2611 = vsel %vm2515, %v2579, 0.0
        %v2612 = vsel %vm2516, %v2580, 0.0
        %v2613 = vsel %vm2517, %v2581, 0.0
        %v2614 = vsel %vm2518, %v2582, 0.0
        %v2615 = vsel %vm2519, %v2583, 0.0
        %v2616 = vsel %vm2520, %v2584, 0.0
        %v2617 = vsel %vm2521, %v2585, 0.0
        %v2618 = vpack.c.bf16 %v2586, %v2586
        %v2619 = vpack.c.bf16 %v2587, %v2587
        %v2620 = vpack.c.bf16 %v2588, %v2588
        %v2621 = vpack.c.bf16 %v2589, %v2589
        %v2622 = vpack.c.bf16 %v2590, %v2590
        %v2623 = vpack.c.bf16 %v2591, %v2591
        %v2624 = vpack.c.bf16 %v2592, %v2592
        %v2625 = vpack.c.bf16 %v2593, %v2593
        %v2626 = vpack.c.bf16 %v2594, %v2594
        %v2627 = vpack.c.bf16 %v2595, %v2595
        %v2628 = vpack.c.bf16 %v2596, %v2596
        %v2629 = vpack.c.bf16 %v2597, %v2597
        %v2630 = vpack.c.bf16 %v2598, %v2598
        %v2631 = vpack.c.bf16 %v2599, %v2599
        %v2632 = vpack.c.bf16 %v2600, %v2600
        %v2633 = vpack.c.bf16 %v2601, %v2601
        %v2634 = vpack.c.bf16 %v2602, %v2602
        %v2635 = vpack.c.bf16 %v2603, %v2603
        %v2636 = vpack.c.bf16 %v2604, %v2604
        %v2637 = vpack.c.bf16 %v2605, %v2605
        %v2638 = vpack.c.bf16 %v2606, %v2606
        %v2639 = vpack.c.bf16 %v2607, %v2607
        %v2640 = vpack.c.bf16 %v2608, %v2608
        %v2641 = vpack.c.bf16 %v2609, %v2609
        %v2642 = vpack.c.bf16 %v2610, %v2610
        %v2643 = vpack.c.bf16 %v2611, %v2611
        %v2644 = vpack.c.bf16 %v2612, %v2612
        %v2645 = vpack.c.bf16 %v2613, %v2613
        %v2646 = vpack.c.bf16 %v2614, %v2614
        %v2647 = vpack.c.bf16 %v2615, %v2615
        %v2648 = vpack.c.bf16 %v2616, %v2616
        %v2649 = vpack.c.bf16 %v2617, %v2617
        %vm2650 = vcmask 11264
        %2651 = vst.msk [vmem:[#allocation3] sm:$0xf] %vm2650, %v2618
        %2652 = vst.msk [vmem:[#allocation3 + $0x4] sm:$0xf] %vm2650, %v2619
        %2653 = vst.msk [vmem:[#allocation3 + $0x8] sm:$0xf] %vm2650, %v2620
        %2654 = vst.msk [vmem:[#allocation3 + $0xc] sm:$0xf] %vm2650, %v2621
        %2655 = vst.msk [vmem:[#allocation3 + $0x10] sm:$0xf] %vm2650, %v2622
        %2656 = vst.msk [vmem:[#allocation3 + $0x14] sm:$0xf] %vm2650, %v2623
        %2657 = vst.msk [vmem:[#allocation3 + $0x18] sm:$0xf] %vm2650, %v2624
        %2658 = vst.msk [vmem:[#allocation3 + $0x1c] sm:$0xf] %vm2650, %v2625
        %2659 = vst.msk [vmem:[#allocation3 + $0x20] sm:$0xf] %vm2650, %v2626
        %2660 = vst.msk [vmem:[#allocation3 + $0x24] sm:$0xf] %vm2650, %v2627
        %2661 = vst.msk [vmem:[#allocation3 + $0x28] sm:$0xf] %vm2650, %v2628
        %2662 = vst.msk [vmem:[#allocation3 + $0x2c] sm:$0xf] %vm2650, %v2629
        %2663 = vst.msk [vmem:[#allocation3 + $0x30] sm:$0xf] %vm2650, %v2630
        %2664 = vst.msk [vmem:[#allocation3 + $0x34] sm:$0xf] %vm2650, %v2631
        %2665 = vst.msk [vmem:[#allocation3 + $0x38] sm:$0xf] %vm2650, %v2632
        %2666 = vst.msk [vmem:[#allocation3 + $0x3c] sm:$0xf] %vm2650, %v2633
        %2667 = vst.msk [vmem:[#allocation3 + $0x40] sm:$0xf] %vm2650, %v2634
        %2668 = vst.msk [vmem:[#allocation3 + $0x44] sm:$0xf] %vm2650, %v2635
        %2669 = vst.msk [vmem:[#allocation3 + $0x48] sm:$0xf] %vm2650, %v2636
        %2670 = vst.msk [vmem:[#allocation3 + $0x4c] sm:$0xf] %vm2650, %v2637
        %2671 = vst.msk [vmem:[#allocation3 + $0x50] sm:$0xf] %vm2650, %v2638
        %2672 = vst.msk [vmem:[#allocation3 + $0x54] sm:$0xf] %vm2650, %v2639
        %2673 = vst.msk [vmem:[#allocation3 + $0x58] sm:$0xf] %vm2650, %v2640
        %2674 = vst.msk [vmem:[#allocation3 + $0x5c] sm:$0xf] %vm2650, %v2641
        %2675 = vst.msk [vmem:[#allocation3 + $0x60] sm:$0xf] %vm2650, %v2642
        %2676 = vst.msk [vmem:[#allocation3 + $0x64] sm:$0xf] %vm2650, %v2643
        %2677 = vst.msk [vmem:[#allocation3 + $0x68] sm:$0xf] %vm2650, %v2644
        %2678 = vst.msk [vmem:[#allocation3 + $0x6c] sm:$0xf] %vm2650, %v2645
        %2679 = vst.msk [vmem:[#allocation3 + $0x70] sm:$0xf] %vm2650, %v2646
        %2680 = vst.msk [vmem:[#allocation3 + $0x74] sm:$0xf] %vm2650, %v2647
        %2681 = vst.msk [vmem:[#allocation3 + $0x78] sm:$0xf] %vm2650, %v2648
        %2682 = vst.msk [vmem:[#allocation3 + $0x7c] sm:$0xf] %vm2650, %v2649
        %v2683 = vld [vmem:[#allocation2 + $0x1] sm:$0xff]
        %v2684 = vld [vmem:[#allocation2 + $0x9] sm:$0xff]
        %v2685 = vld [vmem:[#allocation2 + $0x11] sm:$0xff]
        %v2686 = vld [vmem:[#allocation2 + $0x19] sm:$0xff]
        %v2687 = vld [vmem:[#allocation2 + $0x21] sm:$0xff]
        %v2688 = vld [vmem:[#allocation2 + $0x29] sm:$0xff]
        %v2689 = vld [vmem:[#allocation2 + $0x31] sm:$0xff]
        %v2690 = vld [vmem:[#allocation2 + $0x39] sm:$0xff]
        %v2691 = vld [vmem:[#allocation2 + $0x41] sm:$0xff]
        %v2692 = vld [vmem:[#allocation2 + $0x49] sm:$0xff]
        %v2693 = vld [vmem:[#allocation2 + $0x51] sm:$0xff]
        %v2694 = vld [vmem:[#allocation2 + $0x59] sm:$0xff]
        %v2695 = vld [vmem:[#allocation2 + $0x61] sm:$0xff]
        %v2696 = vld [vmem:[#allocation2 + $0x69] sm:$0xff]
        %v2697 = vld [vmem:[#allocation2 + $0x71] sm:$0xff]
        %v2698 = vld [vmem:[#allocation2 + $0x79] sm:$0xff]
        %v2699 = vld [vmem:[#allocation2 + $0x81] sm:$0xff]
        %v2700 = vld [vmem:[#allocation2 + $0x89] sm:$0xff]
        %v2701 = vld [vmem:[#allocation2 + $0x91] sm:$0xff]
        %v2702 = vld [vmem:[#allocation2 + $0x99] sm:$0xff]
        %v2703 = vld [vmem:[#allocation2 + $0xa1] sm:$0xff]
        %v2704 = vld [vmem:[#allocation2 + $0xa9] sm:$0xff]
        %v2705 = vld [vmem:[#allocation2 + $0xb1] sm:$0xff]
        %v2706 = vld [vmem:[#allocation2 + $0xb9] sm:$0xff]
        %v2707 = vld [vmem:[#allocation2 + $0xc1] sm:$0xff]
        %v2708 = vld [vmem:[#allocation2 + $0xc9] sm:$0xff]
        %v2709 = vld [vmem:[#allocation2 + $0xd1] sm:$0xff]
        %v2710 = vld [vmem:[#allocation2 + $0xd9] sm:$0xff]
        %v2711 = vld [vmem:[#allocation2 + $0xe1] sm:$0xff]
        %v2712 = vld [vmem:[#allocation2 + $0xe9] sm:$0xff]
        %v2713 = vld [vmem:[#allocation2 + $0xf1] sm:$0xff]
        %v2714 = vld [vmem:[#allocation2 + $0xf9] sm:$0xff]
        %v2715 = vpack.c.bf16 %v2683, %v2683
        %v2716 = vpack.c.bf16 %v2684, %v2684
        %v2717 = vpack.c.bf16 %v2685, %v2685
        %v2718 = vpack.c.bf16 %v2686, %v2686
        %v2719 = vpack.c.bf16 %v2687, %v2687
        %v2720 = vpack.c.bf16 %v2688, %v2688
        %v2721 = vpack.c.bf16 %v2689, %v2689
        %v2722 = vpack.c.bf16 %v2690, %v2690
        %v2723 = vpack.c.bf16 %v2691, %v2691
        %v2724 = vpack.c.bf16 %v2692, %v2692
        %v2725 = vpack.c.bf16 %v2693, %v2693
        %v2726 = vpack.c.bf16 %v2694, %v2694
        %v2727 = vpack.c.bf16 %v2695, %v2695
        %v2728 = vpack.c.bf16 %v2696, %v2696
        %v2729 = vpack.c.bf16 %v2697, %v2697
        %v2730 = vpack.c.bf16 %v2698, %v2698
        %v2731 = vpack.c.bf16 %v2699, %v2699
        %v2732 = vpack.c.bf16 %v2700, %v2700
        %v2733 = vpack.c.bf16 %v2701, %v2701
        %v2734 = vpack.c.bf16 %v2702, %v2702
        %v2735 = vpack.c.bf16 %v2703, %v2703
        %v2736 = vpack.c.bf16 %v2704, %v2704
        %v2737 = vpack.c.bf16 %v2705, %v2705
        %v2738 = vpack.c.bf16 %v2706, %v2706
        %v2739 = vpack.c.bf16 %v2707, %v2707
        %v2740 = vpack.c.bf16 %v2708, %v2708
        %v2741 = vpack.c.bf16 %v2709, %v2709
        %v2742 = vpack.c.bf16 %v2710, %v2710
        %v2743 = vpack.c.bf16 %v2711, %v2711
        %v2744 = vpack.c.bf16 %v2712, %v2712
        %v2745 = vpack.c.bf16 %v2713, %v2713
        %v2746 = vpack.c.bf16 %v2714, %v2714
        %2779 = vrot.lane.b32.xlu0 %v2715, 2
        %v2780 = vpop.permute.xlu0 %2779
        %2781 = vrot.lane.b32.xlu0 %v2716, 2
        %v2782 = vpop.permute.xlu0 %2781
        %2783 = vrot.lane.b32.xlu0 %v2717, 2
        %v2784 = vpop.permute.xlu0 %2783
        %2785 = vrot.lane.b32.xlu0 %v2718, 2
        %v2786 = vpop.permute.xlu0 %2785
        %2787 = vrot.lane.b32.xlu0 %v2719, 2
        %v2788 = vpop.permute.xlu0 %2787
        %2789 = vrot.lane.b32.xlu0 %v2720, 2
        %v2790 = vpop.permute.xlu0 %2789
        %2791 = vrot.lane.b32.xlu0 %v2721, 2
        %v2792 = vpop.permute.xlu0 %2791
        %2793 = vrot.lane.b32.xlu0 %v2722, 2
        %v2794 = vpop.permute.xlu0 %2793
        %2795 = vrot.lane.b32.xlu0 %v2723, 2
        %v2796 = vpop.permute.xlu0 %2795
        %2797 = vrot.lane.b32.xlu0 %v2724, 2
        %v2798 = vpop.permute.xlu0 %2797
        %2799 = vrot.lane.b32.xlu0 %v2725, 2
        %v2800 = vpop.permute.xlu0 %2799
        %2801 = vrot.lane.b32.xlu0 %v2726, 2
        %v2802 = vpop.permute.xlu0 %2801
        %2803 = vrot.lane.b32.xlu0 %v2727, 2
        %v2804 = vpop.permute.xlu0 %2803
        %2805 = vrot.lane.b32.xlu0 %v2728, 2
        %v2806 = vpop.permute.xlu0 %2805
        %2807 = vrot.lane.b32.xlu0 %v2729, 2
        %v2808 = vpop.permute.xlu0 %2807
        %2809 = vrot.lane.b32.xlu0 %v2730, 2
        %v2810 = vpop.permute.xlu0 %2809
        %2811 = vrot.lane.b32.xlu0 %v2731, 2
        %v2812 = vpop.permute.xlu0 %2811
        %2813 = vrot.lane.b32.xlu0 %v2732, 2
        %v2814 = vpop.permute.xlu0 %2813
        %2815 = vrot.lane.b32.xlu0 %v2733, 2
        %v2816 = vpop.permute.xlu0 %2815
        %2817 = vrot.lane.b32.xlu0 %v2734, 2
        %v2818 = vpop.permute.xlu0 %2817
        %2819 = vrot.lane.b32.xlu0 %v2735, 2
        %v2820 = vpop.permute.xlu0 %2819
        %2821 = vrot.lane.b32.xlu0 %v2736, 2
        %v2822 = vpop.permute.xlu0 %2821
        %2823 = vrot.lane.b32.xlu0 %v2737, 2
        %v2824 = vpop.permute.xlu0 %2823
        %2825 = vrot.lane.b32.xlu0 %v2738, 2
        %v2826 = vpop.permute.xlu0 %2825
        %2827 = vrot.lane.b32.xlu0 %v2739, 2
        %v2828 = vpop.permute.xlu0 %2827
        %2829 = vrot.lane.b32.xlu0 %v2740, 2
        %v2830 = vpop.permute.xlu0 %2829
        %2831 = vrot.lane.b32.xlu0 %v2741, 2
        %v2832 = vpop.permute.xlu0 %2831
        %2833 = vrot.lane.b32.xlu0 %v2742, 2
        %v2834 = vpop.permute.xlu0 %2833
        %2835 = vrot.lane.b32.xlu0 %v2743, 2
        %v2836 = vpop.permute.xlu0 %2835
        %2837 = vrot.lane.b32.xlu0 %v2744, 2
        %v2838 = vpop.permute.xlu0 %2837
        %2839 = vrot.lane.b32.xlu0 %v2745, 2
        %v2840 = vpop.permute.xlu0 %2839
        %2841 = vrot.lane.b32.xlu0 %v2746, 2
        %v2842 = vpop.permute.xlu0 %2841
        %vm2875 = vcmask 27664
        %2876 = vst.msk [vmem:[#allocation3] sm:$0xf] %vm2875, %v2780
        %2877 = vst.msk [vmem:[#allocation3 + $0x4] sm:$0xf] %vm2875, %v2782
        %2878 = vst.msk [vmem:[#allocation3 + $0x8] sm:$0xf] %vm2875, %v2784
        %2879 = vst.msk [vmem:[#allocation3 + $0xc] sm:$0xf] %vm2875, %v2786
        %2880 = vst.msk [vmem:[#allocation3 + $0x10] sm:$0xf] %vm2875, %v2788
        %2881 = vst.msk [vmem:[#allocation3 + $0x14] sm:$0xf] %vm2875, %v2790
        %2882 = vst.msk [vmem:[#allocation3 + $0x18] sm:$0xf] %vm2875, %v2792
        %2883 = vst.msk [vmem:[#allocation3 + $0x1c] sm:$0xf] %vm2875, %v2794
        %2884 = vst.msk [vmem:[#allocation3 + $0x20] sm:$0xf] %vm2875, %v2796
        %2885 = vst.msk [vmem:[#allocation3 + $0x24] sm:$0xf] %vm2875, %v2798
        %2886 = vst.msk [vmem:[#allocation3 + $0x28] sm:$0xf] %vm2875, %v2800
        %2887 = vst.msk [vmem:[#allocation3 + $0x2c] sm:$0xf] %vm2875, %v2802
        %2888 = vst.msk [vmem:[#allocation3 + $0x30] sm:$0xf] %vm2875, %v2804
        %2889 = vst.msk [vmem:[#allocation3 + $0x34] sm:$0xf] %vm2875, %v2806
        %2890 = vst.msk [vmem:[#allocation3 + $0x38] sm:$0xf] %vm2875, %v2808
        %2891 = vst.msk [vmem:[#allocation3 + $0x3c] sm:$0xf] %vm2875, %v2810
        %2892 = vst.msk [vmem:[#allocation3 + $0x40] sm:$0xf] %vm2875, %v2812
        %2893 = vst.msk [vmem:[#allocation3 + $0x44] sm:$0xf] %vm2875, %v2814
        %2894 = vst.msk [vmem:[#allocation3 + $0x48] sm:$0xf] %vm2875, %v2816
        %2895 = vst.msk [vmem:[#allocation3 + $0x4c] sm:$0xf] %vm2875, %v2818
        %2896 = vst.msk [vmem:[#allocation3 + $0x50] sm:$0xf] %vm2875, %v2820
        %2897 = vst.msk [vmem:[#allocation3 + $0x54] sm:$0xf] %vm2875, %v2822
        %2898 = vst.msk [vmem:[#allocation3 + $0x58] sm:$0xf] %vm2875, %v2824
        %2899 = vst.msk [vmem:[#allocation3 + $0x5c] sm:$0xf] %vm2875, %v2826
        %2900 = vst.msk [vmem:[#allocation3 + $0x60] sm:$0xf] %vm2875, %v2828
        %2901 = vst.msk [vmem:[#allocation3 + $0x64] sm:$0xf] %vm2875, %v2830
        %2902 = vst.msk [vmem:[#allocation3 + $0x68] sm:$0xf] %vm2875, %v2832
        %2903 = vst.msk [vmem:[#allocation3 + $0x6c] sm:$0xf] %vm2875, %v2834
        %2904 = vst.msk [vmem:[#allocation3 + $0x70] sm:$0xf] %vm2875, %v2836
        %2905 = vst.msk [vmem:[#allocation3 + $0x74] sm:$0xf] %vm2875, %v2838
        %2906 = vst.msk [vmem:[#allocation3 + $0x78] sm:$0xf] %vm2875, %v2840
        %2907 = vst.msk [vmem:[#allocation3 + $0x7c] sm:$0xf] %vm2875, %v2842
        %v2908 = vld [vmem:[#allocation2 + $0x2] sm:$0xff]
        %v2909 = vld [vmem:[#allocation2 + $0xa] sm:$0xff]
        %v2910 = vld [vmem:[#allocation2 + $0x12] sm:$0xff]
        %v2911 = vld [vmem:[#allocation2 + $0x1a] sm:$0xff]
        %v2912 = vld [vmem:[#allocation2 + $0x22] sm:$0xff]
        %v2913 = vld [vmem:[#allocation2 + $0x2a] sm:$0xff]
        %v2914 = vld [vmem:[#allocation2 + $0x32] sm:$0xff]
        %v2915 = vld [vmem:[#allocation2 + $0x3a] sm:$0xff]
        %v2916 = vld [vmem:[#allocation2 + $0x42] sm:$0xff]
        %v2917 = vld [vmem:[#allocation2 + $0x4a] sm:$0xff]
        %v2918 = vld [vmem:[#allocation2 + $0x52] sm:$0xff]
        %v2919 = vld [vmem:[#allocation2 + $0x5a] sm:$0xff]
        %v2920 = vld [vmem:[#allocation2 + $0x62] sm:$0xff]
        %v2921 = vld [vmem:[#allocation2 + $0x6a] sm:$0xff]
        %v2922 = vld [vmem:[#allocation2 + $0x72] sm:$0xff]
        %v2923 = vld [vmem:[#allocation2 + $0x7a] sm:$0xff]
        %v2924 = vld [vmem:[#allocation2 + $0x82] sm:$0xff]
        %v2925 = vld [vmem:[#allocation2 + $0x8a] sm:$0xff]
        %v2926 = vld [vmem:[#allocation2 + $0x92] sm:$0xff]
        %v2927 = vld [vmem:[#allocation2 + $0x9a] sm:$0xff]
        %v2928 = vld [vmem:[#allocation2 + $0xa2] sm:$0xff]
        %v2929 = vld [vmem:[#allocation2 + $0xaa] sm:$0xff]
        %v2930 = vld [vmem:[#allocation2 + $0xb2] sm:$0xff]
        %v2931 = vld [vmem:[#allocation2 + $0xba] sm:$0xff]
        %v2932 = vld [vmem:[#allocation2 + $0xc2] sm:$0xff]
        %v2933 = vld [vmem:[#allocation2 + $0xca] sm:$0xff]
        %v2934 = vld [vmem:[#allocation2 + $0xd2] sm:$0xff]
        %v2935 = vld [vmem:[#allocation2 + $0xda] sm:$0xff]
        %v2936 = vld [vmem:[#allocation2 + $0xe2] sm:$0xff]
        %v2937 = vld [vmem:[#allocation2 + $0xea] sm:$0xff]
        %v2938 = vld [vmem:[#allocation2 + $0xf2] sm:$0xff]
        %v2939 = vld [vmem:[#allocation2 + $0xfa] sm:$0xff]
        %v2940 = vsel %vm2522, %v2908, 0.0
        %v2941 = vsel %vm2523, %v2909, 0.0
        %v2942 = vsel %vm2524, %v2910, 0.0
        %v2943 = vsel %vm2525, %v2911, 0.0
        %v2944 = vsel %vm2526, %v2912, 0.0
        %v2945 = vsel %vm2527, %v2913, 0.0
        %v2946 = vsel %vm2528, %v2914, 0.0
        %v2947 = vsel %vm2529, %v2915, 0.0
        %v2948 = vsel %vm2530, %v2916, 0.0
        %v2949 = vsel %vm2531, %v2917, 0.0
        %v2950 = vsel %vm2532, %v2918, 0.0
        %v2951 = vsel %vm2533, %v2919, 0.0
        %v2952 = vsel %vm2534, %v2920, 0.0
        %v2953 = vsel %vm2535, %v2921, 0.0
        %v2954 = vsel %vm2536, %v2922, 0.0
        %v2955 = vsel %vm2537, %v2923, 0.0
        %v2956 = vsel %vm2538, %v2924, 0.0
        %v2957 = vsel %vm2539, %v2925, 0.0
        %v2958 = vsel %vm2540, %v2926, 0.0
        %v2959 = vsel %vm2541, %v2927, 0.0
        %v2960 = vsel %vm2542, %v2928, 0.0
        %v2961 = vsel %vm2543, %v2929, 0.0
        %v2962 = vsel %vm2544, %v2930, 0.0
        %v2963 = vsel %vm2545, %v2931, 0.0
        %v2964 = vsel %vm2546, %v2932, 0.0
        %v2965 = vsel %vm2547, %v2933, 0.0
        %v2966 = vsel %vm2548, %v2934, 0.0
        %v2967 = vsel %vm2549, %v2935, 0.0
        %v2968 = vsel %vm2550, %v2936, 0.0
        %v2969 = vsel %vm2551, %v2937, 0.0
        %v2970 = vsel %vm2552, %v2938, 0.0
        %v2971 = vsel %vm2553, %v2939, 0.0
        %v2972 = vpack.c.bf16 %v2940, %v2940
        %v2973 = vpack.c.bf16 %v2941, %v2941
        %v2974 = vpack.c.bf16 %v2942, %v2942
        %v2975 = vpack.c.bf16 %v2943, %v2943
        %v2976 = vpack.c.bf16 %v2944, %v2944
        %v2977 = vpack.c.bf16 %v2945, %v2945
        %v2978 = vpack.c.bf16 %v2946, %v2946
        %v2979 = vpack.c.bf16 %v2947, %v2947
        %v2980 = vpack.c.bf16 %v2948, %v2948
        %v2981 = vpack.c.bf16 %v2949, %v2949
        %v2982 = vpack.c.bf16 %v2950, %v2950
        %v2983 = vpack.c.bf16 %v2951, %v2951
        %v2984 = vpack.c.bf16 %v2952, %v2952
        %v2985 = vpack.c.bf16 %v2953, %v2953
        %v2986 = vpack.c.bf16 %v2954, %v2954
        %v2987 = vpack.c.bf16 %v2955, %v2955
        %v2988 = vpack.c.bf16 %v2956, %v2956
        %v2989 = vpack.c.bf16 %v2957, %v2957
        %v2990 = vpack.c.bf16 %v2958, %v2958
        %v2991 = vpack.c.bf16 %v2959, %v2959
        %v2992 = vpack.c.bf16 %v2960, %v2960
        %v2993 = vpack.c.bf16 %v2961, %v2961
        %v2994 = vpack.c.bf16 %v2962, %v2962
        %v2995 = vpack.c.bf16 %v2963, %v2963
        %v2996 = vpack.c.bf16 %v2964, %v2964
        %v2997 = vpack.c.bf16 %v2965, %v2965
        %v2998 = vpack.c.bf16 %v2966, %v2966
        %v2999 = vpack.c.bf16 %v2967, %v2967
        %v3000 = vpack.c.bf16 %v2968, %v2968
        %v3001 = vpack.c.bf16 %v2969, %v2969
        %v3002 = vpack.c.bf16 %v2970, %v2970
        %v3003 = vpack.c.bf16 %v2971, %v2971
        %3036 = vrot.lane.b32.xlu0 %v2972, 4
        %v3037 = vpop.permute.xlu0 %3036
        %3038 = vrot.lane.b32.xlu0 %v2973, 4
        %v3039 = vpop.permute.xlu0 %3038
        %3040 = vrot.lane.b32.xlu0 %v2974, 4
        %v3041 = vpop.permute.xlu0 %3040
        %3042 = vrot.lane.b32.xlu0 %v2975, 4
        %v3043 = vpop.permute.xlu0 %3042
        %3044 = vrot.lane.b32.xlu0 %v2976, 4
        %v3045 = vpop.permute.xlu0 %3044
        %3046 = vrot.lane.b32.xlu0 %v2977, 4
        %v3047 = vpop.permute.xlu0 %3046
        %3048 = vrot.lane.b32.xlu0 %v2978, 4
        %v3049 = vpop.permute.xlu0 %3048
        %3050 = vrot.lane.b32.xlu0 %v2979, 4
        %v3051 = vpop.permute.xlu0 %3050
        %3052 = vrot.lane.b32.xlu0 %v2980, 4
        %v3053 = vpop.permute.xlu0 %3052
        %3054 = vrot.lane.b32.xlu0 %v2981, 4
        %v3055 = vpop.permute.xlu0 %3054
        %3056 = vrot.lane.b32.xlu0 %v2982, 4
        %v3057 = vpop.permute.xlu0 %3056
        %3058 = vrot.lane.b32.xlu0 %v2983, 4
        %v3059 = vpop.permute.xlu0 %3058
        %3060 = vrot.lane.b32.xlu0 %v2984, 4
        %v3061 = vpop.permute.xlu0 %3060
        %3062 = vrot.lane.b32.xlu0 %v2985, 4
        %v3063 = vpop.permute.xlu0 %3062
        %3064 = vrot.lane.b32.xlu0 %v2986, 4
        %v3065 = vpop.permute.xlu0 %3064
        %3066 = vrot.lane.b32.xlu0 %v2987, 4
        %v3067 = vpop.permute.xlu0 %3066
        %3068 = vrot.lane.b32.xlu0 %v2988, 4
        %v3069 = vpop.permute.xlu0 %3068
        %3070 = vrot.lane.b32.xlu0 %v2989, 4
        %v3071 = vpop.permute.xlu0 %3070
        %3072 = vrot.lane.b32.xlu0 %v2990, 4
        %v3073 = vpop.permute.xlu0 %3072
        %3074 = vrot.lane.b32.xlu0 %v2991, 4
        %v3075 = vpop.permute.xlu0 %3074
        %3076 = vrot.lane.b32.xlu0 %v2992, 4
        %v3077 = vpop.permute.xlu0 %3076
        %3078 = vrot.lane.b32.xlu0 %v2993, 4
        %v3079 = vpop.permute.xlu0 %3078
        %3080 = vrot.lane.b32.xlu0 %v2994, 4
        %v3081 = vpop.permute.xlu0 %3080
        %3082 = vrot.lane.b32.xlu0 %v2995, 4
        %v3083 = vpop.permute.xlu0 %3082
        %3084 = vrot.lane.b32.xlu0 %v2996, 4
        %v3085 = vpop.permute.xlu0 %3084
        %3086 = vrot.lane.b32.xlu0 %v2997, 4
        %v3087 = vpop.permute.xlu0 %3086
        %3088 = vrot.lane.b32.xlu0 %v2998, 4
        %v3089 = vpop.permute.xlu0 %3088
        %3090 = vrot.lane.b32.xlu0 %v2999, 4
        %v3091 = vpop.permute.xlu0 %3090
        %3092 = vrot.lane.b32.xlu0 %v3000, 4
        %v3093 = vpop.permute.xlu0 %3092
        %3094 = vrot.lane.b32.xlu0 %v3001, 4
        %v3095 = vpop.permute.xlu0 %3094
        %3096 = vrot.lane.b32.xlu0 %v3002, 4
        %v3097 = vpop.permute.xlu0 %3096
        %3098 = vrot.lane.b32.xlu0 %v3003, 4
        %v3099 = vpop.permute.xlu0 %3098
        %vm3132 = vcmask 44064
        %3133 = vst.msk [vmem:[#allocation3] sm:$0xf] %vm3132, %v3037
        %3134 = vst.msk [vmem:[#allocation3 + $0x4] sm:$0xf] %vm3132, %v3039
        %3135 = vst.msk [vmem:[#allocation3 + $0x8] sm:$0xf] %vm3132, %v3041
        %3136 = vst.msk [vmem:[#allocation3 + $0xc] sm:$0xf] %vm3132, %v3043
        %3137 = vst.msk [vmem:[#allocation3 + $0x10] sm:$0xf] %vm3132, %v3045
        %3138 = vst.msk [vmem:[#allocation3 + $0x14] sm:$0xf] %vm3132, %v3047
        %3139 = vst.msk [vmem:[#allocation3 + $0x18] sm:$0xf] %vm3132, %v3049
        %3140 = vst.msk [vmem:[#allocation3 + $0x1c] sm:$0xf] %vm3132, %v3051
        %3141 = vst.msk [vmem:[#allocation3 + $0x20] sm:$0xf] %vm3132, %v3053
        %3142 = vst.msk [vmem:[#allocation3 + $0x24] sm:$0xf] %vm3132, %v3055
        %3143 = vst.msk [vmem:[#allocation3 + $0x28] sm:$0xf] %vm3132, %v3057
        %3144 = vst.msk [vmem:[#allocation3 + $0x2c] sm:$0xf] %vm3132, %v3059
        %3145 = vst.msk [vmem:[#allocation3 + $0x30] sm:$0xf] %vm3132, %v3061
        %3146 = vst.msk [vmem:[#allocation3 + $0x34] sm:$0xf] %vm3132, %v3063
        %3147 = vst.msk [vmem:[#allocation3 + $0x38] sm:$0xf] %vm3132, %v3065
        %3148 = vst.msk [vmem:[#allocation3 + $0x3c] sm:$0xf] %vm3132, %v3067
        %3149 = vst.msk [vmem:[#allocation3 + $0x40] sm:$0xf] %vm3132, %v3069
        %3150 = vst.msk [vmem:[#allocation3 + $0x44] sm:$0xf] %vm3132, %v3071
        %3151 = vst.msk [vmem:[#allocation3 + $0x48] sm:$0xf] %vm3132, %v3073
        %3152 = vst.msk [vmem:[#allocation3 + $0x4c] sm:$0xf] %vm3132, %v3075
        %3153 = vst.msk [vmem:[#allocation3 + $0x50] sm:$0xf] %vm3132, %v3077
        %3154 = vst.msk [vmem:[#allocation3 + $0x54] sm:$0xf] %vm3132, %v3079
        %3155 = vst.msk [vmem:[#allocation3 + $0x58] sm:$0xf] %vm3132, %v3081
        %3156 = vst.msk [vmem:[#allocation3 + $0x5c] sm:$0xf] %vm3132, %v3083
        %3157 = vst.msk [vmem:[#allocation3 + $0x60] sm:$0xf] %vm3132, %v3085
        %3158 = vst.msk [vmem:[#allocation3 + $0x64] sm:$0xf] %vm3132, %v3087
        %3159 = vst.msk [vmem:[#allocation3 + $0x68] sm:$0xf] %vm3132, %v3089
        %3160 = vst.msk [vmem:[#allocation3 + $0x6c] sm:$0xf] %vm3132, %v3091
        %3161 = vst.msk [vmem:[#allocation3 + $0x70] sm:$0xf] %vm3132, %v3093
        %3162 = vst.msk [vmem:[#allocation3 + $0x74] sm:$0xf] %vm3132, %v3095
        %3163 = vst.msk [vmem:[#allocation3 + $0x78] sm:$0xf] %vm3132, %v3097
        %3164 = vst.msk [vmem:[#allocation3 + $0x7c] sm:$0xf] %vm3132, %v3099
        %v3165 = vld [vmem:[#allocation2 + $0x10] sm:$0xff]
        %v3166 = vld [vmem:[#allocation2 + $0x18] sm:$0xff]
        %v3167 = vld [vmem:[#allocation2 + $0x20] sm:$0xff]
        %v3168 = vld [vmem:[#allocation2 + $0x28] sm:$0xff]
        %v3169 = vld [vmem:[#allocation2 + $0x30] sm:$0xff]
        %v3170 = vld [vmem:[#allocation2 + $0x38] sm:$0xff]
        %v3171 = vld [vmem:[#allocation2 + $0x40] sm:$0xff]
        %v3172 = vld [vmem:[#allocation2 + $0x48] sm:$0xff]
        %v3173 = vld [vmem:[#allocation2 + $0x50] sm:$0xff]
        %v3174 = vld [vmem:[#allocation2 + $0x58] sm:$0xff]
        %v3175 = vld [vmem:[#allocation2 + $0x60] sm:$0xff]
        %v3176 = vld [vmem:[#allocation2 + $0x68] sm:$0xff]
        %v3177 = vld [vmem:[#allocation2 + $0x70] sm:$0xff]
        %v3178 = vld [vmem:[#allocation2 + $0x78] sm:$0xff]
        %v3179 = vld [vmem:[#allocation2 + $0x80] sm:$0xff]
        %v3180 = vld [vmem:[#allocation2 + $0x88] sm:$0xff]
        %v3181 = vld [vmem:[#allocation2 + $0x90] sm:$0xff]
        %v3182 = vld [vmem:[#allocation2 + $0x98] sm:$0xff]
        %v3183 = vld [vmem:[#allocation2 + $0xa0] sm:$0xff]
        %v3184 = vld [vmem:[#allocation2 + $0xa8] sm:$0xff]
        %v3185 = vld [vmem:[#allocation2 + $0xb0] sm:$0xff]
        %v3186 = vld [vmem:[#allocation2 + $0xb8] sm:$0xff]
        %v3187 = vld [vmem:[#allocation2 + $0xc0] sm:$0xff]
        %v3188 = vld [vmem:[#allocation2 + $0xc8] sm:$0xff]
        %v3189 = vld [vmem:[#allocation2 + $0xd0] sm:$0xff]
        %v3190 = vld [vmem:[#allocation2 + $0xd8] sm:$0xff]
        %v3191 = vld [vmem:[#allocation2 + $0xe0] sm:$0xff]
        %v3192 = vld [vmem:[#allocation2 + $0xe8] sm:$0xff]
        %v3193 = vld [vmem:[#allocation2 + $0xf0] sm:$0xff]
        %v3194 = vld [vmem:[#allocation2 + $0xf8] sm:$0xff]
        %v3195 = vld [vmem:[#allocation2 + $0x100] sm:$0xff]
        %v3196 = vld [vmem:[#allocation2 + $0x108] sm:$0xff]
        %v3197 = vsel %vm2490, %v3165, 0.0
        %v3198 = vsel %vm2491, %v3166, 0.0
        %v3199 = vsel %vm2492, %v3167, 0.0
        %v3200 = vsel %vm2493, %v3168, 0.0
        %v3201 = vsel %vm2494, %v3169, 0.0
        %v3202 = vsel %vm2495, %v3170, 0.0
        %v3203 = vsel %vm2496, %v3171, 0.0
        %v3204 = vsel %vm2497, %v3172, 0.0
        %v3205 = vsel %vm2498, %v3173, 0.0
        %v3206 = vsel %vm2499, %v3174, 0.0
        %v3207 = vsel %vm2500, %v3175, 0.0
        %v3208 = vsel %vm2501, %v3176, 0.0
        %v3209 = vsel %vm2502, %v3177, 0.0
        %v3210 = vsel %vm2503, %v3178, 0.0
        %v3211 = vsel %vm2504, %v3179, 0.0
        %v3212 = vsel %vm2505, %v3180, 0.0
        %v3213 = vsel %vm2506, %v3181, 0.0
        %v3214 = vsel %vm2507, %v3182, 0.0
        %v3215 = vsel %vm2508, %v3183, 0.0
        %v3216 = vsel %vm2509, %v3184, 0.0
        %v3217 = vsel %vm2510, %v3185, 0.0
        %v3218 = vsel %vm2511, %v3186, 0.0
        %v3219 = vsel %vm2512, %v3187, 0.0
        %v3220 = vsel %vm2513, %v3188, 0.0
        %v3221 = vsel %vm2514, %v3189, 0.0
        %v3222 = vsel %vm2515, %v3190, 0.0
        %v3223 = vsel %vm2516, %v3191, 0.0
        %v3224 = vsel %vm2517, %v3192, 0.0
        %v3225 = vsel %vm2518, %v3193, 0.0
        %v3226 = vsel %vm2519, %v3194, 0.0
        %v3227 = vsel %vm2520, %v3195, 0.0
        %v3228 = vsel %vm2521, %v3196, 0.0
        %v3229 = vpack.c.bf16 %v3197, %v3197
        %v3230 = vpack.c.bf16 %v3198, %v3198
        %v3231 = vpack.c.bf16 %v3199, %v3199
        %v3232 = vpack.c.bf16 %v3200, %v3200
        %v3233 = vpack.c.bf16 %v3201, %v3201
        %v3234 = vpack.c.bf16 %v3202, %v3202
        %v3235 = vpack.c.bf16 %v3203, %v3203
        %v3236 = vpack.c.bf16 %v3204, %v3204
        %v3237 = vpack.c.bf16 %v3205, %v3205
        %v3238 = vpack.c.bf16 %v3206, %v3206
        %v3239 = vpack.c.bf16 %v3207, %v3207
        %v3240 = vpack.c.bf16 %v3208, %v3208
        %v3241 = vpack.c.bf16 %v3209, %v3209
        %v3242 = vpack.c.bf16 %v3210, %v3210
        %v3243 = vpack.c.bf16 %v3211, %v3211
        %v3244 = vpack.c.bf16 %v3212, %v3212
        %v3245 = vpack.c.bf16 %v3213, %v3213
        %v3246 = vpack.c.bf16 %v3214, %v3214
        %v3247 = vpack.c.bf16 %v3215, %v3215
        %v3248 = vpack.c.bf16 %v3216, %v3216
        %v3249 = vpack.c.bf16 %v3217, %v3217
        %v3250 = vpack.c.bf16 %v3218, %v3218
        %v3251 = vpack.c.bf16 %v3219, %v3219
        %v3252 = vpack.c.bf16 %v3220, %v3220
        %v3253 = vpack.c.bf16 %v3221, %v3221
        %v3254 = vpack.c.bf16 %v3222, %v3222
        %v3255 = vpack.c.bf16 %v3223, %v3223
        %v3256 = vpack.c.bf16 %v3224, %v3224
        %v3257 = vpack.c.bf16 %v3225, %v3225
        %v3258 = vpack.c.bf16 %v3226, %v3226
        %v3259 = vpack.c.bf16 %v3227, %v3227
        %v3260 = vpack.c.bf16 %v3228, %v3228
        %3293 = vrot.lane.b32.xlu0 %v3229, 6
        %v3294 = vpop.permute.xlu0 %3293
        %3295 = vrot.lane.b32.xlu0 %v3230, 6
        %v3296 = vpop.permute.xlu0 %3295
        %3297 = vrot.lane.b32.xlu0 %v3231, 6
        %v3298 = vpop.permute.xlu0 %3297
        %3299 = vrot.lane.b32.xlu0 %v3232, 6
        %v3300 = vpop.permute.xlu0 %3299
        %3301 = vrot.lane.b32.xlu0 %v3233, 6
        %v3302 = vpop.permute.xlu0 %3301
        %3303 = vrot.lane.b32.xlu0 %v3234, 6
        %v3304 = vpop.permute.xlu0 %3303
        %3305 = vrot.lane.b32.xlu0 %v3235, 6
        %v3306 = vpop.permute.xlu0 %3305
        %3307 = vrot.lane.b32.xlu0 %v3236, 6
        %v3308 = vpop.permute.xlu0 %3307
        %3309 = vrot.lane.b32.xlu0 %v3237, 6
        %v3310 = vpop.permute.xlu0 %3309
        %3311 = vrot.lane.b32.xlu0 %v3238, 6
        %v3312 = vpop.permute.xlu0 %3311
        %3313 = vrot.lane.b32.xlu0 %v3239, 6
        %v3314 = vpop.permute.xlu0 %3313
        %3315 = vrot.lane.b32.xlu0 %v3240, 6
        %v3316 = vpop.permute.xlu0 %3315
        %3317 = vrot.lane.b32.xlu0 %v3241, 6
        %v3318 = vpop.permute.xlu0 %3317
        %3319 = vrot.lane.b32.xlu0 %v3242, 6
        %v3320 = vpop.permute.xlu0 %3319
        %3321 = vrot.lane.b32.xlu0 %v3243, 6
        %v3322 = vpop.permute.xlu0 %3321
        %3323 = vrot.lane.b32.xlu0 %v3244, 6
        %v3324 = vpop.permute.xlu0 %3323
        %3325 = vrot.lane.b32.xlu0 %v3245, 6
        %v3326 = vpop.permute.xlu0 %3325
        %3327 = vrot.lane.b32.xlu0 %v3246, 6
        %v3328 = vpop.permute.xlu0 %3327
        %3329 = vrot.lane.b32.xlu0 %v3247, 6
        %v3330 = vpop.permute.xlu0 %3329
        %3331 = vrot.lane.b32.xlu0 %v3248, 6
        %v3332 = vpop.permute.xlu0 %3331
        %3333 = vrot.lane.b32.xlu0 %v3249, 6
        %v3334 = vpop.permute.xlu0 %3333
        %3335 = vrot.lane.b32.xlu0 %v3250, 6
        %v3336 = vpop.permute.xlu0 %3335
        %3337 = vrot.lane.b32.xlu0 %v3251, 6
        %v3338 = vpop.permute.xlu0 %3337
        %3339 = vrot.lane.b32.xlu0 %v3252, 6
        %v3340 = vpop.permute.xlu0 %3339
        %3341 = vrot.lane.b32.xlu0 %v3253, 6
        %v3342 = vpop.permute.xlu0 %3341
        %3343 = vrot.lane.b32.xlu0 %v3254, 6
        %v3344 = vpop.permute.xlu0 %3343
        %3345 = vrot.lane.b32.xlu0 %v3255, 6
        %v3346 = vpop.permute.xlu0 %3345
        %3347 = vrot.lane.b32.xlu0 %v3256, 6
        %v3348 = vpop.permute.xlu0 %3347
        %3349 = vrot.lane.b32.xlu0 %v3257, 6
        %v3350 = vpop.permute.xlu0 %3349
        %3351 = vrot.lane.b32.xlu0 %v3258, 6
        %v3352 = vpop.permute.xlu0 %3351
        %3353 = vrot.lane.b32.xlu0 %v3259, 6
        %v3354 = vpop.permute.xlu0 %3353
        %3355 = vrot.lane.b32.xlu0 %v3260, 6
        %v3356 = vpop.permute.xlu0 %3355
        %vm3389 = vcmask 60464
        %3390 = vst.msk [vmem:[#allocation3] sm:$0xf] %vm3389, %v3294
        %3391 = vst.msk [vmem:[#allocation3 + $0x4] sm:$0xf] %vm3389, %v3296
        %3392 = vst.msk [vmem:[#allocation3 + $0x8] sm:$0xf] %vm3389, %v3298
        %3393 = vst.msk [vmem:[#allocation3 + $0xc] sm:$0xf] %vm3389, %v3300
        %3394 = vst.msk [vmem:[#allocation3 + $0x10] sm:$0xf] %vm3389, %v3302
        %3395 = vst.msk [vmem:[#allocation3 + $0x14] sm:$0xf] %vm3389, %v3304
        %3396 = vst.msk [vmem:[#allocation3 + $0x18] sm:$0xf] %vm3389, %v3306
        %3397 = vst.msk [vmem:[#allocation3 + $0x1c] sm:$0xf] %vm3389, %v3308
        %3398 = vst.msk [vmem:[#allocation3 + $0x20] sm:$0xf] %vm3389, %v3310
        %3399 = vst.msk [vmem:[#allocation3 + $0x24] sm:$0xf] %vm3389, %v3312
        %3400 = vst.msk [vmem:[#allocation3 + $0x28] sm:$0xf] %vm3389, %v3314
        %3401 = vst.msk [vmem:[#allocation3 + $0x2c] sm:$0xf] %vm3389, %v3316
        %3402 = vst.msk [vmem:[#allocation3 + $0x30] sm:$0xf] %vm3389, %v3318
        %3403 = vst.msk [vmem:[#allocation3 + $0x34] sm:$0xf] %vm3389, %v3320
        %3404 = vst.msk [vmem:[#allocation3 + $0x38] sm:$0xf] %vm3389, %v3322
        %3405 = vst.msk [vmem:[#allocation3 + $0x3c] sm:$0xf] %vm3389, %v3324
        %3406 = vst.msk [vmem:[#allocation3 + $0x40] sm:$0xf] %vm3389, %v3326
        %3407 = vst.msk [vmem:[#allocation3 + $0x44] sm:$0xf] %vm3389, %v3328
        %3408 = vst.msk [vmem:[#allocation3 + $0x48] sm:$0xf] %vm3389, %v3330
        %3409 = vst.msk [vmem:[#allocation3 + $0x4c] sm:$0xf] %vm3389, %v3332
        %3410 = vst.msk [vmem:[#allocation3 + $0x50] sm:$0xf] %vm3389, %v3334
        %3411 = vst.msk [vmem:[#allocation3 + $0x54] sm:$0xf] %vm3389, %v3336
        %3412 = vst.msk [vmem:[#allocation3 + $0x58] sm:$0xf] %vm3389, %v3338
        %3413 = vst.msk [vmem:[#allocation3 + $0x5c] sm:$0xf] %vm3389, %v3340
        %3414 = vst.msk [vmem:[#allocation3 + $0x60] sm:$0xf] %vm3389, %v3342
        %3415 = vst.msk [vmem:[#allocation3 + $0x64] sm:$0xf] %vm3389, %v3344
        %3416 = vst.msk [vmem:[#allocation3 + $0x68] sm:$0xf] %vm3389, %v3346
        %3417 = vst.msk [vmem:[#allocation3 + $0x6c] sm:$0xf] %vm3389, %v3348
        %3418 = vst.msk [vmem:[#allocation3 + $0x70] sm:$0xf] %vm3389, %v3350
        %3419 = vst.msk [vmem:[#allocation3 + $0x74] sm:$0xf] %vm3389, %v3352
        %3420 = vst.msk [vmem:[#allocation3 + $0x78] sm:$0xf] %vm3389, %v3354
        %3421 = vst.msk [vmem:[#allocation3 + $0x7c] sm:$0xf] %vm3389, %v3356
        %v3422 = vld [vmem:[#allocation2 + $0x11] sm:$0xff]
        %v3423 = vld [vmem:[#allocation2 + $0x19] sm:$0xff]
        %v3424 = vld [vmem:[#allocation2 + $0x21] sm:$0xff]
        %v3425 = vld [vmem:[#allocation2 + $0x29] sm:$0xff]
        %v3426 = vld [vmem:[#allocation2 + $0x31] sm:$0xff]
        %v3427 = vld [vmem:[#allocation2 + $0x39] sm:$0xff]
        %v3428 = vld [vmem:[#allocation2 + $0x41] sm:$0xff]
        %v3429 = vld [vmem:[#allocation2 + $0x49] sm:$0xff]
        %v3430 = vld [vmem:[#allocation2 + $0x51] sm:$0xff]
        %v3431 = vld [vmem:[#allocation2 + $0x59] sm:$0xff]
        %v3432 = vld [vmem:[#allocation2 + $0x61] sm:$0xff]
        %v3433 = vld [vmem:[#allocation2 + $0x69] sm:$0xff]
        %v3434 = vld [vmem:[#allocation2 + $0x71] sm:$0xff]
        %v3435 = vld [vmem:[#allocation2 + $0x79] sm:$0xff]
        %v3436 = vld [vmem:[#allocation2 + $0x81] sm:$0xff]
        %v3437 = vld [vmem:[#allocation2 + $0x89] sm:$0xff]
        %v3438 = vld [vmem:[#allocation2 + $0x91] sm:$0xff]
        %v3439 = vld [vmem:[#allocation2 + $0x99] sm:$0xff]
        %v3440 = vld [vmem:[#allocation2 + $0xa1] sm:$0xff]
        %v3441 = vld [vmem:[#allocation2 + $0xa9] sm:$0xff]
        %v3442 = vld [vmem:[#allocation2 + $0xb1] sm:$0xff]
        %v3443 = vld [vmem:[#allocation2 + $0xb9] sm:$0xff]
        %v3444 = vld [vmem:[#allocation2 + $0xc1] sm:$0xff]
        %v3445 = vld [vmem:[#allocation2 + $0xc9] sm:$0xff]
        %v3446 = vld [vmem:[#allocation2 + $0xd1] sm:$0xff]
        %v3447 = vld [vmem:[#allocation2 + $0xd9] sm:$0xff]
        %v3448 = vld [vmem:[#allocation2 + $0xe1] sm:$0xff]
        %v3449 = vld [vmem:[#allocation2 + $0xe9] sm:$0xff]
        %v3450 = vld [vmem:[#allocation2 + $0xf1] sm:$0xff]
        %v3451 = vld [vmem:[#allocation2 + $0xf9] sm:$0xff]
        %v3452 = vld [vmem:[#allocation2 + $0x101] sm:$0xff]
        %v3453 = vld [vmem:[#allocation2 + $0x109] sm:$0xff]
        %v3454 = vpack.c.bf16 %v3422, %v3422
        %v3455 = vpack.c.bf16 %v3423, %v3423
        %v3456 = vpack.c.bf16 %v3424, %v3424
        %v3457 = vpack.c.bf16 %v3425, %v3425
        %v3458 = vpack.c.bf16 %v3426, %v3426
        %v3459 = vpack.c.bf16 %v3427, %v3427
        %v3460 = vpack.c.bf16 %v3428, %v3428
        %v3461 = vpack.c.bf16 %v3429, %v3429
        %v3462 = vpack.c.bf16 %v3430, %v3430
        %v3463 = vpack.c.bf16 %v3431, %v3431
        %v3464 = vpack.c.bf16 %v3432, %v3432
        %v3465 = vpack.c.bf16 %v3433, %v3433
        %v3466 = vpack.c.bf16 %v3434, %v3434
        %v3467 = vpack.c.bf16 %v3435, %v3435
        %v3468 = vpack.c.bf16 %v3436, %v3436
        %v3469 = vpack.c.bf16 %v3437, %v3437
        %v3470 = vpack.c.bf16 %v3438, %v3438
        %v3471 = vpack.c.bf16 %v3439, %v3439
        %v3472 = vpack.c.bf16 %v3440, %v3440
        %v3473 = vpack.c.bf16 %v3441, %v3441
        %v3474 = vpack.c.bf16 %v3442, %v3442
        %v3475 = vpack.c.bf16 %v3443, %v3443
        %v3476 = vpack.c.bf16 %v3444, %v3444
        %v3477 = vpack.c.bf16 %v3445, %v3445
        %v3478 = vpack.c.bf16 %v3446, %v3446
        %v3479 = vpack.c.bf16 %v3447, %v3447
        %v3480 = vpack.c.bf16 %v3448, %v3448
        %v3481 = vpack.c.bf16 %v3449, %v3449
        %v3482 = vpack.c.bf16 %v3450, %v3450
        %v3483 = vpack.c.bf16 %v3451, %v3451
        %v3484 = vpack.c.bf16 %v3452, %v3452
        %v3485 = vpack.c.bf16 %v3453, %v3453
        %3518 = vrot.lane.b32.xlu0 %v3454, 8
        %v3519 = vpop.permute.xlu0 %3518
        %3520 = vrot.lane.b32.xlu0 %v3455, 8
        %v3521 = vpop.permute.xlu0 %3520
        %3522 = vrot.lane.b32.xlu0 %v3456, 8
        %v3523 = vpop.permute.xlu0 %3522
        %3524 = vrot.lane.b32.xlu0 %v3457, 8
        %v3525 = vpop.permute.xlu0 %3524
        %3526 = vrot.lane.b32.xlu0 %v3458, 8
        %v3527 = vpop.permute.xlu0 %3526
        %3528 = vrot.lane.b32.xlu0 %v3459, 8
        %v3529 = vpop.permute.xlu0 %3528
        %3530 = vrot.lane.b32.xlu0 %v3460, 8
        %v3531 = vpop.permute.xlu0 %3530
        %3532 = vrot.lane.b32.xlu0 %v3461, 8
        %v3533 = vpop.permute.xlu0 %3532
        %3534 = vrot.lane.b32.xlu0 %v3462, 8
        %v3535 = vpop.permute.xlu0 %3534
        %3536 = vrot.lane.b32.xlu0 %v3463, 8
        %v3537 = vpop.permute.xlu0 %3536
        %3538 = vrot.lane.b32.xlu0 %v3464, 8
        %v3539 = vpop.permute.xlu0 %3538
        %3540 = vrot.lane.b32.xlu0 %v3465, 8
        %v3541 = vpop.permute.xlu0 %3540
        %3542 = vrot.lane.b32.xlu0 %v3466, 8
        %v3543 = vpop.permute.xlu0 %3542
        %3544 = vrot.lane.b32.xlu0 %v3467, 8
        %v3545 = vpop.permute.xlu0 %3544
        %3546 = vrot.lane.b32.xlu0 %v3468, 8
        %v3547 = vpop.permute.xlu0 %3546
        %3548 = vrot.lane.b32.xlu0 %v3469, 8
        %v3549 = vpop.permute.xlu0 %3548
        %3550 = vrot.lane.b32.xlu0 %v3470, 8
        %v3551 = vpop.permute.xlu0 %3550
        %3552 = vrot.lane.b32.xlu0 %v3471, 8
        %v3553 = vpop.permute.xlu0 %3552
        %3554 = vrot.lane.b32.xlu0 %v3472, 8
        %v3555 = vpop.permute.xlu0 %3554
        %3556 = vrot.lane.b32.xlu0 %v3473, 8
        %v3557 = vpop.permute.xlu0 %3556
        %3558 = vrot.lane.b32.xlu0 %v3474, 8
        %v3559 = vpop.permute.xlu0 %3558
        %3560 = vrot.lane.b32.xlu0 %v3475, 8
        %v3561 = vpop.permute.xlu0 %3560
        %3562 = vrot.lane.b32.xlu0 %v3476, 8
        %v3563 = vpop.permute.xlu0 %3562
        %3564 = vrot.lane.b32.xlu0 %v3477, 8
        %v3565 = vpop.permute.xlu0 %3564
        %3566 = vrot.lane.b32.xlu0 %v3478, 8
        %v3567 = vpop.permute.xlu0 %3566
        %3568 = vrot.lane.b32.xlu0 %v3479, 8
        %v3569 = vpop.permute.xlu0 %3568
        %3570 = vrot.lane.b32.xlu0 %v3480, 8
        %v3571 = vpop.permute.xlu0 %3570
        %3572 = vrot.lane.b32.xlu0 %v3481, 8
        %v3573 = vpop.permute.xlu0 %3572
        %3574 = vrot.lane.b32.xlu0 %v3482, 8
        %v3575 = vpop.permute.xlu0 %3574
        %3576 = vrot.lane.b32.xlu0 %v3483, 8
        %v3577 = vpop.permute.xlu0 %3576
        %3578 = vrot.lane.b32.xlu0 %v3484, 8
        %v3579 = vpop.permute.xlu0 %3578
        %3580 = vrot.lane.b32.xlu0 %v3485, 8
        %v3581 = vpop.permute.xlu0 %3580
        %vm3614 = vcmask 76864
        %3615 = vst.msk [vmem:[#allocation3] sm:$0xf] %vm3614, %v3519
        %3616 = vst.msk [vmem:[#allocation3 + $0x4] sm:$0xf] %vm3614, %v3521
        %3617 = vst.msk [vmem:[#allocation3 + $0x8] sm:$0xf] %vm3614, %v3523
        %3618 = vst.msk [vmem:[#allocation3 + $0xc] sm:$0xf] %vm3614, %v3525
        %3619 = vst.msk [vmem:[#allocation3 + $0x10] sm:$0xf] %vm3614, %v3527
        %3620 = vst.msk [vmem:[#allocation3 + $0x14] sm:$0xf] %vm3614, %v3529
        %3621 = vst.msk [vmem:[#allocation3 + $0x18] sm:$0xf] %vm3614, %v3531
        %3622 = vst.msk [vmem:[#allocation3 + $0x1c] sm:$0xf] %vm3614, %v3533
        %3623 = vst.msk [vmem:[#allocation3 + $0x20] sm:$0xf] %vm3614, %v3535
        %3624 = vst.msk [vmem:[#allocation3 + $0x24] sm:$0xf] %vm3614, %v3537
        %3625 = vst.msk [vmem:[#allocation3 + $0x28] sm:$0xf] %vm3614, %v3539
        %3626 = vst.msk [vmem:[#allocation3 + $0x2c] sm:$0xf] %vm3614, %v3541
        %3627 = vst.msk [vmem:[#allocation3 + $0x30] sm:$0xf] %vm3614, %v3543
        %3628 = vst.msk [vmem:[#allocation3 + $0x34] sm:$0xf] %vm3614, %v3545
        %3629 = vst.msk [vmem:[#allocation3 + $0x38] sm:$0xf] %vm3614, %v3547
        %3630 = vst.msk [vmem:[#allocation3 + $0x3c] sm:$0xf] %vm3614, %v3549
        %3631 = vst.msk [vmem:[#allocation3 + $0x40] sm:$0xf] %vm3614, %v3551
        %3632 = vst.msk [vmem:[#allocation3 + $0x44] sm:$0xf] %vm3614, %v3553
        %3633 = vst.msk [vmem:[#allocation3 + $0x48] sm:$0xf] %vm3614, %v3555
        %3634 = vst.msk [vmem:[#allocation3 + $0x4c] sm:$0xf] %vm3614, %v3557
        %3635 = vst.msk [vmem:[#allocation3 + $0x50] sm:$0xf] %vm3614, %v3559
        %3636 = vst.msk [vmem:[#allocation3 + $0x54] sm:$0xf] %vm3614, %v3561
        %3637 = vst.msk [vmem:[#allocation3 + $0x58] sm:$0xf] %vm3614, %v3563
        %3638 = vst.msk [vmem:[#allocation3 + $0x5c] sm:$0xf] %vm3614, %v3565
        %3639 = vst.msk [vmem:[#allocation3 + $0x60] sm:$0xf] %vm3614, %v3567
        %3640 = vst.msk [vmem:[#allocation3 + $0x64] sm:$0xf] %vm3614, %v3569
        %3641 = vst.msk [vmem:[#allocation3 + $0x68] sm:$0xf] %vm3614, %v3571
        %3642 = vst.msk [vmem:[#allocation3 + $0x6c] sm:$0xf] %vm3614, %v3573
        %3643 = vst.msk [vmem:[#allocation3 + $0x70] sm:$0xf] %vm3614, %v3575
        %3644 = vst.msk [vmem:[#allocation3 + $0x74] sm:$0xf] %vm3614, %v3577
        %3645 = vst.msk [vmem:[#allocation3 + $0x78] sm:$0xf] %vm3614, %v3579
        %3646 = vst.msk [vmem:[#allocation3 + $0x7c] sm:$0xf] %vm3614, %v3581
        %v3647 = vld [vmem:[#allocation2 + $0x12] sm:$0xff]
        %v3648 = vld [vmem:[#allocation2 + $0x1a] sm:$0xff]
        %v3649 = vld [vmem:[#allocation2 + $0x22] sm:$0xff]
        %v3650 = vld [vmem:[#allocation2 + $0x2a] sm:$0xff]
        %v3651 = vld [vmem:[#allocation2 + $0x32] sm:$0xff]
        %v3652 = vld [vmem:[#allocation2 + $0x3a] sm:$0xff]
        %v3653 = vld [vmem:[#allocation2 + $0x42] sm:$0xff]
        %v3654 = vld [vmem:[#allocation2 + $0x4a] sm:$0xff]
        %v3655 = vld [vmem:[#allocation2 + $0x52] sm:$0xff]
        %v3656 = vld [vmem:[#allocation2 + $0x5a] sm:$0xff]
        %v3657 = vld [vmem:[#allocation2 + $0x62] sm:$0xff]
        %v3658 = vld [vmem:[#allocation2 + $0x6a] sm:$0xff]
        %v3659 = vld [vmem:[#allocation2 + $0x72] sm:$0xff]
        %v3660 = vld [vmem:[#allocation2 + $0x7a] sm:$0xff]
        %v3661 = vld [vmem:[#allocation2 + $0x82] sm:$0xff]
        %v3662 = vld [vmem:[#allocation2 + $0x8a] sm:$0xff]
        %v3663 = vld [vmem:[#allocation2 + $0x92] sm:$0xff]
        %v3664 = vld [vmem:[#allocation2 + $0x9a] sm:$0xff]
        %v3665 = vld [vmem:[#allocation2 + $0xa2] sm:$0xff]
        %v3666 = vld [vmem:[#allocation2 + $0xaa] sm:$0xff]
        %v3667 = vld [vmem:[#allocation2 + $0xb2] sm:$0xff]
        %v3668 = vld [vmem:[#allocation2 + $0xba] sm:$0xff]
        %v3669 = vld [vmem:[#allocation2 + $0xc2] sm:$0xff]
        %v3670 = vld [vmem:[#allocation2 + $0xca] sm:$0xff]
        %v3671 = vld [vmem:[#allocation2 + $0xd2] sm:$0xff]
        %v3672 = vld [vmem:[#allocation2 + $0xda] sm:$0xff]
        %v3673 = vld [vmem:[#allocation2 + $0xe2] sm:$0xff]
        %v3674 = vld [vmem:[#allocation2 + $0xea] sm:$0xff]
        %v3675 = vld [vmem:[#allocation2 + $0xf2] sm:$0xff]
        %v3676 = vld [vmem:[#allocation2 + $0xfa] sm:$0xff]
        %v3677 = vld [vmem:[#allocation2 + $0x102] sm:$0xff]
        %v3678 = vld [vmem:[#allocation2 + $0x10a] sm:$0xff]
        %v3679 = vsel %vm2522, %v3647, 0.0
        %v3680 = vsel %vm2523, %v3648, 0.0
        %v3681 = vsel %vm2524, %v3649, 0.0
        %v3682 = vsel %vm2525, %v3650, 0.0
        %v3683 = vsel %vm2526, %v3651, 0.0
        %v3684 = vsel %vm2527, %v3652, 0.0
        %v3685 = vsel %vm2528, %v3653, 0.0
        %v3686 = vsel %vm2529, %v3654, 0.0
        %v3687 = vsel %vm2530, %v3655, 0.0
        %v3688 = vsel %vm2531, %v3656, 0.0
        %v3689 = vsel %vm2532, %v3657, 0.0
        %v3690 = vsel %vm2533, %v3658, 0.0
        %v3691 = vsel %vm2534, %v3659, 0.0
        %v3692 = vsel %vm2535, %v3660, 0.0
        %v3693 = vsel %vm2536, %v3661, 0.0
        %v3694 = vsel %vm2537, %v3662, 0.0
        %v3695 = vsel %vm2538, %v3663, 0.0
        %v3696 = vsel %vm2539, %v3664, 0.0
        %v3697 = vsel %vm2540, %v3665, 0.0
        %v3698 = vsel %vm2541, %v3666, 0.0
        %v3699 = vsel %vm2542, %v3667, 0.0
        %v3700 = vsel %vm2543, %v3668, 0.0
        %v3701 = vsel %vm2544, %v3669, 0.0
        %v3702 = vsel %vm2545, %v3670, 0.0
        %v3703 = vsel %vm2546, %v3671, 0.0
        %v3704 = vsel %vm2547, %v3672, 0.0
        %v3705 = vsel %vm2548, %v3673, 0.0
        %v3706 = vsel %vm2549, %v3674, 0.0
        %v3707 = vsel %vm2550, %v3675, 0.0
        %v3708 = vsel %vm2551, %v3676, 0.0
        %v3709 = vsel %vm2552, %v3677, 0.0
        %v3710 = vsel %vm2553, %v3678, 0.0
        %v3711 = vpack.c.bf16 %v3679, %v3679
        %v3712 = vpack.c.bf16 %v3680, %v3680
        %v3713 = vpack.c.bf16 %v3681, %v3681
        %v3714 = vpack.c.bf16 %v3682, %v3682
        %v3715 = vpack.c.bf16 %v3683, %v3683
        %v3716 = vpack.c.bf16 %v3684, %v3684
        %v3717 = vpack.c.bf16 %v3685, %v3685
        %v3718 = vpack.c.bf16 %v3686, %v3686
        %v3719 = vpack.c.bf16 %v3687, %v3687
        %v3720 = vpack.c.bf16 %v3688, %v3688
        %v3721 = vpack.c.bf16 %v3689, %v3689
        %v3722 = vpack.c.bf16 %v3690, %v3690
        %v3723 = vpack.c.bf16 %v3691, %v3691
        %v3724 = vpack.c.bf16 %v3692, %v3692
        %v3725 = vpack.c.bf16 %v3693, %v3693
        %v3726 = vpack.c.bf16 %v3694, %v3694
        %v3727 = vpack.c.bf16 %v3695, %v3695
        %v3728 = vpack.c.bf16 %v3696, %v3696
        %v3729 = vpack.c.bf16 %v3697, %v3697
        %v3730 = vpack.c.bf16 %v3698, %v3698
        %v3731 = vpack.c.bf16 %v3699, %v3699
        %v3732 = vpack.c.bf16 %v3700, %v3700
        %v3733 = vpack.c.bf16 %v3701, %v3701
        %v3734 = vpack.c.bf16 %v3702, %v3702
        %v3735 = vpack.c.bf16 %v3703, %v3703
        %v3736 = vpack.c.bf16 %v3704, %v3704
        %v3737 = vpack.c.bf16 %v3705, %v3705
        %v3738 = vpack.c.bf16 %v3706, %v3706
        %v3739 = vpack.c.bf16 %v3707, %v3707
        %v3740 = vpack.c.bf16 %v3708, %v3708
        %v3741 = vpack.c.bf16 %v3709, %v3709
        %v3742 = vpack.c.bf16 %v3710, %v3710
        %3775 = vrot.lane.b32.xlu0 %v3711, 10
        %v3776 = vpop.permute.xlu0 %3775
        %3777 = vrot.lane.b32.xlu0 %v3712, 10
        %v3778 = vpop.permute.xlu0 %3777
        %3779 = vrot.lane.b32.xlu0 %v3713, 10
        %v3780 = vpop.permute.xlu0 %3779
        %3781 = vrot.lane.b32.xlu0 %v3714, 10
        %v3782 = vpop.permute.xlu0 %3781
        %3783 = vrot.lane.b32.xlu0 %v3715, 10
        %v3784 = vpop.permute.xlu0 %3783
        %3785 = vrot.lane.b32.xlu0 %v3716, 10
        %v3786 = vpop.permute.xlu0 %3785
        %3787 = vrot.lane.b32.xlu0 %v3717, 10
        %v3788 = vpop.permute.xlu0 %3787
        %3789 = vrot.lane.b32.xlu0 %v3718, 10
        %v3790 = vpop.permute.xlu0 %3789
        %3791 = vrot.lane.b32.xlu0 %v3719, 10
        %v3792 = vpop.permute.xlu0 %3791
        %3793 = vrot.lane.b32.xlu0 %v3720, 10
        %v3794 = vpop.permute.xlu0 %3793
        %3795 = vrot.lane.b32.xlu0 %v3721, 10
        %v3796 = vpop.permute.xlu0 %3795
        %3797 = vrot.lane.b32.xlu0 %v3722, 10
        %v3798 = vpop.permute.xlu0 %3797
        %3799 = vrot.lane.b32.xlu0 %v3723, 10
        %v3800 = vpop.permute.xlu0 %3799
        %3801 = vrot.lane.b32.xlu0 %v3724, 10
        %v3802 = vpop.permute.xlu0 %3801
        %3803 = vrot.lane.b32.xlu0 %v3725, 10
        %v3804 = vpop.permute.xlu0 %3803
        %3805 = vrot.lane.b32.xlu0 %v3726, 10
        %v3806 = vpop.permute.xlu0 %3805
        %3807 = vrot.lane.b32.xlu0 %v3727, 10
        %v3808 = vpop.permute.xlu0 %3807
        %3809 = vrot.lane.b32.xlu0 %v3728, 10
        %v3810 = vpop.permute.xlu0 %3809
        %3811 = vrot.lane.b32.xlu0 %v3729, 10
        %v3812 = vpop.permute.xlu0 %3811
        %3813 = vrot.lane.b32.xlu0 %v3730, 10
        %v3814 = vpop.permute.xlu0 %3813
        %3815 = vrot.lane.b32.xlu0 %v3731, 10
        %v3816 = vpop.permute.xlu0 %3815
        %3817 = vrot.lane.b32.xlu0 %v3732, 10
        %v3818 = vpop.permute.xlu0 %3817
        %3819 = vrot.lane.b32.xlu0 %v3733, 10
        %v3820 = vpop.permute.xlu0 %3819
        %3821 = vrot.lane.b32.xlu0 %v3734, 10
        %v3822 = vpop.permute.xlu0 %3821
        %3823 = vrot.lane.b32.xlu0 %v3735, 10
        %v3824 = vpop.permute.xlu0 %3823
        %3825 = vrot.lane.b32.xlu0 %v3736, 10
        %v3826 = vpop.permute.xlu0 %3825
        %3827 = vrot.lane.b32.xlu0 %v3737, 10
        %v3828 = vpop.permute.xlu0 %3827
        %3829 = vrot.lane.b32.xlu0 %v3738, 10
        %v3830 = vpop.permute.xlu0 %3829
        %3831 = vrot.lane.b32.xlu0 %v3739, 10
        %v3832 = vpop.permute.xlu0 %3831
        %3833 = vrot.lane.b32.xlu0 %v3740, 10
        %v3834 = vpop.permute.xlu0 %3833
        %3835 = vrot.lane.b32.xlu0 %v3741, 10
        %v3836 = vpop.permute.xlu0 %3835
        %3837 = vrot.lane.b32.xlu0 %v3742, 10
        %v3838 = vpop.permute.xlu0 %3837
        %vm3871 = vcmask 93264
        %3872 = vst.msk [vmem:[#allocation3] sm:$0xf] %vm3871, %v3776
        %3873 = vst.msk [vmem:[#allocation3 + $0x4] sm:$0xf] %vm3871, %v3778
        %3874 = vst.msk [vmem:[#allocation3 + $0x8] sm:$0xf] %vm3871, %v3780
        %3875 = vst.msk [vmem:[#allocation3 + $0xc] sm:$0xf] %vm3871, %v3782
        %3876 = vst.msk [vmem:[#allocation3 + $0x10] sm:$0xf] %vm3871, %v3784
        %3877 = vst.msk [vmem:[#allocation3 + $0x14] sm:$0xf] %vm3871, %v3786
        %3878 = vst.msk [vmem:[#allocation3 + $0x18] sm:$0xf] %vm3871, %v3788
        %3879 = vst.msk [vmem:[#allocation3 + $0x1c] sm:$0xf] %vm3871, %v3790
        %3880 = vst.msk [vmem:[#allocation3 + $0x20] sm:$0xf] %vm3871, %v3792
        %3881 = vst.msk [vmem:[#allocation3 + $0x24] sm:$0xf] %vm3871, %v3794
        %3882 = vst.msk [vmem:[#allocation3 + $0x28] sm:$0xf] %vm3871, %v3796
        %3883 = vst.msk [vmem:[#allocation3 + $0x2c] sm:$0xf] %vm3871, %v3798
        %3884 = vst.msk [vmem:[#allocation3 + $0x30] sm:$0xf] %vm3871, %v3800
        %3885 = vst.msk [vmem:[#allocation3 + $0x34] sm:$0xf] %vm3871, %v3802
        %3886 = vst.msk [vmem:[#allocation3 + $0x38] sm:$0xf] %vm3871, %v3804
        %3887 = vst.msk [vmem:[#allocation3 + $0x3c] sm:$0xf] %vm3871, %v3806
        %3888 = vst.msk [vmem:[#allocation3 + $0x40] sm:$0xf] %vm3871, %v3808
        %3889 = vst.msk [vmem:[#allocation3 + $0x44] sm:$0xf] %vm3871, %v3810
        %3890 = vst.msk [vmem:[#allocation3 + $0x48] sm:$0xf] %vm3871, %v3812
        %3891 = vst.msk [vmem:[#allocation3 + $0x4c] sm:$0xf] %vm3871, %v3814
        %3892 = vst.msk [vmem:[#allocation3 + $0x50] sm:$0xf] %vm3871, %v3816
        %3893 = vst.msk [vmem:[#allocation3 + $0x54] sm:$0xf] %vm3871, %v3818
        %3894 = vst.msk [vmem:[#allocation3 + $0x58] sm:$0xf] %vm3871, %v3820
        %3895 = vst.msk [vmem:[#allocation3 + $0x5c] sm:$0xf] %vm3871, %v3822
        %3896 = vst.msk [vmem:[#allocation3 + $0x60] sm:$0xf] %vm3871, %v3824
        %3897 = vst.msk [vmem:[#allocation3 + $0x64] sm:$0xf] %vm3871, %v3826
        %3898 = vst.msk [vmem:[#allocation3 + $0x68] sm:$0xf] %vm3871, %v3828
        %3899 = vst.msk [vmem:[#allocation3 + $0x6c] sm:$0xf] %vm3871, %v3830
        %3900 = vst.msk [vmem:[#allocation3 + $0x70] sm:$0xf] %vm3871, %v3832
        %3901 = vst.msk [vmem:[#allocation3 + $0x74] sm:$0xf] %vm3871, %v3834
        %3902 = vst.msk [vmem:[#allocation3 + $0x78] sm:$0xf] %vm3871, %v3836
        %3903 = vst.msk [vmem:[#allocation3 + $0x7c] sm:$0xf] %vm3871, %v3838
        %v3904 = vld [vmem:[#allocation2 + $0x20] sm:$0xff]
        %v3905 = vld [vmem:[#allocation2 + $0x28] sm:$0xff]
        %v3906 = vld [vmem:[#allocation2 + $0x30] sm:$0xff]
        %v3907 = vld [vmem:[#allocation2 + $0x38] sm:$0xff]
        %v3908 = vld [vmem:[#allocation2 + $0x40] sm:$0xff]
        %v3909 = vld [vmem:[#allocation2 + $0x48] sm:$0xff]
        %v3910 = vld [vmem:[#allocation2 + $0x50] sm:$0xff]
        %v3911 = vld [vmem:[#allocation2 + $0x58] sm:$0xff]
        %v3912 = vld [vmem:[#allocation2 + $0x60] sm:$0xff]
        %v3913 = vld [vmem:[#allocation2 + $0x68] sm:$0xff]
        %v3914 = vld [vmem:[#allocation2 + $0x70] sm:$0xff]
        %v3915 = vld [vmem:[#allocation2 + $0x78] sm:$0xff]
        %v3916 = vld [vmem:[#allocation2 + $0x80] sm:$0xff]
        %v3917 = vld [vmem:[#allocation2 + $0x88] sm:$0xff]
        %v3918 = vld [vmem:[#allocation2 + $0x90] sm:$0xff]
        %v3919 = vld [vmem:[#allocation2 + $0x98] sm:$0xff]
        %v3920 = vld [vmem:[#allocation2 + $0xa0] sm:$0xff]
        %v3921 = vld [vmem:[#allocation2 + $0xa8] sm:$0xff]
        %v3922 = vld [vmem:[#allocation2 + $0xb0] sm:$0xff]
        %v3923 = vld [vmem:[#allocation2 + $0xb8] sm:$0xff]
        %v3924 = vld [vmem:[#allocation2 + $0xc0] sm:$0xff]
        %v3925 = vld [vmem:[#allocation2 + $0xc8] sm:$0xff]
        %v3926 = vld [vmem:[#allocation2 + $0xd0] sm:$0xff]
        %v3927 = vld [vmem:[#allocation2 + $0xd8] sm:$0xff]
        %v3928 = vld [vmem:[#allocation2 + $0xe0] sm:$0xff]
        %v3929 = vld [vmem:[#allocation2 + $0xe8] sm:$0xff]
        %v3930 = vld [vmem:[#allocation2 + $0xf0] sm:$0xff]
        %v3931 = vld [vmem:[#allocation2 + $0xf8] sm:$0xff]
        %v3932 = vld [vmem:[#allocation2 + $0x100] sm:$0xff]
        %v3933 = vld [vmem:[#allocation2 + $0x108] sm:$0xff]
        %v3934 = vld [vmem:[#allocation2 + $0x110] sm:$0xff]
        %v3935 = vld [vmem:[#allocation2 + $0x118] sm:$0xff]
        %v3936 = vsel %vm2490, %v3904, 0.0
        %v3937 = vsel %vm2491, %v3905, 0.0
        %v3938 = vsel %vm2492, %v3906, 0.0
        %v3939 = vsel %vm2493, %v3907, 0.0
        %v3940 = vsel %vm2494, %v3908, 0.0
        %v3941 = vsel %vm2495, %v3909, 0.0
        %v3942 = vsel %vm2496, %v3910, 0.0
        %v3943 = vsel %vm2497, %v3911, 0.0
        %v3944 = vsel %vm2498, %v3912, 0.0
        %v3945 = vsel %vm2499, %v3913, 0.0
        %v3946 = vsel %vm2500, %v3914, 0.0
        %v3947 = vsel %vm2501, %v3915, 0.0
        %v3948 = vsel %vm2502, %v3916, 0.0
        %v3949 = vsel %vm2503, %v3917, 0.0
        %v3950 = vsel %vm2504, %v3918, 0.0
        %v3951 = vsel %vm2505, %v3919, 0.0
        %v3952 = vsel %vm2506, %v3920, 0.0
        %v3953 = vsel %vm2507, %v3921, 0.0
        %v3954 = vsel %vm2508, %v3922, 0.0
        %v3955 = vsel %vm2509, %v3923, 0.0
        %v3956 = vsel %vm2510, %v3924, 0.0
        %v3957 = vsel %vm2511, %v3925, 0.0
        %v3958 = vsel %vm2512, %v3926, 0.0
        %v3959 = vsel %vm2513, %v3927, 0.0
        %v3960 = vsel %vm2514, %v3928, 0.0
        %v3961 = vsel %vm2515, %v3929, 0.0
        %v3962 = vsel %vm2516, %v3930, 0.0
        %v3963 = vsel %vm2517, %v3931, 0.0
        %v3964 = vsel %vm2518, %v3932, 0.0
        %v3965 = vsel %vm2519, %v3933, 0.0
        %v3966 = vsel %vm2520, %v3934, 0.0
        %v3967 = vsel %vm2521, %v3935, 0.0
        %v3968 = vpack.c.bf16 %v3936, %v3936
        %v3969 = vpack.c.bf16 %v3937, %v3937
        %v3970 = vpack.c.bf16 %v3938, %v3938
        %v3971 = vpack.c.bf16 %v3939, %v3939
        %v3972 = vpack.c.bf16 %v3940, %v3940
        %v3973 = vpack.c.bf16 %v3941, %v3941
        %v3974 = vpack.c.bf16 %v3942, %v3942
        %v3975 = vpack.c.bf16 %v3943, %v3943
        %v3976 = vpack.c.bf16 %v3944, %v3944
        %v3977 = vpack.c.bf16 %v3945, %v3945
        %v3978 = vpack.c.bf16 %v3946, %v3946
        %v3979 = vpack.c.bf16 %v3947, %v3947
        %v3980 = vpack.c.bf16 %v3948, %v3948
        %v3981 = vpack.c.bf16 %v3949, %v3949
        %v3982 = vpack.c.bf16 %v3950, %v3950
        %v3983 = vpack.c.bf16 %v3951, %v3951
        %v3984 = vpack.c.bf16 %v3952, %v3952
        %v3985 = vpack.c.bf16 %v3953, %v3953
        %v3986 = vpack.c.bf16 %v3954, %v3954
        %v3987 = vpack.c.bf16 %v3955, %v3955
        %v3988 = vpack.c.bf16 %v3956, %v3956
        %v3989 = vpack.c.bf16 %v3957, %v3957
        %v3990 = vpack.c.bf16 %v3958, %v3958
        %v3991 = vpack.c.bf16 %v3959, %v3959
        %v3992 = vpack.c.bf16 %v3960, %v3960
        %v3993 = vpack.c.bf16 %v3961, %v3961
        %v3994 = vpack.c.bf16 %v3962, %v3962
        %v3995 = vpack.c.bf16 %v3963, %v3963
        %v3996 = vpack.c.bf16 %v3964, %v3964
        %v3997 = vpack.c.bf16 %v3965, %v3965
        %v3998 = vpack.c.bf16 %v3966, %v3966
        %v3999 = vpack.c.bf16 %v3967, %v3967
        %4032 = vrot.lane.b32.xlu0 %v3968, 12
        %v4033 = vpop.permute.xlu0 %4032
        %4034 = vrot.lane.b32.xlu0 %v3969, 12
        %v4035 = vpop.permute.xlu0 %4034
        %4036 = vrot.lane.b32.xlu0 %v3970, 12
        %v4037 = vpop.permute.xlu0 %4036
        %4038 = vrot.lane.b32.xlu0 %v3971, 12
        %v4039 = vpop.permute.xlu0 %4038
        %4040 = vrot.lane.b32.xlu0 %v3972, 12
        %v4041 = vpop.permute.xlu0 %4040
        %4042 = vrot.lane.b32.xlu0 %v3973, 12
        %v4043 = vpop.permute.xlu0 %4042
        %4044 = vrot.lane.b32.xlu0 %v3974, 12
        %v4045 = vpop.permute.xlu0 %4044
        %4046 = vrot.lane.b32.xlu0 %v3975, 12
        %v4047 = vpop.permute.xlu0 %4046
        %4048 = vrot.lane.b32.xlu0 %v3976, 12
        %v4049 = vpop.permute.xlu0 %4048
        %4050 = vrot.lane.b32.xlu0 %v3977, 12
        %v4051 = vpop.permute.xlu0 %4050
        %4052 = vrot.lane.b32.xlu0 %v3978, 12
        %v4053 = vpop.permute.xlu0 %4052
        %4054 = vrot.lane.b32.xlu0 %v3979, 12
        %v4055 = vpop.permute.xlu0 %4054
        %4056 = vrot.lane.b32.xlu0 %v3980, 12
        %v4057 = vpop.permute.xlu0 %4056
        %4058 = vrot.lane.b32.xlu0 %v3981, 12
        %v4059 = vpop.permute.xlu0 %4058
        %4060 = vrot.lane.b32.xlu0 %v3982, 12
        %v4061 = vpop.permute.xlu0 %4060
        %4062 = vrot.lane.b32.xlu0 %v3983, 12
        %v4063 = vpop.permute.xlu0 %4062
        %4064 = vrot.lane.b32.xlu0 %v3984, 12
        %v4065 = vpop.permute.xlu0 %4064
        %4066 = vrot.lane.b32.xlu0 %v3985, 12
        %v4067 = vpop.permute.xlu0 %4066
        %4068 = vrot.lane.b32.xlu0 %v3986, 12
        %v4069 = vpop.permute.xlu0 %4068
        %4070 = vrot.lane.b32.xlu0 %v3987, 12
        %v4071 = vpop.permute.xlu0 %4070
        %4072 = vrot.lane.b32.xlu0 %v3988, 12
        %v4073 = vpop.permute.xlu0 %4072
        %4074 = vrot.lane.b32.xlu0 %v3989, 12
        %v4075 = vpop.permute.xlu0 %4074
        %4076 = vrot.lane.b32.xlu0 %v3990, 12
        %v4077 = vpop.permute.xlu0 %4076
        %4078 = vrot.lane.b32.xlu0 %v3991, 12
        %v4079 = vpop.permute.xlu0 %4078
        %4080 = vrot.lane.b32.xlu0 %v3992, 12
        %v4081 = vpop.permute.xlu0 %4080
        %4082 = vrot.lane.b32.xlu0 %v3993, 12
        %v4083 = vpop.permute.xlu0 %4082
        %4084 = vrot.lane.b32.xlu0 %v3994, 12
        %v4085 = vpop.permute.xlu0 %4084
        %4086 = vrot.lane.b32.xlu0 %v3995, 12
        %v4087 = vpop.permute.xlu0 %4086
        %4088 = vrot.lane.b32.xlu0 %v3996, 12
        %v4089 = vpop.permute.xlu0 %4088
        %4090 = vrot.lane.b32.xlu0 %v3997, 12
        %v4091 = vpop.permute.xlu0 %4090
        %4092 = vrot.lane.b32.xlu0 %v3998, 12
        %v4093 = vpop.permute.xlu0 %4092
        %4094 = vrot.lane.b32.xlu0 %v3999, 12
        %v4095 = vpop.permute.xlu0 %4094
        %vm4128 = vcmask 109664
        %4129 = vst.msk [vmem:[#allocation3] sm:$0xf] %vm4128, %v4033
        %4130 = vst.msk [vmem:[#allocation3 + $0x4] sm:$0xf] %vm4128, %v4035
        %4131 = vst.msk [vmem:[#allocation3 + $0x8] sm:$0xf] %vm4128, %v4037
        %4132 = vst.msk [vmem:[#allocation3 + $0xc] sm:$0xf] %vm4128, %v4039
        %4133 = vst.msk [vmem:[#allocation3 + $0x10] sm:$0xf] %vm4128, %v4041
        %4134 = vst.msk [vmem:[#allocation3 + $0x14] sm:$0xf] %vm4128, %v4043
        %4135 = vst.msk [vmem:[#allocation3 + $0x18] sm:$0xf] %vm4128, %v4045
        %4136 = vst.msk [vmem:[#allocation3 + $0x1c] sm:$0xf] %vm4128, %v4047
        %4137 = vst.msk [vmem:[#allocation3 + $0x20] sm:$0xf] %vm4128, %v4049
        %4138 = vst.msk [vmem:[#allocation3 + $0x24] sm:$0xf] %vm4128, %v4051
        %4139 = vst.msk [vmem:[#allocation3 + $0x28] sm:$0xf] %vm4128, %v4053
        %4140 = vst.msk [vmem:[#allocation3 + $0x2c] sm:$0xf] %vm4128, %v4055
        %4141 = vst.msk [vmem:[#allocation3 + $0x30] sm:$0xf] %vm4128, %v4057
        %4142 = vst.msk [vmem:[#allocation3 + $0x34] sm:$0xf] %vm4128, %v4059
        %4143 = vst.msk [vmem:[#allocation3 + $0x38] sm:$0xf] %vm4128, %v4061
        %4144 = vst.msk [vmem:[#allocation3 + $0x3c] sm:$0xf] %vm4128, %v4063
        %4145 = vst.msk [vmem:[#allocation3 + $0x40] sm:$0xf] %vm4128, %v4065
        %4146 = vst.msk [vmem:[#allocation3 + $0x44] sm:$0xf] %vm4128, %v4067
        %4147 = vst.msk [vmem:[#allocation3 + $0x48] sm:$0xf] %vm4128, %v4069
        %4148 = vst.msk [vmem:[#allocation3 + $0x4c] sm:$0xf] %vm4128, %v4071
        %4149 = vst.msk [vmem:[#allocation3 + $0x50] sm:$0xf] %vm4128, %v4073
        %4150 = vst.msk [vmem:[#allocation3 + $0x54] sm:$0xf] %vm4128, %v4075
        %4151 = vst.msk [vmem:[#allocation3 + $0x58] sm:$0xf] %vm4128, %v4077
        %4152 = vst.msk [vmem:[#allocation3 + $0x5c] sm:$0xf] %vm4128, %v4079
        %4153 = vst.msk [vmem:[#allocation3 + $0x60] sm:$0xf] %vm4128, %v4081
        %4154 = vst.msk [vmem:[#allocation3 + $0x64] sm:$0xf] %vm4128, %v4083
        %4155 = vst.msk [vmem:[#allocation3 + $0x68] sm:$0xf] %vm4128, %v4085
        %4156 = vst.msk [vmem:[#allocation3 + $0x6c] sm:$0xf] %vm4128, %v4087
        %4157 = vst.msk [vmem:[#allocation3 + $0x70] sm:$0xf] %vm4128, %v4089
        %4158 = vst.msk [vmem:[#allocation3 + $0x74] sm:$0xf] %vm4128, %v4091
        %4159 = vst.msk [vmem:[#allocation3 + $0x78] sm:$0xf] %vm4128, %v4093
        %4160 = vst.msk [vmem:[#allocation3 + $0x7c] sm:$0xf] %vm4128, %v4095
        %v4161 = vld [vmem:[#allocation2 + $0x21] sm:$0xff]
        %v4162 = vld [vmem:[#allocation2 + $0x29] sm:$0xff]
        %v4163 = vld [vmem:[#allocation2 + $0x31] sm:$0xff]
        %v4164 = vld [vmem:[#allocation2 + $0x39] sm:$0xff]
        %v4165 = vld [vmem:[#allocation2 + $0x41] sm:$0xff]
        %v4166 = vld [vmem:[#allocation2 + $0x49] sm:$0xff]
        %v4167 = vld [vmem:[#allocation2 + $0x51] sm:$0xff]
        %v4168 = vld [vmem:[#allocation2 + $0x59] sm:$0xff]
        %v4169 = vld [vmem:[#allocation2 + $0x61] sm:$0xff]
        %v4170 = vld [vmem:[#allocation2 + $0x69] sm:$0xff]
        %v4171 = vld [vmem:[#allocation2 + $0x71] sm:$0xff]
        %v4172 = vld [vmem:[#allocation2 + $0x79] sm:$0xff]
        %v4173 = vld [vmem:[#allocation2 + $0x81] sm:$0xff]
        %v4174 = vld [vmem:[#allocation2 + $0x89] sm:$0xff]
        %v4175 = vld [vmem:[#allocation2 + $0x91] sm:$0xff]
        %v4176 = vld [vmem:[#allocation2 + $0x99] sm:$0xff]
        %v4177 = vld [vmem:[#allocation2 + $0xa1] sm:$0xff]
        %v4178 = vld [vmem:[#allocation2 + $0xa9] sm:$0xff]
        %v4179 = vld [vmem:[#allocation2 + $0xb1] sm:$0xff]
        %v4180 = vld [vmem:[#allocation2 + $0xb9] sm:$0xff]
        %v4181 = vld [vmem:[#allocation2 + $0xc1] sm:$0xff]
        %v4182 = vld [vmem:[#allocation2 + $0xc9] sm:$0xff]
        %v4183 = vld [vmem:[#allocation2 + $0xd1] sm:$0xff]
        %v4184 = vld [vmem:[#allocation2 + $0xd9] sm:$0xff]
        %v4185 = vld [vmem:[#allocation2 + $0xe1] sm:$0xff]
        %v4186 = vld [vmem:[#allocation2 + $0xe9] sm:$0xff]
        %v4187 = vld [vmem:[#allocation2 + $0xf1] sm:$0xff]
        %v4188 = vld [vmem:[#allocation2 + $0xf9] sm:$0xff]
        %v4189 = vld [vmem:[#allocation2 + $0x101] sm:$0xff]
        %v4190 = vld [vmem:[#allocation2 + $0x109] sm:$0xff]
        %v4191 = vld [vmem:[#allocation2 + $0x111] sm:$0xff]
        %v4192 = vld [vmem:[#allocation2 + $0x119] sm:$0xff]
        %v4193 = vpack.c.bf16 %v4161, %v4161
        %v4194 = vpack.c.bf16 %v4162, %v4162
        %v4195 = vpack.c.bf16 %v4163, %v4163
        %v4196 = vpack.c.bf16 %v4164, %v4164
        %v4197 = vpack.c.bf16 %v4165, %v4165
        %v4198 = vpack.c.bf16 %v4166, %v4166
        %v4199 = vpack.c.bf16 %v4167, %v4167
        %v4200 = vpack.c.bf16 %v4168, %v4168
        %v4201 = vpack.c.bf16 %v4169, %v4169
        %v4202 = vpack.c.bf16 %v4170, %v4170
        %v4203 = vpack.c.bf16 %v4171, %v4171
        %v4204 = vpack.c.bf16 %v4172, %v4172
        %v4205 = vpack.c.bf16 %v4173, %v4173
        %v4206 = vpack.c.bf16 %v4174, %v4174
        %v4207 = vpack.c.bf16 %v4175, %v4175
        %v4208 = vpack.c.bf16 %v4176, %v4176
        %v4209 = vpack.c.bf16 %v4177, %v4177
        %v4210 = vpack.c.bf16 %v4178, %v4178
        %v4211 = vpack.c.bf16 %v4179, %v4179
        %v4212 = vpack.c.bf16 %v4180, %v4180
        %v4213 = vpack.c.bf16 %v4181, %v4181
        %v4214 = vpack.c.bf16 %v4182, %v4182
        %v4215 = vpack.c.bf16 %v4183, %v4183
        %v4216 = vpack.c.bf16 %v4184, %v4184
        %v4217 = vpack.c.bf16 %v4185, %v4185
        %v4218 = vpack.c.bf16 %v4186, %v4186
        %v4219 = vpack.c.bf16 %v4187, %v4187
        %v4220 = vpack.c.bf16 %v4188, %v4188
        %v4221 = vpack.c.bf16 %v4189, %v4189
        %v4222 = vpack.c.bf16 %v4190, %v4190
        %v4223 = vpack.c.bf16 %v4191, %v4191
        %v4224 = vpack.c.bf16 %v4192, %v4192
        %4257 = vrot.lane.b32.xlu0 %v4193, 14
        %v4258 = vpop.permute.xlu0 %4257
        %4259 = vrot.lane.b32.xlu0 %v4194, 14
        %v4260 = vpop.permute.xlu0 %4259
        %4261 = vrot.lane.b32.xlu0 %v4195, 14
        %v4262 = vpop.permute.xlu0 %4261
        %4263 = vrot.lane.b32.xlu0 %v4196, 14
        %v4264 = vpop.permute.xlu0 %4263
        %4265 = vrot.lane.b32.xlu0 %v4197, 14
        %v4266 = vpop.permute.xlu0 %4265
        %4267 = vrot.lane.b32.xlu0 %v4198, 14
        %v4268 = vpop.permute.xlu0 %4267
        %4269 = vrot.lane.b32.xlu0 %v4199, 14
        %v4270 = vpop.permute.xlu0 %4269
        %4271 = vrot.lane.b32.xlu0 %v4200, 14
        %v4272 = vpop.permute.xlu0 %4271
        %4273 = vrot.lane.b32.xlu0 %v4201, 14
        %v4274 = vpop.permute.xlu0 %4273
        %4275 = vrot.lane.b32.xlu0 %v4202, 14
        %v4276 = vpop.permute.xlu0 %4275
        %4277 = vrot.lane.b32.xlu0 %v4203, 14
        %v4278 = vpop.permute.xlu0 %4277
        %4279 = vrot.lane.b32.xlu0 %v4204, 14
        %v4280 = vpop.permute.xlu0 %4279
        %4281 = vrot.lane.b32.xlu0 %v4205, 14
        %v4282 = vpop.permute.xlu0 %4281
        %4283 = vrot.lane.b32.xlu0 %v4206, 14
        %v4284 = vpop.permute.xlu0 %4283
        %4285 = vrot.lane.b32.xlu0 %v4207, 14
        %v4286 = vpop.permute.xlu0 %4285
        %4287 = vrot.lane.b32.xlu0 %v4208, 14
        %v4288 = vpop.permute.xlu0 %4287
        %4289 = vrot.lane.b32.xlu0 %v4209, 14
        %v4290 = vpop.permute.xlu0 %4289
        %4291 = vrot.lane.b32.xlu0 %v4210, 14
        %v4292 = vpop.permute.xlu0 %4291
        %4293 = vrot.lane.b32.xlu0 %v4211, 14
        %v4294 = vpop.permute.xlu0 %4293
        %4295 = vrot.lane.b32.xlu0 %v4212, 14
        %v4296 = vpop.permute.xlu0 %4295
        %4297 = vrot.lane.b32.xlu0 %v4213, 14
        %v4298 = vpop.permute.xlu0 %4297
        %4299 = vrot.lane.b32.xlu0 %v4214, 14
        %v4300 = vpop.permute.xlu0 %4299
        %4301 = vrot.lane.b32.xlu0 %v4215, 14
        %v4302 = vpop.permute.xlu0 %4301
        %4303 = vrot.lane.b32.xlu0 %v4216, 14
        %v4304 = vpop.permute.xlu0 %4303
        %4305 = vrot.lane.b32.xlu0 %v4217, 14
        %v4306 = vpop.permute.xlu0 %4305
        %4307 = vrot.lane.b32.xlu0 %v4218, 14
        %v4308 = vpop.permute.xlu0 %4307
        %4309 = vrot.lane.b32.xlu0 %v4219, 14
        %v4310 = vpop.permute.xlu0 %4309
        %4311 = vrot.lane.b32.xlu0 %v4220, 14
        %v4312 = vpop.permute.xlu0 %4311
        %4313 = vrot.lane.b32.xlu0 %v4221, 14
        %v4314 = vpop.permute.xlu0 %4313
        %4315 = vrot.lane.b32.xlu0 %v4222, 14
        %v4316 = vpop.permute.xlu0 %4315
        %4317 = vrot.lane.b32.xlu0 %v4223, 14
        %v4318 = vpop.permute.xlu0 %4317
        %4319 = vrot.lane.b32.xlu0 %v4224, 14
        %v4320 = vpop.permute.xlu0 %4319
        %vm4353 = vcmask 126064
        %4354 = vst.msk [vmem:[#allocation3] sm:$0xf] %vm4353, %v4258
        %4355 = vst.msk [vmem:[#allocation3 + $0x4] sm:$0xf] %vm4353, %v4260
        %4356 = vst.msk [vmem:[#allocation3 + $0x8] sm:$0xf] %vm4353, %v4262
        %4357 = vst.msk [vmem:[#allocation3 + $0xc] sm:$0xf] %vm4353, %v4264
        %4358 = vst.msk [vmem:[#allocation3 + $0x10] sm:$0xf] %vm4353, %v4266
        %4359 = vst.msk [vmem:[#allocation3 + $0x14] sm:$0xf] %vm4353, %v4268
        %4360 = vst.msk [vmem:[#allocation3 + $0x18] sm:$0xf] %vm4353, %v4270
        %4361 = vst.msk [vmem:[#allocation3 + $0x1c] sm:$0xf] %vm4353, %v4272
        %4362 = vst.msk [vmem:[#allocation3 + $0x20] sm:$0xf] %vm4353, %v4274
        %4363 = vst.msk [vmem:[#allocation3 + $0x24] sm:$0xf] %vm4353, %v4276
        %4364 = vst.msk [vmem:[#allocation3 + $0x28] sm:$0xf] %vm4353, %v4278
        %4365 = vst.msk [vmem:[#allocation3 + $0x2c] sm:$0xf] %vm4353, %v4280
        %4366 = vst.msk [vmem:[#allocation3 + $0x30] sm:$0xf] %vm4353, %v4282
        %4367 = vst.msk [vmem:[#allocation3 + $0x34] sm:$0xf] %vm4353, %v4284
        %4368 = vst.msk [vmem:[#allocation3 + $0x38] sm:$0xf] %vm4353, %v4286
        %4369 = vst.msk [vmem:[#allocation3 + $0x3c] sm:$0xf] %vm4353, %v4288
        %4370 = vst.msk [vmem:[#allocation3 + $0x40] sm:$0xf] %vm4353, %v4290
        %4371 = vst.msk [vmem:[#allocation3 + $0x44] sm:$0xf] %vm4353, %v4292
        %4372 = vst.msk [vmem:[#allocation3 + $0x48] sm:$0xf] %vm4353, %v4294
        %4373 = vst.msk [vmem:[#allocation3 + $0x4c] sm:$0xf] %vm4353, %v4296
        %4374 = vst.msk [vmem:[#allocation3 + $0x50] sm:$0xf] %vm4353, %v4298
        %4375 = vst.msk [vmem:[#allocation3 + $0x54] sm:$0xf] %vm4353, %v4300
        %4376 = vst.msk [vmem:[#allocation3 + $0x58] sm:$0xf] %vm4353, %v4302
        %4377 = vst.msk [vmem:[#allocation3 + $0x5c] sm:$0xf] %vm4353, %v4304
        %4378 = vst.msk [vmem:[#allocation3 + $0x60] sm:$0xf] %vm4353, %v4306
        %4379 = vst.msk [vmem:[#allocation3 + $0x64] sm:$0xf] %vm4353, %v4308
        %4380 = vst.msk [vmem:[#allocation3 + $0x68] sm:$0xf] %vm4353, %v4310
        %4381 = vst.msk [vmem:[#allocation3 + $0x6c] sm:$0xf] %vm4353, %v4312
        %4382 = vst.msk [vmem:[#allocation3 + $0x70] sm:$0xf] %vm4353, %v4314
        %4383 = vst.msk [vmem:[#allocation3 + $0x74] sm:$0xf] %vm4353, %v4316
        %4384 = vst.msk [vmem:[#allocation3 + $0x78] sm:$0xf] %vm4353, %v4318
        %4385 = vst.msk [vmem:[#allocation3 + $0x7c] sm:$0xf] %vm4353, %v4320
        %v4386 = vld [vmem:[#allocation2 + $0x22] sm:$0xff]
        %v4387 = vld [vmem:[#allocation2 + $0x2a] sm:$0xff]
        %v4388 = vld [vmem:[#allocation2 + $0x32] sm:$0xff]
        %v4389 = vld [vmem:[#allocation2 + $0x3a] sm:$0xff]
        %v4390 = vld [vmem:[#allocation2 + $0x42] sm:$0xff]
        %v4391 = vld [vmem:[#allocation2 + $0x4a] sm:$0xff]
        %v4392 = vld [vmem:[#allocation2 + $0x52] sm:$0xff]
        %v4393 = vld [vmem:[#allocation2 + $0x5a] sm:$0xff]
        %v4394 = vld [vmem:[#allocation2 + $0x62] sm:$0xff]
        %v4395 = vld [vmem:[#allocation2 + $0x6a] sm:$0xff]
        %v4396 = vld [vmem:[#allocation2 + $0x72] sm:$0xff]
        %v4397 = vld [vmem:[#allocation2 + $0x7a] sm:$0xff]
        %v4398 = vld [vmem:[#allocation2 + $0x82] sm:$0xff]
        %v4399 = vld [vmem:[#allocation2 + $0x8a] sm:$0xff]
        %v4400 = vld [vmem:[#allocation2 + $0x92] sm:$0xff]
        %v4401 = vld [vmem:[#allocation2 + $0x9a] sm:$0xff]
        %v4402 = vld [vmem:[#allocation2 + $0xa2] sm:$0xff]
        %v4403 = vld [vmem:[#allocation2 + $0xaa] sm:$0xff]
        %v4404 = vld [vmem:[#allocation2 + $0xb2] sm:$0xff]
        %v4405 = vld [vmem:[#allocation2 + $0xba] sm:$0xff]
        %v4406 = vld [vmem:[#allocation2 + $0xc2] sm:$0xff]
        %v4407 = vld [vmem:[#allocation2 + $0xca] sm:$0xff]
        %v4408 = vld [vmem:[#allocation2 + $0xd2] sm:$0xff]
        %v4409 = vld [vmem:[#allocation2 + $0xda] sm:$0xff]
        %v4410 = vld [vmem:[#allocation2 + $0xe2] sm:$0xff]
        %v4411 = vld [vmem:[#allocation2 + $0xea] sm:$0xff]
        %v4412 = vld [vmem:[#allocation2 + $0xf2] sm:$0xff]
        %v4413 = vld [vmem:[#allocation2 + $0xfa] sm:$0xff]
        %v4414 = vld [vmem:[#allocation2 + $0x102] sm:$0xff]
        %v4415 = vld [vmem:[#allocation2 + $0x10a] sm:$0xff]
        %v4416 = vld [vmem:[#allocation2 + $0x112] sm:$0xff]
        %v4417 = vld [vmem:[#allocation2 + $0x11a] sm:$0xff]
        %v4418 = vsel %vm2522, %v4386, 0.0
        %v4419 = vsel %vm2523, %v4387, 0.0
        %v4420 = vsel %vm2524, %v4388, 0.0
        %v4421 = vsel %vm2525, %v4389, 0.0
        %v4422 = vsel %vm2526, %v4390, 0.0
        %v4423 = vsel %vm2527, %v4391, 0.0
        %v4424 = vsel %vm2528, %v4392, 0.0
        %v4425 = vsel %vm2529, %v4393, 0.0
        %v4426 = vsel %vm2530, %v4394, 0.0
        %v4427 = vsel %vm2531, %v4395, 0.0
        %v4428 = vsel %vm2532, %v4396, 0.0
        %v4429 = vsel %vm2533, %v4397, 0.0
        %v4430 = vsel %vm2534, %v4398, 0.0
        %v4431 = vsel %vm2535, %v4399, 0.0
        %v4432 = vsel %vm2536, %v4400, 0.0
        %v4433 = vsel %vm2537, %v4401, 0.0
        %v4434 = vsel %vm2538, %v4402, 0.0
        %v4435 = vsel %vm2539, %v4403, 0.0
        %v4436 = vsel %vm2540, %v4404, 0.0
        %v4437 = vsel %vm2541, %v4405, 0.0
        %v4438 = vsel %vm2542, %v4406, 0.0
        %v4439 = vsel %vm2543, %v4407, 0.0
        %v4440 = vsel %vm2544, %v4408, 0.0
        %v4441 = vsel %vm2545, %v4409, 0.0
        %v4442 = vsel %vm2546, %v4410, 0.0
        %v4443 = vsel %vm2547, %v4411, 0.0
        %v4444 = vsel %vm2548, %v4412, 0.0
        %v4445 = vsel %vm2549, %v4413, 0.0
        %v4446 = vsel %vm2550, %v4414, 0.0
        %v4447 = vsel %vm2551, %v4415, 0.0
        %v4448 = vsel %vm2552, %v4416, 0.0
        %v4449 = vsel %vm2553, %v4417, 0.0
        %v4450 = vpack.c.bf16 %v4418, %v4418
        %v4451 = vpack.c.bf16 %v4419, %v4419
        %v4452 = vpack.c.bf16 %v4420, %v4420
        %v4453 = vpack.c.bf16 %v4421, %v4421
        %v4454 = vpack.c.bf16 %v4422, %v4422
        %v4455 = vpack.c.bf16 %v4423, %v4423
        %v4456 = vpack.c.bf16 %v4424, %v4424
        %v4457 = vpack.c.bf16 %v4425, %v4425
        %v4458 = vpack.c.bf16 %v4426, %v4426
        %v4459 = vpack.c.bf16 %v4427, %v4427
        %v4460 = vpack.c.bf16 %v4428, %v4428
        %v4461 = vpack.c.bf16 %v4429, %v4429
        %v4462 = vpack.c.bf16 %v4430, %v4430
        %v4463 = vpack.c.bf16 %v4431, %v4431
        %v4464 = vpack.c.bf16 %v4432, %v4432
        %v4465 = vpack.c.bf16 %v4433, %v4433
        %v4466 = vpack.c.bf16 %v4434, %v4434
        %v4467 = vpack.c.bf16 %v4435, %v4435
        %v4468 = vpack.c.bf16 %v4436, %v4436
        %v4469 = vpack.c.bf16 %v4437, %v4437
        %v4470 = vpack.c.bf16 %v4438, %v4438
        %v4471 = vpack.c.bf16 %v4439, %v4439
        %v4472 = vpack.c.bf16 %v4440, %v4440
        %v4473 = vpack.c.bf16 %v4441, %v4441
        %v4474 = vpack.c.bf16 %v4442, %v4442
        %v4475 = vpack.c.bf16 %v4443, %v4443
        %v4476 = vpack.c.bf16 %v4444, %v4444
        %v4477 = vpack.c.bf16 %v4445, %v4445
        %v4478 = vpack.c.bf16 %v4446, %v4446
        %v4479 = vpack.c.bf16 %v4447, %v4447
        %v4480 = vpack.c.bf16 %v4448, %v4448
        %v4481 = vpack.c.bf16 %v4449, %v4449
        %4514 = vrot.lane.b32.xlu0 %v4450, 16
        %v4515 = vpop.permute.xlu0 %4514
        %4516 = vrot.lane.b32.xlu0 %v4451, 16
        %v4517 = vpop.permute.xlu0 %4516
        %4518 = vrot.lane.b32.xlu0 %v4452, 16
        %v4519 = vpop.permute.xlu0 %4518
        %4520 = vrot.lane.b32.xlu0 %v4453, 16
        %v4521 = vpop.permute.xlu0 %4520
        %4522 = vrot.lane.b32.xlu0 %v4454, 16
        %v4523 = vpop.permute.xlu0 %4522
        %4524 = vrot.lane.b32.xlu0 %v4455, 16
        %v4525 = vpop.permute.xlu0 %4524
        %4526 = vrot.lane.b32.xlu0 %v4456, 16
        %v4527 = vpop.permute.xlu0 %4526
        %4528 = vrot.lane.b32.xlu0 %v4457, 16
        %v4529 = vpop.permute.xlu0 %4528
        %4530 = vrot.lane.b32.xlu0 %v4458, 16
        %v4531 = vpop.permute.xlu0 %4530
        %4532 = vrot.lane.b32.xlu0 %v4459, 16
        %v4533 = vpop.permute.xlu0 %4532
        %4534 = vrot.lane.b32.xlu0 %v4460, 16
        %v4535 = vpop.permute.xlu0 %4534
        %4536 = vrot.lane.b32.xlu0 %v4461, 16
        %v4537 = vpop.permute.xlu0 %4536
        %4538 = vrot.lane.b32.xlu0 %v4462, 16
        %v4539 = vpop.permute.xlu0 %4538
        %4540 = vrot.lane.b32.xlu0 %v4463, 16
        %v4541 = vpop.permute.xlu0 %4540
        %4542 = vrot.lane.b32.xlu0 %v4464, 16
        %v4543 = vpop.permute.xlu0 %4542
        %4544 = vrot.lane.b32.xlu0 %v4465, 16
        %v4545 = vpop.permute.xlu0 %4544
        %4546 = vrot.lane.b32.xlu0 %v4466, 16
        %v4547 = vpop.permute.xlu0 %4546
        %4548 = vrot.lane.b32.xlu0 %v4467, 16
        %v4549 = vpop.permute.xlu0 %4548
        %4550 = vrot.lane.b32.xlu0 %v4468, 16
        %v4551 = vpop.permute.xlu0 %4550
        %4552 = vrot.lane.b32.xlu0 %v4469, 16
        %v4553 = vpop.permute.xlu0 %4552
        %4554 = vrot.lane.b32.xlu0 %v4470, 16
        %v4555 = vpop.permute.xlu0 %4554
        %4556 = vrot.lane.b32.xlu0 %v4471, 16
        %v4557 = vpop.permute.xlu0 %4556
        %4558 = vrot.lane.b32.xlu0 %v4472, 16
        %v4559 = vpop.permute.xlu0 %4558
        %4560 = vrot.lane.b32.xlu0 %v4473, 16
        %v4561 = vpop.permute.xlu0 %4560
        %4562 = vrot.lane.b32.xlu0 %v4474, 16
        %v4563 = vpop.permute.xlu0 %4562
        %4564 = vrot.lane.b32.xlu0 %v4475, 16
        %v4565 = vpop.permute.xlu0 %4564
        %4566 = vrot.lane.b32.xlu0 %v4476, 16
        %v4567 = vpop.permute.xlu0 %4566
        %4568 = vrot.lane.b32.xlu0 %v4477, 16
        %v4569 = vpop.permute.xlu0 %4568
        %4570 = vrot.lane.b32.xlu0 %v4478, 16
        %v4571 = vpop.permute.xlu0 %4570
        %4572 = vrot.lane.b32.xlu0 %v4479, 16
        %v4573 = vpop.permute.xlu0 %4572
        %4574 = vrot.lane.b32.xlu0 %v4480, 16
        %v4575 = vpop.permute.xlu0 %4574
        %4576 = vrot.lane.b32.xlu0 %v4481, 16
        %v4577 = vpop.permute.xlu0 %4576
        %vm4610 = vcmask 142464
        %4611 = vst.msk [vmem:[#allocation3] sm:$0xf] %vm4610, %v4515
        %4612 = vst.msk [vmem:[#allocation3 + $0x4] sm:$0xf] %vm4610, %v4517
        %4613 = vst.msk [vmem:[#allocation3 + $0x8] sm:$0xf] %vm4610, %v4519
        %4614 = vst.msk [vmem:[#allocation3 + $0xc] sm:$0xf] %vm4610, %v4521
        %4615 = vst.msk [vmem:[#allocation3 + $0x10] sm:$0xf] %vm4610, %v4523
        %4616 = vst.msk [vmem:[#allocation3 + $0x14] sm:$0xf] %vm4610, %v4525
        %4617 = vst.msk [vmem:[#allocation3 + $0x18] sm:$0xf] %vm4610, %v4527
        %4618 = vst.msk [vmem:[#allocation3 + $0x1c] sm:$0xf] %vm4610, %v4529
        %4619 = vst.msk [vmem:[#allocation3 + $0x20] sm:$0xf] %vm4610, %v4531
        %4620 = vst.msk [vmem:[#allocation3 + $0x24] sm:$0xf] %vm4610, %v4533
        %4621 = vst.msk [vmem:[#allocation3 + $0x28] sm:$0xf] %vm4610, %v4535
        %4622 = vst.msk [vmem:[#allocation3 + $0x2c] sm:$0xf] %vm4610, %v4537
        %4623 = vst.msk [vmem:[#allocation3 + $0x30] sm:$0xf] %vm4610, %v4539
        %4624 = vst.msk [vmem:[#allocation3 + $0x34] sm:$0xf] %vm4610, %v4541
        %4625 = vst.msk [vmem:[#allocation3 + $0x38] sm:$0xf] %vm4610, %v4543
        %4626 = vst.msk [vmem:[#allocation3 + $0x3c] sm:$0xf] %vm4610, %v4545
        %4627 = vst.msk [vmem:[#allocation3 + $0x40] sm:$0xf] %vm4610, %v4547
        %4628 = vst.msk [vmem:[#allocation3 + $0x44] sm:$0xf] %vm4610, %v4549
        %4629 = vst.msk [vmem:[#allocation3 + $0x48] sm:$0xf] %vm4610, %v4551
        %4630 = vst.msk [vmem:[#allocation3 + $0x4c] sm:$0xf] %vm4610, %v4553
        %4631 = vst.msk [vmem:[#allocation3 + $0x50] sm:$0xf] %vm4610, %v4555
        %4632 = vst.msk [vmem:[#allocation3 + $0x54] sm:$0xf] %vm4610, %v4557
        %4633 = vst.msk [vmem:[#allocation3 + $0x58] sm:$0xf] %vm4610, %v4559
        %4634 = vst.msk [vmem:[#allocation3 + $0x5c] sm:$0xf] %vm4610, %v4561
        %4635 = vst.msk [vmem:[#allocation3 + $0x60] sm:$0xf] %vm4610, %v4563
        %4636 = vst.msk [vmem:[#allocation3 + $0x64] sm:$0xf] %vm4610, %v4565
        %4637 = vst.msk [vmem:[#allocation3 + $0x68] sm:$0xf] %vm4610, %v4567
        %4638 = vst.msk [vmem:[#allocation3 + $0x6c] sm:$0xf] %vm4610, %v4569
        %4639 = vst.msk [vmem:[#allocation3 + $0x70] sm:$0xf] %vm4610, %v4571
        %4640 = vst.msk [vmem:[#allocation3 + $0x74] sm:$0xf] %vm4610, %v4573
        %4641 = vst.msk [vmem:[#allocation3 + $0x78] sm:$0xf] %vm4610, %v4575
        %4642 = vst.msk [vmem:[#allocation3 + $0x7c] sm:$0xf] %vm4610, %v4577
        %v4643 = vld [vmem:[#allocation3] sm:$0xf]
        %v4644 = vld [vmem:[#allocation3 + $0x4] sm:$0xf]
        %v4645 = vld [vmem:[#allocation3 + $0x8] sm:$0xf]
        %v4646 = vld [vmem:[#allocation3 + $0xc] sm:$0xf]
        %v4647 = vld [vmem:[#allocation3 + $0x10] sm:$0xf]
        %v4648 = vld [vmem:[#allocation3 + $0x14] sm:$0xf]
        %v4649 = vld [vmem:[#allocation3 + $0x18] sm:$0xf]
        %v4650 = vld [vmem:[#allocation3 + $0x1c] sm:$0xf]
        %v4651 = vld [vmem:[#allocation3 + $0x20] sm:$0xf]
        %v4652 = vld [vmem:[#allocation3 + $0x24] sm:$0xf]
        %v4653 = vld [vmem:[#allocation3 + $0x28] sm:$0xf]
        %v4654 = vld [vmem:[#allocation3 + $0x2c] sm:$0xf]
        %v4655 = vld [vmem:[#allocation3 + $0x30] sm:$0xf]
        %v4656 = vld [vmem:[#allocation3 + $0x34] sm:$0xf]
        %v4657 = vld [vmem:[#allocation3 + $0x38] sm:$0xf]
        %v4658 = vld [vmem:[#allocation3 + $0x3c] sm:$0xf]
        %v4659 = vld [vmem:[#allocation3 + $0x40] sm:$0xf]
        %v4660 = vld [vmem:[#allocation3 + $0x44] sm:$0xf]
        %v4661 = vld [vmem:[#allocation3 + $0x48] sm:$0xf]
        %v4662 = vld [vmem:[#allocation3 + $0x4c] sm:$0xf]
        %v4663 = vld [vmem:[#allocation3 + $0x50] sm:$0xf]
        %v4664 = vld [vmem:[#allocation3 + $0x54] sm:$0xf]
        %v4665 = vld [vmem:[#allocation3 + $0x58] sm:$0xf]
        %v4666 = vld [vmem:[#allocation3 + $0x5c] sm:$0xf]
        %v4667 = vld [vmem:[#allocation3 + $0x60] sm:$0xf]
        %v4668 = vld [vmem:[#allocation3 + $0x64] sm:$0xf]
        %v4669 = vld [vmem:[#allocation3 + $0x68] sm:$0xf]
        %v4670 = vld [vmem:[#allocation3 + $0x6c] sm:$0xf]
        %v4671 = vld [vmem:[#allocation3 + $0x70] sm:$0xf]
        %v4672 = vld [vmem:[#allocation3 + $0x74] sm:$0xf]
        %v4673 = vld [vmem:[#allocation3 + $0x78] sm:$0xf]
        %v4674 = vld [vmem:[#allocation3 + $0x7c] sm:$0xf]
        %v4675 = vld [vmem:[%s5] sm:$0xf]
        %v4676 = vld [vmem:[%s5 + $0x4] sm:$0xf]
        %v4677 = vld [vmem:[%s5 + $0x8] sm:$0x1]
        %v4678 = vld [vmem:[%s6] sm:$0x1]
        %v4680 = vperm.slane %v4678, 0
        %v4714 = vunpack.c.l.b16 %v4643
        %v4715 = vunpack.c.l.b16 %v4644
        %v4716 = vunpack.c.l.b16 %v4645
        %v4717 = vunpack.c.l.b16 %v4646
        %v4718 = vunpack.c.l.b16 %v4647
        %v4719 = vunpack.c.l.b16 %v4648
        %v4720 = vunpack.c.l.b16 %v4649
        %v4721 = vunpack.c.l.b16 %v4650
        %v4722 = vunpack.c.l.b16 %v4651
        %v4723 = vunpack.c.l.b16 %v4652
        %v4724 = vunpack.c.l.b16 %v4653
        %v4725 = vunpack.c.l.b16 %v4654
        %v4726 = vunpack.c.l.b16 %v4655
        %v4727 = vunpack.c.l.b16 %v4656
        %v4728 = vunpack.c.l.b16 %v4657
        %v4729 = vunpack.c.l.b16 %v4658
        %v4730 = vunpack.c.l.b16 %v4659
        %v4731 = vunpack.c.l.b16 %v4660
        %v4732 = vunpack.c.l.b16 %v4661
        %v4733 = vunpack.c.l.b16 %v4662
        %v4734 = vunpack.c.l.b16 %v4663
        %v4735 = vunpack.c.l.b16 %v4664
        %v4736 = vunpack.c.l.b16 %v4665
        %v4737 = vunpack.c.l.b16 %v4666
        %v4738 = vunpack.c.l.b16 %v4667
        %v4739 = vunpack.c.l.b16 %v4668
        %v4740 = vunpack.c.l.b16 %v4669
        %v4741 = vunpack.c.l.b16 %v4670
        %v4742 = vunpack.c.l.b16 %v4671
        %v4743 = vunpack.c.l.b16 %v4672
        %v4744 = vunpack.c.l.b16 %v4673
        %v4745 = vunpack.c.l.b16 %v4674
        %v4746 = vpack.c.b16 %v4715, %v4714
        %v4747 = vpack.c.b16 %v4717, %v4716
        %v4748 = vpack.c.b16 %v4719, %v4718
        %v4749 = vpack.c.b16 %v4721, %v4720
        %v4750 = vpack.c.b16 %v4723, %v4722
        %v4751 = vpack.c.b16 %v4725, %v4724
        %v4752 = vpack.c.b16 %v4727, %v4726
        %v4753 = vpack.c.b16 %v4729, %v4728
        %v4754 = vpack.c.b16 %v4731, %v4730
        %v4755 = vpack.c.b16 %v4733, %v4732
        %v4756 = vpack.c.b16 %v4735, %v4734
        %v4757 = vpack.c.b16 %v4737, %v4736
        %v4758 = vpack.c.b16 %v4739, %v4738
        %v4759 = vpack.c.b16 %v4741, %v4740
        %v4760 = vpack.c.b16 %v4743, %v4742
        %v4761 = vpack.c.b16 %v4745, %v4744
        %v4765 = vunpack.c.l.b16 %v4675
        %v4766 = vunpack.c.l.b16 %v4676
        %v4767 = vunpack.c.l.b16 %v4677
        %v4768 = vpack.c.b16 %v4766, %v4765
        %v4769 = vpack.c.b16 %v4767, %v4767
        %vm4771 = vcmask 146432
        %v4773 = vsel %vm4771, %v4746, 0
        %v4776 = vsel %vm4771, %v4747, 0
        %v4779 = vsel %vm4771, %v4748, 0
        %v4782 = vsel %vm4771, %v4749, 0
        %v4785 = vsel %vm4771, %v4750, 0
        %v4788 = vsel %vm4771, %v4751, 0
        %v4791 = vsel %vm4771, %v4752, 0
        %v4794 = vsel %vm4771, %v4753, 0
        %v4797 = vsel %vm4771, %v4754, 0
        %v4800 = vsel %vm4771, %v4755, 0
        %v4803 = vsel %vm4771, %v4756, 0
        %v4806 = vsel %vm4771, %v4757, 0
        %v4809 = vsel %vm4771, %v4758, 0
        %v4812 = vsel %vm4771, %v4759, 0
        %v4815 = vsel %vm4771, %v4760, 0
        %v4818 = vsel %vm4771, %v4761, 0
        %v4821 = vsel %vm1308, %v4769, 0
        %4823 = vmatpush.bf16.msra.mxu0 0
        %4824 = vmatpush.bf16.msra.mxu0 0
        %4825 = vmatpush.bf16.msra.mxu0 0
        %4826 = vmatpush.bf16.msra.mxu0 0
        %4827 = vmatpush.bf16.msra.mxu0 0
        %4828 = vmatpush.bf16.msra.mxu0 0
        %4829 = vmatpush.bf16.msra.mxu0 %v4821
        %4830 = vmatpush.bf16.msra.mxu0 %v4768
        %4831 = vmatmul.bf16.gmra.mxu0 %v4773
        %v4832 = vpop.f32.mrf.mxu0
        %v4833 = vadd.f32 %v4680, %v4832
        %v4834 = vpop.f32.mrf.mxu0
        %v4835 = vadd.f32 %v4680, %v4834
        %4836 = vmatmul.bf16.gmra.mxu0 %v4776
        %v4837 = vpop.f32.mrf.mxu0
        %v4838 = vadd.f32 %v4680, %v4837
        %v4839 = vpop.f32.mrf.mxu0
        %v4840 = vadd.f32 %v4680, %v4839
        %4841 = vmatmul.bf16.gmra.mxu0 %v4779
        %v4842 = vpop.f32.mrf.mxu0
        %v4843 = vadd.f32 %v4680, %v4842
        %v4844 = vpop.f32.mrf.mxu0
        %v4845 = vadd.f32 %v4680, %v4844
        %4846 = vmatmul.bf16.gmra.mxu0 %v4782
        %v4847 = vpop.f32.mrf.mxu0
        %v4848 = vadd.f32 %v4680, %v4847
        %v4849 = vpop.f32.mrf.mxu0
        %v4850 = vadd.f32 %v4680, %v4849
        %4851 = vmatmul.bf16.gmra.mxu0 %v4785
        %v4852 = vpop.f32.mrf.mxu0
        %v4853 = vadd.f32 %v4680, %v4852
        %v4854 = vpop.f32.mrf.mxu0
        %v4855 = vadd.f32 %v4680, %v4854
        %4856 = vmatmul.bf16.gmra.mxu0 %v4788
        %v4857 = vpop.f32.mrf.mxu0
        %v4858 = vadd.f32 %v4680, %v4857
        %v4859 = vpop.f32.mrf.mxu0
        %v4860 = vadd.f32 %v4680, %v4859
        %4861 = vmatmul.bf16.gmra.mxu0 %v4791
        %v4862 = vpop.f32.mrf.mxu0
        %v4863 = vadd.f32 %v4680, %v4862
        %v4864 = vpop.f32.mrf.mxu0
        %v4865 = vadd.f32 %v4680, %v4864
        %4866 = vmatmul.bf16.gmra.mxu0 %v4794
        %v4867 = vpop.f32.mrf.mxu0
        %v4868 = vadd.f32 %v4680, %v4867
        %v4869 = vpop.f32.mrf.mxu0
        %v4870 = vadd.f32 %v4680, %v4869
        %4871 = vmatmul.bf16.gmra.mxu0 %v4797
        %v4872 = vpop.f32.mrf.mxu0
        %v4873 = vadd.f32 %v4680, %v4872
        %v4874 = vpop.f32.mrf.mxu0
        %v4875 = vadd.f32 %v4680, %v4874
        %4876 = vmatmul.bf16.gmra.mxu0 %v4800
        %v4877 = vpop.f32.mrf.mxu0
        %v4878 = vadd.f32 %v4680, %v4877
        %v4879 = vpop.f32.mrf.mxu0
        %v4880 = vadd.f32 %v4680, %v4879
        %4881 = vmatmul.bf16.gmra.mxu0 %v4803
        %v4882 = vpop.f32.mrf.mxu0
        %v4883 = vadd.f32 %v4680, %v4882
        %v4884 = vpop.f32.mrf.mxu0
        %v4885 = vadd.f32 %v4680, %v4884
        %4886 = vmatmul.bf16.gmra.mxu0 %v4806
        %v4887 = vpop.f32.mrf.mxu0
        %v4888 = vadd.f32 %v4680, %v4887
        %v4889 = vpop.f32.mrf.mxu0
        %v4890 = vadd.f32 %v4680, %v4889
        %4891 = vmatmul.bf16.gmra.mxu0 %v4809
        %v4892 = vpop.f32.mrf.mxu0
        %v4893 = vadd.f32 %v4680, %v4892
        %v4894 = vpop.f32.mrf.mxu0
        %v4895 = vadd.f32 %v4680, %v4894
        %4896 = vmatmul.bf16.gmra.mxu0 %v4812
        %v4897 = vpop.f32.mrf.mxu0
        %v4898 = vadd.f32 %v4680, %v4897
        %v4899 = vpop.f32.mrf.mxu0
        %v4900 = vadd.f32 %v4680, %v4899
        %4901 = vmatmul.bf16.gmra.mxu0 %v4815
        %v4902 = vpop.f32.mrf.mxu0
        %v4903 = vadd.f32 %v4680, %v4902
        %v4904 = vpop.f32.mrf.mxu0
        %v4905 = vadd.f32 %v4680, %v4904
        %4906 = vmatmul.bf16.gmra.mxu0 %v4818
        %v4907 = vpop.f32.mrf.mxu0
        %v4908 = vadd.f32 %v4680, %v4907
        %v4909 = vpop.f32.mrf.mxu0
        %v4910 = vadd.f32 %v4680, %v4909
        %4911 = vdwg.mxu0
        %v4912 = vxor.u32 %v4833, 2147483648
        %v4913 = vxor.u32 %v4835, 2147483648
        %v4914 = vxor.u32 %v4838, 2147483648
        %v4915 = vxor.u32 %v4840, 2147483648
        %v4916 = vxor.u32 %v4843, 2147483648
        %v4917 = vxor.u32 %v4845, 2147483648
        %v4918 = vxor.u32 %v4848, 2147483648
        %v4919 = vxor.u32 %v4850, 2147483648
        %v4920 = vxor.u32 %v4853, 2147483648
        %v4921 = vxor.u32 %v4855, 2147483648
        %v4922 = vxor.u32 %v4858, 2147483648
        %v4923 = vxor.u32 %v4860, 2147483648
        %v4924 = vxor.u32 %v4863, 2147483648
        %v4925 = vxor.u32 %v4865, 2147483648
        %v4926 = vxor.u32 %v4868, 2147483648
        %v4927 = vxor.u32 %v4870, 2147483648
        %v4928 = vxor.u32 %v4873, 2147483648
        %v4929 = vxor.u32 %v4875, 2147483648
        %v4930 = vxor.u32 %v4878, 2147483648
        %v4931 = vxor.u32 %v4880, 2147483648
        %v4932 = vxor.u32 %v4883, 2147483648
        %v4933 = vxor.u32 %v4885, 2147483648
        %v4934 = vxor.u32 %v4888, 2147483648
        %v4935 = vxor.u32 %v4890, 2147483648
        %v4936 = vxor.u32 %v4893, 2147483648
        %v4937 = vxor.u32 %v4895, 2147483648
        %v4938 = vxor.u32 %v4898, 2147483648
        %v4939 = vxor.u32 %v4900, 2147483648
        %v4940 = vxor.u32 %v4903, 2147483648
        %v4941 = vxor.u32 %v4905, 2147483648
        %v4942 = vxor.u32 %v4908, 2147483648
        %v4943 = vxor.u32 %v4910, 2147483648
        %v4944 = vmul.f32 %v4912, 1.442695
        %v4945 = vpow.pop %v4944
        %v4946 = vmul.f32 %v4913, 1.442695
        %v4947 = vpow.pop %v4946
        %v4948 = vmul.f32 %v4914, 1.442695
        %v4949 = vpow.pop %v4948
        %v4950 = vmul.f32 %v4915, 1.442695
        %v4951 = vpow.pop %v4950
        %v4952 = vmul.f32 %v4916, 1.442695
        %v4953 = vpow.pop %v4952
        %v4954 = vmul.f32 %v4917, 1.442695
        %v4955 = vpow.pop %v4954
        %v4956 = vmul.f32 %v4918, 1.442695
        %v4957 = vpow.pop %v4956
        %v4958 = vmul.f32 %v4919, 1.442695
        %v4959 = vpow.pop %v4958
        %v4960 = vmul.f32 %v4920, 1.442695
        %v4961 = vpow.pop %v4960
        %v4962 = vmul.f32 %v4921, 1.442695
        %v4963 = vpow.pop %v4962
        %v4964 = vmul.f32 %v4922, 1.442695
        %v4965 = vpow.pop %v4964
        %v4966 = vmul.f32 %v4923, 1.442695
        %v4967 = vpow.pop %v4966
        %v4968 = vmul.f32 %v4924, 1.442695
        %v4969 = vpow.pop %v4968
        %v4970 = vmul.f32 %v4925, 1.442695
        %v4971 = vpow.pop %v4970
        %v4972 = vmul.f32 %v4926, 1.442695
        %v4973 = vpow.pop %v4972
        %v4974 = vmul.f32 %v4927, 1.442695
        %v4975 = vpow.pop %v4974
        %v4976 = vmul.f32 %v4928, 1.442695
        %v4977 = vpow.pop %v4976
        %v4978 = vmul.f32 %v4929, 1.442695
        %v4979 = vpow.pop %v4978
        %v4980 = vmul.f32 %v4930, 1.442695
        %v4981 = vpow.pop %v4980
        %v4982 = vmul.f32 %v4931, 1.442695
        %v4983 = vpow.pop %v4982
        %v4984 = vmul.f32 %v4932, 1.442695
        %v4985 = vpow.pop %v4984
        %v4986 = vmul.f32 %v4933, 1.442695
        %v4987 = vpow.pop %v4986
        %v4988 = vmul.f32 %v4934, 1.442695
        %v4989 = vpow.pop %v4988
        %v4990 = vmul.f32 %v4935, 1.442695
        %v4991 = vpow.pop %v4990
        %v4992 = vmul.f32 %v4936, 1.442695
        %v4993 = vpow.pop %v4992
        %v4994 = vmul.f32 %v4937, 1.442695
        %v4995 = vpow.pop %v4994
        %v4996 = vmul.f32 %v4938, 1.442695
        %v4997 = vpow.pop %v4996
        %v4998 = vmul.f32 %v4939, 1.442695
        %v4999 = vpow.pop %v4998
        %v5000 = vmul.f32 %v4940, 1.442695
        %v5001 = vpow.pop %v5000
        %v5002 = vmul.f32 %v4941, 1.442695
        %v5003 = vpow.pop %v5002
        %v5004 = vmul.f32 %v4942, 1.442695
        %v5005 = vpow.pop %v5004
        %v5006 = vmul.f32 %v4943, 1.442695
        %v5007 = vpow.pop %v5006
        %v5008 = vadd.f32 %v4945, 1.0
        %v5009 = vadd.f32 %v4947, 1.0
        %v5010 = vadd.f32 %v4949, 1.0
        %v5011 = vadd.f32 %v4951, 1.0
        %v5012 = vadd.f32 %v4953, 1.0
        %v5013 = vadd.f32 %v4955, 1.0
        %v5014 = vadd.f32 %v4957, 1.0
        %v5015 = vadd.f32 %v4959, 1.0
        %v5016 = vadd.f32 %v4961, 1.0
        %v5017 = vadd.f32 %v4963, 1.0
        %v5018 = vadd.f32 %v4965, 1.0
        %v5019 = vadd.f32 %v4967, 1.0
        %v5020 = vadd.f32 %v4969, 1.0
        %v5021 = vadd.f32 %v4971, 1.0
        %v5022 = vadd.f32 %v4973, 1.0
        %v5023 = vadd.f32 %v4975, 1.0
        %v5024 = vadd.f32 %v4977, 1.0
        %v5025 = vadd.f32 %v4979, 1.0
        %v5026 = vadd.f32 %v4981, 1.0
        %v5027 = vadd.f32 %v4983, 1.0
        %v5028 = vadd.f32 %v4985, 1.0
        %v5029 = vadd.f32 %v4987, 1.0
        %v5030 = vadd.f32 %v4989, 1.0
        %v5031 = vadd.f32 %v4991, 1.0
        %v5032 = vadd.f32 %v4993, 1.0
        %v5033 = vadd.f32 %v4995, 1.0
        %v5034 = vadd.f32 %v4997, 1.0
        %v5035 = vadd.f32 %v4999, 1.0
        %v5036 = vadd.f32 %v5001, 1.0
        %v5037 = vadd.f32 %v5003, 1.0
        %v5038 = vadd.f32 %v5005, 1.0
        %v5039 = vadd.f32 %v5007, 1.0
        %v5040 = vrcp.pop %v5008
        %v5041 = vmul.f32 %v5008, %v5040
        %v5042 = vsub.f32 1.0, %v5041
        %v5043 = vmul.f32 %v5040, %v5042
        %v5044 = vadd.f32 %v5040, %v5043
        %vm5045 = vweird.f32 %v5008
        %vm5046 = vweird.f32 %v5040
        %vm5047 = vmor %vm5045, %vm5046
        %v5048 = vsel %vm5047, %v5040, %v5044
        %v5049 = vand.u32 2147483647, %v5008
        %vm5050 = vcmp.eq.f32.partialorder %v5049, 8.507059e+37
        %v5051 = vand.u32 %v5008, 2147483648
        %v5052 = vor.u32 1.1754944e-38, %v5051
        %v5053 = vsel %vm5050, %v5052, %v5048
        %v5054 = vmul.f32 1.0, %v5053
        %v5055 = vrcp.pop %v5009
        %v5056 = vmul.f32 %v5009, %v5055
        %v5057 = vsub.f32 1.0, %v5056
        %v5058 = vmul.f32 %v5055, %v5057
        %v5059 = vadd.f32 %v5055, %v5058
        %vm5060 = vweird.f32 %v5009
        %vm5061 = vweird.f32 %v5055
        %vm5062 = vmor %vm5060, %vm5061
        %v5063 = vsel %vm5062, %v5055, %v5059
        %v5064 = vand.u32 2147483647, %v5009
        %vm5065 = vcmp.eq.f32.partialorder %v5064, 8.507059e+37
        %v5066 = vand.u32 %v5009, 2147483648
        %v5067 = vor.u32 1.1754944e-38, %v5066
        %v5068 = vsel %vm5065, %v5067, %v5063
        %v5069 = vmul.f32 1.0, %v5068
        %v5070 = vrcp.pop %v5010
        %v5071 = vmul.f32 %v5010, %v5070
        %v5072 = vsub.f32 1.0, %v5071
        %v5073 = vmul.f32 %v5070, %v5072
        %v5074 = vadd.f32 %v5070, %v5073
        %vm5075 = vweird.f32 %v5010
        %vm5076 = vweird.f32 %v5070
        %vm5077 = vmor %vm5075, %vm5076
        %v5078 = vsel %vm5077, %v5070, %v5074
        %v5079 = vand.u32 2147483647, %v5010
        %vm5080 = vcmp.eq.f32.partialorder %v5079, 8.507059e+37
        %v5081 = vand.u32 %v5010, 2147483648
        %v5082 = vor.u32 1.1754944e-38, %v5081
        %v5083 = vsel %vm5080, %v5082, %v5078
        %v5084 = vmul.f32 1.0, %v5083
        %v5085 = vrcp.pop %v5011
        %v5086 = vmul.f32 %v5011, %v5085
        %v5087 = vsub.f32 1.0, %v5086
        %v5088 = vmul.f32 %v5085, %v5087
        %v5089 = vadd.f32 %v5085, %v5088
        %vm5090 = vweird.f32 %v5011
        %vm5091 = vweird.f32 %v5085
        %vm5092 = vmor %vm5090, %vm5091
        %v5093 = vsel %vm5092, %v5085, %v5089
        %v5094 = vand.u32 2147483647, %v5011
        %vm5095 = vcmp.eq.f32.partialorder %v5094, 8.507059e+37
        %v5096 = vand.u32 %v5011, 2147483648
        %v5097 = vor.u32 1.1754944e-38, %v5096
        %v5098 = vsel %vm5095, %v5097, %v5093
        %v5099 = vmul.f32 1.0, %v5098
        %v5100 = vrcp.pop %v5012
        %v5101 = vmul.f32 %v5012, %v5100
        %v5102 = vsub.f32 1.0, %v5101
        %v5103 = vmul.f32 %v5100, %v5102
        %v5104 = vadd.f32 %v5100, %v5103
        %vm5105 = vweird.f32 %v5012
        %vm5106 = vweird.f32 %v5100
        %vm5107 = vmor %vm5105, %vm5106
        %v5108 = vsel %vm5107, %v5100, %v5104
        %v5109 = vand.u32 2147483647, %v5012
        %vm5110 = vcmp.eq.f32.partialorder %v5109, 8.507059e+37
        %v5111 = vand.u32 %v5012, 2147483648
        %v5112 = vor.u32 1.1754944e-38, %v5111
        %v5113 = vsel %vm5110, %v5112, %v5108
        %v5114 = vmul.f32 1.0, %v5113
        %v5115 = vrcp.pop %v5013
        %v5116 = vmul.f32 %v5013, %v5115
        %v5117 = vsub.f32 1.0, %v5116
        %v5118 = vmul.f32 %v5115, %v5117
        %v5119 = vadd.f32 %v5115, %v5118
        %vm5120 = vweird.f32 %v5013
        %vm5121 = vweird.f32 %v5115
        %vm5122 = vmor %vm5120, %vm5121
        %v5123 = vsel %vm5122, %v5115, %v5119
        %v5124 = vand.u32 2147483647, %v5013
        %vm5125 = vcmp.eq.f32.partialorder %v5124, 8.507059e+37
        %v5126 = vand.u32 %v5013, 2147483648
        %v5127 = vor.u32 1.1754944e-38, %v5126
        %v5128 = vsel %vm5125, %v5127, %v5123
        %v5129 = vmul.f32 1.0, %v5128
        %v5130 = vrcp.pop %v5014
        %v5131 = vmul.f32 %v5014, %v5130
        %v5132 = vsub.f32 1.0, %v5131
        %v5133 = vmul.f32 %v5130, %v5132
        %v5134 = vadd.f32 %v5130, %v5133
        %vm5135 = vweird.f32 %v5014
        %vm5136 = vweird.f32 %v5130
        %vm5137 = vmor %vm5135, %vm5136
        %v5138 = vsel %vm5137, %v5130, %v5134
        %v5139 = vand.u32 2147483647, %v5014
        %vm5140 = vcmp.eq.f32.partialorder %v5139, 8.507059e+37
        %v5141 = vand.u32 %v5014, 2147483648
        %v5142 = vor.u32 1.1754944e-38, %v5141
        %v5143 = vsel %vm5140, %v5142, %v5138
        %v5144 = vmul.f32 1.0, %v5143
        %v5145 = vrcp.pop %v5015
        %v5146 = vmul.f32 %v5015, %v5145
        %v5147 = vsub.f32 1.0, %v5146
        %v5148 = vmul.f32 %v5145, %v5147
        %v5149 = vadd.f32 %v5145, %v5148
        %vm5150 = vweird.f32 %v5015
        %vm5151 = vweird.f32 %v5145
        %vm5152 = vmor %vm5150, %vm5151
        %v5153 = vsel %vm5152, %v5145, %v5149
        %v5154 = vand.u32 2147483647, %v5015
        %vm5155 = vcmp.eq.f32.partialorder %v5154, 8.507059e+37
        %v5156 = vand.u32 %v5015, 2147483648
        %v5157 = vor.u32 1.1754944e-38, %v5156
        %v5158 = vsel %vm5155, %v5157, %v5153
        %v5159 = vmul.f32 1.0, %v5158
        %v5160 = vrcp.pop %v5016
        %v5161 = vmul.f32 %v5016, %v5160
        %v5162 = vsub.f32 1.0, %v5161
        %v5163 = vmul.f32 %v5160, %v5162
        %v5164 = vadd.f32 %v5160, %v5163
        %vm5165 = vweird.f32 %v5016
        %vm5166 = vweird.f32 %v5160
        %vm5167 = vmor %vm5165, %vm5166
        %v5168 = vsel %vm5167, %v5160, %v5164
        %v5169 = vand.u32 2147483647, %v5016
        %vm5170 = vcmp.eq.f32.partialorder %v5169, 8.507059e+37
        %v5171 = vand.u32 %v5016, 2147483648
        %v5172 = vor.u32 1.1754944e-38, %v5171
        %v5173 = vsel %vm5170, %v5172, %v5168
        %v5174 = vmul.f32 1.0, %v5173
        %v5175 = vrcp.pop %v5017
        %v5176 = vmul.f32 %v5017, %v5175
        %v5177 = vsub.f32 1.0, %v5176
        %v5178 = vmul.f32 %v5175, %v5177
        %v5179 = vadd.f32 %v5175, %v5178
        %vm5180 = vweird.f32 %v5017
        %vm5181 = vweird.f32 %v5175
        %vm5182 = vmor %vm5180, %vm5181
        %v5183 = vsel %vm5182, %v5175, %v5179
        %v5184 = vand.u32 2147483647, %v5017
        %vm5185 = vcmp.eq.f32.partialorder %v5184, 8.507059e+37
        %v5186 = vand.u32 %v5017, 2147483648
        %v5187 = vor.u32 1.1754944e-38, %v5186
        %v5188 = vsel %vm5185, %v5187, %v5183
        %v5189 = vmul.f32 1.0, %v5188
        %v5190 = vrcp.pop %v5018
        %v5191 = vmul.f32 %v5018, %v5190
        %v5192 = vsub.f32 1.0, %v5191
        %v5193 = vmul.f32 %v5190, %v5192
        %v5194 = vadd.f32 %v5190, %v5193
        %vm5195 = vweird.f32 %v5018
        %vm5196 = vweird.f32 %v5190
        %vm5197 = vmor %vm5195, %vm5196
        %v5198 = vsel %vm5197, %v5190, %v5194
        %v5199 = vand.u32 2147483647, %v5018
        %vm5200 = vcmp.eq.f32.partialorder %v5199, 8.507059e+37
        %v5201 = vand.u32 %v5018, 2147483648
        %v5202 = vor.u32 1.1754944e-38, %v5201
        %v5203 = vsel %vm5200, %v5202, %v5198
        %v5204 = vmul.f32 1.0, %v5203
        %v5205 = vrcp.pop %v5019
        %v5206 = vmul.f32 %v5019, %v5205
        %v5207 = vsub.f32 1.0, %v5206
        %v5208 = vmul.f32 %v5205, %v5207
        %v5209 = vadd.f32 %v5205, %v5208
        %vm5210 = vweird.f32 %v5019
        %vm5211 = vweird.f32 %v5205
        %vm5212 = vmor %vm5210, %vm5211
        %v5213 = vsel %vm5212, %v5205, %v5209
        %v5214 = vand.u32 2147483647, %v5019
        %vm5215 = vcmp.eq.f32.partialorder %v5214, 8.507059e+37
        %v5216 = vand.u32 %v5019, 2147483648
        %v5217 = vor.u32 1.1754944e-38, %v5216
        %v5218 = vsel %vm5215, %v5217, %v5213
        %v5219 = vmul.f32 1.0, %v5218
        %v5220 = vrcp.pop %v5020
        %v5221 = vmul.f32 %v5020, %v5220
        %v5222 = vsub.f32 1.0, %v5221
        %v5223 = vmul.f32 %v5220, %v5222
        %v5224 = vadd.f32 %v5220, %v5223
        %vm5225 = vweird.f32 %v5020
        %vm5226 = vweird.f32 %v5220
        %vm5227 = vmor %vm5225, %vm5226
        %v5228 = vsel %vm5227, %v5220, %v5224
        %v5229 = vand.u32 2147483647, %v5020
        %vm5230 = vcmp.eq.f32.partialorder %v5229, 8.507059e+37
        %v5231 = vand.u32 %v5020, 2147483648
        %v5232 = vor.u32 1.1754944e-38, %v5231
        %v5233 = vsel %vm5230, %v5232, %v5228
        %v5234 = vmul.f32 1.0, %v5233
        %v5235 = vrcp.pop %v5021
        %v5236 = vmul.f32 %v5021, %v5235
        %v5237 = vsub.f32 1.0, %v5236
        %v5238 = vmul.f32 %v5235, %v5237
        %v5239 = vadd.f32 %v5235, %v5238
        %vm5240 = vweird.f32 %v5021
        %vm5241 = vweird.f32 %v5235
        %vm5242 = vmor %vm5240, %vm5241
        %v5243 = vsel %vm5242, %v5235, %v5239
        %v5244 = vand.u32 2147483647, %v5021
        %vm5245 = vcmp.eq.f32.partialorder %v5244, 8.507059e+37
        %v5246 = vand.u32 %v5021, 2147483648
        %v5247 = vor.u32 1.1754944e-38, %v5246
        %v5248 = vsel %vm5245, %v5247, %v5243
        %v5249 = vmul.f32 1.0, %v5248
        %v5250 = vrcp.pop %v5022
        %v5251 = vmul.f32 %v5022, %v5250
        %v5252 = vsub.f32 1.0, %v5251
        %v5253 = vmul.f32 %v5250, %v5252
        %v5254 = vadd.f32 %v5250, %v5253
        %vm5255 = vweird.f32 %v5022
        %vm5256 = vweird.f32 %v5250
        %vm5257 = vmor %vm5255, %vm5256
        %v5258 = vsel %vm5257, %v5250, %v5254
        %v5259 = vand.u32 2147483647, %v5022
        %vm5260 = vcmp.eq.f32.partialorder %v5259, 8.507059e+37
        %v5261 = vand.u32 %v5022, 2147483648
        %v5262 = vor.u32 1.1754944e-38, %v5261
        %v5263 = vsel %vm5260, %v5262, %v5258
        %v5264 = vmul.f32 1.0, %v5263
        %v5265 = vrcp.pop %v5023
        %v5266 = vmul.f32 %v5023, %v5265
        %v5267 = vsub.f32 1.0, %v5266
        %v5268 = vmul.f32 %v5265, %v5267
        %v5269 = vadd.f32 %v5265, %v5268
        %vm5270 = vweird.f32 %v5023
        %vm5271 = vweird.f32 %v5265
        %vm5272 = vmor %vm5270, %vm5271
        %v5273 = vsel %vm5272, %v5265, %v5269
        %v5274 = vand.u32 2147483647, %v5023
        %vm5275 = vcmp.eq.f32.partialorder %v5274, 8.507059e+37
        %v5276 = vand.u32 %v5023, 2147483648
        %v5277 = vor.u32 1.1754944e-38, %v5276
        %v5278 = vsel %vm5275, %v5277, %v5273
        %v5279 = vmul.f32 1.0, %v5278
        %v5280 = vrcp.pop %v5024
        %v5281 = vmul.f32 %v5024, %v5280
        %v5282 = vsub.f32 1.0, %v5281
        %v5283 = vmul.f32 %v5280, %v5282
        %v5284 = vadd.f32 %v5280, %v5283
        %vm5285 = vweird.f32 %v5024
        %vm5286 = vweird.f32 %v5280
        %vm5287 = vmor %vm5285, %vm5286
        %v5288 = vsel %vm5287, %v5280, %v5284
        %v5289 = vand.u32 2147483647, %v5024
        %vm5290 = vcmp.eq.f32.partialorder %v5289, 8.507059e+37
        %v5291 = vand.u32 %v5024, 2147483648
        %v5292 = vor.u32 1.1754944e-38, %v5291
        %v5293 = vsel %vm5290, %v5292, %v5288
        %v5294 = vmul.f32 1.0, %v5293
        %v5295 = vrcp.pop %v5025
        %v5296 = vmul.f32 %v5025, %v5295
        %v5297 = vsub.f32 1.0, %v5296
        %v5298 = vmul.f32 %v5295, %v5297
        %v5299 = vadd.f32 %v5295, %v5298
        %vm5300 = vweird.f32 %v5025
        %vm5301 = vweird.f32 %v5295
        %vm5302 = vmor %vm5300, %vm5301
        %v5303 = vsel %vm5302, %v5295, %v5299
        %v5304 = vand.u32 2147483647, %v5025
        %vm5305 = vcmp.eq.f32.partialorder %v5304, 8.507059e+37
        %v5306 = vand.u32 %v5025, 2147483648
        %v5307 = vor.u32 1.1754944e-38, %v5306
        %v5308 = vsel %vm5305, %v5307, %v5303
        %v5309 = vmul.f32 1.0, %v5308
        %v5310 = vrcp.pop %v5026
        %v5311 = vmul.f32 %v5026, %v5310
        %v5312 = vsub.f32 1.0, %v5311
        %v5313 = vmul.f32 %v5310, %v5312
        %v5314 = vadd.f32 %v5310, %v5313
        %vm5315 = vweird.f32 %v5026
        %vm5316 = vweird.f32 %v5310
        %vm5317 = vmor %vm5315, %vm5316
        %v5318 = vsel %vm5317, %v5310, %v5314
        %v5319 = vand.u32 2147483647, %v5026
        %vm5320 = vcmp.eq.f32.partialorder %v5319, 8.507059e+37
        %v5321 = vand.u32 %v5026, 2147483648
        %v5322 = vor.u32 1.1754944e-38, %v5321
        %v5323 = vsel %vm5320, %v5322, %v5318
        %v5324 = vmul.f32 1.0, %v5323
        %v5325 = vrcp.pop %v5027
        %v5326 = vmul.f32 %v5027, %v5325
        %v5327 = vsub.f32 1.0, %v5326
        %v5328 = vmul.f32 %v5325, %v5327
        %v5329 = vadd.f32 %v5325, %v5328
        %vm5330 = vweird.f32 %v5027
        %vm5331 = vweird.f32 %v5325
        %vm5332 = vmor %vm5330, %vm5331
        %v5333 = vsel %vm5332, %v5325, %v5329
        %v5334 = vand.u32 2147483647, %v5027
        %vm5335 = vcmp.eq.f32.partialorder %v5334, 8.507059e+37
        %v5336 = vand.u32 %v5027, 2147483648
        %v5337 = vor.u32 1.1754944e-38, %v5336
        %v5338 = vsel %vm5335, %v5337, %v5333
        %v5339 = vmul.f32 1.0, %v5338
        %v5340 = vrcp.pop %v5028
        %v5341 = vmul.f32 %v5028, %v5340
        %v5342 = vsub.f32 1.0, %v5341
        %v5343 = vmul.f32 %v5340, %v5342
        %v5344 = vadd.f32 %v5340, %v5343
        %vm5345 = vweird.f32 %v5028
        %vm5346 = vweird.f32 %v5340
        %vm5347 = vmor %vm5345, %vm5346
        %v5348 = vsel %vm5347, %v5340, %v5344
        %v5349 = vand.u32 2147483647, %v5028
        %vm5350 = vcmp.eq.f32.partialorder %v5349, 8.507059e+37
        %v5351 = vand.u32 %v5028, 2147483648
        %v5352 = vor.u32 1.1754944e-38, %v5351
        %v5353 = vsel %vm5350, %v5352, %v5348
        %v5354 = vmul.f32 1.0, %v5353
        %v5355 = vrcp.pop %v5029
        %v5356 = vmul.f32 %v5029, %v5355
        %v5357 = vsub.f32 1.0, %v5356
        %v5358 = vmul.f32 %v5355, %v5357
        %v5359 = vadd.f32 %v5355, %v5358
        %vm5360 = vweird.f32 %v5029
        %vm5361 = vweird.f32 %v5355
        %vm5362 = vmor %vm5360, %vm5361
        %v5363 = vsel %vm5362, %v5355, %v5359
        %v5364 = vand.u32 2147483647, %v5029
        %vm5365 = vcmp.eq.f32.partialorder %v5364, 8.507059e+37
        %v5366 = vand.u32 %v5029, 2147483648
        %v5367 = vor.u32 1.1754944e-38, %v5366
        %v5368 = vsel %vm5365, %v5367, %v5363
        %v5369 = vmul.f32 1.0, %v5368
        %v5370 = vrcp.pop %v5030
        %v5371 = vmul.f32 %v5030, %v5370
        %v5372 = vsub.f32 1.0, %v5371
        %v5373 = vmul.f32 %v5370, %v5372
        %v5374 = vadd.f32 %v5370, %v5373
        %vm5375 = vweird.f32 %v5030
        %vm5376 = vweird.f32 %v5370
        %vm5377 = vmor %vm5375, %vm5376
        %v5378 = vsel %vm5377, %v5370, %v5374
        %v5379 = vand.u32 2147483647, %v5030
        %vm5380 = vcmp.eq.f32.partialorder %v5379, 8.507059e+37
        %v5381 = vand.u32 %v5030, 2147483648
        %v5382 = vor.u32 1.1754944e-38, %v5381
        %v5383 = vsel %vm5380, %v5382, %v5378
        %v5384 = vmul.f32 1.0, %v5383
        %v5385 = vrcp.pop %v5031
        %v5386 = vmul.f32 %v5031, %v5385
        %v5387 = vsub.f32 1.0, %v5386
        %v5388 = vmul.f32 %v5385, %v5387
        %v5389 = vadd.f32 %v5385, %v5388
        %vm5390 = vweird.f32 %v5031
        %vm5391 = vweird.f32 %v5385
        %vm5392 = vmor %vm5390, %vm5391
        %v5393 = vsel %vm5392, %v5385, %v5389
        %v5394 = vand.u32 2147483647, %v5031
        %vm5395 = vcmp.eq.f32.partialorder %v5394, 8.507059e+37
        %v5396 = vand.u32 %v5031, 2147483648
        %v5397 = vor.u32 1.1754944e-38, %v5396
        %v5398 = vsel %vm5395, %v5397, %v5393
        %v5399 = vmul.f32 1.0, %v5398
        %v5400 = vrcp.pop %v5032
        %v5401 = vmul.f32 %v5032, %v5400
        %v5402 = vsub.f32 1.0, %v5401
        %v5403 = vmul.f32 %v5400, %v5402
        %v5404 = vadd.f32 %v5400, %v5403
        %vm5405 = vweird.f32 %v5032
        %vm5406 = vweird.f32 %v5400
        %vm5407 = vmor %vm5405, %vm5406
        %v5408 = vsel %vm5407, %v5400, %v5404
        %v5409 = vand.u32 2147483647, %v5032
        %vm5410 = vcmp.eq.f32.partialorder %v5409, 8.507059e+37
        %v5411 = vand.u32 %v5032, 2147483648
        %v5412 = vor.u32 1.1754944e-38, %v5411
        %v5413 = vsel %vm5410, %v5412, %v5408
        %v5414 = vmul.f32 1.0, %v5413
        %v5415 = vrcp.pop %v5033
        %v5416 = vmul.f32 %v5033, %v5415
        %v5417 = vsub.f32 1.0, %v5416
        %v5418 = vmul.f32 %v5415, %v5417
        %v5419 = vadd.f32 %v5415, %v5418
        %vm5420 = vweird.f32 %v5033
        %vm5421 = vweird.f32 %v5415
        %vm5422 = vmor %vm5420, %vm5421
        %v5423 = vsel %vm5422, %v5415, %v5419
        %v5424 = vand.u32 2147483647, %v5033
        %vm5425 = vcmp.eq.f32.partialorder %v5424, 8.507059e+37
        %v5426 = vand.u32 %v5033, 2147483648
        %v5427 = vor.u32 1.1754944e-38, %v5426
        %v5428 = vsel %vm5425, %v5427, %v5423
        %v5429 = vmul.f32 1.0, %v5428
        %v5430 = vrcp.pop %v5034
        %v5431 = vmul.f32 %v5034, %v5430
        %v5432 = vsub.f32 1.0, %v5431
        %v5433 = vmul.f32 %v5430, %v5432
        %v5434 = vadd.f32 %v5430, %v5433
        %vm5435 = vweird.f32 %v5034
        %vm5436 = vweird.f32 %v5430
        %vm5437 = vmor %vm5435, %vm5436
        %v5438 = vsel %vm5437, %v5430, %v5434
        %v5439 = vand.u32 2147483647, %v5034
        %vm5440 = vcmp.eq.f32.partialorder %v5439, 8.507059e+37
        %v5441 = vand.u32 %v5034, 2147483648
        %v5442 = vor.u32 1.1754944e-38, %v5441
        %v5443 = vsel %vm5440, %v5442, %v5438
        %v5444 = vmul.f32 1.0, %v5443
        %v5445 = vrcp.pop %v5035
        %v5446 = vmul.f32 %v5035, %v5445
        %v5447 = vsub.f32 1.0, %v5446
        %v5448 = vmul.f32 %v5445, %v5447
        %v5449 = vadd.f32 %v5445, %v5448
        %vm5450 = vweird.f32 %v5035
        %vm5451 = vweird.f32 %v5445
        %vm5452 = vmor %vm5450, %vm5451
        %v5453 = vsel %vm5452, %v5445, %v5449
        %v5454 = vand.u32 2147483647, %v5035
        %vm5455 = vcmp.eq.f32.partialorder %v5454, 8.507059e+37
        %v5456 = vand.u32 %v5035, 2147483648
        %v5457 = vor.u32 1.1754944e-38, %v5456
        %v5458 = vsel %vm5455, %v5457, %v5453
        %v5459 = vmul.f32 1.0, %v5458
        %v5460 = vrcp.pop %v5036
        %v5461 = vmul.f32 %v5036, %v5460
        %v5462 = vsub.f32 1.0, %v5461
        %v5463 = vmul.f32 %v5460, %v5462
        %v5464 = vadd.f32 %v5460, %v5463
        %vm5465 = vweird.f32 %v5036
        %vm5466 = vweird.f32 %v5460
        %vm5467 = vmor %vm5465, %vm5466
        %v5468 = vsel %vm5467, %v5460, %v5464
        %v5469 = vand.u32 2147483647, %v5036
        %vm5470 = vcmp.eq.f32.partialorder %v5469, 8.507059e+37
        %v5471 = vand.u32 %v5036, 2147483648
        %v5472 = vor.u32 1.1754944e-38, %v5471
        %v5473 = vsel %vm5470, %v5472, %v5468
        %v5474 = vmul.f32 1.0, %v5473
        %v5475 = vrcp.pop %v5037
        %v5476 = vmul.f32 %v5037, %v5475
        %v5477 = vsub.f32 1.0, %v5476
        %v5478 = vmul.f32 %v5475, %v5477
        %v5479 = vadd.f32 %v5475, %v5478
        %vm5480 = vweird.f32 %v5037
        %vm5481 = vweird.f32 %v5475
        %vm5482 = vmor %vm5480, %vm5481
        %v5483 = vsel %vm5482, %v5475, %v5479
        %v5484 = vand.u32 2147483647, %v5037
        %vm5485 = vcmp.eq.f32.partialorder %v5484, 8.507059e+37
        %v5486 = vand.u32 %v5037, 2147483648
        %v5487 = vor.u32 1.1754944e-38, %v5486
        %v5488 = vsel %vm5485, %v5487, %v5483
        %v5489 = vmul.f32 1.0, %v5488
        %v5490 = vrcp.pop %v5038
        %v5491 = vmul.f32 %v5038, %v5490
        %v5492 = vsub.f32 1.0, %v5491
        %v5493 = vmul.f32 %v5490, %v5492
        %v5494 = vadd.f32 %v5490, %v5493
        %vm5495 = vweird.f32 %v5038
        %vm5496 = vweird.f32 %v5490
        %vm5497 = vmor %vm5495, %vm5496
        %v5498 = vsel %vm5497, %v5490, %v5494
        %v5499 = vand.u32 2147483647, %v5038
        %vm5500 = vcmp.eq.f32.partialorder %v5499, 8.507059e+37
        %v5501 = vand.u32 %v5038, 2147483648
        %v5502 = vor.u32 1.1754944e-38, %v5501
        %v5503 = vsel %vm5500, %v5502, %v5498
        %v5504 = vmul.f32 1.0, %v5503
        %v5505 = vrcp.pop %v5039
        %v5506 = vmul.f32 %v5039, %v5505
        %v5507 = vsub.f32 1.0, %v5506
        %v5508 = vmul.f32 %v5505, %v5507
        %v5509 = vadd.f32 %v5505, %v5508
        %vm5510 = vweird.f32 %v5039
        %vm5511 = vweird.f32 %v5505
        %vm5512 = vmor %vm5510, %vm5511
        %v5513 = vsel %vm5512, %v5505, %v5509
        %v5514 = vand.u32 2147483647, %v5039
        %vm5515 = vcmp.eq.f32.partialorder %v5514, 8.507059e+37
        %v5516 = vand.u32 %v5039, 2147483648
        %v5517 = vor.u32 1.1754944e-38, %v5516
        %v5518 = vsel %vm5515, %v5517, %v5513
        %v5519 = vmul.f32 1.0, %v5518
        %v5520 = vmul.f32 %v4833, %v5054
        %v5521 = vmul.f32 %v4835, %v5069
        %v5522 = vmul.f32 %v4838, %v5084
        %v5523 = vmul.f32 %v4840, %v5099
        %v5524 = vmul.f32 %v4843, %v5114
        %v5525 = vmul.f32 %v4845, %v5129
        %v5526 = vmul.f32 %v4848, %v5144
        %v5527 = vmul.f32 %v4850, %v5159
        %v5528 = vmul.f32 %v4853, %v5174
        %v5529 = vmul.f32 %v4855, %v5189
        %v5530 = vmul.f32 %v4858, %v5204
        %v5531 = vmul.f32 %v4860, %v5219
        %v5532 = vmul.f32 %v4863, %v5234
        %v5533 = vmul.f32 %v4865, %v5249
        %v5534 = vmul.f32 %v4868, %v5264
        %v5535 = vmul.f32 %v4870, %v5279
        %v5536 = vmul.f32 %v4873, %v5294
        %v5537 = vmul.f32 %v4875, %v5309
        %v5538 = vmul.f32 %v4878, %v5324
        %v5539 = vmul.f32 %v4880, %v5339
        %v5540 = vmul.f32 %v4883, %v5354
        %v5541 = vmul.f32 %v4885, %v5369
        %v5542 = vmul.f32 %v4888, %v5384
        %v5543 = vmul.f32 %v4890, %v5399
        %v5544 = vmul.f32 %v4893, %v5414
        %v5545 = vmul.f32 %v4895, %v5429
        %v5546 = vmul.f32 %v4898, %v5444
        %v5547 = vmul.f32 %v4900, %v5459
        %v5548 = vmul.f32 %v4903, %v5474
        %v5549 = vmul.f32 %v4905, %v5489
        %v5550 = vmul.f32 %v4908, %v5504
        %v5551 = vmul.f32 %v4910, %v5519
        %v5552 = vadd.f32 %v1207, %v5520
        %v5553 = vadd.f32 %v1208, %v5521
        %v5554 = vadd.f32 %v1209, %v5522
        %v5555 = vadd.f32 %v1210, %v5523
        %v5556 = vadd.f32 %v1211, %v5524
        %v5557 = vadd.f32 %v1212, %v5525
        %v5558 = vadd.f32 %v1213, %v5526
        %v5559 = vadd.f32 %v1214, %v5527
        %v5560 = vadd.f32 %v1215, %v5528
        %v5561 = vadd.f32 %v1216, %v5529
        %v5562 = vadd.f32 %v1217, %v5530
        %v5563 = vadd.f32 %v1218, %v5531
        %v5564 = vadd.f32 %v1219, %v5532
        %v5565 = vadd.f32 %v1220, %v5533
        %v5566 = vadd.f32 %v1221, %v5534
        %v5567 = vadd.f32 %v1222, %v5535
        %v5568 = vadd.f32 %v1223, %v5536
        %v5569 = vadd.f32 %v1224, %v5537
        %v5570 = vadd.f32 %v1225, %v5538
        %v5571 = vadd.f32 %v1226, %v5539
        %v5572 = vadd.f32 %v1227, %v5540
        %v5573 = vadd.f32 %v1228, %v5541
        %v5574 = vadd.f32 %v1229, %v5542
        %v5575 = vadd.f32 %v1230, %v5543
        %v5576 = vadd.f32 %v1231, %v5544
        %v5577 = vadd.f32 %v1232, %v5545
        %v5578 = vadd.f32 %v1233, %v5546
        %v5579 = vadd.f32 %v1234, %v5547
        %v5580 = vadd.f32 %v1235, %v5548
        %v5581 = vadd.f32 %v1236, %v5549
        %v5582 = vadd.f32 %v1237, %v5550
        %v5583 = vadd.f32 %v1238, %v5551
        %v5584 = vpack.c.bf16 %v5552, %v5552
        %v5585 = vpack.c.bf16 %v5553, %v5553
        %v5586 = vpack.c.bf16 %v5554, %v5554
        %v5587 = vpack.c.bf16 %v5555, %v5555
        %v5588 = vpack.c.bf16 %v5556, %v5556
        %v5589 = vpack.c.bf16 %v5557, %v5557
        %v5590 = vpack.c.bf16 %v5558, %v5558
        %v5591 = vpack.c.bf16 %v5559, %v5559
        %v5592 = vpack.c.bf16 %v5560, %v5560
        %v5593 = vpack.c.bf16 %v5561, %v5561
        %v5594 = vpack.c.bf16 %v5562, %v5562
        %v5595 = vpack.c.bf16 %v5563, %v5563
        %v5596 = vpack.c.bf16 %v5564, %v5564
        %v5597 = vpack.c.bf16 %v5565, %v5565
        %v5598 = vpack.c.bf16 %v5566, %v5566
        %v5599 = vpack.c.bf16 %v5567, %v5567
        %v5600 = vpack.c.bf16 %v5568, %v5568
        %v5601 = vpack.c.bf16 %v5569, %v5569
        %v5602 = vpack.c.bf16 %v5570, %v5570
        %v5603 = vpack.c.bf16 %v5571, %v5571
        %v5604 = vpack.c.bf16 %v5572, %v5572
        %v5605 = vpack.c.bf16 %v5573, %v5573
        %v5606 = vpack.c.bf16 %v5574, %v5574
        %v5607 = vpack.c.bf16 %v5575, %v5575
        %v5608 = vpack.c.bf16 %v5576, %v5576
        %v5609 = vpack.c.bf16 %v5577, %v5577
        %v5610 = vpack.c.bf16 %v5578, %v5578
        %v5611 = vpack.c.bf16 %v5579, %v5579
        %v5612 = vpack.c.bf16 %v5580, %v5580
        %v5613 = vpack.c.bf16 %v5581, %v5581
        %v5614 = vpack.c.bf16 %v5582, %v5582
        %v5615 = vpack.c.bf16 %v5583, %v5583
        %v5616 = vpack.c.bf16 %v1207, %v1207
        %v5617 = vpack.c.bf16 %v1208, %v1208
        %v5618 = vpack.c.bf16 %v1209, %v1209
        %v5619 = vpack.c.bf16 %v1210, %v1210
        %v5620 = vpack.c.bf16 %v1211, %v1211
        %v5621 = vpack.c.bf16 %v1212, %v1212
        %v5622 = vpack.c.bf16 %v1213, %v1213
        %v5623 = vpack.c.bf16 %v1214, %v1214
        %v5624 = vpack.c.bf16 %v1215, %v1215
        %v5625 = vpack.c.bf16 %v1216, %v1216
        %v5626 = vpack.c.bf16 %v1217, %v1217
        %v5627 = vpack.c.bf16 %v1218, %v1218
        %v5628 = vpack.c.bf16 %v1219, %v1219
        %v5629 = vpack.c.bf16 %v1220, %v1220
        %v5630 = vpack.c.bf16 %v1221, %v1221
        %v5631 = vpack.c.bf16 %v1222, %v1222
        %v5632 = vpack.c.bf16 %v1223, %v1223
        %v5633 = vpack.c.bf16 %v1224, %v1224
        %v5634 = vpack.c.bf16 %v1225, %v1225
        %v5635 = vpack.c.bf16 %v1226, %v1226
        %v5636 = vpack.c.bf16 %v1227, %v1227
        %v5637 = vpack.c.bf16 %v1228, %v1228
        %v5638 = vpack.c.bf16 %v1229, %v1229
        %v5639 = vpack.c.bf16 %v1230, %v1230
        %v5640 = vpack.c.bf16 %v1231, %v1231
        %v5641 = vpack.c.bf16 %v1232, %v1232
        %v5642 = vpack.c.bf16 %v1233, %v1233
        %v5643 = vpack.c.bf16 %v1234, %v1234
        %v5644 = vpack.c.bf16 %v1235, %v1235
        %v5645 = vpack.c.bf16 %v1236, %v1236
        %v5646 = vpack.c.bf16 %v1237, %v1237
        %v5647 = vpack.c.bf16 %v1238, %v1238
        %v5680 = vunpack.c.l.b16 %v5584
        %v5681 = vunpack.c.l.b16 %v5585
        %v5682 = vunpack.c.l.b16 %v5586
        %v5683 = vunpack.c.l.b16 %v5587
        %v5684 = vunpack.c.l.b16 %v5588
        %v5685 = vunpack.c.l.b16 %v5589
        %v5686 = vunpack.c.l.b16 %v5590
        %v5687 = vunpack.c.l.b16 %v5591
        %v5688 = vunpack.c.l.b16 %v5592
        %v5689 = vunpack.c.l.b16 %v5593
        %v5690 = vunpack.c.l.b16 %v5594
        %v5691 = vunpack.c.l.b16 %v5595
        %v5692 = vunpack.c.l.b16 %v5596
        %v5693 = vunpack.c.l.b16 %v5597
        %v5694 = vunpack.c.l.b16 %v5598
        %v5695 = vunpack.c.l.b16 %v5599
        %v5696 = vunpack.c.l.b16 %v5600
        %v5697 = vunpack.c.l.b16 %v5601
        %v5698 = vunpack.c.l.b16 %v5602
        %v5699 = vunpack.c.l.b16 %v5603
        %v5700 = vunpack.c.l.b16 %v5604
        %v5701 = vunpack.c.l.b16 %v5605
        %v5702 = vunpack.c.l.b16 %v5606
        %v5703 = vunpack.c.l.b16 %v5607
        %v5704 = vunpack.c.l.b16 %v5608
        %v5705 = vunpack.c.l.b16 %v5609
        %v5706 = vunpack.c.l.b16 %v5610
        %v5707 = vunpack.c.l.b16 %v5611
        %v5708 = vunpack.c.l.b16 %v5612
        %v5709 = vunpack.c.l.b16 %v5613
        %v5710 = vunpack.c.l.b16 %v5614
        %v5711 = vunpack.c.l.b16 %v5615
        %v5712 = vpack.c.b16 %v5681, %v5680
        %v5713 = vpack.c.b16 %v5683, %v5682
        %v5714 = vpack.c.b16 %v5685, %v5684
        %v5715 = vpack.c.b16 %v5687, %v5686
        %v5716 = vpack.c.b16 %v5689, %v5688
        %v5717 = vpack.c.b16 %v5691, %v5690
        %v5718 = vpack.c.b16 %v5693, %v5692
        %v5719 = vpack.c.b16 %v5695, %v5694
        %v5720 = vpack.c.b16 %v5697, %v5696
        %v5721 = vpack.c.b16 %v5699, %v5698
        %v5722 = vpack.c.b16 %v5701, %v5700
        %v5723 = vpack.c.b16 %v5703, %v5702
        %v5724 = vpack.c.b16 %v5705, %v5704
        %v5725 = vpack.c.b16 %v5707, %v5706
        %v5726 = vpack.c.b16 %v5709, %v5708
        %v5727 = vpack.c.b16 %v5711, %v5710
        %v5760 = vunpack.c.l.b16 %v5616
        %v5761 = vunpack.c.l.b16 %v5617
        %v5762 = vunpack.c.l.b16 %v5618
        %v5763 = vunpack.c.l.b16 %v5619
        %v5764 = vunpack.c.l.b16 %v5620
        %v5765 = vunpack.c.l.b16 %v5621
        %v5766 = vunpack.c.l.b16 %v5622
        %v5767 = vunpack.c.l.b16 %v5623
        %v5768 = vunpack.c.l.b16 %v5624
        %v5769 = vunpack.c.l.b16 %v5625
        %v5770 = vunpack.c.l.b16 %v5626
        %v5771 = vunpack.c.l.b16 %v5627
        %v5772 = vunpack.c.l.b16 %v5628
        %v5773 = vunpack.c.l.b16 %v5629
        %v5774 = vunpack.c.l.b16 %v5630
        %v5775 = vunpack.c.l.b16 %v5631
        %v5776 = vunpack.c.l.b16 %v5632
        %v5777 = vunpack.c.l.b16 %v5633
        %v5778 = vunpack.c.l.b16 %v5634
        %v5779 = vunpack.c.l.b16 %v5635
        %v5780 = vunpack.c.l.b16 %v5636
        %v5781 = vunpack.c.l.b16 %v5637
        %v5782 = vunpack.c.l.b16 %v5638
        %v5783 = vunpack.c.l.b16 %v5639
        %v5784 = vunpack.c.l.b16 %v5640
        %v5785 = vunpack.c.l.b16 %v5641
        %v5786 = vunpack.c.l.b16 %v5642
        %v5787 = vunpack.c.l.b16 %v5643
        %v5788 = vunpack.c.l.b16 %v5644
        %v5789 = vunpack.c.l.b16 %v5645
        %v5790 = vunpack.c.l.b16 %v5646
        %v5791 = vunpack.c.l.b16 %v5647
        %v5792 = vpack.c.b16 %v5761, %v5760
        %v5793 = vpack.c.b16 %v5763, %v5762
        %v5794 = vpack.c.b16 %v5765, %v5764
        %v5795 = vpack.c.b16 %v5767, %v5766
        %v5796 = vpack.c.b16 %v5769, %v5768
        %v5797 = vpack.c.b16 %v5771, %v5770
        %v5798 = vpack.c.b16 %v5773, %v5772
        %v5799 = vpack.c.b16 %v5775, %v5774
        %v5800 = vpack.c.b16 %v5777, %v5776
        %v5801 = vpack.c.b16 %v5779, %v5778
        %v5802 = vpack.c.b16 %v5781, %v5780
        %v5803 = vpack.c.b16 %v5783, %v5782
        %v5804 = vpack.c.b16 %v5785, %v5784
        %v5805 = vpack.c.b16 %v5787, %v5786
        %v5806 = vpack.c.b16 %v5789, %v5788
        %v5807 = vpack.c.b16 %v5791, %v5790
        %v5810 = vsel %vm332, %v5712, %v5792
        %v5813 = vsel %vm332, %v5713, %v5793
        %v5816 = vsel %vm332, %v5714, %v5794
        %v5819 = vsel %vm332, %v5715, %v5795
        %v5822 = vsel %vm332, %v5716, %v5796
        %v5825 = vsel %vm332, %v5717, %v5797
        %v5828 = vsel %vm332, %v5718, %v5798
        %v5831 = vsel %vm332, %v5719, %v5799
        %v5834 = vsel %vm332, %v5720, %v5800
        %v5837 = vsel %vm332, %v5721, %v5801
        %v5840 = vsel %vm332, %v5722, %v5802
        %v5843 = vsel %vm332, %v5723, %v5803
        %v5846 = vsel %vm332, %v5724, %v5804
        %v5849 = vsel %vm332, %v5725, %v5805
        %v5852 = vsel %vm332, %v5726, %v5806
        %v5855 = vsel %vm332, %v5727, %v5807
        %v5856 = vld [vmem:[%s7] sm:$0x3]
        %v5857 = vld [vmem:[%s8] sm:$0x1]
        %v5859 = vperm.slane %v5857, 0
        %v5861 = vsel %vm457, %v5810, 0
        %v5863 = vsel %vm457, %v5813, 0
        %v5865 = vsel %vm457, %v5816, 0
        %v5867 = vsel %vm457, %v5819, 0
        %v5869 = vsel %vm457, %v5822, 0
        %v5871 = vsel %vm457, %v5825, 0
        %v5873 = vsel %vm457, %v5828, 0
        %v5875 = vsel %vm457, %v5831, 0
        %v5877 = vsel %vm457, %v5834, 0
        %v5879 = vsel %vm457, %v5837, 0
        %v5881 = vsel %vm457, %v5840, 0
        %v5883 = vsel %vm457, %v5843, 0
        %v5885 = vsel %vm457, %v5846, 0
        %v5887 = vsel %vm457, %v5849, 0
        %v5889 = vsel %vm457, %v5852, 0
        %v5891 = vsel %vm457, %v5855, 0
        %v5894 = vsel %vm506, %v5856, 0
        %5896 = vmatpush.bf16.msra.mxu0 0
        %5897 = vmatpush.bf16.msra.mxu0 0
        %5898 = vmatpush.bf16.msra.mxu0 0
        %5899 = vmatpush.bf16.msra.mxu0 0
        %5900 = vmatpush.bf16.msra.mxu0 0
        %5901 = vmatpush.bf16.msra.mxu0 0
        %5902 = vmatpush.bf16.msra.mxu0 0
        %5903 = vmatpush.bf16.msra.mxu0 %v5894
        %5904 = vmatmul.bf16.gmra.mxu0 %v5861
        %v5905 = vpop.f32.mrf.mxu0
        %v5906 = vadd.f32 %v5859, %v5905
        %v5907 = vpop.f32.mrf.mxu0
        %v5908 = vadd.f32 %v5859, %v5907
        %5909 = vmatmul.bf16.gmra.mxu0 %v5863
        %v5910 = vpop.f32.mrf.mxu0
        %v5911 = vadd.f32 %v5859, %v5910
        %v5912 = vpop.f32.mrf.mxu0
        %v5913 = vadd.f32 %v5859, %v5912
        %5914 = vmatmul.bf16.gmra.mxu0 %v5865
        %v5915 = vpop.f32.mrf.mxu0
        %v5916 = vadd.f32 %v5859, %v5915
        %v5917 = vpop.f32.mrf.mxu0
        %v5918 = vadd.f32 %v5859, %v5917
        %5919 = vmatmul.bf16.gmra.mxu0 %v5867
        %v5920 = vpop.f32.mrf.mxu0
        %v5921 = vadd.f32 %v5859, %v5920
        %v5922 = vpop.f32.mrf.mxu0
        %v5923 = vadd.f32 %v5859, %v5922
        %5924 = vmatmul.bf16.gmra.mxu0 %v5869
        %v5925 = vpop.f32.mrf.mxu0
        %v5926 = vadd.f32 %v5859, %v5925
        %v5927 = vpop.f32.mrf.mxu0
        %v5928 = vadd.f32 %v5859, %v5927
        %5929 = vmatmul.bf16.gmra.mxu0 %v5871
        %v5930 = vpop.f32.mrf.mxu0
        %v5931 = vadd.f32 %v5859, %v5930
        %v5932 = vpop.f32.mrf.mxu0
        %v5933 = vadd.f32 %v5859, %v5932
        %5934 = vmatmul.bf16.gmra.mxu0 %v5873
        %v5935 = vpop.f32.mrf.mxu0
        %v5936 = vadd.f32 %v5859, %v5935
        %v5937 = vpop.f32.mrf.mxu0
        %v5938 = vadd.f32 %v5859, %v5937
        %5939 = vmatmul.bf16.gmra.mxu0 %v5875
        %v5940 = vpop.f32.mrf.mxu0
        %v5941 = vadd.f32 %v5859, %v5940
        %v5942 = vpop.f32.mrf.mxu0
        %v5943 = vadd.f32 %v5859, %v5942
        %5944 = vmatmul.bf16.gmra.mxu0 %v5877
        %v5945 = vpop.f32.mrf.mxu0
        %v5946 = vadd.f32 %v5859, %v5945
        %v5947 = vpop.f32.mrf.mxu0
        %v5948 = vadd.f32 %v5859, %v5947
        %5949 = vmatmul.bf16.gmra.mxu0 %v5879
        %v5950 = vpop.f32.mrf.mxu0
        %v5951 = vadd.f32 %v5859, %v5950
        %v5952 = vpop.f32.mrf.mxu0
        %v5953 = vadd.f32 %v5859, %v5952
        %5954 = vmatmul.bf16.gmra.mxu0 %v5881
        %v5955 = vpop.f32.mrf.mxu0
        %v5956 = vadd.f32 %v5859, %v5955
        %v5957 = vpop.f32.mrf.mxu0
        %v5958 = vadd.f32 %v5859, %v5957
        %5959 = vmatmul.bf16.gmra.mxu0 %v5883
        %v5960 = vpop.f32.mrf.mxu0
        %v5961 = vadd.f32 %v5859, %v5960
        %v5962 = vpop.f32.mrf.mxu0
        %v5963 = vadd.f32 %v5859, %v5962
        %5964 = vmatmul.bf16.gmra.mxu0 %v5885
        %v5965 = vpop.f32.mrf.mxu0
        %v5966 = vadd.f32 %v5859, %v5965
        %v5967 = vpop.f32.mrf.mxu0
        %v5968 = vadd.f32 %v5859, %v5967
        %5969 = vmatmul.bf16.gmra.mxu0 %v5887
        %v5970 = vpop.f32.mrf.mxu0
        %v5971 = vadd.f32 %v5859, %v5970
        %v5972 = vpop.f32.mrf.mxu0
        %v5973 = vadd.f32 %v5859, %v5972
        %5974 = vmatmul.bf16.gmra.mxu0 %v5889
        %v5975 = vpop.f32.mrf.mxu0
        %v5976 = vadd.f32 %v5859, %v5975
        %v5977 = vpop.f32.mrf.mxu0
        %v5978 = vadd.f32 %v5859, %v5977
        %5979 = vmatmul.bf16.gmra.mxu0 %v5891
        %v5980 = vpop.f32.mrf.mxu0
        %v5981 = vadd.f32 %v5859, %v5980
        %v5982 = vpop.f32.mrf.mxu0
        %v5983 = vadd.f32 %v5859, %v5982
        %5984 = vdwg.mxu0
        %v5985 = vxor.u32 %v5906, 2147483648
        %v5986 = vxor.u32 %v5908, 2147483648
        %v5987 = vxor.u32 %v5911, 2147483648
        %v5988 = vxor.u32 %v5913, 2147483648
        %v5989 = vxor.u32 %v5916, 2147483648
        %v5990 = vxor.u32 %v5918, 2147483648
        %v5991 = vxor.u32 %v5921, 2147483648
        %v5992 = vxor.u32 %v5923, 2147483648
        %v5993 = vxor.u32 %v5926, 2147483648
        %v5994 = vxor.u32 %v5928, 2147483648
        %v5995 = vxor.u32 %v5931, 2147483648
        %v5996 = vxor.u32 %v5933, 2147483648
        %v5997 = vxor.u32 %v5936, 2147483648
        %v5998 = vxor.u32 %v5938, 2147483648
        %v5999 = vxor.u32 %v5941, 2147483648
        %v6000 = vxor.u32 %v5943, 2147483648
        %v6001 = vxor.u32 %v5946, 2147483648
        %v6002 = vxor.u32 %v5948, 2147483648
        %v6003 = vxor.u32 %v5951, 2147483648
        %v6004 = vxor.u32 %v5953, 2147483648
        %v6005 = vxor.u32 %v5956, 2147483648
        %v6006 = vxor.u32 %v5958, 2147483648
        %v6007 = vxor.u32 %v5961, 2147483648
        %v6008 = vxor.u32 %v5963, 2147483648
        %v6009 = vxor.u32 %v5966, 2147483648
        %v6010 = vxor.u32 %v5968, 2147483648
        %v6011 = vxor.u32 %v5971, 2147483648
        %v6012 = vxor.u32 %v5973, 2147483648
        %v6013 = vxor.u32 %v5976, 2147483648
        %v6014 = vxor.u32 %v5978, 2147483648
        %v6015 = vxor.u32 %v5981, 2147483648
        %v6016 = vxor.u32 %v5983, 2147483648
        %v6017 = vmul.f32 %v5985, 1.442695
        %v6018 = vpow.pop %v6017
        %v6019 = vmul.f32 %v5986, 1.442695
        %v6020 = vpow.pop %v6019
        %v6021 = vmul.f32 %v5987, 1.442695
        %v6022 = vpow.pop %v6021
        %v6023 = vmul.f32 %v5988, 1.442695
        %v6024 = vpow.pop %v6023
        %v6025 = vmul.f32 %v5989, 1.442695
        %v6026 = vpow.pop %v6025
        %v6027 = vmul.f32 %v5990, 1.442695
        %v6028 = vpow.pop %v6027
        %v6029 = vmul.f32 %v5991, 1.442695
        %v6030 = vpow.pop %v6029
        %v6031 = vmul.f32 %v5992, 1.442695
        %v6032 = vpow.pop %v6031
        %v6033 = vmul.f32 %v5993, 1.442695
        %v6034 = vpow.pop %v6033
        %v6035 = vmul.f32 %v5994, 1.442695
        %v6036 = vpow.pop %v6035
        %v6037 = vmul.f32 %v5995, 1.442695
        %v6038 = vpow.pop %v6037
        %v6039 = vmul.f32 %v5996, 1.442695
        %v6040 = vpow.pop %v6039
        %v6041 = vmul.f32 %v5997, 1.442695
        %v6042 = vpow.pop %v6041
        %v6043 = vmul.f32 %v5998, 1.442695
        %v6044 = vpow.pop %v6043
        %v6045 = vmul.f32 %v5999, 1.442695
        %v6046 = vpow.pop %v6045
        %v6047 = vmul.f32 %v6000, 1.442695
        %v6048 = vpow.pop %v6047
        %v6049 = vmul.f32 %v6001, 1.442695
        %v6050 = vpow.pop %v6049
        %v6051 = vmul.f32 %v6002, 1.442695
        %v6052 = vpow.pop %v6051
        %v6053 = vmul.f32 %v6003, 1.442695
        %v6054 = vpow.pop %v6053
        %v6055 = vmul.f32 %v6004, 1.442695
        %v6056 = vpow.pop %v6055
        %v6057 = vmul.f32 %v6005, 1.442695
        %v6058 = vpow.pop %v6057
        %v6059 = vmul.f32 %v6006, 1.442695
        %v6060 = vpow.pop %v6059
        %v6061 = vmul.f32 %v6007, 1.442695
        %v6062 = vpow.pop %v6061
        %v6063 = vmul.f32 %v6008, 1.442695
        %v6064 = vpow.pop %v6063
        %v6065 = vmul.f32 %v6009, 1.442695
        %v6066 = vpow.pop %v6065
        %v6067 = vmul.f32 %v6010, 1.442695
        %v6068 = vpow.pop %v6067
        %v6069 = vmul.f32 %v6011, 1.442695
        %v6070 = vpow.pop %v6069
        %v6071 = vmul.f32 %v6012, 1.442695
        %v6072 = vpow.pop %v6071
        %v6073 = vmul.f32 %v6013, 1.442695
        %v6074 = vpow.pop %v6073
        %v6075 = vmul.f32 %v6014, 1.442695
        %v6076 = vpow.pop %v6075
        %v6077 = vmul.f32 %v6015, 1.442695
        %v6078 = vpow.pop %v6077
        %v6079 = vmul.f32 %v6016, 1.442695
        %v6080 = vpow.pop %v6079
        %v6081 = vadd.f32 %v6018, 1.0
        %v6082 = vadd.f32 %v6020, 1.0
        %v6083 = vadd.f32 %v6022, 1.0
        %v6084 = vadd.f32 %v6024, 1.0
        %v6085 = vadd.f32 %v6026, 1.0
        %v6086 = vadd.f32 %v6028, 1.0
        %v6087 = vadd.f32 %v6030, 1.0
        %v6088 = vadd.f32 %v6032, 1.0
        %v6089 = vadd.f32 %v6034, 1.0
        %v6090 = vadd.f32 %v6036, 1.0
        %v6091 = vadd.f32 %v6038, 1.0
        %v6092 = vadd.f32 %v6040, 1.0
        %v6093 = vadd.f32 %v6042, 1.0
        %v6094 = vadd.f32 %v6044, 1.0
        %v6095 = vadd.f32 %v6046, 1.0
        %v6096 = vadd.f32 %v6048, 1.0
        %v6097 = vadd.f32 %v6050, 1.0
        %v6098 = vadd.f32 %v6052, 1.0
        %v6099 = vadd.f32 %v6054, 1.0
        %v6100 = vadd.f32 %v6056, 1.0
        %v6101 = vadd.f32 %v6058, 1.0
        %v6102 = vadd.f32 %v6060, 1.0
        %v6103 = vadd.f32 %v6062, 1.0
        %v6104 = vadd.f32 %v6064, 1.0
        %v6105 = vadd.f32 %v6066, 1.0
        %v6106 = vadd.f32 %v6068, 1.0
        %v6107 = vadd.f32 %v6070, 1.0
        %v6108 = vadd.f32 %v6072, 1.0
        %v6109 = vadd.f32 %v6074, 1.0
        %v6110 = vadd.f32 %v6076, 1.0
        %v6111 = vadd.f32 %v6078, 1.0
        %v6112 = vadd.f32 %v6080, 1.0
        %v6113 = vrcp.pop %v6081
        %v6114 = vmul.f32 %v6081, %v6113
        %v6115 = vsub.f32 1.0, %v6114
        %v6116 = vmul.f32 %v6113, %v6115
        %v6117 = vadd.f32 %v6113, %v6116
        %vm6118 = vweird.f32 %v6081
        %vm6119 = vweird.f32 %v6113
        %vm6120 = vmor %vm6118, %vm6119
        %v6121 = vsel %vm6120, %v6113, %v6117
        %v6122 = vand.u32 2147483647, %v6081
        %vm6123 = vcmp.eq.f32.partialorder %v6122, 8.507059e+37
        %v6124 = vand.u32 %v6081, 2147483648
        %v6125 = vor.u32 1.1754944e-38, %v6124
        %v6126 = vsel %vm6123, %v6125, %v6121
        %v6127 = vmul.f32 1.0, %v6126
        %v6128 = vrcp.pop %v6082
        %v6129 = vmul.f32 %v6082, %v6128
        %v6130 = vsub.f32 1.0, %v6129
        %v6131 = vmul.f32 %v6128, %v6130
        %v6132 = vadd.f32 %v6128, %v6131
        %vm6133 = vweird.f32 %v6082
        %vm6134 = vweird.f32 %v6128
        %vm6135 = vmor %vm6133, %vm6134
        %v6136 = vsel %vm6135, %v6128, %v6132
        %v6137 = vand.u32 2147483647, %v6082
        %vm6138 = vcmp.eq.f32.partialorder %v6137, 8.507059e+37
        %v6139 = vand.u32 %v6082, 2147483648
        %v6140 = vor.u32 1.1754944e-38, %v6139
        %v6141 = vsel %vm6138, %v6140, %v6136
        %v6142 = vmul.f32 1.0, %v6141
        %v6143 = vrcp.pop %v6083
        %v6144 = vmul.f32 %v6083, %v6143
        %v6145 = vsub.f32 1.0, %v6144
        %v6146 = vmul.f32 %v6143, %v6145
        %v6147 = vadd.f32 %v6143, %v6146
        %vm6148 = vweird.f32 %v6083
        %vm6149 = vweird.f32 %v6143
        %vm6150 = vmor %vm6148, %vm6149
        %v6151 = vsel %vm6150, %v6143, %v6147
        %v6152 = vand.u32 2147483647, %v6083
        %vm6153 = vcmp.eq.f32.partialorder %v6152, 8.507059e+37
        %v6154 = vand.u32 %v6083, 2147483648
        %v6155 = vor.u32 1.1754944e-38, %v6154
        %v6156 = vsel %vm6153, %v6155, %v6151
        %v6157 = vmul.f32 1.0, %v6156
        %v6158 = vrcp.pop %v6084
        %v6159 = vmul.f32 %v6084, %v6158
        %v6160 = vsub.f32 1.0, %v6159
        %v6161 = vmul.f32 %v6158, %v6160
        %v6162 = vadd.f32 %v6158, %v6161
        %vm6163 = vweird.f32 %v6084
        %vm6164 = vweird.f32 %v6158
        %vm6165 = vmor %vm6163, %vm6164
        %v6166 = vsel %vm6165, %v6158, %v6162
        %v6167 = vand.u32 2147483647, %v6084
        %vm6168 = vcmp.eq.f32.partialorder %v6167, 8.507059e+37
        %v6169 = vand.u32 %v6084, 2147483648
        %v6170 = vor.u32 1.1754944e-38, %v6169
        %v6171 = vsel %vm6168, %v6170, %v6166
        %v6172 = vmul.f32 1.0, %v6171
        %v6173 = vrcp.pop %v6085
        %v6174 = vmul.f32 %v6085, %v6173
        %v6175 = vsub.f32 1.0, %v6174
        %v6176 = vmul.f32 %v6173, %v6175
        %v6177 = vadd.f32 %v6173, %v6176
        %vm6178 = vweird.f32 %v6085
        %vm6179 = vweird.f32 %v6173
        %vm6180 = vmor %vm6178, %vm6179
        %v6181 = vsel %vm6180, %v6173, %v6177
        %v6182 = vand.u32 2147483647, %v6085
        %vm6183 = vcmp.eq.f32.partialorder %v6182, 8.507059e+37
        %v6184 = vand.u32 %v6085, 2147483648
        %v6185 = vor.u32 1.1754944e-38, %v6184
        %v6186 = vsel %vm6183, %v6185, %v6181
        %v6187 = vmul.f32 1.0, %v6186
        %v6188 = vrcp.pop %v6086
        %v6189 = vmul.f32 %v6086, %v6188
        %v6190 = vsub.f32 1.0, %v6189
        %v6191 = vmul.f32 %v6188, %v6190
        %v6192 = vadd.f32 %v6188, %v6191
        %vm6193 = vweird.f32 %v6086
        %vm6194 = vweird.f32 %v6188
        %vm6195 = vmor %vm6193, %vm6194
        %v6196 = vsel %vm6195, %v6188, %v6192
        %v6197 = vand.u32 2147483647, %v6086
        %vm6198 = vcmp.eq.f32.partialorder %v6197, 8.507059e+37
        %v6199 = vand.u32 %v6086, 2147483648
        %v6200 = vor.u32 1.1754944e-38, %v6199
        %v6201 = vsel %vm6198, %v6200, %v6196
        %v6202 = vmul.f32 1.0, %v6201
        %v6203 = vrcp.pop %v6087
        %v6204 = vmul.f32 %v6087, %v6203
        %v6205 = vsub.f32 1.0, %v6204
        %v6206 = vmul.f32 %v6203, %v6205
        %v6207 = vadd.f32 %v6203, %v6206
        %vm6208 = vweird.f32 %v6087
        %vm6209 = vweird.f32 %v6203
        %vm6210 = vmor %vm6208, %vm6209
        %v6211 = vsel %vm6210, %v6203, %v6207
        %v6212 = vand.u32 2147483647, %v6087
        %vm6213 = vcmp.eq.f32.partialorder %v6212, 8.507059e+37
        %v6214 = vand.u32 %v6087, 2147483648
        %v6215 = vor.u32 1.1754944e-38, %v6214
        %v6216 = vsel %vm6213, %v6215, %v6211
        %v6217 = vmul.f32 1.0, %v6216
        %v6218 = vrcp.pop %v6088
        %v6219 = vmul.f32 %v6088, %v6218
        %v6220 = vsub.f32 1.0, %v6219
        %v6221 = vmul.f32 %v6218, %v6220
        %v6222 = vadd.f32 %v6218, %v6221
        %vm6223 = vweird.f32 %v6088
        %vm6224 = vweird.f32 %v6218
        %vm6225 = vmor %vm6223, %vm6224
        %v6226 = vsel %vm6225, %v6218, %v6222
        %v6227 = vand.u32 2147483647, %v6088
        %vm6228 = vcmp.eq.f32.partialorder %v6227, 8.507059e+37
        %v6229 = vand.u32 %v6088, 2147483648
        %v6230 = vor.u32 1.1754944e-38, %v6229
        %v6231 = vsel %vm6228, %v6230, %v6226
        %v6232 = vmul.f32 1.0, %v6231
        %v6233 = vrcp.pop %v6089
        %v6234 = vmul.f32 %v6089, %v6233
        %v6235 = vsub.f32 1.0, %v6234
        %v6236 = vmul.f32 %v6233, %v6235
        %v6237 = vadd.f32 %v6233, %v6236
        %vm6238 = vweird.f32 %v6089
        %vm6239 = vweird.f32 %v6233
        %vm6240 = vmor %vm6238, %vm6239
        %v6241 = vsel %vm6240, %v6233, %v6237
        %v6242 = vand.u32 2147483647, %v6089
        %vm6243 = vcmp.eq.f32.partialorder %v6242, 8.507059e+37
        %v6244 = vand.u32 %v6089, 2147483648
        %v6245 = vor.u32 1.1754944e-38, %v6244
        %v6246 = vsel %vm6243, %v6245, %v6241
        %v6247 = vmul.f32 1.0, %v6246
        %v6248 = vrcp.pop %v6090
        %v6249 = vmul.f32 %v6090, %v6248
        %v6250 = vsub.f32 1.0, %v6249
        %v6251 = vmul.f32 %v6248, %v6250
        %v6252 = vadd.f32 %v6248, %v6251
        %vm6253 = vweird.f32 %v6090
        %vm6254 = vweird.f32 %v6248
        %vm6255 = vmor %vm6253, %vm6254
        %v6256 = vsel %vm6255, %v6248, %v6252
        %v6257 = vand.u32 2147483647, %v6090
        %vm6258 = vcmp.eq.f32.partialorder %v6257, 8.507059e+37
        %v6259 = vand.u32 %v6090, 2147483648
        %v6260 = vor.u32 1.1754944e-38, %v6259
        %v6261 = vsel %vm6258, %v6260, %v6256
        %v6262 = vmul.f32 1.0, %v6261
        %v6263 = vrcp.pop %v6091
        %v6264 = vmul.f32 %v6091, %v6263
        %v6265 = vsub.f32 1.0, %v6264
        %v6266 = vmul.f32 %v6263, %v6265
        %v6267 = vadd.f32 %v6263, %v6266
        %vm6268 = vweird.f32 %v6091
        %vm6269 = vweird.f32 %v6263
        %vm6270 = vmor %vm6268, %vm6269
        %v6271 = vsel %vm6270, %v6263, %v6267
        %v6272 = vand.u32 2147483647, %v6091
        %vm6273 = vcmp.eq.f32.partialorder %v6272, 8.507059e+37
        %v6274 = vand.u32 %v6091, 2147483648
        %v6275 = vor.u32 1.1754944e-38, %v6274
        %v6276 = vsel %vm6273, %v6275, %v6271
        %v6277 = vmul.f32 1.0, %v6276
        %v6278 = vrcp.pop %v6092
        %v6279 = vmul.f32 %v6092, %v6278
        %v6280 = vsub.f32 1.0, %v6279
        %v6281 = vmul.f32 %v6278, %v6280
        %v6282 = vadd.f32 %v6278, %v6281
        %vm6283 = vweird.f32 %v6092
        %vm6284 = vweird.f32 %v6278
        %vm6285 = vmor %vm6283, %vm6284
        %v6286 = vsel %vm6285, %v6278, %v6282
        %v6287 = vand.u32 2147483647, %v6092
        %vm6288 = vcmp.eq.f32.partialorder %v6287, 8.507059e+37
        %v6289 = vand.u32 %v6092, 2147483648
        %v6290 = vor.u32 1.1754944e-38, %v6289
        %v6291 = vsel %vm6288, %v6290, %v6286
        %v6292 = vmul.f32 1.0, %v6291
        %v6293 = vrcp.pop %v6093
        %v6294 = vmul.f32 %v6093, %v6293
        %v6295 = vsub.f32 1.0, %v6294
        %v6296 = vmul.f32 %v6293, %v6295
        %v6297 = vadd.f32 %v6293, %v6296
        %vm6298 = vweird.f32 %v6093
        %vm6299 = vweird.f32 %v6293
        %vm6300 = vmor %vm6298, %vm6299
        %v6301 = vsel %vm6300, %v6293, %v6297
        %v6302 = vand.u32 2147483647, %v6093
        %vm6303 = vcmp.eq.f32.partialorder %v6302, 8.507059e+37
        %v6304 = vand.u32 %v6093, 2147483648
        %v6305 = vor.u32 1.1754944e-38, %v6304
        %v6306 = vsel %vm6303, %v6305, %v6301
        %v6307 = vmul.f32 1.0, %v6306
        %v6308 = vrcp.pop %v6094
        %v6309 = vmul.f32 %v6094, %v6308
        %v6310 = vsub.f32 1.0, %v6309
        %v6311 = vmul.f32 %v6308, %v6310
        %v6312 = vadd.f32 %v6308, %v6311
        %vm6313 = vweird.f32 %v6094
        %vm6314 = vweird.f32 %v6308
        %vm6315 = vmor %vm6313, %vm6314
        %v6316 = vsel %vm6315, %v6308, %v6312
        %v6317 = vand.u32 2147483647, %v6094
        %vm6318 = vcmp.eq.f32.partialorder %v6317, 8.507059e+37
        %v6319 = vand.u32 %v6094, 2147483648
        %v6320 = vor.u32 1.1754944e-38, %v6319
        %v6321 = vsel %vm6318, %v6320, %v6316
        %v6322 = vmul.f32 1.0, %v6321
        %v6323 = vrcp.pop %v6095
        %v6324 = vmul.f32 %v6095, %v6323
        %v6325 = vsub.f32 1.0, %v6324
        %v6326 = vmul.f32 %v6323, %v6325
        %v6327 = vadd.f32 %v6323, %v6326
        %vm6328 = vweird.f32 %v6095
        %vm6329 = vweird.f32 %v6323
        %vm6330 = vmor %vm6328, %vm6329
        %v6331 = vsel %vm6330, %v6323, %v6327
        %v6332 = vand.u32 2147483647, %v6095
        %vm6333 = vcmp.eq.f32.partialorder %v6332, 8.507059e+37
        %v6334 = vand.u32 %v6095, 2147483648
        %v6335 = vor.u32 1.1754944e-38, %v6334
        %v6336 = vsel %vm6333, %v6335, %v6331
        %v6337 = vmul.f32 1.0, %v6336
        %v6338 = vrcp.pop %v6096
        %v6339 = vmul.f32 %v6096, %v6338
        %v6340 = vsub.f32 1.0, %v6339
        %v6341 = vmul.f32 %v6338, %v6340
        %v6342 = vadd.f32 %v6338, %v6341
        %vm6343 = vweird.f32 %v6096
        %vm6344 = vweird.f32 %v6338
        %vm6345 = vmor %vm6343, %vm6344
        %v6346 = vsel %vm6345, %v6338, %v6342
        %v6347 = vand.u32 2147483647, %v6096
        %vm6348 = vcmp.eq.f32.partialorder %v6347, 8.507059e+37
        %v6349 = vand.u32 %v6096, 2147483648
        %v6350 = vor.u32 1.1754944e-38, %v6349
        %v6351 = vsel %vm6348, %v6350, %v6346
        %v6352 = vmul.f32 1.0, %v6351
        %v6353 = vrcp.pop %v6097
        %v6354 = vmul.f32 %v6097, %v6353
        %v6355 = vsub.f32 1.0, %v6354
        %v6356 = vmul.f32 %v6353, %v6355
        %v6357 = vadd.f32 %v6353, %v6356
        %vm6358 = vweird.f32 %v6097
        %vm6359 = vweird.f32 %v6353
        %vm6360 = vmor %vm6358, %vm6359
        %v6361 = vsel %vm6360, %v6353, %v6357
        %v6362 = vand.u32 2147483647, %v6097
        %vm6363 = vcmp.eq.f32.partialorder %v6362, 8.507059e+37
        %v6364 = vand.u32 %v6097, 2147483648
        %v6365 = vor.u32 1.1754944e-38, %v6364
        %v6366 = vsel %vm6363, %v6365, %v6361
        %v6367 = vmul.f32 1.0, %v6366
        %v6368 = vrcp.pop %v6098
        %v6369 = vmul.f32 %v6098, %v6368
        %v6370 = vsub.f32 1.0, %v6369
        %v6371 = vmul.f32 %v6368, %v6370
        %v6372 = vadd.f32 %v6368, %v6371
        %vm6373 = vweird.f32 %v6098
        %vm6374 = vweird.f32 %v6368
        %vm6375 = vmor %vm6373, %vm6374
        %v6376 = vsel %vm6375, %v6368, %v6372
        %v6377 = vand.u32 2147483647, %v6098
        %vm6378 = vcmp.eq.f32.partialorder %v6377, 8.507059e+37
        %v6379 = vand.u32 %v6098, 2147483648
        %v6380 = vor.u32 1.1754944e-38, %v6379
        %v6381 = vsel %vm6378, %v6380, %v6376
        %v6382 = vmul.f32 1.0, %v6381
        %v6383 = vrcp.pop %v6099
        %v6384 = vmul.f32 %v6099, %v6383
        %v6385 = vsub.f32 1.0, %v6384
        %v6386 = vmul.f32 %v6383, %v6385
        %v6387 = vadd.f32 %v6383, %v6386
        %vm6388 = vweird.f32 %v6099
        %vm6389 = vweird.f32 %v6383
        %vm6390 = vmor %vm6388, %vm6389
        %v6391 = vsel %vm6390, %v6383, %v6387
        %v6392 = vand.u32 2147483647, %v6099
        %vm6393 = vcmp.eq.f32.partialorder %v6392, 8.507059e+37
        %v6394 = vand.u32 %v6099, 2147483648
        %v6395 = vor.u32 1.1754944e-38, %v6394
        %v6396 = vsel %vm6393, %v6395, %v6391
        %v6397 = vmul.f32 1.0, %v6396
        %v6398 = vrcp.pop %v6100
        %v6399 = vmul.f32 %v6100, %v6398
        %v6400 = vsub.f32 1.0, %v6399
        %v6401 = vmul.f32 %v6398, %v6400
        %v6402 = vadd.f32 %v6398, %v6401
        %vm6403 = vweird.f32 %v6100
        %vm6404 = vweird.f32 %v6398
        %vm6405 = vmor %vm6403, %vm6404
        %v6406 = vsel %vm6405, %v6398, %v6402
        %v6407 = vand.u32 2147483647, %v6100
        %vm6408 = vcmp.eq.f32.partialorder %v6407, 8.507059e+37
        %v6409 = vand.u32 %v6100, 2147483648
        %v6410 = vor.u32 1.1754944e-38, %v6409
        %v6411 = vsel %vm6408, %v6410, %v6406
        %v6412 = vmul.f32 1.0, %v6411
        %v6413 = vrcp.pop %v6101
        %v6414 = vmul.f32 %v6101, %v6413
        %v6415 = vsub.f32 1.0, %v6414
        %v6416 = vmul.f32 %v6413, %v6415
        %v6417 = vadd.f32 %v6413, %v6416
        %vm6418 = vweird.f32 %v6101
        %vm6419 = vweird.f32 %v6413
        %vm6420 = vmor %vm6418, %vm6419
        %v6421 = vsel %vm6420, %v6413, %v6417
        %v6422 = vand.u32 2147483647, %v6101
        %vm6423 = vcmp.eq.f32.partialorder %v6422, 8.507059e+37
        %v6424 = vand.u32 %v6101, 2147483648
        %v6425 = vor.u32 1.1754944e-38, %v6424
        %v6426 = vsel %vm6423, %v6425, %v6421
        %v6427 = vmul.f32 1.0, %v6426
        %v6428 = vrcp.pop %v6102
        %v6429 = vmul.f32 %v6102, %v6428
        %v6430 = vsub.f32 1.0, %v6429
        %v6431 = vmul.f32 %v6428, %v6430
        %v6432 = vadd.f32 %v6428, %v6431
        %vm6433 = vweird.f32 %v6102
        %vm6434 = vweird.f32 %v6428
        %vm6435 = vmor %vm6433, %vm6434
        %v6436 = vsel %vm6435, %v6428, %v6432
        %v6437 = vand.u32 2147483647, %v6102
        %vm6438 = vcmp.eq.f32.partialorder %v6437, 8.507059e+37
        %v6439 = vand.u32 %v6102, 2147483648
        %v6440 = vor.u32 1.1754944e-38, %v6439
        %v6441 = vsel %vm6438, %v6440, %v6436
        %v6442 = vmul.f32 1.0, %v6441
        %v6443 = vrcp.pop %v6103
        %v6444 = vmul.f32 %v6103, %v6443
        %v6445 = vsub.f32 1.0, %v6444
        %v6446 = vmul.f32 %v6443, %v6445
        %v6447 = vadd.f32 %v6443, %v6446
        %vm6448 = vweird.f32 %v6103
        %vm6449 = vweird.f32 %v6443
        %vm6450 = vmor %vm6448, %vm6449
        %v6451 = vsel %vm6450, %v6443, %v6447
        %v6452 = vand.u32 2147483647, %v6103
        %vm6453 = vcmp.eq.f32.partialorder %v6452, 8.507059e+37
        %v6454 = vand.u32 %v6103, 2147483648
        %v6455 = vor.u32 1.1754944e-38, %v6454
        %v6456 = vsel %vm6453, %v6455, %v6451
        %v6457 = vmul.f32 1.0, %v6456
        %v6458 = vrcp.pop %v6104
        %v6459 = vmul.f32 %v6104, %v6458
        %v6460 = vsub.f32 1.0, %v6459
        %v6461 = vmul.f32 %v6458, %v6460
        %v6462 = vadd.f32 %v6458, %v6461
        %vm6463 = vweird.f32 %v6104
        %vm6464 = vweird.f32 %v6458
        %vm6465 = vmor %vm6463, %vm6464
        %v6466 = vsel %vm6465, %v6458, %v6462
        %v6467 = vand.u32 2147483647, %v6104
        %vm6468 = vcmp.eq.f32.partialorder %v6467, 8.507059e+37
        %v6469 = vand.u32 %v6104, 2147483648
        %v6470 = vor.u32 1.1754944e-38, %v6469
        %v6471 = vsel %vm6468, %v6470, %v6466
        %v6472 = vmul.f32 1.0, %v6471
        %v6473 = vrcp.pop %v6105
        %v6474 = vmul.f32 %v6105, %v6473
        %v6475 = vsub.f32 1.0, %v6474
        %v6476 = vmul.f32 %v6473, %v6475
        %v6477 = vadd.f32 %v6473, %v6476
        %vm6478 = vweird.f32 %v6105
        %vm6479 = vweird.f32 %v6473
        %vm6480 = vmor %vm6478, %vm6479
        %v6481 = vsel %vm6480, %v6473, %v6477
        %v6482 = vand.u32 2147483647, %v6105
        %vm6483 = vcmp.eq.f32.partialorder %v6482, 8.507059e+37
        %v6484 = vand.u32 %v6105, 2147483648
        %v6485 = vor.u32 1.1754944e-38, %v6484
        %v6486 = vsel %vm6483, %v6485, %v6481
        %v6487 = vmul.f32 1.0, %v6486
        %v6488 = vrcp.pop %v6106
        %v6489 = vmul.f32 %v6106, %v6488
        %v6490 = vsub.f32 1.0, %v6489
        %v6491 = vmul.f32 %v6488, %v6490
        %v6492 = vadd.f32 %v6488, %v6491
        %vm6493 = vweird.f32 %v6106
        %vm6494 = vweird.f32 %v6488
        %vm6495 = vmor %vm6493, %vm6494
        %v6496 = vsel %vm6495, %v6488, %v6492
        %v6497 = vand.u32 2147483647, %v6106
        %vm6498 = vcmp.eq.f32.partialorder %v6497, 8.507059e+37
        %v6499 = vand.u32 %v6106, 2147483648
        %v6500 = vor.u32 1.1754944e-38, %v6499
        %v6501 = vsel %vm6498, %v6500, %v6496
        %v6502 = vmul.f32 1.0, %v6501
        %v6503 = vrcp.pop %v6107
        %v6504 = vmul.f32 %v6107, %v6503
        %v6505 = vsub.f32 1.0, %v6504
        %v6506 = vmul.f32 %v6503, %v6505
        %v6507 = vadd.f32 %v6503, %v6506
        %vm6508 = vweird.f32 %v6107
        %vm6509 = vweird.f32 %v6503
        %vm6510 = vmor %vm6508, %vm6509
        %v6511 = vsel %vm6510, %v6503, %v6507
        %v6512 = vand.u32 2147483647, %v6107
        %vm6513 = vcmp.eq.f32.partialorder %v6512, 8.507059e+37
        %v6514 = vand.u32 %v6107, 2147483648
        %v6515 = vor.u32 1.1754944e-38, %v6514
        %v6516 = vsel %vm6513, %v6515, %v6511
        %v6517 = vmul.f32 1.0, %v6516
        %v6518 = vrcp.pop %v6108
        %v6519 = vmul.f32 %v6108, %v6518
        %v6520 = vsub.f32 1.0, %v6519
        %v6521 = vmul.f32 %v6518, %v6520
        %v6522 = vadd.f32 %v6518, %v6521
        %vm6523 = vweird.f32 %v6108
        %vm6524 = vweird.f32 %v6518
        %vm6525 = vmor %vm6523, %vm6524
        %v6526 = vsel %vm6525, %v6518, %v6522
        %v6527 = vand.u32 2147483647, %v6108
        %vm6528 = vcmp.eq.f32.partialorder %v6527, 8.507059e+37
        %v6529 = vand.u32 %v6108, 2147483648
        %v6530 = vor.u32 1.1754944e-38, %v6529
        %v6531 = vsel %vm6528, %v6530, %v6526
        %v6532 = vmul.f32 1.0, %v6531
        %v6533 = vrcp.pop %v6109
        %v6534 = vmul.f32 %v6109, %v6533
        %v6535 = vsub.f32 1.0, %v6534
        %v6536 = vmul.f32 %v6533, %v6535
        %v6537 = vadd.f32 %v6533, %v6536
        %vm6538 = vweird.f32 %v6109
        %vm6539 = vweird.f32 %v6533
        %vm6540 = vmor %vm6538, %vm6539
        %v6541 = vsel %vm6540, %v6533, %v6537
        %v6542 = vand.u32 2147483647, %v6109
        %vm6543 = vcmp.eq.f32.partialorder %v6542, 8.507059e+37
        %v6544 = vand.u32 %v6109, 2147483648
        %v6545 = vor.u32 1.1754944e-38, %v6544
        %v6546 = vsel %vm6543, %v6545, %v6541
        %v6547 = vmul.f32 1.0, %v6546
        %v6548 = vrcp.pop %v6110
        %v6549 = vmul.f32 %v6110, %v6548
        %v6550 = vsub.f32 1.0, %v6549
        %v6551 = vmul.f32 %v6548, %v6550
        %v6552 = vadd.f32 %v6548, %v6551
        %vm6553 = vweird.f32 %v6110
        %vm6554 = vweird.f32 %v6548
        %vm6555 = vmor %vm6553, %vm6554
        %v6556 = vsel %vm6555, %v6548, %v6552
        %v6557 = vand.u32 2147483647, %v6110
        %vm6558 = vcmp.eq.f32.partialorder %v6557, 8.507059e+37
        %v6559 = vand.u32 %v6110, 2147483648
        %v6560 = vor.u32 1.1754944e-38, %v6559
        %v6561 = vsel %vm6558, %v6560, %v6556
        %v6562 = vmul.f32 1.0, %v6561
        %v6563 = vrcp.pop %v6111
        %v6564 = vmul.f32 %v6111, %v6563
        %v6565 = vsub.f32 1.0, %v6564
        %v6566 = vmul.f32 %v6563, %v6565
        %v6567 = vadd.f32 %v6563, %v6566
        %vm6568 = vweird.f32 %v6111
        %vm6569 = vweird.f32 %v6563
        %vm6570 = vmor %vm6568, %vm6569
        %v6571 = vsel %vm6570, %v6563, %v6567
        %v6572 = vand.u32 2147483647, %v6111
        %vm6573 = vcmp.eq.f32.partialorder %v6572, 8.507059e+37
        %v6574 = vand.u32 %v6111, 2147483648
        %v6575 = vor.u32 1.1754944e-38, %v6574
        %v6576 = vsel %vm6573, %v6575, %v6571
        %v6577 = vmul.f32 1.0, %v6576
        %v6578 = vrcp.pop %v6112
        %v6579 = vmul.f32 %v6112, %v6578
        %v6580 = vsub.f32 1.0, %v6579
        %v6581 = vmul.f32 %v6578, %v6580
        %v6582 = vadd.f32 %v6578, %v6581
        %vm6583 = vweird.f32 %v6112
        %vm6584 = vweird.f32 %v6578
        %vm6585 = vmor %vm6583, %vm6584
        %v6586 = vsel %vm6585, %v6578, %v6582
        %v6587 = vand.u32 2147483647, %v6112
        %vm6588 = vcmp.eq.f32.partialorder %v6587, 8.507059e+37
        %v6589 = vand.u32 %v6112, 2147483648
        %v6590 = vor.u32 1.1754944e-38, %v6589
        %v6591 = vsel %vm6588, %v6590, %v6586
        %v6592 = vmul.f32 1.0, %v6591
        %v6593 = vmul.f32 %v5906, %v6127
        %v6594 = vmul.f32 %v5908, %v6142
        %v6595 = vmul.f32 %v5911, %v6157
        %v6596 = vmul.f32 %v5913, %v6172
        %v6597 = vmul.f32 %v5916, %v6187
        %v6598 = vmul.f32 %v5918, %v6202
        %v6599 = vmul.f32 %v5921, %v6217
        %v6600 = vmul.f32 %v5923, %v6232
        %v6601 = vmul.f32 %v5926, %v6247
        %v6602 = vmul.f32 %v5928, %v6262
        %v6603 = vmul.f32 %v5931, %v6277
        %v6604 = vmul.f32 %v5933, %v6292
        %v6605 = vmul.f32 %v5936, %v6307
        %v6606 = vmul.f32 %v5938, %v6322
        %v6607 = vmul.f32 %v5941, %v6337
        %v6608 = vmul.f32 %v5943, %v6352
        %v6609 = vmul.f32 %v5946, %v6367
        %v6610 = vmul.f32 %v5948, %v6382
        %v6611 = vmul.f32 %v5951, %v6397
        %v6612 = vmul.f32 %v5953, %v6412
        %v6613 = vmul.f32 %v5956, %v6427
        %v6614 = vmul.f32 %v5958, %v6442
        %v6615 = vmul.f32 %v5961, %v6457
        %v6616 = vmul.f32 %v5963, %v6472
        %v6617 = vmul.f32 %v5966, %v6487
        %v6618 = vmul.f32 %v5968, %v6502
        %v6619 = vmul.f32 %v5971, %v6517
        %v6620 = vmul.f32 %v5973, %v6532
        %v6621 = vmul.f32 %v5976, %v6547
        %v6622 = vmul.f32 %v5978, %v6562
        %v6623 = vmul.f32 %v5981, %v6577
        %v6624 = vmul.f32 %v5983, %v6592
        %6625 = vst [vmem:[%s325] sm:$0xff] %v6593
        %6626 = vst [vmem:[%s325 + $0x8] sm:$0xff] %v6594
        %6627 = vst [vmem:[%s325 + $0x10] sm:$0xff] %v6595
        %6628 = vst [vmem:[%s325 + $0x18] sm:$0xff] %v6596
        %6629 = vst [vmem:[%s325 + $0x20] sm:$0xff] %v6597
        %6630 = vst [vmem:[%s325 + $0x28] sm:$0xff] %v6598
        %6631 = vst [vmem:[%s325 + $0x30] sm:$0xff] %v6599
        %6632 = vst [vmem:[%s325 + $0x38] sm:$0xff] %v6600
        %6633 = vst [vmem:[%s325 + $0x40] sm:$0xff] %v6601
        %6634 = vst [vmem:[%s325 + $0x48] sm:$0xff] %v6602
        %6635 = vst [vmem:[%s325 + $0x50] sm:$0xff] %v6603
        %6636 = vst [vmem:[%s325 + $0x58] sm:$0xff] %v6604
        %6637 = vst [vmem:[%s325 + $0x60] sm:$0xff] %v6605
        %6638 = vst [vmem:[%s325 + $0x68] sm:$0xff] %v6606
        %6639 = vst [vmem:[%s325 + $0x70] sm:$0xff] %v6607
        %6640 = vst [vmem:[%s325 + $0x78] sm:$0xff] %v6608
        %6641 = vst [vmem:[%s325 + $0x80] sm:$0xff] %v6609
        %6642 = vst [vmem:[%s325 + $0x88] sm:$0xff] %v6610
        %6643 = vst [vmem:[%s325 + $0x90] sm:$0xff] %v6611
        %6644 = vst [vmem:[%s325 + $0x98] sm:$0xff] %v6612
        %6645 = vst [vmem:[%s325 + $0xa0] sm:$0xff] %v6613
        %6646 = vst [vmem:[%s325 + $0xa8] sm:$0xff] %v6614
        %6647 = vst [vmem:[%s325 + $0xb0] sm:$0xff] %v6615
        %6648 = vst [vmem:[%s325 + $0xb8] sm:$0xff] %v6616
        %6649 = vst [vmem:[%s325 + $0xc0] sm:$0xff] %v6617
        %6650 = vst [vmem:[%s325 + $0xc8] sm:$0xff] %v6618
        %6651 = vst [vmem:[%s325 + $0xd0] sm:$0xff] %v6619
        %6652 = vst [vmem:[%s325 + $0xd8] sm:$0xff] %v6620
        %6653 = vst [vmem:[%s325 + $0xe0] sm:$0xff] %v6621
        %6654 = vst [vmem:[%s325 + $0xe8] sm:$0xff] %v6622
        %6655 = vst [vmem:[%s325 + $0xf0] sm:$0xff] %v6623
        %6656 = vst [vmem:[%s325 + $0xf8] sm:$0xff] %v6624
        %s6657 = sand.u32 %s225, 1
        %s6658 = scalar_lea.sflag [#allocation5], %s6657
        %s6659 = sand.u32 %s225, 1
        %s6660 = smul.addr %s6659, 256
        %s6661 = scalar_lea.vmem [#allocation4], %s6660
        // Predicated region
        $region57: #{tpu_custom_call.1} parent=55 // pred_check
          %p6662 = pneg %p235
        $region58: #{tpu_custom_call.1} parent=55 // pred_check_branch
          %6664 = sbr.rel (%p6662) target = $region60
        $region59: #{tpu_custom_call.1} parent=55 // pred_region
          %6666 = vsyncadd %s6658, 0
          %s6667 = smul.addr %s23, 32
          %s6668 = smul.addr %s6667, 8
          %s6669 = scalar_lea.hbm %s9, %s6668
          %s6670 = sshll.u32 %s6661, 4
          %s6671 = int_to_ptr.vmem [resolvable:$true] %s6670
          %s6672 = sshll.u32 %s6669, 4
          %s6673 = int_to_ptr.hbm [resolvable:$true] %s6672
          %6678 = dma.vmem_to_hbm [thread:$0]  %s6671, 4096, %s6673, %s6658, 128, 128, 8
        $region60: #{tpu_custom_call.1} parent=55 // pred_fallthru
          _
      $region56: #{tpu_custom_call.1} parent=5 // pred_fallthru
        _
      %p6679 = scmp.le.s32.totalorder 2, %s18
      // Predicated region
      $region61: #{tpu_custom_call.1} parent=5 // pred_check
        %p6680 = pneg %p6679
      $region62: #{tpu_custom_call.1} parent=5 // pred_check_branch
        %6682 = sbr.rel (%p6680) target = $region64
      $region63: #{tpu_custom_call.1} parent=5 // pred_region
        %s6683 = ssub.s32 %s18, 2
        // Predicated region
        $region65: #{tpu_custom_call.1} parent=63 // pred_check
          %p6684 = pneg %p241
        $region66: #{tpu_custom_call.1} parent=63 // pred_check_branch
          %6686 = sbr.rel (%p6684) target = $region68
        $region67: #{tpu_custom_call.1} parent=63 // pred_region
          %s6687 = sand.u32 %s226, 1
          %s6688 = scalar_lea.sflag [#allocation5], %s6687
          %s6689 = sand.u32 %s226, 1
          %s6690 = smul.addr %s6689, 256
          %s6691 = scalar_lea.vmem [#allocation4], %s6690
          %6693 = dma.done %s6688, 4096
        $region68: #{tpu_custom_call.1} parent=63 // pred_fallthru
          _
      $region64: #{tpu_custom_call.1} parent=5 // pred_fallthru
        _
    $region6: #{tpu_custom_call.1} parent=1 // loop_footer
      %s22 = sadd.s32 1, %s18
    $region7: #{tpu_custom_call.1} parent=1 // loop_footer_branch
      %17 = sbr.rel target = $region3
    $region8: #{tpu_custom_call.1} parent=1 // loop_exit
      _
    %6694 = vsyncpa [#allocation5], 1
    %s6695 = scalar_lea.sflag [#allocation5], 1
    %6696 = vsyncpa %s6695, 1

</llo_original>
